<compile_context>
chip_gen: v5e
topology: v5e:2x2
jax: 0.10.0
libtpu: 0.0.40
codegen_flags: <defaults>
</compile_context>

<pallas_src>
import jax
import jax.numpy as jnp
from jax import lax
from jax.experimental import pallas as pl
from jax.experimental.pallas import tpu as pltpu

_K = 7
_P = _K // 2          # 3
_C1 = 0.01 ** 2
_C2 = 0.03 ** 2


def _ssim_kernel(x_ref, y_ref, o_ref, pad_ref):
    # x_ref / y_ref : (Bt, H, W)        unpadded input planes (VMEM)
    # o_ref         : (Bt, H, W)        SSIM loss planes
    # pad_ref       : (5*Bt, H+6, W+6)  f32 scratch: reflection-padded stack
    #                 [x, y, x*x, y*y, x*y].
    Bt, H, W = o_ref.shape
    Hp, Wp = H + 2 * _P, W + 2 * _P

    x = x_ref[...].astype(jnp.float32)
    y = y_ref[...].astype(jnp.float32)

    # ---- fused ReflectionPad2d(3) ----
    # Centre: write each quantity directly (no stacked concatenate copy).
    quantities = (x, y, x * x, y * y, x * y)
    for i, q in enumerate(quantities):
        pad_ref[i * Bt:(i + 1) * Bt, _P:_P + H, _P:_P + W] = q

    # Top / bottom reflection rows (single-sublane, full-width copies),
    # batched over the whole 5*Bt stack.
    for d in range(1, _P + 1):                                   # d = 1, 2, 3
        pad_ref[:, _P - d:_P - d + 1, _P:_P + W] = (
            pad_ref[:, _P + d:_P + d + 1, _P:_P + W])
        pad_ref[:, _P + H - 1 + d:_P + H + d, _P:_P + W] = (
            pad_ref[:, _P + H - 1 - d:_P + H - d, _P:_P + W])

    # Left / right reflection columns.  Read the two 3-wide row-padded strips
    # once (instead of the previous full-slab misaligned read-back) so the
    # corner halo reflects in both axes, then scatter as narrow stores.
    left_src = pad_ref[:, :, _P + 1:_P + 1 + _P]          # row-padded cols 1..3
    right_src = pad_ref[:, :, _P + W - 1 - _P:_P + W - 1]  # cols W-4..W-2
    for d in range(1, _P + 1):
        pad_ref[:, :, _P - d:_P - d + 1] = left_src[:, :, d - 1:d]
        pad_ref[:, :, _P + W - 1 + d:_P + W + d] = (
            right_src[:, :, _P - d:_P - d + 1])

    a = pad_ref[...]                                       # (5Bt, Hp, Wp) f32

    # ---- separable 7-tap box sum, log-doubling: 4 adds per axis ----
    # vertical (sublane) pass
    s1 = a[:, 0:Hp - 1] + a[:, 1:Hp]                       # 2-tap
    s2 = s1[:, 0:Hp - 3] + s1[:, 2:Hp - 1]                 # 4-tap
    v = s2[:, 0:H] + s1[:, 4:4 + H] + a[:, 6:6 + H]        # 7-tap (5Bt,H,Wp)
    # horizontal (lane) pass
    t1 = v[:, :, 0:Wp - 1] + v[:, :, 1:Wp]
    t2 = t1[:, :, 0:Wp - 3] + t1[:, :, 2:Wp - 1]
    pooled = (t2[:, :, 0:W] + t1[:, :, 4:4 + W] + v[:, :, 6:6 + W]) * (
        1.0 / (_K * _K))                                    # (5Bt, H, W)

    mu_x = pooled[0 * Bt:1 * Bt]
    mu_y = pooled[1 * Bt:2 * Bt]
    sigma_x = pooled[2 * Bt:3 * Bt] - mu_x * mu_x
    sigma_y = pooled[3 * Bt:4 * Bt] - mu_y * mu_y
    sigma_xy = pooled[4 * Bt:5 * Bt] - mu_x * mu_y

    ssim_n = (2.0 * mu_x * mu_y + _C1) * (2.0 * sigma_xy + _C2)
    ssim_d = (mu_x * mu_x + mu_y * mu_y + _C1) * (sigma_x + sigma_y + _C2)
    # EUP approximate reciprocal (~2^-12 rel. error) refined with one Newton
    # step on the VPU -> ~1e-7 relative, well inside the 5e-5 tolerance.
    inv_d = pl.reciprocal(ssim_d, approx=True)
    inv_d = inv_d * (2.0 - ssim_d * inv_d)
    out = jnp.clip((1.0 - ssim_n * inv_d) * 0.5, 0.0, 1.0)
    o_ref[...] = out.astype(o_ref.dtype)


def _round_up(n, m):
    return -(-n // m) * m


def _vmem_capacity_bytes():
    try:
        return int(pltpu.get_tpu_info().vmem_capacity_bytes)
    except Exception:
        return 64 * 1024 * 1024            # conservative (v7x-sized) fallback


def _num_tensorcores():
    try:
        kind = jax.devices()[0].device_kind.lower()
    except Exception:
        return 1
    return 2 if ("v7" in kind or "7x" in kind) else 1


def _footprint_bytes(bt, H, W, in_isz, out_isz):
    """Per-grid-step VMEM estimate: (8,128)-padded shapes, the padded f32
    scratch slab, the big live temporaries of the two pooling passes, and the
    double-buffered input/output blocks."""
    Hc, Wc = _round_up(H, 8), _round_up(W, 128)
    Hp, Wp = _round_up(H + 2 * _P, 8), _round_up(W + 2 * _P, 128)
    slab_pad = 5 * bt * Hp * Wp * 4        # padded-size f32 slab
    slab_ctr = 5 * bt * Hc * Wc * 4        # centre-size f32 slab
    scratch = slab_pad
    temps = 3 * slab_pad + 3 * slab_ctr    # a/s1/s2 + v/t1/pooled (spill-backed)
    io = 2 * (2 * bt * Hc * Wc * in_isz) + 2 * (bt * Hc * Wc * out_isz)
    return scratch + temps + io


def _pick_block_batch(B, H, W, in_isz, out_isz, vmem_cap, n_cores):
    budget = vmem_cap // 2
    divs = [d for d in range(1, B + 1) if B % d == 0]
    fitting = [d for d in divs if _footprint_bytes(d, H, W, in_isz, out_isz) <= budget]
    if not fitting:
        # Even a single plane exceeds the budget.
        # TODO(synk): tile the H axis with a 6-row halo for very large planes
        # (1080p-class) so the padded working set fits v7x's 64 MiB VMEM.
        return 1
    if n_cores > 1:
        # Dual-TensorCore (v7x): prefer an even number of grid steps so both
        # cores get equal work, then the largest tile that still fits.
        even = [d for d in fitting if (B // d) >= n_cores and (B // d) % n_cores == 0]
        atleast = [d for d in fitting if (B // d) >= n_cores]
        cand = even or atleast or fitting
    else:
        # Single TensorCore (v5e/v6e): extra grid steps are pure overhead,
        # take the single largest fitting tile.
        cand = fitting
    return max(cand)


def ssim_pallas(x, y):
    """x, y: (N, C, H, W) -> (N, C, H, W) SSIM loss map (matches torch SSIM)."""
    assert x.shape == y.shape and x.ndim == 4
    N, C, H, W = x.shape
    assert H > _P and W > _P, "ReflectionPad2d(3) requires H, W >= 4"
    B = N * C
    xb = x.reshape(B, H, W)        # free reshape, no transpose
    yb = y.reshape(B, H, W)

    vmem_cap = _vmem_capacity_bytes()
    n_cores = _num_tensorcores()
    in_isz = jnp.dtype(x.dtype).itemsize      # bf16 inputs halve HBM traffic
    out_isz = in_isz
    Bt = _pick_block_batch(B, H, W, in_isz, out_isz, vmem_cap, n_cores)
    Hp, Wp = H + 2 * _P, W + 2 * _P

    footprint = _footprint_bytes(Bt, H, W, in_isz, out_isz)
    vmem_limit = int(min(vmem_cap * 7 // 8,
                         max(32 * 1024 * 1024, footprint * 5 // 4)))

    cost = pl.CostEstimate(
        flops=70 * B * H * W,
        transcendentals=B * H * W,                 # one approx reciprocal / pixel
        bytes_accessed=B * H * W * (2 * in_isz + out_isz),
    )

    # TODO(synk): for W < 128 the lane dimension is only partially used; a
    # lane-dense repack (fold rows/planes into the last dim) would avoid
    # masked partial stores on small feature maps.
    out = pl.pallas_call(
        _ssim_kernel,
        out_shape=jax.ShapeDtypeStruct((B, H, W), x.dtype),
        grid=(B // Bt,),
        in_specs=[
            pl.BlockSpec((Bt, H, W), lambda b: (b, 0, 0)),
            pl.BlockSpec((Bt, H, W), lambda b: (b, 0, 0)),
        ],
        out_specs=pl.BlockSpec((Bt, H, W), lambda b: (b, 0, 0)),
        scratch_shapes=[pltpu.VMEM((5 * Bt, Hp, Wp), jnp.float32)],
        compiler_params=pltpu.CompilerParams(
            dimension_semantics=("parallel",),
            vmem_limit_bytes=vmem_limit,
        ),
        cost_estimate=cost,
    )(xb, yb)
    return out.reshape(N, C, H, W)


def ssim_ref(x, y):
    """Pure-JAX reference mirroring the PyTorch module."""
    p = _P
    xp = jnp.pad(x, ((0, 0), (0, 0), (p, p), (p, p)), mode="reflect")
    yp = jnp.pad(y, ((0, 0), (0, 0), (p, p), (p, p)), mode="reflect")

    def pool(a):
        s = lax.reduce_window(a, 0.0, lax.add,
                              (1, 1, _K, _K), (1, 1, 1, 1), "VALID")
        return s / (_K * _K)

    mu_x = pool(xp)
    mu_y = pool(yp)
    sigma_x = pool(xp * xp) - mu_x * mu_x
    sigma_y = pool(yp * yp) - mu_y * mu_y
    sigma_xy = pool(xp * yp) - mu_x * mu_y
    n = (2 * mu_x * mu_y + _C1) * (2 * sigma_xy + _C2)
    d = (mu_x ** 2 + mu_y ** 2 + _C1) * (sigma_x + sigma_y + _C2)
    return jnp.clip((1 - n / d) / 2, 0.0, 1.0)


if __name__ == "__main__":
    key = jax.random.PRNGKey(0)
    kx, ky = jax.random.split(key)
    N, C, H, W = 2, 4, 16, 16
    x = jax.random.uniform(kx, (N, C, H, W), dtype=jnp.float32)
    y = jax.random.uniform(ky, (N, C, H, W), dtype=jnp.float32)

    out = jax.block_until_ready(ssim_pallas(x, y))
    ref = jax.block_until_ready(ssim_ref(x, y))

    assert out.shape == (N, C, H, W)
    assert jnp.max(jnp.abs(out - ref)) < 5e-5
    print("KERNEL_OK")
</pallas_src>

<mosaic_0001>
module attributes {stable_mosaic.version = 11 : i64} {
  func.func @_ssim_kernel(%arg0: i32, %arg1: memref<8x16x16xf32, #tpu.memory_space<vmem>>, %arg2: memref<8x16x16xf32, #tpu.memory_space<vmem>>, %arg3: memref<8x16x16xf32, #tpu.memory_space<vmem>>, %arg4: memref<40x22x22xf32, #tpu.memory_space<vmem>>) attributes {dimension_semantics = [#tpu.dimension_semantics<parallel>], iteration_bounds = array<i64: 1>, scalar_prefetch = 0 : i64, scratch_operands = 1 : i64, tpu.core_type = #tpu.core_type<tc>, window_params = [{transform_indices = @transform_0, window_bounds = array<i64: 8, 16, 16>}, {transform_indices = @transform_1, window_bounds = array<i64: 8, 16, 16>}, {transform_indices = @transform_2, window_bounds = array<i64: 8, 16, 16>}]} {
    %c0 = arith.constant 0 : index
    %c0_0 = arith.constant 0 : index
    %c0_1 = arith.constant 0 : index
    %0 = vector.load %arg1[%c0, %c0_0, %c0_1] : memref<8x16x16xf32, #tpu.memory_space<vmem>>, vector<8x16x16xf32>
    %c0_2 = arith.constant 0 : index
    %c0_3 = arith.constant 0 : index
    %c0_4 = arith.constant 0 : index
    %1 = vector.load %arg2[%c0_2, %c0_3, %c0_4] : memref<8x16x16xf32, #tpu.memory_space<vmem>>, vector<8x16x16xf32>
    %2 = arith.mulf %0, %0 : vector<8x16x16xf32>
    %3 = arith.mulf %1, %1 : vector<8x16x16xf32>
    %4 = arith.mulf %0, %1 : vector<8x16x16xf32>
    %c0_5 = arith.constant 0 : index
    %c3 = arith.constant 3 : index
    %c3_6 = arith.constant 3 : index
    %5 = vector.load %arg4[%c0_5, %c3, %c3_6] : memref<40x22x22xf32, #tpu.memory_space<vmem>>, vector<8x16x16xf32>
    tpu.vector_store %arg4[%c0_5, %c3, %c3_6], %0 {strides = array<i32>} : memref<40x22x22xf32, #tpu.memory_space<vmem>>, vector<8x16x16xf32>,
    %c8 = arith.constant 8 : index
    %c3_7 = arith.constant 3 : index
    %c3_8 = arith.constant 3 : index
    %6 = vector.load %arg4[%c8, %c3_7, %c3_8] : memref<40x22x22xf32, #tpu.memory_space<vmem>>, vector<8x16x16xf32>
    tpu.vector_store %arg4[%c8, %c3_7, %c3_8], %1 {strides = array<i32>} : memref<40x22x22xf32, #tpu.memory_space<vmem>>, vector<8x16x16xf32>,
    %c16 = arith.constant 16 : index
    %c3_9 = arith.constant 3 : index
    %c3_10 = arith.constant 3 : index
    %7 = vector.load %arg4[%c16, %c3_9, %c3_10] : memref<40x22x22xf32, #tpu.memory_space<vmem>>, vector<8x16x16xf32>
    tpu.vector_store %arg4[%c16, %c3_9, %c3_10], %2 {strides = array<i32>} : memref<40x22x22xf32, #tpu.memory_space<vmem>>, vector<8x16x16xf32>,
    %c24 = arith.constant 24 : index
    %c3_11 = arith.constant 3 : index
    %c3_12 = arith.constant 3 : index
    %8 = vector.load %arg4[%c24, %c3_11, %c3_12] : memref<40x22x22xf32, #tpu.memory_space<vmem>>, vector<8x16x16xf32>
    tpu.vector_store %arg4[%c24, %c3_11, %c3_12], %3 {strides = array<i32>} : memref<40x22x22xf32, #tpu.memory_space<vmem>>, vector<8x16x16xf32>,
    %c32 = arith.constant 32 : index
    %c3_13 = arith.constant 3 : index
    %c3_14 = arith.constant 3 : index
    %9 = vector.load %arg4[%c32, %c3_13, %c3_14] : memref<40x22x22xf32, #tpu.memory_space<vmem>>, vector<8x16x16xf32>
    tpu.vector_store %arg4[%c32, %c3_13, %c3_14], %4 {strides = array<i32>} : memref<40x22x22xf32, #tpu.memory_space<vmem>>, vector<8x16x16xf32>,
    %c0_15 = arith.constant 0 : index
    %c4 = arith.constant 4 : index
    %c3_16 = arith.constant 3 : index
    %10 = vector.load %arg4[%c0_15, %c4, %c3_16] : memref<40x22x22xf32, #tpu.memory_space<vmem>>, vector<40x1x16xf32>
    %c0_17 = arith.constant 0 : index
    %c2 = arith.constant 2 : index
    %c3_18 = arith.constant 3 : index
    %11 = vector.load %arg4[%c0_17, %c2, %c3_18] : memref<40x22x22xf32, #tpu.memory_space<vmem>>, vector<40x1x16xf32>
    tpu.vector_store %arg4[%c0_17, %c2, %c3_18], %10 {strides = array<i32>} : memref<40x22x22xf32, #tpu.memory_space<vmem>>, vector<40x1x16xf32>,
    %c0_19 = arith.constant 0 : index
    %c17 = arith.constant 17 : index
    %c3_20 = arith.constant 3 : index
    %12 = vector.load %arg4[%c0_19, %c17, %c3_20] : memref<40x22x22xf32, #tpu.memory_space<vmem>>, vector<40x1x16xf32>
    %c0_21 = arith.constant 0 : index
    %c19 = arith.constant 19 : index
    %c3_22 = arith.constant 3 : index
    %13 = vector.load %arg4[%c0_21, %c19, %c3_22] : memref<40x22x22xf32, #tpu.memory_space<vmem>>, vector<40x1x16xf32>
    tpu.vector_store %arg4[%c0_21, %c19, %c3_22], %12 {strides = array<i32>} : memref<40x22x22xf32, #tpu.memory_space<vmem>>, vector<40x1x16xf32>,
    %c0_23 = arith.constant 0 : index
    %c5 = arith.constant 5 : index
    %c3_24 = arith.constant 3 : index
    %14 = vector.load %arg4[%c0_23, %c5, %c3_24] : memref<40x22x22xf32, #tpu.memory_space<vmem>>, vector<40x1x16xf32>
    %c0_25 = arith.constant 0 : index
    %c1 = arith.constant 1 : index
    %c3_26 = arith.constant 3 : index
    %15 = vector.load %arg4[%c0_25, %c1, %c3_26] : memref<40x22x22xf32, #tpu.memory_space<vmem>>, vector<40x1x16xf32>
    tpu.vector_store %arg4[%c0_25, %c1, %c3_26], %14 {strides = array<i32>} : memref<40x22x22xf32, #tpu.memory_space<vmem>>, vector<40x1x16xf32>,
    %c0_27 = arith.constant 0 : index
    %c16_28 = arith.constant 16 : index
    %c3_29 = arith.constant 3 : index
    %16 = vector.load %arg4[%c0_27, %c16_28, %c3_29] : memref<40x22x22xf32, #tpu.memory_space<vmem>>, vector<40x1x16xf32>
    %c0_30 = arith.constant 0 : index
    %c20 = arith.constant 20 : index
    %c3_31 = arith.constant 3 : index
    %17 = vector.load %arg4[%c0_30, %c20, %c3_31] : memref<40x22x22xf32, #tpu.memory_space<vmem>>, vector<40x1x16xf32>
    tpu.vector_store %arg4[%c0_30, %c20, %c3_31], %16 {strides = array<i32>} : memref<40x22x22xf32, #tpu.memory_space<vmem>>, vector<40x1x16xf32>,
    %c0_32 = arith.constant 0 : index
    %c6 = arith.constant 6 : index
    %c3_33 = arith.constant 3 : index
    %18 = vector.load %arg4[%c0_32, %c6, %c3_33] : memref<40x22x22xf32, #tpu.memory_space<vmem>>, vector<40x1x16xf32>
    %c0_34 = arith.constant 0 : index
    %c0_35 = arith.constant 0 : index
    %c3_36 = arith.constant 3 : index
    %19 = vector.load %arg4[%c0_34, %c0_35, %c3_36] : memref<40x22x22xf32, #tpu.memory_space<vmem>>, vector<40x1x16xf32>
    tpu.vector_store %arg4[%c0_34, %c0_35, %c3_36], %18 {strides = array<i32>} : memref<40x22x22xf32, #tpu.memory_space<vmem>>, vector<40x1x16xf32>,
    %c0_37 = arith.constant 0 : index
    %c15 = arith.constant 15 : index
    %c3_38 = arith.constant 3 : index
    %20 = vector.load %arg4[%c0_37, %c15, %c3_38] : memref<40x22x22xf32, #tpu.memory_space<vmem>>, vector<40x1x16xf32>
    %c0_39 = arith.constant 0 : index
    %c21 = arith.constant 21 : index
    %c3_40 = arith.constant 3 : index
    %21 = vector.load %arg4[%c0_39, %c21, %c3_40] : memref<40x22x22xf32, #tpu.memory_space<vmem>>, vector<40x1x16xf32>
    tpu.vector_store %arg4[%c0_39, %c21, %c3_40], %20 {strides = array<i32>} : memref<40x22x22xf32, #tpu.memory_space<vmem>>, vector<40x1x16xf32>,
    %c0_41 = arith.constant 0 : index
    %c0_42 = arith.constant 0 : index
    %c4_43 = arith.constant 4 : index
    %22 = vector.load %arg4[%c0_41, %c0_42, %c4_43] : memref<40x22x22xf32, #tpu.memory_space<vmem>>, vector<40x22x3xf32>
    %c0_44 = arith.constant 0 : index
    %c0_45 = arith.constant 0 : index
    %c15_46 = arith.constant 15 : index
    %23 = vector.load %arg4[%c0_44, %c0_45, %c15_46] : memref<40x22x22xf32, #tpu.memory_space<vmem>>, vector<40x22x3xf32>
    %24 = vector.extract_strided_slice %22 {offsets = [0, 0, 0], sizes = [40, 22, 1], strides = [1, 1, 1]} : vector<40x22x3xf32> to vector<40x22x1xf32>
    %c0_47 = arith.constant 0 : index
    %c0_48 = arith.constant 0 : index
    %c2_49 = arith.constant 2 : index
    %25 = vector.load %arg4[%c0_47, %c0_48, %c2_49] : memref<40x22x22xf32, #tpu.memory_space<vmem>>, vector<40x22x1xf32>
    tpu.vector_store %arg4[%c0_47, %c0_48, %c2_49], %24 {strides = array<i32>} : memref<40x22x22xf32, #tpu.memory_space<vmem>>, vector<40x22x1xf32>,
    %26 = vector.extract_strided_slice %23 {offsets = [0, 0, 2], sizes = [40, 22, 1], strides = [1, 1, 1]} : vector<40x22x3xf32> to vector<40x22x1xf32>
    %c0_50 = arith.constant 0 : index
    %c0_51 = arith.constant 0 : index
    %c19_52 = arith.constant 19 : index
    %27 = vector.load %arg4[%c0_50, %c0_51, %c19_52] : memref<40x22x22xf32, #tpu.memory_space<vmem>>, vector<40x22x1xf32>
    tpu.vector_store %arg4[%c0_50, %c0_51, %c19_52], %26 {strides = array<i32>} : memref<40x22x22xf32, #tpu.memory_space<vmem>>, vector<40x22x1xf32>,
    %28 = vector.extract_strided_slice %22 {offsets = [0, 0, 1], sizes = [40, 22, 1], strides = [1, 1, 1]} : vector<40x22x3xf32> to vector<40x22x1xf32>
    %c0_53 = arith.constant 0 : index
    %c0_54 = arith.constant 0 : index
    %c1_55 = arith.constant 1 : index
    %29 = vector.load %arg4[%c0_53, %c0_54, %c1_55] : memref<40x22x22xf32, #tpu.memory_space<vmem>>, vector<40x22x1xf32>
    tpu.vector_store %arg4[%c0_53, %c0_54, %c1_55], %28 {strides = array<i32>} : memref<40x22x22xf32, #tpu.memory_space<vmem>>, vector<40x22x1xf32>,
    %30 = vector.extract_strided_slice %23 {offsets = [0, 0, 1], sizes = [40, 22, 1], strides = [1, 1, 1]} : vector<40x22x3xf32> to vector<40x22x1xf32>
    %c0_56 = arith.constant 0 : index
    %c0_57 = arith.constant 0 : index
    %c20_58 = arith.constant 20 : index
    %31 = vector.load %arg4[%c0_56, %c0_57, %c20_58] : memref<40x22x22xf32, #tpu.memory_space<vmem>>, vector<40x22x1xf32>
    tpu.vector_store %arg4[%c0_56, %c0_57, %c20_58], %30 {strides = array<i32>} : memref<40x22x22xf32, #tpu.memory_space<vmem>>, vector<40x22x1xf32>,
    %32 = vector.extract_strided_slice %22 {offsets = [0, 0, 2], sizes = [40, 22, 1], strides = [1, 1, 1]} : vector<40x22x3xf32> to vector<40x22x1xf32>
    %c0_59 = arith.constant 0 : index
    %c0_60 = arith.constant 0 : index
    %c0_61 = arith.constant 0 : index
    %33 = vector.load %arg4[%c0_59, %c0_60, %c0_61] : memref<40x22x22xf32, #tpu.memory_space<vmem>>, vector<40x22x1xf32>
    tpu.vector_store %arg4[%c0_59, %c0_60, %c0_61], %32 {strides = array<i32>} : memref<40x22x22xf32, #tpu.memory_space<vmem>>, vector<40x22x1xf32>,
    %34 = vector.extract_strided_slice %23 {offsets = [0, 0, 0], sizes = [40, 22, 1], strides = [1, 1, 1]} : vector<40x22x3xf32> to vector<40x22x1xf32>
    %c0_62 = arith.constant 0 : index
    %c0_63 = arith.constant 0 : index
    %c21_64 = arith.constant 21 : index
    %35 = vector.load %arg4[%c0_62, %c0_63, %c21_64] : memref<40x22x22xf32, #tpu.memory_space<vmem>>, vector<40x22x1xf32>
    tpu.vector_store %arg4[%c0_62, %c0_63, %c21_64], %34 {strides = array<i32>} : memref<40x22x22xf32, #tpu.memory_space<vmem>>, vector<40x22x1xf32>,
    %c0_65 = arith.constant 0 : index
    %c0_66 = arith.constant 0 : index
    %c0_67 = arith.constant 0 : index
    %36 = vector.load %arg4[%c0_65, %c0_66, %c0_67] : memref<40x22x22xf32, #tpu.memory_space<vmem>>, vector<40x22x22xf32>
    %37 = vector.extract_strided_slice %36 {offsets = [0, 0, 0], sizes = [40, 21, 22], strides = [1, 1, 1]} : vector<40x22x22xf32> to vector<40x21x22xf32>
    %38 = vector.extract_strided_slice %36 {offsets = [0, 1, 0], sizes = [40, 21, 22], strides = [1, 1, 1]} : vector<40x22x22xf32> to vector<40x21x22xf32>
    %39 = arith.addf %37, %38 : vector<40x21x22xf32>
    %40 = vector.extract_strided_slice %39 {offsets = [0, 0, 0], sizes = [40, 19, 22], strides = [1, 1, 1]} : vector<40x21x22xf32> to vector<40x19x22xf32>
    %41 = vector.extract_strided_slice %39 {offsets = [0, 2, 0], sizes = [40, 19, 22], strides = [1, 1, 1]} : vector<40x21x22xf32> to vector<40x19x22xf32>
    %42 = arith.addf %40, %41 : vector<40x19x22xf32>
    %43 = vector.extract_strided_slice %42 {offsets = [0, 0, 0], sizes = [40, 16, 22], strides = [1, 1, 1]} : vector<40x19x22xf32> to vector<40x16x22xf32>
    %44 = vector.extract_strided_slice %39 {offsets = [0, 4, 0], sizes = [40, 16, 22], strides = [1, 1, 1]} : vector<40x21x22xf32> to vector<40x16x22xf32>
    %45 = arith.addf %43, %44 : vector<40x16x22xf32>
    %46 = vector.extract_strided_slice %36 {offsets = [0, 6, 0], sizes = [40, 16, 22], strides = [1, 1, 1]} : vector<40x22x22xf32> to vector<40x16x22xf32>
    %47 = arith.addf %45, %46 : vector<40x16x22xf32>
    %48 = vector.extract_strided_slice %47 {offsets = [0, 0, 0], sizes = [40, 16, 21], strides = [1, 1, 1]} : vector<40x16x22xf32> to vector<40x16x21xf32>
    %49 = vector.extract_strided_slice %47 {offsets = [0, 0, 1], sizes = [40, 16, 21], strides = [1, 1, 1]} : vector<40x16x22xf32> to vector<40x16x21xf32>
    %50 = arith.addf %48, %49 : vector<40x16x21xf32>
    %51 = vector.extract_strided_slice %50 {offsets = [0, 0, 0], sizes = [40, 16, 19], strides = [1, 1, 1]} : vector<40x16x21xf32> to vector<40x16x19xf32>
    %52 = vector.extract_strided_slice %50 {offsets = [0, 0, 2], sizes = [40, 16, 19], strides = [1, 1, 1]} : vector<40x16x21xf32> to vector<40x16x19xf32>
    %53 = arith.addf %51, %52 : vector<40x16x19xf32>
    %54 = vector.extract_strided_slice %53 {offsets = [0, 0, 0], sizes = [40, 16, 16], strides = [1, 1, 1]} : vector<40x16x19xf32> to vector<40x16x16xf32>
    %55 = vector.extract_strided_slice %50 {offsets = [0, 0, 4], sizes = [40, 16, 16], strides = [1, 1, 1]} : vector<40x16x21xf32> to vector<40x16x16xf32>
    %56 = arith.addf %54, %55 : vector<40x16x16xf32>
    %57 = vector.extract_strided_slice %47 {offsets = [0, 0, 6], sizes = [40, 16, 16], strides = [1, 1, 1]} : vector<40x16x22xf32> to vector<40x16x16xf32>
    %58 = arith.addf %56, %57 : vector<40x16x16xf32>
    %cst = arith.constant 0.0204081628 : f32
    %59 = vector.broadcast %cst : f32 to vector<40x16x16xf32>
    %60 = arith.mulf %58, %59 : vector<40x16x16xf32>
    %61 = vector.extract_strided_slice %60 {offsets = [0, 0, 0], sizes = [8, 16, 16], strides = [1, 1, 1]} : vector<40x16x16xf32> to vector<8x16x16xf32>
    %62 = vector.extract_strided_slice %60 {offsets = [8, 0, 0], sizes = [8, 16, 16], strides = [1, 1, 1]} : vector<40x16x16xf32> to vector<8x16x16xf32>
    %63 = vector.extract_strided_slice %60 {offsets = [16, 0, 0], sizes = [8, 16, 16], strides = [1, 1, 1]} : vector<40x16x16xf32> to vector<8x16x16xf32>
    %64 = arith.mulf %61, %61 : vector<8x16x16xf32>
    %65 = arith.subf %63, %64 : vector<8x16x16xf32>
    %66 = vector.extract_strided_slice %60 {offsets = [24, 0, 0], sizes = [8, 16, 16], strides = [1, 1, 1]} : vector<40x16x16xf32> to vector<8x16x16xf32>
    %67 = arith.mulf %62, %62 : vector<8x16x16xf32>
    %68 = arith.subf %66, %67 : vector<8x16x16xf32>
    %69 = vector.extract_strided_slice %60 {offsets = [32, 0, 0], sizes = [8, 16, 16], strides = [1, 1, 1]} : vector<40x16x16xf32> to vector<8x16x16xf32>
    %70 = arith.mulf %61, %62 : vector<8x16x16xf32>
    %71 = arith.subf %69, %70 : vector<8x16x16xf32>
    %cst_68 = arith.constant 2.000000e+00 : f32
    %72 = vector.broadcast %cst_68 : f32 to vector<8x16x16xf32>
    %73 = arith.mulf %72, %61 : vector<8x16x16xf32>
    %74 = arith.mulf %73, %62 : vector<8x16x16xf32>
    %cst_69 = arith.constant 9.99999974E-5 : f32
    %75 = vector.broadcast %cst_69 : f32 to vector<8x16x16xf32>
    %76 = arith.addf %74, %75 : vector<8x16x16xf32>
    %cst_70 = arith.constant 2.000000e+00 : f32
    %77 = vector.broadcast %cst_70 : f32 to vector<8x16x16xf32>
    %78 = arith.mulf %77, %71 : vector<8x16x16xf32>
    %cst_71 = arith.constant 8.99999984E-4 : f32
    %79 = vector.broadcast %cst_71 : f32 to vector<8x16x16xf32>
    %80 = arith.addf %78, %79 : vector<8x16x16xf32>
    %81 = arith.mulf %76, %80 : vector<8x16x16xf32>
    %82 = arith.mulf %61, %61 : vector<8x16x16xf32>
    %83 = arith.mulf %62, %62 : vector<8x16x16xf32>
    %84 = arith.addf %82, %83 : vector<8x16x16xf32>
    %cst_72 = arith.constant 9.99999974E-5 : f32
    %85 = vector.broadcast %cst_72 : f32 to vector<8x16x16xf32>
    %86 = arith.addf %84, %85 : vector<8x16x16xf32>
    %87 = arith.addf %65, %68 : vector<8x16x16xf32>
    %cst_73 = arith.constant 8.99999984E-4 : f32
    %88 = vector.broadcast %cst_73 : f32 to vector<8x16x16xf32>
    %89 = arith.addf %87, %88 : vector<8x16x16xf32>
    %90 = arith.mulf %86, %89 : vector<8x16x16xf32>
    %91 = tpu.reciprocal %90 {approx = true} : vector<8x16x16xf32> -> vector<8x16x16xf32>
    %92 = arith.mulf %90, %91 : vector<8x16x16xf32>
    %cst_74 = arith.constant 2.000000e+00 : f32
    %93 = vector.broadcast %cst_74 : f32 to vector<8x16x16xf32>
    %94 = arith.subf %93, %92 : vector<8x16x16xf32>
    %95 = arith.mulf %91, %94 : vector<8x16x16xf32>
    %96 = arith.mulf %81, %95 : vector<8x16x16xf32>
    %cst_75 = arith.constant 1.000000e+00 : f32
    %97 = vector.broadcast %cst_75 : f32 to vector<8x16x16xf32>
    %98 = arith.subf %97, %96 : vector<8x16x16xf32>
    %cst_76 = arith.constant 5.000000e-01 : f32
    %99 = vector.broadcast %cst_76 : f32 to vector<8x16x16xf32>
    %100 = arith.mulf %98, %99 : vector<8x16x16xf32>
    %cst_77 = arith.constant 0.000000e+00 : f32
    %cst_78 = arith.constant 1.000000e+00 : f32
    %101 = vector.broadcast %cst_77 : f32 to vector<8x16x16xf32>
    %102 = arith.maximumf %101, %100 : vector<8x16x16xf32>
    %103 = vector.broadcast %cst_78 : f32 to vector<8x16x16xf32>
    %104 = arith.minimumf %103, %102 : vector<8x16x16xf32>
    %c0_79 = arith.constant 0 : index
    %c0_80 = arith.constant 0 : index
    %c0_81 = arith.constant 0 : index
    %105 = vector.load %arg3[%c0_79, %c0_80, %c0_81] : memref<8x16x16xf32, #tpu.memory_space<vmem>>, vector<8x16x16xf32>
    tpu.vector_store %arg3[%c0_79, %c0_80, %c0_81], %104 {strides = array<i32>} : memref<8x16x16xf32, #tpu.memory_space<vmem>>, vector<8x16x16xf32>,
    return
  }
  func.func @transform_0(%arg0: i32) -> (i32, i32, i32) {
    %c0_i32 = arith.constant 0 : i32
    %c0_i32_0 = arith.constant 0 : i32
    %c0_i32_1 = arith.constant 0 : i32
    return %arg0, %c0_i32, %c0_i32_0 : i32, i32, i32
  }
  func.func @transform_1(%arg0: i32) -> (i32, i32, i32) {
    %c0_i32 = arith.constant 0 : i32
    %c0_i32_0 = arith.constant 0 : i32
    %c0_i32_1 = arith.constant 0 : i32
    return %arg0, %c0_i32, %c0_i32_0 : i32, i32, i32
  }
  func.func @transform_2(%arg0: i32) -> (i32, i32, i32) {
    %c0_i32 = arith.constant 0 : i32
    %c0_i32_0 = arith.constant 0 : i32
    %c0_i32_1 = arith.constant 0 : i32
    return %arg0, %c0_i32, %c0_i32_0 : i32, i32, i32
  }
}

</mosaic_0001>

<llo_original>
// kernel: tpu_custom_call.1
$region0: #{tpu_custom_call.1}
  #allocation0 [shape = 'u32[]', space=smem, size = 0x4, offset = 0x4, fixed_abs, tag = 'smem constant byte address 0x4 - core index']
  #allocation1 [shape = 'u32[72,128]{1,0:T(1,128)}', space=vmem, size = 0x9000, scoped, tag = 'internal scratch']
  #allocation2 [shape = 'f32[40,22,22]{2,1,0:T(8,128)}', space=vmem, size = 0x78000, scoped, tag = 'scratch operand']
  %s0 = inlined_call_operand.hbm [shape: f32[8,16,16], index: 0, kind: input, shape index: {}]
  %s1 = inlined_call_operand.hbm [shape: f32[8,16,16], index: 1, kind: input, shape index: {}]
  %s2 = inlined_call_operand.hbm [shape: f32[8,16,16], index: 2, kind: output, shape index: {}]
  %s3 = sld [smem:[#allocation0]]
  $region26: #{tpu_custom_call.1} parent=0
    _
  %s5 = ssub.s32 1, %s3
  %s6 = scalar_select 0, %s5, %s3
  $region1: #{tpu_custom_call.1} parent=0
    #allocation3 [shape = 'u8[65536]{0}', space=vmem, size = 0x10000, scoped, tag = 'input window, operand 0, single buffered']
    #allocation4 [shape = 's32[1]{0}', space=sflag, size = 0x4, scoped, tag = 'scoped memory for tpu_custom_call.1']
    #allocation5 [shape = 's32[1]{0}', space=sflag, size = 0x4, scoped, tag = 'scoped memory for tpu_custom_call.1']
    #allocation6 [shape = 'u8[65536]{0}', space=vmem, size = 0x10000, scoped, tag = 'input window, operand 1, single buffered']
    #allocation7 [shape = 's32[1]{0}', space=sflag, size = 0x4, scoped, tag = 'scoped memory for tpu_custom_call.1']
    #allocation8 [shape = 'u8[65536]{0}', space=vmem, size = 0x10000, scoped, tag = 'output window, operand 0, single buffered']
    %7 = vsyncpa [#allocation4], 0
    %8 = vsyncpa [#allocation7], 0
    %9 = vsyncpa [#allocation5], 0
    // Predicated region
    $region2: #{tpu_custom_call.1} parent=1 // pred_check
      _
    $region3: #{tpu_custom_call.1} parent=1 // pred_check_branch
      %11 = sbr.rel (0) target = $region5
    $region4: #{tpu_custom_call.1} parent=1 // pred_region
      %13 = vsyncadd [#allocation4], 0
      %s14 = sshll.u32 %s0, 4
      %s15 = int_to_ptr.hbm [resolvable:$true] %s14
      %s16 = sshll.u32 [#allocation3], 4
      %s17 = int_to_ptr.vmem [resolvable:$true] %s16
      %22 = dma.hbm_to_vmem [thread:$0]  %s15, 2048, %s17, [#allocation4], 128, 128, 8
    $region5: #{tpu_custom_call.1} parent=1 // pred_fallthru
      _
    // Predicated region
    $region6: #{tpu_custom_call.1} parent=1 // pred_check
      _
    $region7: #{tpu_custom_call.1} parent=1 // pred_check_branch
      %24 = sbr.rel (0) target = $region9
    $region8: #{tpu_custom_call.1} parent=1 // pred_region
      %26 = vsyncadd [#allocation7], 0
      %s27 = sshll.u32 %s1, 4
      %s28 = int_to_ptr.hbm [resolvable:$true] %s27
      %s29 = sshll.u32 [#allocation6], 4
      %s30 = int_to_ptr.vmem [resolvable:$true] %s29
      %35 = dma.hbm_to_vmem [thread:$0]  %s28, 2048, %s30, [#allocation7], 128, 128, 8
    $region9: #{tpu_custom_call.1} parent=1 // pred_fallthru
      _
    // Predicated region
    $region10: #{tpu_custom_call.1} parent=1 // pred_check
      _
    $region11: #{tpu_custom_call.1} parent=1 // pred_check_branch
      %37 = sbr.rel (0) target = $region13
    $region12: #{tpu_custom_call.1} parent=1 // pred_region
      %39 = dma.done [#allocation4], 2048
    $region13: #{tpu_custom_call.1} parent=1 // pred_fallthru
      _
    // Predicated region
    $region14: #{tpu_custom_call.1} parent=1 // pred_check
      _
    $region15: #{tpu_custom_call.1} parent=1 // pred_check_branch
      %41 = sbr.rel (0) target = $region17
    $region16: #{tpu_custom_call.1} parent=1 // pred_region
      %43 = dma.done [#allocation7], 2048
    $region17: #{tpu_custom_call.1} parent=1 // pred_fallthru
      _
    %v44 = vld [vmem:[#allocation3] sm:$0xff]
    %v45 = vld [vmem:[#allocation3 + $0x8] sm:$0xff]
    %v46 = vld [vmem:[#allocation3 + $0x10] sm:$0xff]
    %v47 = vld [vmem:[#allocation3 + $0x18] sm:$0xff]
    %v48 = vld [vmem:[#allocation3 + $0x20] sm:$0xff]
    %v49 = vld [vmem:[#allocation3 + $0x28] sm:$0xff]
    %v50 = vld [vmem:[#allocation3 + $0x30] sm:$0xff]
    %v51 = vld [vmem:[#allocation3 + $0x38] sm:$0xff]
    %v52 = vld [vmem:[#allocation3 + $0x40] sm:$0xff]
    %v53 = vld [vmem:[#allocation3 + $0x48] sm:$0xff]
    %v54 = vld [vmem:[#allocation3 + $0x50] sm:$0xff]
    %v55 = vld [vmem:[#allocation3 + $0x58] sm:$0xff]
    %v56 = vld [vmem:[#allocation3 + $0x60] sm:$0xff]
    %v57 = vld [vmem:[#allocation3 + $0x68] sm:$0xff]
    %v58 = vld [vmem:[#allocation3 + $0x70] sm:$0xff]
    %v59 = vld [vmem:[#allocation3 + $0x78] sm:$0xff]
    %v60 = vld [vmem:[#allocation6] sm:$0xff]
    %v61 = vld [vmem:[#allocation6 + $0x8] sm:$0xff]
    %v62 = vld [vmem:[#allocation6 + $0x10] sm:$0xff]
    %v63 = vld [vmem:[#allocation6 + $0x18] sm:$0xff]
    %v64 = vld [vmem:[#allocation6 + $0x20] sm:$0xff]
    %v65 = vld [vmem:[#allocation6 + $0x28] sm:$0xff]
    %v66 = vld [vmem:[#allocation6 + $0x30] sm:$0xff]
    %v67 = vld [vmem:[#allocation6 + $0x38] sm:$0xff]
    %v68 = vld [vmem:[#allocation6 + $0x40] sm:$0xff]
    %v69 = vld [vmem:[#allocation6 + $0x48] sm:$0xff]
    %v70 = vld [vmem:[#allocation6 + $0x50] sm:$0xff]
    %v71 = vld [vmem:[#allocation6 + $0x58] sm:$0xff]
    %v72 = vld [vmem:[#allocation6 + $0x60] sm:$0xff]
    %v73 = vld [vmem:[#allocation6 + $0x68] sm:$0xff]
    %v74 = vld [vmem:[#allocation6 + $0x70] sm:$0xff]
    %v75 = vld [vmem:[#allocation6 + $0x78] sm:$0xff]
    %v76 = vmul.f32 %v44, %v44
    %v77 = vmul.f32 %v45, %v45
    %v78 = vmul.f32 %v46, %v46
    %v79 = vmul.f32 %v47, %v47
    %v80 = vmul.f32 %v48, %v48
    %v81 = vmul.f32 %v49, %v49
    %v82 = vmul.f32 %v50, %v50
    %v83 = vmul.f32 %v51, %v51
    %v84 = vmul.f32 %v52, %v52
    %v85 = vmul.f32 %v53, %v53
    %v86 = vmul.f32 %v54, %v54
    %v87 = vmul.f32 %v55, %v55
    %v88 = vmul.f32 %v56, %v56
    %v89 = vmul.f32 %v57, %v57
    %v90 = vmul.f32 %v58, %v58
    %v91 = vmul.f32 %v59, %v59
    %v92 = vmul.f32 %v60, %v60
    %v93 = vmul.f32 %v61, %v61
    %v94 = vmul.f32 %v62, %v62
    %v95 = vmul.f32 %v63, %v63
    %v96 = vmul.f32 %v64, %v64
    %v97 = vmul.f32 %v65, %v65
    %v98 = vmul.f32 %v66, %v66
    %v99 = vmul.f32 %v67, %v67
    %v100 = vmul.f32 %v68, %v68
    %v101 = vmul.f32 %v69, %v69
    %v102 = vmul.f32 %v70, %v70
    %v103 = vmul.f32 %v71, %v71
    %v104 = vmul.f32 %v72, %v72
    %v105 = vmul.f32 %v73, %v73
    %v106 = vmul.f32 %v74, %v74
    %v107 = vmul.f32 %v75, %v75
    %v108 = vmul.f32 %v44, %v60
    %v109 = vmul.f32 %v45, %v61
    %v110 = vmul.f32 %v46, %v62
    %v111 = vmul.f32 %v47, %v63
    %v112 = vmul.f32 %v48, %v64
    %v113 = vmul.f32 %v49, %v65
    %v114 = vmul.f32 %v50, %v66
    %v115 = vmul.f32 %v51, %v67
    %v116 = vmul.f32 %v52, %v68
    %v117 = vmul.f32 %v53, %v69
    %v118 = vmul.f32 %v54, %v70
    %v119 = vmul.f32 %v55, %v71
    %v120 = vmul.f32 %v56, %v72
    %v121 = vmul.f32 %v57, %v73
    %v122 = vmul.f32 %v58, %v74
    %v123 = vmul.f32 %v59, %v75
    %140 = vrot.lane.b32.xlu0 %v44, 3
    %v141 = vpop.permute.xlu0 %140
    %142 = vrot.lane.b32.xlu0 %v45, 3
    %v143 = vpop.permute.xlu0 %142
    %144 = vrot.lane.b32.xlu0 %v46, 3
    %v145 = vpop.permute.xlu0 %144
    %146 = vrot.lane.b32.xlu0 %v47, 3
    %v147 = vpop.permute.xlu0 %146
    %148 = vrot.lane.b32.xlu0 %v48, 3
    %v149 = vpop.permute.xlu0 %148
    %150 = vrot.lane.b32.xlu0 %v49, 3
    %v151 = vpop.permute.xlu0 %150
    %152 = vrot.lane.b32.xlu0 %v50, 3
    %v153 = vpop.permute.xlu0 %152
    %154 = vrot.lane.b32.xlu0 %v51, 3
    %v155 = vpop.permute.xlu0 %154
    %156 = vrot.lane.b32.xlu0 %v52, 3
    %v157 = vpop.permute.xlu0 %156
    %158 = vrot.lane.b32.xlu0 %v53, 3
    %v159 = vpop.permute.xlu0 %158
    %160 = vrot.lane.b32.xlu0 %v54, 3
    %v161 = vpop.permute.xlu0 %160
    %162 = vrot.lane.b32.xlu0 %v55, 3
    %v163 = vpop.permute.xlu0 %162
    %164 = vrot.lane.b32.xlu0 %v56, 3
    %v165 = vpop.permute.xlu0 %164
    %166 = vrot.lane.b32.xlu0 %v57, 3
    %v167 = vpop.permute.xlu0 %166
    %168 = vrot.lane.b32.xlu0 %v58, 3
    %v169 = vpop.permute.xlu0 %168
    %170 = vrot.lane.b32.xlu0 %v59, 3
    %v171 = vpop.permute.xlu0 %170
    %vm188 = vcmask 154648
    %189 = vst.msk [vmem:[#allocation2 + $0x3] sm:$0xff] %vm188, %v141
    %190 = vst.msk [vmem:[#allocation2 + $0xb] sm:$0xff] %vm188, %v143
    %191 = vst.msk [vmem:[#allocation2 + $0x1b] sm:$0xff] %vm188, %v145
    %192 = vst.msk [vmem:[#allocation2 + $0x23] sm:$0xff] %vm188, %v147
    %193 = vst.msk [vmem:[#allocation2 + $0x33] sm:$0xff] %vm188, %v149
    %194 = vst.msk [vmem:[#allocation2 + $0x3b] sm:$0xff] %vm188, %v151
    %195 = vst.msk [vmem:[#allocation2 + $0x4b] sm:$0xff] %vm188, %v153
    %196 = vst.msk [vmem:[#allocation2 + $0x53] sm:$0xff] %vm188, %v155
    %197 = vst.msk [vmem:[#allocation2 + $0x63] sm:$0xff] %vm188, %v157
    %198 = vst.msk [vmem:[#allocation2 + $0x6b] sm:$0xff] %vm188, %v159
    %199 = vst.msk [vmem:[#allocation2 + $0x7b] sm:$0xff] %vm188, %v161
    %200 = vst.msk [vmem:[#allocation2 + $0x83] sm:$0xff] %vm188, %v163
    %201 = vst.msk [vmem:[#allocation2 + $0x93] sm:$0xff] %vm188, %v165
    %202 = vst.msk [vmem:[#allocation2 + $0x9b] sm:$0xff] %vm188, %v167
    %203 = vst.msk [vmem:[#allocation2 + $0xab] sm:$0xff] %vm188, %v169
    %204 = vst.msk [vmem:[#allocation2 + $0xb3] sm:$0xff] %vm188, %v171
    %221 = vrot.lane.b32.xlu0 %v60, 3
    %v222 = vpop.permute.xlu0 %221
    %223 = vrot.lane.b32.xlu0 %v61, 3
    %v224 = vpop.permute.xlu0 %223
    %225 = vrot.lane.b32.xlu0 %v62, 3
    %v226 = vpop.permute.xlu0 %225
    %227 = vrot.lane.b32.xlu0 %v63, 3
    %v228 = vpop.permute.xlu0 %227
    %229 = vrot.lane.b32.xlu0 %v64, 3
    %v230 = vpop.permute.xlu0 %229
    %231 = vrot.lane.b32.xlu0 %v65, 3
    %v232 = vpop.permute.xlu0 %231
    %233 = vrot.lane.b32.xlu0 %v66, 3
    %v234 = vpop.permute.xlu0 %233
    %235 = vrot.lane.b32.xlu0 %v67, 3
    %v236 = vpop.permute.xlu0 %235
    %237 = vrot.lane.b32.xlu0 %v68, 3
    %v238 = vpop.permute.xlu0 %237
    %239 = vrot.lane.b32.xlu0 %v69, 3
    %v240 = vpop.permute.xlu0 %239
    %241 = vrot.lane.b32.xlu0 %v70, 3
    %v242 = vpop.permute.xlu0 %241
    %243 = vrot.lane.b32.xlu0 %v71, 3
    %v244 = vpop.permute.xlu0 %243
    %245 = vrot.lane.b32.xlu0 %v72, 3
    %v246 = vpop.permute.xlu0 %245
    %247 = vrot.lane.b32.xlu0 %v73, 3
    %v248 = vpop.permute.xlu0 %247
    %249 = vrot.lane.b32.xlu0 %v74, 3
    %v250 = vpop.permute.xlu0 %249
    %251 = vrot.lane.b32.xlu0 %v75, 3
    %v252 = vpop.permute.xlu0 %251
    %s269 = scalar_lea.vmem [#allocation2], 192
    %270 = vst.msk [vmem:[%s269 + $0x3] sm:$0xff] %vm188, %v222
    %271 = vst.msk [vmem:[%s269 + $0xb] sm:$0xff] %vm188, %v224
    %272 = vst.msk [vmem:[%s269 + $0x1b] sm:$0xff] %vm188, %v226
    %273 = vst.msk [vmem:[%s269 + $0x23] sm:$0xff] %vm188, %v228
    %274 = vst.msk [vmem:[%s269 + $0x33] sm:$0xff] %vm188, %v230
    %275 = vst.msk [vmem:[%s269 + $0x3b] sm:$0xff] %vm188, %v232
    %276 = vst.msk [vmem:[%s269 + $0x4b] sm:$0xff] %vm188, %v234
    %277 = vst.msk [vmem:[%s269 + $0x53] sm:$0xff] %vm188, %v236
    %278 = vst.msk [vmem:[%s269 + $0x63] sm:$0xff] %vm188, %v238
    %279 = vst.msk [vmem:[%s269 + $0x6b] sm:$0xff] %vm188, %v240
    %280 = vst.msk [vmem:[%s269 + $0x7b] sm:$0xff] %vm188, %v242
    %281 = vst.msk [vmem:[%s269 + $0x83] sm:$0xff] %vm188, %v244
    %282 = vst.msk [vmem:[%s269 + $0x93] sm:$0xff] %vm188, %v246
    %283 = vst.msk [vmem:[%s269 + $0x9b] sm:$0xff] %vm188, %v248
    %284 = vst.msk [vmem:[%s269 + $0xab] sm:$0xff] %vm188, %v250
    %285 = vst.msk [vmem:[%s269 + $0xb3] sm:$0xff] %vm188, %v252
    %302 = vrot.lane.b32.xlu0 %v76, 3
    %v303 = vpop.permute.xlu0 %302
    %304 = vrot.lane.b32.xlu0 %v77, 3
    %v305 = vpop.permute.xlu0 %304
    %306 = vrot.lane.b32.xlu0 %v78, 3
    %v307 = vpop.permute.xlu0 %306
    %308 = vrot.lane.b32.xlu0 %v79, 3
    %v309 = vpop.permute.xlu0 %308
    %310 = vrot.lane.b32.xlu0 %v80, 3
    %v311 = vpop.permute.xlu0 %310
    %312 = vrot.lane.b32.xlu0 %v81, 3
    %v313 = vpop.permute.xlu0 %312
    %314 = vrot.lane.b32.xlu0 %v82, 3
    %v315 = vpop.permute.xlu0 %314
    %316 = vrot.lane.b32.xlu0 %v83, 3
    %v317 = vpop.permute.xlu0 %316
    %318 = vrot.lane.b32.xlu0 %v84, 3
    %v319 = vpop.permute.xlu0 %318
    %320 = vrot.lane.b32.xlu0 %v85, 3
    %v321 = vpop.permute.xlu0 %320
    %322 = vrot.lane.b32.xlu0 %v86, 3
    %v323 = vpop.permute.xlu0 %322
    %324 = vrot.lane.b32.xlu0 %v87, 3
    %v325 = vpop.permute.xlu0 %324
    %326 = vrot.lane.b32.xlu0 %v88, 3
    %v327 = vpop.permute.xlu0 %326
    %328 = vrot.lane.b32.xlu0 %v89, 3
    %v329 = vpop.permute.xlu0 %328
    %330 = vrot.lane.b32.xlu0 %v90, 3
    %v331 = vpop.permute.xlu0 %330
    %332 = vrot.lane.b32.xlu0 %v91, 3
    %v333 = vpop.permute.xlu0 %332
    %s350 = scalar_lea.vmem [#allocation2], 384
    %351 = vst.msk [vmem:[%s350 + $0x3] sm:$0xff] %vm188, %v303
    %352 = vst.msk [vmem:[%s350 + $0xb] sm:$0xff] %vm188, %v305
    %353 = vst.msk [vmem:[%s350 + $0x1b] sm:$0xff] %vm188, %v307
    %354 = vst.msk [vmem:[%s350 + $0x23] sm:$0xff] %vm188, %v309
    %355 = vst.msk [vmem:[%s350 + $0x33] sm:$0xff] %vm188, %v311
    %356 = vst.msk [vmem:[%s350 + $0x3b] sm:$0xff] %vm188, %v313
    %357 = vst.msk [vmem:[%s350 + $0x4b] sm:$0xff] %vm188, %v315
    %358 = vst.msk [vmem:[%s350 + $0x53] sm:$0xff] %vm188, %v317
    %359 = vst.msk [vmem:[%s350 + $0x63] sm:$0xff] %vm188, %v319
    %360 = vst.msk [vmem:[%s350 + $0x6b] sm:$0xff] %vm188, %v321
    %361 = vst.msk [vmem:[%s350 + $0x7b] sm:$0xff] %vm188, %v323
    %362 = vst.msk [vmem:[%s350 + $0x83] sm:$0xff] %vm188, %v325
    %363 = vst.msk [vmem:[%s350 + $0x93] sm:$0xff] %vm188, %v327
    %364 = vst.msk [vmem:[%s350 + $0x9b] sm:$0xff] %vm188, %v329
    %365 = vst.msk [vmem:[%s350 + $0xab] sm:$0xff] %vm188, %v331
    %366 = vst.msk [vmem:[%s350 + $0xb3] sm:$0xff] %vm188, %v333
    %383 = vrot.lane.b32.xlu0 %v92, 3
    %v384 = vpop.permute.xlu0 %383
    %385 = vrot.lane.b32.xlu0 %v93, 3
    %v386 = vpop.permute.xlu0 %385
    %387 = vrot.lane.b32.xlu0 %v94, 3
    %v388 = vpop.permute.xlu0 %387
    %389 = vrot.lane.b32.xlu0 %v95, 3
    %v390 = vpop.permute.xlu0 %389
    %391 = vrot.lane.b32.xlu0 %v96, 3
    %v392 = vpop.permute.xlu0 %391
    %393 = vrot.lane.b32.xlu0 %v97, 3
    %v394 = vpop.permute.xlu0 %393
    %395 = vrot.lane.b32.xlu0 %v98, 3
    %v396 = vpop.permute.xlu0 %395
    %397 = vrot.lane.b32.xlu0 %v99, 3
    %v398 = vpop.permute.xlu0 %397
    %399 = vrot.lane.b32.xlu0 %v100, 3
    %v400 = vpop.permute.xlu0 %399
    %401 = vrot.lane.b32.xlu0 %v101, 3
    %v402 = vpop.permute.xlu0 %401
    %403 = vrot.lane.b32.xlu0 %v102, 3
    %v404 = vpop.permute.xlu0 %403
    %405 = vrot.lane.b32.xlu0 %v103, 3
    %v406 = vpop.permute.xlu0 %405
    %407 = vrot.lane.b32.xlu0 %v104, 3
    %v408 = vpop.permute.xlu0 %407
    %409 = vrot.lane.b32.xlu0 %v105, 3
    %v410 = vpop.permute.xlu0 %409
    %411 = vrot.lane.b32.xlu0 %v106, 3
    %v412 = vpop.permute.xlu0 %411
    %413 = vrot.lane.b32.xlu0 %v107, 3
    %v414 = vpop.permute.xlu0 %413
    %s431 = scalar_lea.vmem [#allocation2], 576
    %432 = vst.msk [vmem:[%s431 + $0x3] sm:$0xff] %vm188, %v384
    %433 = vst.msk [vmem:[%s431 + $0xb] sm:$0xff] %vm188, %v386
    %434 = vst.msk [vmem:[%s431 + $0x1b] sm:$0xff] %vm188, %v388
    %435 = vst.msk [vmem:[%s431 + $0x23] sm:$0xff] %vm188, %v390
    %436 = vst.msk [vmem:[%s431 + $0x33] sm:$0xff] %vm188, %v392
    %437 = vst.msk [vmem:[%s431 + $0x3b] sm:$0xff] %vm188, %v394
    %438 = vst.msk [vmem:[%s431 + $0x4b] sm:$0xff] %vm188, %v396
    %439 = vst.msk [vmem:[%s431 + $0x53] sm:$0xff] %vm188, %v398
    %440 = vst.msk [vmem:[%s431 + $0x63] sm:$0xff] %vm188, %v400
    %441 = vst.msk [vmem:[%s431 + $0x6b] sm:$0xff] %vm188, %v402
    %442 = vst.msk [vmem:[%s431 + $0x7b] sm:$0xff] %vm188, %v404
    %443 = vst.msk [vmem:[%s431 + $0x83] sm:$0xff] %vm188, %v406
    %444 = vst.msk [vmem:[%s431 + $0x93] sm:$0xff] %vm188, %v408
    %445 = vst.msk [vmem:[%s431 + $0x9b] sm:$0xff] %vm188, %v410
    %446 = vst.msk [vmem:[%s431 + $0xab] sm:$0xff] %vm188, %v412
    %447 = vst.msk [vmem:[%s431 + $0xb3] sm:$0xff] %vm188, %v414
    %464 = vrot.lane.b32.xlu0 %v108, 3
    %v465 = vpop.permute.xlu0 %464
    %466 = vrot.lane.b32.xlu0 %v109, 3
    %v467 = vpop.permute.xlu0 %466
    %468 = vrot.lane.b32.xlu0 %v110, 3
    %v469 = vpop.permute.xlu0 %468
    %470 = vrot.lane.b32.xlu0 %v111, 3
    %v471 = vpop.permute.xlu0 %470
    %472 = vrot.lane.b32.xlu0 %v112, 3
    %v473 = vpop.permute.xlu0 %472
    %474 = vrot.lane.b32.xlu0 %v113, 3
    %v475 = vpop.permute.xlu0 %474
    %476 = vrot.lane.b32.xlu0 %v114, 3
    %v477 = vpop.permute.xlu0 %476
    %478 = vrot.lane.b32.xlu0 %v115, 3
    %v479 = vpop.permute.xlu0 %478
    %480 = vrot.lane.b32.xlu0 %v116, 3
    %v481 = vpop.permute.xlu0 %480
    %482 = vrot.lane.b32.xlu0 %v117, 3
    %v483 = vpop.permute.xlu0 %482
    %484 = vrot.lane.b32.xlu0 %v118, 3
    %v485 = vpop.permute.xlu0 %484
    %486 = vrot.lane.b32.xlu0 %v119, 3
    %v487 = vpop.permute.xlu0 %486
    %488 = vrot.lane.b32.xlu0 %v120, 3
    %v489 = vpop.permute.xlu0 %488
    %490 = vrot.lane.b32.xlu0 %v121, 3
    %v491 = vpop.permute.xlu0 %490
    %492 = vrot.lane.b32.xlu0 %v122, 3
    %v493 = vpop.permute.xlu0 %492
    %494 = vrot.lane.b32.xlu0 %v123, 3
    %v495 = vpop.permute.xlu0 %494
    %s512 = scalar_lea.vmem [#allocation2], 768
    %513 = vst.msk [vmem:[%s512 + $0x3] sm:$0xff] %vm188, %v465
    %514 = vst.msk [vmem:[%s512 + $0xb] sm:$0xff] %vm188, %v467
    %515 = vst.msk [vmem:[%s512 + $0x1b] sm:$0xff] %vm188, %v469
    %516 = vst.msk [vmem:[%s512 + $0x23] sm:$0xff] %vm188, %v471
    %517 = vst.msk [vmem:[%s512 + $0x33] sm:$0xff] %vm188, %v473
    %518 = vst.msk [vmem:[%s512 + $0x3b] sm:$0xff] %vm188, %v475
    %519 = vst.msk [vmem:[%s512 + $0x4b] sm:$0xff] %vm188, %v477
    %520 = vst.msk [vmem:[%s512 + $0x53] sm:$0xff] %vm188, %v479
    %521 = vst.msk [vmem:[%s512 + $0x63] sm:$0xff] %vm188, %v481
    %522 = vst.msk [vmem:[%s512 + $0x6b] sm:$0xff] %vm188, %v483
    %523 = vst.msk [vmem:[%s512 + $0x7b] sm:$0xff] %vm188, %v485
    %524 = vst.msk [vmem:[%s512 + $0x83] sm:$0xff] %vm188, %v487
    %525 = vst.msk [vmem:[%s512 + $0x93] sm:$0xff] %vm188, %v489
    %526 = vst.msk [vmem:[%s512 + $0x9b] sm:$0xff] %vm188, %v491
    %527 = vst.msk [vmem:[%s512 + $0xab] sm:$0xff] %vm188, %v493
    %528 = vst.msk [vmem:[%s512 + $0xb3] sm:$0xff] %vm188, %v495
    %v529 = vld [vmem:[#allocation2 + $0x4] sm:$0x1]
    %v530 = vld [vmem:[#allocation2 + $0x1c] sm:$0x1]
    %v531 = vld [vmem:[#allocation2 + $0x34] sm:$0x1]
    %v532 = vld [vmem:[#allocation2 + $0x4c] sm:$0x1]
    %v533 = vld [vmem:[#allocation2 + $0x64] sm:$0x1]
    %v534 = vld [vmem:[#allocation2 + $0x7c] sm:$0x1]
    %v535 = vld [vmem:[#allocation2 + $0x94] sm:$0x1]
    %v536 = vld [vmem:[#allocation2 + $0xac] sm:$0x1]
    %v537 = vld [vmem:[#allocation2 + $0xc4] sm:$0x1]
    %v538 = vld [vmem:[#allocation2 + $0xdc] sm:$0x1]
    %v539 = vld [vmem:[#allocation2 + $0xf4] sm:$0x1]
    %v540 = vld [vmem:[#allocation2 + $0x10c] sm:$0x1]
    %v541 = vld [vmem:[#allocation2 + $0x124] sm:$0x1]
    %v542 = vld [vmem:[#allocation2 + $0x13c] sm:$0x1]
    %v543 = vld [vmem:[#allocation2 + $0x154] sm:$0x1]
    %v544 = vld [vmem:[#allocation2 + $0x16c] sm:$0x1]
    %v545 = vld [vmem:[#allocation2 + $0x184] sm:$0x1]
    %v546 = vld [vmem:[#allocation2 + $0x19c] sm:$0x1]
    %v547 = vld [vmem:[#allocation2 + $0x1b4] sm:$0x1]
    %v548 = vld [vmem:[#allocation2 + $0x1cc] sm:$0x1]
    %v549 = vld [vmem:[#allocation2 + $0x1e4] sm:$0x1]
    %v550 = vld [vmem:[#allocation2 + $0x1fc] sm:$0x1]
    %v551 = vld [vmem:[#allocation2 + $0x214] sm:$0x1]
    %v552 = vld [vmem:[#allocation2 + $0x22c] sm:$0x1]
    %v553 = vld [vmem:[#allocation2 + $0x244] sm:$0x1]
    %v554 = vld [vmem:[#allocation2 + $0x25c] sm:$0x1]
    %v555 = vld [vmem:[#allocation2 + $0x274] sm:$0x1]
    %v556 = vld [vmem:[#allocation2 + $0x28c] sm:$0x1]
    %v557 = vld [vmem:[#allocation2 + $0x2a4] sm:$0x1]
    %v558 = vld [vmem:[#allocation2 + $0x2bc] sm:$0x1]
    %v559 = vld [vmem:[#allocation2 + $0x2d4] sm:$0x1]
    %v560 = vld [vmem:[#allocation2 + $0x2ec] sm:$0x1]
    %v561 = vld [vmem:[#allocation2 + $0x304] sm:$0x1]
    %v562 = vld [vmem:[#allocation2 + $0x31c] sm:$0x1]
    %v563 = vld [vmem:[#allocation2 + $0x334] sm:$0x1]
    %v564 = vld [vmem:[#allocation2 + $0x34c] sm:$0x1]
    %v565 = vld [vmem:[#allocation2 + $0x364] sm:$0x1]
    %v566 = vld [vmem:[#allocation2 + $0x37c] sm:$0x1]
    %v567 = vld [vmem:[#allocation2 + $0x394] sm:$0x1]
    %v568 = vld [vmem:[#allocation2 + $0x3ac] sm:$0x1]
    %vm569 = vcmask 147480
    %570 = vst.msk [vmem:[#allocation2 + $0x2] sm:$0x1] %vm569, %v529
    %571 = vst.msk [vmem:[#allocation2 + $0x1a] sm:$0x1] %vm569, %v530
    %572 = vst.msk [vmem:[#allocation2 + $0x32] sm:$0x1] %vm569, %v531
    %573 = vst.msk [vmem:[#allocation2 + $0x4a] sm:$0x1] %vm569, %v532
    %574 = vst.msk [vmem:[#allocation2 + $0x62] sm:$0x1] %vm569, %v533
    %575 = vst.msk [vmem:[#allocation2 + $0x7a] sm:$0x1] %vm569, %v534
    %576 = vst.msk [vmem:[#allocation2 + $0x92] sm:$0x1] %vm569, %v535
    %577 = vst.msk [vmem:[#allocation2 + $0xaa] sm:$0x1] %vm569, %v536
    %578 = vst.msk [vmem:[#allocation2 + $0xc2] sm:$0x1] %vm569, %v537
    %579 = vst.msk [vmem:[#allocation2 + $0xda] sm:$0x1] %vm569, %v538
    %580 = vst.msk [vmem:[#allocation2 + $0xf2] sm:$0x1] %vm569, %v539
    %581 = vst.msk [vmem:[#allocation2 + $0x10a] sm:$0x1] %vm569, %v540
    %582 = vst.msk [vmem:[#allocation2 + $0x122] sm:$0x1] %vm569, %v541
    %583 = vst.msk [vmem:[#allocation2 + $0x13a] sm:$0x1] %vm569, %v542
    %584 = vst.msk [vmem:[#allocation2 + $0x152] sm:$0x1] %vm569, %v543
    %585 = vst.msk [vmem:[#allocation2 + $0x16a] sm:$0x1] %vm569, %v544
    %586 = vst.msk [vmem:[#allocation2 + $0x182] sm:$0x1] %vm569, %v545
    %587 = vst.msk [vmem:[#allocation2 + $0x19a] sm:$0x1] %vm569, %v546
    %588 = vst.msk [vmem:[#allocation2 + $0x1b2] sm:$0x1] %vm569, %v547
    %589 = vst.msk [vmem:[#allocation2 + $0x1ca] sm:$0x1] %vm569, %v548
    %590 = vst.msk [vmem:[#allocation2 + $0x1e2] sm:$0x1] %vm569, %v549
    %591 = vst.msk [vmem:[#allocation2 + $0x1fa] sm:$0x1] %vm569, %v550
    %592 = vst.msk [vmem:[#allocation2 + $0x212] sm:$0x1] %vm569, %v551
    %593 = vst.msk [vmem:[#allocation2 + $0x22a] sm:$0x1] %vm569, %v552
    %594 = vst.msk [vmem:[#allocation2 + $0x242] sm:$0x1] %vm569, %v553
    %595 = vst.msk [vmem:[#allocation2 + $0x25a] sm:$0x1] %vm569, %v554
    %596 = vst.msk [vmem:[#allocation2 + $0x272] sm:$0x1] %vm569, %v555
    %597 = vst.msk [vmem:[#allocation2 + $0x28a] sm:$0x1] %vm569, %v556
    %598 = vst.msk [vmem:[#allocation2 + $0x2a2] sm:$0x1] %vm569, %v557
    %599 = vst.msk [vmem:[#allocation2 + $0x2ba] sm:$0x1] %vm569, %v558
    %600 = vst.msk [vmem:[#allocation2 + $0x2d2] sm:$0x1] %vm569, %v559
    %601 = vst.msk [vmem:[#allocation2 + $0x2ea] sm:$0x1] %vm569, %v560
    %602 = vst.msk [vmem:[#allocation2 + $0x302] sm:$0x1] %vm569, %v561
    %603 = vst.msk [vmem:[#allocation2 + $0x31a] sm:$0x1] %vm569, %v562
    %604 = vst.msk [vmem:[#allocation2 + $0x332] sm:$0x1] %vm569, %v563
    %605 = vst.msk [vmem:[#allocation2 + $0x34a] sm:$0x1] %vm569, %v564
    %606 = vst.msk [vmem:[#allocation2 + $0x362] sm:$0x1] %vm569, %v565
    %607 = vst.msk [vmem:[#allocation2 + $0x37a] sm:$0x1] %vm569, %v566
    %608 = vst.msk [vmem:[#allocation2 + $0x392] sm:$0x1] %vm569, %v567
    %609 = vst.msk [vmem:[#allocation2 + $0x3aa] sm:$0x1] %vm569, %v568
    %v610 = vld [vmem:[#allocation2 + $0x11] sm:$0x1]
    %v611 = vld [vmem:[#allocation2 + $0x29] sm:$0x1]
    %v612 = vld [vmem:[#allocation2 + $0x41] sm:$0x1]
    %v613 = vld [vmem:[#allocation2 + $0x59] sm:$0x1]
    %v614 = vld [vmem:[#allocation2 + $0x71] sm:$0x1]
    %v615 = vld [vmem:[#allocation2 + $0x89] sm:$0x1]
    %v616 = vld [vmem:[#allocation2 + $0xa1] sm:$0x1]
    %v617 = vld [vmem:[#allocation2 + $0xb9] sm:$0x1]
    %v618 = vld [vmem:[#allocation2 + $0xd1] sm:$0x1]
    %v619 = vld [vmem:[#allocation2 + $0xe9] sm:$0x1]
    %v620 = vld [vmem:[#allocation2 + $0x101] sm:$0x1]
    %v621 = vld [vmem:[#allocation2 + $0x119] sm:$0x1]
    %v622 = vld [vmem:[#allocation2 + $0x131] sm:$0x1]
    %v623 = vld [vmem:[#allocation2 + $0x149] sm:$0x1]
    %v624 = vld [vmem:[#allocation2 + $0x161] sm:$0x1]
    %v625 = vld [vmem:[#allocation2 + $0x179] sm:$0x1]
    %v626 = vld [vmem:[#allocation2 + $0x191] sm:$0x1]
    %v627 = vld [vmem:[#allocation2 + $0x1a9] sm:$0x1]
    %v628 = vld [vmem:[#allocation2 + $0x1c1] sm:$0x1]
    %v629 = vld [vmem:[#allocation2 + $0x1d9] sm:$0x1]
    %v630 = vld [vmem:[#allocation2 + $0x1f1] sm:$0x1]
    %v631 = vld [vmem:[#allocation2 + $0x209] sm:$0x1]
    %v632 = vld [vmem:[#allocation2 + $0x221] sm:$0x1]
    %v633 = vld [vmem:[#allocation2 + $0x239] sm:$0x1]
    %v634 = vld [vmem:[#allocation2 + $0x251] sm:$0x1]
    %v635 = vld [vmem:[#allocation2 + $0x269] sm:$0x1]
    %v636 = vld [vmem:[#allocation2 + $0x281] sm:$0x1]
    %v637 = vld [vmem:[#allocation2 + $0x299] sm:$0x1]
    %v638 = vld [vmem:[#allocation2 + $0x2b1] sm:$0x1]
    %v639 = vld [vmem:[#allocation2 + $0x2c9] sm:$0x1]
    %v640 = vld [vmem:[#allocation2 + $0x2e1] sm:$0x1]
    %v641 = vld [vmem:[#allocation2 + $0x2f9] sm:$0x1]
    %v642 = vld [vmem:[#allocation2 + $0x311] sm:$0x1]
    %v643 = vld [vmem:[#allocation2 + $0x329] sm:$0x1]
    %v644 = vld [vmem:[#allocation2 + $0x341] sm:$0x1]
    %v645 = vld [vmem:[#allocation2 + $0x359] sm:$0x1]
    %v646 = vld [vmem:[#allocation2 + $0x371] sm:$0x1]
    %v647 = vld [vmem:[#allocation2 + $0x389] sm:$0x1]
    %v648 = vld [vmem:[#allocation2 + $0x3a1] sm:$0x1]
    %v649 = vld [vmem:[#allocation2 + $0x3b9] sm:$0x1]
    %650 = vst.msk [vmem:[#allocation2 + $0x13] sm:$0x1] %vm569, %v610
    %651 = vst.msk [vmem:[#allocation2 + $0x2b] sm:$0x1] %vm569, %v611
    %652 = vst.msk [vmem:[#allocation2 + $0x43] sm:$0x1] %vm569, %v612
    %653 = vst.msk [vmem:[#allocation2 + $0x5b] sm:$0x1] %vm569, %v613
    %654 = vst.msk [vmem:[#allocation2 + $0x73] sm:$0x1] %vm569, %v614
    %655 = vst.msk [vmem:[#allocation2 + $0x8b] sm:$0x1] %vm569, %v615
    %656 = vst.msk [vmem:[#allocation2 + $0xa3] sm:$0x1] %vm569, %v616
    %657 = vst.msk [vmem:[#allocation2 + $0xbb] sm:$0x1] %vm569, %v617
    %658 = vst.msk [vmem:[#allocation2 + $0xd3] sm:$0x1] %vm569, %v618
    %659 = vst.msk [vmem:[#allocation2 + $0xeb] sm:$0x1] %vm569, %v619
    %660 = vst.msk [vmem:[#allocation2 + $0x103] sm:$0x1] %vm569, %v620
    %661 = vst.msk [vmem:[#allocation2 + $0x11b] sm:$0x1] %vm569, %v621
    %662 = vst.msk [vmem:[#allocation2 + $0x133] sm:$0x1] %vm569, %v622
    %663 = vst.msk [vmem:[#allocation2 + $0x14b] sm:$0x1] %vm569, %v623
    %664 = vst.msk [vmem:[#allocation2 + $0x163] sm:$0x1] %vm569, %v624
    %665 = vst.msk [vmem:[#allocation2 + $0x17b] sm:$0x1] %vm569, %v625
    %666 = vst.msk [vmem:[#allocation2 + $0x193] sm:$0x1] %vm569, %v626
    %667 = vst.msk [vmem:[#allocation2 + $0x1ab] sm:$0x1] %vm569, %v627
    %668 = vst.msk [vmem:[#allocation2 + $0x1c3] sm:$0x1] %vm569, %v628
    %669 = vst.msk [vmem:[#allocation2 + $0x1db] sm:$0x1] %vm569, %v629
    %670 = vst.msk [vmem:[#allocation2 + $0x1f3] sm:$0x1] %vm569, %v630
    %671 = vst.msk [vmem:[#allocation2 + $0x20b] sm:$0x1] %vm569, %v631
    %672 = vst.msk [vmem:[#allocation2 + $0x223] sm:$0x1] %vm569, %v632
    %673 = vst.msk [vmem:[#allocation2 + $0x23b] sm:$0x1] %vm569, %v633
    %674 = vst.msk [vmem:[#allocation2 + $0x253] sm:$0x1] %vm569, %v634
    %675 = vst.msk [vmem:[#allocation2 + $0x26b] sm:$0x1] %vm569, %v635
    %676 = vst.msk [vmem:[#allocation2 + $0x283] sm:$0x1] %vm569, %v636
    %677 = vst.msk [vmem:[#allocation2 + $0x29b] sm:$0x1] %vm569, %v637
    %678 = vst.msk [vmem:[#allocation2 + $0x2b3] sm:$0x1] %vm569, %v638
    %679 = vst.msk [vmem:[#allocation2 + $0x2cb] sm:$0x1] %vm569, %v639
    %680 = vst.msk [vmem:[#allocation2 + $0x2e3] sm:$0x1] %vm569, %v640
    %681 = vst.msk [vmem:[#allocation2 + $0x2fb] sm:$0x1] %vm569, %v641
    %682 = vst.msk [vmem:[#allocation2 + $0x313] sm:$0x1] %vm569, %v642
    %683 = vst.msk [vmem:[#allocation2 + $0x32b] sm:$0x1] %vm569, %v643
    %684 = vst.msk [vmem:[#allocation2 + $0x343] sm:$0x1] %vm569, %v644
    %685 = vst.msk [vmem:[#allocation2 + $0x35b] sm:$0x1] %vm569, %v645
    %686 = vst.msk [vmem:[#allocation2 + $0x373] sm:$0x1] %vm569, %v646
    %687 = vst.msk [vmem:[#allocation2 + $0x38b] sm:$0x1] %vm569, %v647
    %688 = vst.msk [vmem:[#allocation2 + $0x3a3] sm:$0x1] %vm569, %v648
    %689 = vst.msk [vmem:[#allocation2 + $0x3bb] sm:$0x1] %vm569, %v649
    %v690 = vld [vmem:[#allocation2 + $0x5] sm:$0x1]
    %v691 = vld [vmem:[#allocation2 + $0x1d] sm:$0x1]
    %v692 = vld [vmem:[#allocation2 + $0x35] sm:$0x1]
    %v693 = vld [vmem:[#allocation2 + $0x4d] sm:$0x1]
    %v694 = vld [vmem:[#allocation2 + $0x65] sm:$0x1]
    %v695 = vld [vmem:[#allocation2 + $0x7d] sm:$0x1]
    %v696 = vld [vmem:[#allocation2 + $0x95] sm:$0x1]
    %v697 = vld [vmem:[#allocation2 + $0xad] sm:$0x1]
    %v698 = vld [vmem:[#allocation2 + $0xc5] sm:$0x1]
    %v699 = vld [vmem:[#allocation2 + $0xdd] sm:$0x1]
    %v700 = vld [vmem:[#allocation2 + $0xf5] sm:$0x1]
    %v701 = vld [vmem:[#allocation2 + $0x10d] sm:$0x1]
    %v702 = vld [vmem:[#allocation2 + $0x125] sm:$0x1]
    %v703 = vld [vmem:[#allocation2 + $0x13d] sm:$0x1]
    %v704 = vld [vmem:[#allocation2 + $0x155] sm:$0x1]
    %v705 = vld [vmem:[#allocation2 + $0x16d] sm:$0x1]
    %v706 = vld [vmem:[#allocation2 + $0x185] sm:$0x1]
    %v707 = vld [vmem:[#allocation2 + $0x19d] sm:$0x1]
    %v708 = vld [vmem:[#allocation2 + $0x1b5] sm:$0x1]
    %v709 = vld [vmem:[#allocation2 + $0x1cd] sm:$0x1]
    %v710 = vld [vmem:[#allocation2 + $0x1e5] sm:$0x1]
    %v711 = vld [vmem:[#allocation2 + $0x1fd] sm:$0x1]
    %v712 = vld [vmem:[#allocation2 + $0x215] sm:$0x1]
    %v713 = vld [vmem:[#allocation2 + $0x22d] sm:$0x1]
    %v714 = vld [vmem:[#allocation2 + $0x245] sm:$0x1]
    %v715 = vld [vmem:[#allocation2 + $0x25d] sm:$0x1]
    %v716 = vld [vmem:[#allocation2 + $0x275] sm:$0x1]
    %v717 = vld [vmem:[#allocation2 + $0x28d] sm:$0x1]
    %v718 = vld [vmem:[#allocation2 + $0x2a5] sm:$0x1]
    %v719 = vld [vmem:[#allocation2 + $0x2bd] sm:$0x1]
    %v720 = vld [vmem:[#allocation2 + $0x2d5] sm:$0x1]
    %v721 = vld [vmem:[#allocation2 + $0x2ed] sm:$0x1]
    %v722 = vld [vmem:[#allocation2 + $0x305] sm:$0x1]
    %v723 = vld [vmem:[#allocation2 + $0x31d] sm:$0x1]
    %v724 = vld [vmem:[#allocation2 + $0x335] sm:$0x1]
    %v725 = vld [vmem:[#allocation2 + $0x34d] sm:$0x1]
    %v726 = vld [vmem:[#allocation2 + $0x365] sm:$0x1]
    %v727 = vld [vmem:[#allocation2 + $0x37d] sm:$0x1]
    %v728 = vld [vmem:[#allocation2 + $0x395] sm:$0x1]
    %v729 = vld [vmem:[#allocation2 + $0x3ad] sm:$0x1]
    %730 = vst.msk [vmem:[#allocation2 + $0x1] sm:$0x1] %vm569, %v690
    %731 = vst.msk [vmem:[#allocation2 + $0x19] sm:$0x1] %vm569, %v691
    %732 = vst.msk [vmem:[#allocation2 + $0x31] sm:$0x1] %vm569, %v692
    %733 = vst.msk [vmem:[#allocation2 + $0x49] sm:$0x1] %vm569, %v693
    %734 = vst.msk [vmem:[#allocation2 + $0x61] sm:$0x1] %vm569, %v694
    %735 = vst.msk [vmem:[#allocation2 + $0x79] sm:$0x1] %vm569, %v695
    %736 = vst.msk [vmem:[#allocation2 + $0x91] sm:$0x1] %vm569, %v696
    %737 = vst.msk [vmem:[#allocation2 + $0xa9] sm:$0x1] %vm569, %v697
    %738 = vst.msk [vmem:[#allocation2 + $0xc1] sm:$0x1] %vm569, %v698
    %739 = vst.msk [vmem:[#allocation2 + $0xd9] sm:$0x1] %vm569, %v699
    %740 = vst.msk [vmem:[#allocation2 + $0xf1] sm:$0x1] %vm569, %v700
    %741 = vst.msk [vmem:[#allocation2 + $0x109] sm:$0x1] %vm569, %v701
    %742 = vst.msk [vmem:[#allocation2 + $0x121] sm:$0x1] %vm569, %v702
    %743 = vst.msk [vmem:[#allocation2 + $0x139] sm:$0x1] %vm569, %v703
    %744 = vst.msk [vmem:[#allocation2 + $0x151] sm:$0x1] %vm569, %v704
    %745 = vst.msk [vmem:[#allocation2 + $0x169] sm:$0x1] %vm569, %v705
    %746 = vst.msk [vmem:[#allocation2 + $0x181] sm:$0x1] %vm569, %v706
    %747 = vst.msk [vmem:[#allocation2 + $0x199] sm:$0x1] %vm569, %v707
    %748 = vst.msk [vmem:[#allocation2 + $0x1b1] sm:$0x1] %vm569, %v708
    %749 = vst.msk [vmem:[#allocation2 + $0x1c9] sm:$0x1] %vm569, %v709
    %750 = vst.msk [vmem:[#allocation2 + $0x1e1] sm:$0x1] %vm569, %v710
    %751 = vst.msk [vmem:[#allocation2 + $0x1f9] sm:$0x1] %vm569, %v711
    %752 = vst.msk [vmem:[#allocation2 + $0x211] sm:$0x1] %vm569, %v712
    %753 = vst.msk [vmem:[#allocation2 + $0x229] sm:$0x1] %vm569, %v713
    %754 = vst.msk [vmem:[#allocation2 + $0x241] sm:$0x1] %vm569, %v714
    %755 = vst.msk [vmem:[#allocation2 + $0x259] sm:$0x1] %vm569, %v715
    %756 = vst.msk [vmem:[#allocation2 + $0x271] sm:$0x1] %vm569, %v716
    %757 = vst.msk [vmem:[#allocation2 + $0x289] sm:$0x1] %vm569, %v717
    %758 = vst.msk [vmem:[#allocation2 + $0x2a1] sm:$0x1] %vm569, %v718
    %759 = vst.msk [vmem:[#allocation2 + $0x2b9] sm:$0x1] %vm569, %v719
    %760 = vst.msk [vmem:[#allocation2 + $0x2d1] sm:$0x1] %vm569, %v720
    %761 = vst.msk [vmem:[#allocation2 + $0x2e9] sm:$0x1] %vm569, %v721
    %762 = vst.msk [vmem:[#allocation2 + $0x301] sm:$0x1] %vm569, %v722
    %763 = vst.msk [vmem:[#allocation2 + $0x319] sm:$0x1] %vm569, %v723
    %764 = vst.msk [vmem:[#allocation2 + $0x331] sm:$0x1] %vm569, %v724
    %765 = vst.msk [vmem:[#allocation2 + $0x349] sm:$0x1] %vm569, %v725
    %766 = vst.msk [vmem:[#allocation2 + $0x361] sm:$0x1] %vm569, %v726
    %767 = vst.msk [vmem:[#allocation2 + $0x379] sm:$0x1] %vm569, %v727
    %768 = vst.msk [vmem:[#allocation2 + $0x391] sm:$0x1] %vm569, %v728
    %769 = vst.msk [vmem:[#allocation2 + $0x3a9] sm:$0x1] %vm569, %v729
    %v770 = vld [vmem:[#allocation2 + $0x10] sm:$0x1]
    %v771 = vld [vmem:[#allocation2 + $0x28] sm:$0x1]
    %v772 = vld [vmem:[#allocation2 + $0x40] sm:$0x1]
    %v773 = vld [vmem:[#allocation2 + $0x58] sm:$0x1]
    %v774 = vld [vmem:[#allocation2 + $0x70] sm:$0x1]
    %v775 = vld [vmem:[#allocation2 + $0x88] sm:$0x1]
    %v776 = vld [vmem:[#allocation2 + $0xa0] sm:$0x1]
    %v777 = vld [vmem:[#allocation2 + $0xb8] sm:$0x1]
    %v778 = vld [vmem:[#allocation2 + $0xd0] sm:$0x1]
    %v779 = vld [vmem:[#allocation2 + $0xe8] sm:$0x1]
    %v780 = vld [vmem:[#allocation2 + $0x100] sm:$0x1]
    %v781 = vld [vmem:[#allocation2 + $0x118] sm:$0x1]
    %v782 = vld [vmem:[#allocation2 + $0x130] sm:$0x1]
    %v783 = vld [vmem:[#allocation2 + $0x148] sm:$0x1]
    %v784 = vld [vmem:[#allocation2 + $0x160] sm:$0x1]
    %v785 = vld [vmem:[#allocation2 + $0x178] sm:$0x1]
    %v786 = vld [vmem:[#allocation2 + $0x190] sm:$0x1]
    %v787 = vld [vmem:[#allocation2 + $0x1a8] sm:$0x1]
    %v788 = vld [vmem:[#allocation2 + $0x1c0] sm:$0x1]
    %v789 = vld [vmem:[#allocation2 + $0x1d8] sm:$0x1]
    %v790 = vld [vmem:[#allocation2 + $0x1f0] sm:$0x1]
    %v791 = vld [vmem:[#allocation2 + $0x208] sm:$0x1]
    %v792 = vld [vmem:[#allocation2 + $0x220] sm:$0x1]
    %v793 = vld [vmem:[#allocation2 + $0x238] sm:$0x1]
    %v794 = vld [vmem:[#allocation2 + $0x250] sm:$0x1]
    %v795 = vld [vmem:[#allocation2 + $0x268] sm:$0x1]
    %v796 = vld [vmem:[#allocation2 + $0x280] sm:$0x1]
    %v797 = vld [vmem:[#allocation2 + $0x298] sm:$0x1]
    %v798 = vld [vmem:[#allocation2 + $0x2b0] sm:$0x1]
    %v799 = vld [vmem:[#allocation2 + $0x2c8] sm:$0x1]
    %v800 = vld [vmem:[#allocation2 + $0x2e0] sm:$0x1]
    %v801 = vld [vmem:[#allocation2 + $0x2f8] sm:$0x1]
    %v802 = vld [vmem:[#allocation2 + $0x310] sm:$0x1]
    %v803 = vld [vmem:[#allocation2 + $0x328] sm:$0x1]
    %v804 = vld [vmem:[#allocation2 + $0x340] sm:$0x1]
    %v805 = vld [vmem:[#allocation2 + $0x358] sm:$0x1]
    %v806 = vld [vmem:[#allocation2 + $0x370] sm:$0x1]
    %v807 = vld [vmem:[#allocation2 + $0x388] sm:$0x1]
    %v808 = vld [vmem:[#allocation2 + $0x3a0] sm:$0x1]
    %v809 = vld [vmem:[#allocation2 + $0x3b8] sm:$0x1]
    %810 = vst.msk [vmem:[#allocation2 + $0x14] sm:$0x1] %vm569, %v770
    %811 = vst.msk [vmem:[#allocation2 + $0x2c] sm:$0x1] %vm569, %v771
    %812 = vst.msk [vmem:[#allocation2 + $0x44] sm:$0x1] %vm569, %v772
    %813 = vst.msk [vmem:[#allocation2 + $0x5c] sm:$0x1] %vm569, %v773
    %814 = vst.msk [vmem:[#allocation2 + $0x74] sm:$0x1] %vm569, %v774
    %815 = vst.msk [vmem:[#allocation2 + $0x8c] sm:$0x1] %vm569, %v775
    %816 = vst.msk [vmem:[#allocation2 + $0xa4] sm:$0x1] %vm569, %v776
    %817 = vst.msk [vmem:[#allocation2 + $0xbc] sm:$0x1] %vm569, %v777
    %818 = vst.msk [vmem:[#allocation2 + $0xd4] sm:$0x1] %vm569, %v778
    %819 = vst.msk [vmem:[#allocation2 + $0xec] sm:$0x1] %vm569, %v779
    %820 = vst.msk [vmem:[#allocation2 + $0x104] sm:$0x1] %vm569, %v780
    %821 = vst.msk [vmem:[#allocation2 + $0x11c] sm:$0x1] %vm569, %v781
    %822 = vst.msk [vmem:[#allocation2 + $0x134] sm:$0x1] %vm569, %v782
    %823 = vst.msk [vmem:[#allocation2 + $0x14c] sm:$0x1] %vm569, %v783
    %824 = vst.msk [vmem:[#allocation2 + $0x164] sm:$0x1] %vm569, %v784
    %825 = vst.msk [vmem:[#allocation2 + $0x17c] sm:$0x1] %vm569, %v785
    %826 = vst.msk [vmem:[#allocation2 + $0x194] sm:$0x1] %vm569, %v786
    %827 = vst.msk [vmem:[#allocation2 + $0x1ac] sm:$0x1] %vm569, %v787
    %828 = vst.msk [vmem:[#allocation2 + $0x1c4] sm:$0x1] %vm569, %v788
    %829 = vst.msk [vmem:[#allocation2 + $0x1dc] sm:$0x1] %vm569, %v789
    %830 = vst.msk [vmem:[#allocation2 + $0x1f4] sm:$0x1] %vm569, %v790
    %831 = vst.msk [vmem:[#allocation2 + $0x20c] sm:$0x1] %vm569, %v791
    %832 = vst.msk [vmem:[#allocation2 + $0x224] sm:$0x1] %vm569, %v792
    %833 = vst.msk [vmem:[#allocation2 + $0x23c] sm:$0x1] %vm569, %v793
    %834 = vst.msk [vmem:[#allocation2 + $0x254] sm:$0x1] %vm569, %v794
    %835 = vst.msk [vmem:[#allocation2 + $0x26c] sm:$0x1] %vm569, %v795
    %836 = vst.msk [vmem:[#allocation2 + $0x284] sm:$0x1] %vm569, %v796
    %837 = vst.msk [vmem:[#allocation2 + $0x29c] sm:$0x1] %vm569, %v797
    %838 = vst.msk [vmem:[#allocation2 + $0x2b4] sm:$0x1] %vm569, %v798
    %839 = vst.msk [vmem:[#allocation2 + $0x2cc] sm:$0x1] %vm569, %v799
    %840 = vst.msk [vmem:[#allocation2 + $0x2e4] sm:$0x1] %vm569, %v800
    %841 = vst.msk [vmem:[#allocation2 + $0x2fc] sm:$0x1] %vm569, %v801
    %842 = vst.msk [vmem:[#allocation2 + $0x314] sm:$0x1] %vm569, %v802
    %843 = vst.msk [vmem:[#allocation2 + $0x32c] sm:$0x1] %vm569, %v803
    %844 = vst.msk [vmem:[#allocation2 + $0x344] sm:$0x1] %vm569, %v804
    %845 = vst.msk [vmem:[#allocation2 + $0x35c] sm:$0x1] %vm569, %v805
    %846 = vst.msk [vmem:[#allocation2 + $0x374] sm:$0x1] %vm569, %v806
    %847 = vst.msk [vmem:[#allocation2 + $0x38c] sm:$0x1] %vm569, %v807
    %848 = vst.msk [vmem:[#allocation2 + $0x3a4] sm:$0x1] %vm569, %v808
    %849 = vst.msk [vmem:[#allocation2 + $0x3bc] sm:$0x1] %vm569, %v809
    %v850 = vld [vmem:[#allocation2 + $0x6] sm:$0x1]
    %v851 = vld [vmem:[#allocation2 + $0x1e] sm:$0x1]
    %v852 = vld [vmem:[#allocation2 + $0x36] sm:$0x1]
    %v853 = vld [vmem:[#allocation2 + $0x4e] sm:$0x1]
    %v854 = vld [vmem:[#allocation2 + $0x66] sm:$0x1]
    %v855 = vld [vmem:[#allocation2 + $0x7e] sm:$0x1]
    %v856 = vld [vmem:[#allocation2 + $0x96] sm:$0x1]
    %v857 = vld [vmem:[#allocation2 + $0xae] sm:$0x1]
    %v858 = vld [vmem:[#allocation2 + $0xc6] sm:$0x1]
    %v859 = vld [vmem:[#allocation2 + $0xde] sm:$0x1]
    %v860 = vld [vmem:[#allocation2 + $0xf6] sm:$0x1]
    %v861 = vld [vmem:[#allocation2 + $0x10e] sm:$0x1]
    %v862 = vld [vmem:[#allocation2 + $0x126] sm:$0x1]
    %v863 = vld [vmem:[#allocation2 + $0x13e] sm:$0x1]
    %v864 = vld [vmem:[#allocation2 + $0x156] sm:$0x1]
    %v865 = vld [vmem:[#allocation2 + $0x16e] sm:$0x1]
    %v866 = vld [vmem:[#allocation2 + $0x186] sm:$0x1]
    %v867 = vld [vmem:[#allocation2 + $0x19e] sm:$0x1]
    %v868 = vld [vmem:[#allocation2 + $0x1b6] sm:$0x1]
    %v869 = vld [vmem:[#allocation2 + $0x1ce] sm:$0x1]
    %v870 = vld [vmem:[#allocation2 + $0x1e6] sm:$0x1]
    %v871 = vld [vmem:[#allocation2 + $0x1fe] sm:$0x1]
    %v872 = vld [vmem:[#allocation2 + $0x216] sm:$0x1]
    %v873 = vld [vmem:[#allocation2 + $0x22e] sm:$0x1]
    %v874 = vld [vmem:[#allocation2 + $0x246] sm:$0x1]
    %v875 = vld [vmem:[#allocation2 + $0x25e] sm:$0x1]
    %v876 = vld [vmem:[#allocation2 + $0x276] sm:$0x1]
    %v877 = vld [vmem:[#allocation2 + $0x28e] sm:$0x1]
    %v878 = vld [vmem:[#allocation2 + $0x2a6] sm:$0x1]
    %v879 = vld [vmem:[#allocation2 + $0x2be] sm:$0x1]
    %v880 = vld [vmem:[#allocation2 + $0x2d6] sm:$0x1]
    %v881 = vld [vmem:[#allocation2 + $0x2ee] sm:$0x1]
    %v882 = vld [vmem:[#allocation2 + $0x306] sm:$0x1]
    %v883 = vld [vmem:[#allocation2 + $0x31e] sm:$0x1]
    %v884 = vld [vmem:[#allocation2 + $0x336] sm:$0x1]
    %v885 = vld [vmem:[#allocation2 + $0x34e] sm:$0x1]
    %v886 = vld [vmem:[#allocation2 + $0x366] sm:$0x1]
    %v887 = vld [vmem:[#allocation2 + $0x37e] sm:$0x1]
    %v888 = vld [vmem:[#allocation2 + $0x396] sm:$0x1]
    %v889 = vld [vmem:[#allocation2 + $0x3ae] sm:$0x1]
    %890 = vst.msk [vmem:[#allocation2] sm:$0x1] %vm569, %v850
    %891 = vst.msk [vmem:[#allocation2 + $0x18] sm:$0x1] %vm569, %v851
    %892 = vst.msk [vmem:[#allocation2 + $0x30] sm:$0x1] %vm569, %v852
    %893 = vst.msk [vmem:[#allocation2 + $0x48] sm:$0x1] %vm569, %v853
    %894 = vst.msk [vmem:[#allocation2 + $0x60] sm:$0x1] %vm569, %v854
    %895 = vst.msk [vmem:[#allocation2 + $0x78] sm:$0x1] %vm569, %v855
    %896 = vst.msk [vmem:[#allocation2 + $0x90] sm:$0x1] %vm569, %v856
    %897 = vst.msk [vmem:[#allocation2 + $0xa8] sm:$0x1] %vm569, %v857
    %898 = vst.msk [vmem:[#allocation2 + $0xc0] sm:$0x1] %vm569, %v858
    %899 = vst.msk [vmem:[#allocation2 + $0xd8] sm:$0x1] %vm569, %v859
    %900 = vst.msk [vmem:[#allocation2 + $0xf0] sm:$0x1] %vm569, %v860
    %901 = vst.msk [vmem:[#allocation2 + $0x108] sm:$0x1] %vm569, %v861
    %902 = vst.msk [vmem:[#allocation2 + $0x120] sm:$0x1] %vm569, %v862
    %903 = vst.msk [vmem:[#allocation2 + $0x138] sm:$0x1] %vm569, %v863
    %904 = vst.msk [vmem:[#allocation2 + $0x150] sm:$0x1] %vm569, %v864
    %905 = vst.msk [vmem:[#allocation2 + $0x168] sm:$0x1] %vm569, %v865
    %906 = vst.msk [vmem:[#allocation2 + $0x180] sm:$0x1] %vm569, %v866
    %907 = vst.msk [vmem:[#allocation2 + $0x198] sm:$0x1] %vm569, %v867
    %908 = vst.msk [vmem:[#allocation2 + $0x1b0] sm:$0x1] %vm569, %v868
    %909 = vst.msk [vmem:[#allocation2 + $0x1c8] sm:$0x1] %vm569, %v869
    %910 = vst.msk [vmem:[#allocation2 + $0x1e0] sm:$0x1] %vm569, %v870
    %911 = vst.msk [vmem:[#allocation2 + $0x1f8] sm:$0x1] %vm569, %v871
    %912 = vst.msk [vmem:[#allocation2 + $0x210] sm:$0x1] %vm569, %v872
    %913 = vst.msk [vmem:[#allocation2 + $0x228] sm:$0x1] %vm569, %v873
    %914 = vst.msk [vmem:[#allocation2 + $0x240] sm:$0x1] %vm569, %v874
    %915 = vst.msk [vmem:[#allocation2 + $0x258] sm:$0x1] %vm569, %v875
    %916 = vst.msk [vmem:[#allocation2 + $0x270] sm:$0x1] %vm569, %v876
    %917 = vst.msk [vmem:[#allocation2 + $0x288] sm:$0x1] %vm569, %v877
    %918 = vst.msk [vmem:[#allocation2 + $0x2a0] sm:$0x1] %vm569, %v878
    %919 = vst.msk [vmem:[#allocation2 + $0x2b8] sm:$0x1] %vm569, %v879
    %920 = vst.msk [vmem:[#allocation2 + $0x2d0] sm:$0x1] %vm569, %v880
    %921 = vst.msk [vmem:[#allocation2 + $0x2e8] sm:$0x1] %vm569, %v881
    %922 = vst.msk [vmem:[#allocation2 + $0x300] sm:$0x1] %vm569, %v882
    %923 = vst.msk [vmem:[#allocation2 + $0x318] sm:$0x1] %vm569, %v883
    %924 = vst.msk [vmem:[#allocation2 + $0x330] sm:$0x1] %vm569, %v884
    %925 = vst.msk [vmem:[#allocation2 + $0x348] sm:$0x1] %vm569, %v885
    %926 = vst.msk [vmem:[#allocation2 + $0x360] sm:$0x1] %vm569, %v886
    %927 = vst.msk [vmem:[#allocation2 + $0x378] sm:$0x1] %vm569, %v887
    %928 = vst.msk [vmem:[#allocation2 + $0x390] sm:$0x1] %vm569, %v888
    %929 = vst.msk [vmem:[#allocation2 + $0x3a8] sm:$0x1] %vm569, %v889
    %v930 = vld [vmem:[#allocation2 + $0xf] sm:$0x1]
    %v931 = vld [vmem:[#allocation2 + $0x27] sm:$0x1]
    %v932 = vld [vmem:[#allocation2 + $0x3f] sm:$0x1]
    %v933 = vld [vmem:[#allocation2 + $0x57] sm:$0x1]
    %v934 = vld [vmem:[#allocation2 + $0x6f] sm:$0x1]
    %v935 = vld [vmem:[#allocation2 + $0x87] sm:$0x1]
    %v936 = vld [vmem:[#allocation2 + $0x9f] sm:$0x1]
    %v937 = vld [vmem:[#allocation2 + $0xb7] sm:$0x1]
    %v938 = vld [vmem:[#allocation2 + $0xcf] sm:$0x1]
    %v939 = vld [vmem:[#allocation2 + $0xe7] sm:$0x1]
    %v940 = vld [vmem:[#allocation2 + $0xff] sm:$0x1]
    %v941 = vld [vmem:[#allocation2 + $0x117] sm:$0x1]
    %v942 = vld [vmem:[#allocation2 + $0x12f] sm:$0x1]
    %v943 = vld [vmem:[#allocation2 + $0x147] sm:$0x1]
    %v944 = vld [vmem:[#allocation2 + $0x15f] sm:$0x1]
    %v945 = vld [vmem:[#allocation2 + $0x177] sm:$0x1]
    %v946 = vld [vmem:[#allocation2 + $0x18f] sm:$0x1]
    %v947 = vld [vmem:[#allocation2 + $0x1a7] sm:$0x1]
    %v948 = vld [vmem:[#allocation2 + $0x1bf] sm:$0x1]
    %v949 = vld [vmem:[#allocation2 + $0x1d7] sm:$0x1]
    %v950 = vld [vmem:[#allocation2 + $0x1ef] sm:$0x1]
    %v951 = vld [vmem:[#allocation2 + $0x207] sm:$0x1]
    %v952 = vld [vmem:[#allocation2 + $0x21f] sm:$0x1]
    %v953 = vld [vmem:[#allocation2 + $0x237] sm:$0x1]
    %v954 = vld [vmem:[#allocation2 + $0x24f] sm:$0x1]
    %v955 = vld [vmem:[#allocation2 + $0x267] sm:$0x1]
    %v956 = vld [vmem:[#allocation2 + $0x27f] sm:$0x1]
    %v957 = vld [vmem:[#allocation2 + $0x297] sm:$0x1]
    %v958 = vld [vmem:[#allocation2 + $0x2af] sm:$0x1]
    %v959 = vld [vmem:[#allocation2 + $0x2c7] sm:$0x1]
    %v960 = vld [vmem:[#allocation2 + $0x2df] sm:$0x1]
    %v961 = vld [vmem:[#allocation2 + $0x2f7] sm:$0x1]
    %v962 = vld [vmem:[#allocation2 + $0x30f] sm:$0x1]
    %v963 = vld [vmem:[#allocation2 + $0x327] sm:$0x1]
    %v964 = vld [vmem:[#allocation2 + $0x33f] sm:$0x1]
    %v965 = vld [vmem:[#allocation2 + $0x357] sm:$0x1]
    %v966 = vld [vmem:[#allocation2 + $0x36f] sm:$0x1]
    %v967 = vld [vmem:[#allocation2 + $0x387] sm:$0x1]
    %v968 = vld [vmem:[#allocation2 + $0x39f] sm:$0x1]
    %v969 = vld [vmem:[#allocation2 + $0x3b7] sm:$0x1]
    %970 = vst.msk [vmem:[#allocation2 + $0x15] sm:$0x1] %vm569, %v930
    %971 = vst.msk [vmem:[#allocation2 + $0x2d] sm:$0x1] %vm569, %v931
    %972 = vst.msk [vmem:[#allocation2 + $0x45] sm:$0x1] %vm569, %v932
    %973 = vst.msk [vmem:[#allocation2 + $0x5d] sm:$0x1] %vm569, %v933
    %974 = vst.msk [vmem:[#allocation2 + $0x75] sm:$0x1] %vm569, %v934
    %975 = vst.msk [vmem:[#allocation2 + $0x8d] sm:$0x1] %vm569, %v935
    %976 = vst.msk [vmem:[#allocation2 + $0xa5] sm:$0x1] %vm569, %v936
    %977 = vst.msk [vmem:[#allocation2 + $0xbd] sm:$0x1] %vm569, %v937
    %978 = vst.msk [vmem:[#allocation2 + $0xd5] sm:$0x1] %vm569, %v938
    %979 = vst.msk [vmem:[#allocation2 + $0xed] sm:$0x1] %vm569, %v939
    %980 = vst.msk [vmem:[#allocation2 + $0x105] sm:$0x1] %vm569, %v940
    %981 = vst.msk [vmem:[#allocation2 + $0x11d] sm:$0x1] %vm569, %v941
    %982 = vst.msk [vmem:[#allocation2 + $0x135] sm:$0x1] %vm569, %v942
    %983 = vst.msk [vmem:[#allocation2 + $0x14d] sm:$0x1] %vm569, %v943
    %984 = vst.msk [vmem:[#allocation2 + $0x165] sm:$0x1] %vm569, %v944
    %985 = vst.msk [vmem:[#allocation2 + $0x17d] sm:$0x1] %vm569, %v945
    %986 = vst.msk [vmem:[#allocation2 + $0x195] sm:$0x1] %vm569, %v946
    %987 = vst.msk [vmem:[#allocation2 + $0x1ad] sm:$0x1] %vm569, %v947
    %988 = vst.msk [vmem:[#allocation2 + $0x1c5] sm:$0x1] %vm569, %v948
    %989 = vst.msk [vmem:[#allocation2 + $0x1dd] sm:$0x1] %vm569, %v949
    %990 = vst.msk [vmem:[#allocation2 + $0x1f5] sm:$0x1] %vm569, %v950
    %991 = vst.msk [vmem:[#allocation2 + $0x20d] sm:$0x1] %vm569, %v951
    %992 = vst.msk [vmem:[#allocation2 + $0x225] sm:$0x1] %vm569, %v952
    %993 = vst.msk [vmem:[#allocation2 + $0x23d] sm:$0x1] %vm569, %v953
    %994 = vst.msk [vmem:[#allocation2 + $0x255] sm:$0x1] %vm569, %v954
    %995 = vst.msk [vmem:[#allocation2 + $0x26d] sm:$0x1] %vm569, %v955
    %996 = vst.msk [vmem:[#allocation2 + $0x285] sm:$0x1] %vm569, %v956
    %997 = vst.msk [vmem:[#allocation2 + $0x29d] sm:$0x1] %vm569, %v957
    %998 = vst.msk [vmem:[#allocation2 + $0x2b5] sm:$0x1] %vm569, %v958
    %999 = vst.msk [vmem:[#allocation2 + $0x2cd] sm:$0x1] %vm569, %v959
    %1000 = vst.msk [vmem:[#allocation2 + $0x2e5] sm:$0x1] %vm569, %v960
    %1001 = vst.msk [vmem:[#allocation2 + $0x2fd] sm:$0x1] %vm569, %v961
    %1002 = vst.msk [vmem:[#allocation2 + $0x315] sm:$0x1] %vm569, %v962
    %1003 = vst.msk [vmem:[#allocation2 + $0x32d] sm:$0x1] %vm569, %v963
    %1004 = vst.msk [vmem:[#allocation2 + $0x345] sm:$0x1] %vm569, %v964
    %1005 = vst.msk [vmem:[#allocation2 + $0x35d] sm:$0x1] %vm569, %v965
    %1006 = vst.msk [vmem:[#allocation2 + $0x375] sm:$0x1] %vm569, %v966
    %1007 = vst.msk [vmem:[#allocation2 + $0x38d] sm:$0x1] %vm569, %v967
    %1008 = vst.msk [vmem:[#allocation2 + $0x3a5] sm:$0x1] %vm569, %v968
    %1009 = vst.msk [vmem:[#allocation2 + $0x3bd] sm:$0x1] %vm569, %v969
    %v1010 = vld [vmem:[#allocation2] sm:$0xff]
    %v1011 = vld [vmem:[#allocation2 + $0x8] sm:$0xff]
    %v1012 = vld [vmem:[#allocation2 + $0x10] sm:$0x3f]
    %v1013 = vld [vmem:[#allocation2 + $0x18] sm:$0xff]
    %v1014 = vld [vmem:[#allocation2 + $0x20] sm:$0xff]
    %v1015 = vld [vmem:[#allocation2 + $0x28] sm:$0x3f]
    %v1016 = vld [vmem:[#allocation2 + $0x30] sm:$0xff]
    %v1017 = vld [vmem:[#allocation2 + $0x38] sm:$0xff]
    %v1018 = vld [vmem:[#allocation2 + $0x40] sm:$0x3f]
    %v1019 = vld [vmem:[#allocation2 + $0x48] sm:$0xff]
    %v1020 = vld [vmem:[#allocation2 + $0x50] sm:$0xff]
    %v1021 = vld [vmem:[#allocation2 + $0x58] sm:$0x3f]
    %v1022 = vld [vmem:[#allocation2 + $0x60] sm:$0xff]
    %v1023 = vld [vmem:[#allocation2 + $0x68] sm:$0xff]
    %v1024 = vld [vmem:[#allocation2 + $0x70] sm:$0x3f]
    %v1025 = vld [vmem:[#allocation2 + $0x78] sm:$0xff]
    %v1026 = vld [vmem:[#allocation2 + $0x80] sm:$0xff]
    %v1027 = vld [vmem:[#allocation2 + $0x88] sm:$0x3f]
    %v1028 = vld [vmem:[#allocation2 + $0x90] sm:$0xff]
    %v1029 = vld [vmem:[#allocation2 + $0x98] sm:$0xff]
    %v1030 = vld [vmem:[#allocation2 + $0xa0] sm:$0x3f]
    %v1031 = vld [vmem:[#allocation2 + $0xa8] sm:$0xff]
    %v1032 = vld [vmem:[#allocation2 + $0xb0] sm:$0xff]
    %v1033 = vld [vmem:[#allocation2 + $0xb8] sm:$0x3f]
    %v1034 = vld [vmem:[#allocation2 + $0xc0] sm:$0xff]
    %v1035 = vld [vmem:[#allocation2 + $0xc8] sm:$0xff]
    %v1036 = vld [vmem:[#allocation2 + $0xd0] sm:$0x3f]
    %v1037 = vld [vmem:[#allocation2 + $0xd8] sm:$0xff]
    %v1038 = vld [vmem:[#allocation2 + $0xe0] sm:$0xff]
    %v1039 = vld [vmem:[#allocation2 + $0xe8] sm:$0x3f]
    %v1040 = vld [vmem:[#allocation2 + $0xf0] sm:$0xff]
    %v1041 = vld [vmem:[#allocation2 + $0xf8] sm:$0xff]
    %v1042 = vld [vmem:[#allocation2 + $0x100] sm:$0x3f]
    %v1043 = vld [vmem:[#allocation2 + $0x108] sm:$0xff]
    %v1044 = vld [vmem:[#allocation2 + $0x110] sm:$0xff]
    %v1045 = vld [vmem:[#allocation2 + $0x118] sm:$0x3f]
    %v1046 = vld [vmem:[#allocation2 + $0x120] sm:$0xff]
    %v1047 = vld [vmem:[#allocation2 + $0x128] sm:$0xff]
    %v1048 = vld [vmem:[#allocation2 + $0x130] sm:$0x3f]
    %v1049 = vld [vmem:[#allocation2 + $0x138] sm:$0xff]
    %v1050 = vld [vmem:[#allocation2 + $0x140] sm:$0xff]
    %v1051 = vld [vmem:[#allocation2 + $0x148] sm:$0x3f]
    %v1052 = vld [vmem:[#allocation2 + $0x150] sm:$0xff]
    %v1053 = vld [vmem:[#allocation2 + $0x158] sm:$0xff]
    %v1054 = vld [vmem:[#allocation2 + $0x160] sm:$0x3f]
    %v1055 = vld [vmem:[#allocation2 + $0x168] sm:$0xff]
    %v1056 = vld [vmem:[#allocation2 + $0x170] sm:$0xff]
    %v1057 = vld [vmem:[#allocation2 + $0x178] sm:$0x3f]
    %v1058 = vld [vmem:[#allocation2 + $0x180] sm:$0xff]
    %v1059 = vld [vmem:[#allocation2 + $0x188] sm:$0xff]
    %v1060 = vld [vmem:[#allocation2 + $0x190] sm:$0x3f]
    %v1061 = vld [vmem:[#allocation2 + $0x198] sm:$0xff]
    %v1062 = vld [vmem:[#allocation2 + $0x1a0] sm:$0xff]
    %v1063 = vld [vmem:[#allocation2 + $0x1a8] sm:$0x3f]
    %v1064 = vld [vmem:[#allocation2 + $0x1b0] sm:$0xff]
    %v1065 = vld [vmem:[#allocation2 + $0x1b8] sm:$0xff]
    %v1066 = vld [vmem:[#allocation2 + $0x1c0] sm:$0x3f]
    %v1067 = vld [vmem:[#allocation2 + $0x1c8] sm:$0xff]
    %v1068 = vld [vmem:[#allocation2 + $0x1d0] sm:$0xff]
    %v1069 = vld [vmem:[#allocation2 + $0x1d8] sm:$0x3f]
    %v1070 = vld [vmem:[#allocation2 + $0x1e0] sm:$0xff]
    %v1071 = vld [vmem:[#allocation2 + $0x1e8] sm:$0xff]
    %v1072 = vld [vmem:[#allocation2 + $0x1f0] sm:$0x3f]
    %v1073 = vld [vmem:[#allocation2 + $0x1f8] sm:$0xff]
    %v1074 = vld [vmem:[#allocation2 + $0x200] sm:$0xff]
    %v1075 = vld [vmem:[#allocation2 + $0x208] sm:$0x3f]
    %v1076 = vld [vmem:[#allocation2 + $0x210] sm:$0xff]
    %v1077 = vld [vmem:[#allocation2 + $0x218] sm:$0xff]
    %v1078 = vld [vmem:[#allocation2 + $0x220] sm:$0x3f]
    %v1079 = vld [vmem:[#allocation2 + $0x228] sm:$0xff]
    %v1080 = vld [vmem:[#allocation2 + $0x230] sm:$0xff]
    %v1081 = vld [vmem:[#allocation2 + $0x238] sm:$0x3f]
    %v1082 = vld [vmem:[#allocation2 + $0x240] sm:$0xff]
    %v1083 = vld [vmem:[#allocation2 + $0x248] sm:$0xff]
    %v1084 = vld [vmem:[#allocation2 + $0x250] sm:$0x3f]
    %v1085 = vld [vmem:[#allocation2 + $0x258] sm:$0xff]
    %v1086 = vld [vmem:[#allocation2 + $0x260] sm:$0xff]
    %v1087 = vld [vmem:[#allocation2 + $0x268] sm:$0x3f]
    %v1088 = vld [vmem:[#allocation2 + $0x270] sm:$0xff]
    %v1089 = vld [vmem:[#allocation2 + $0x278] sm:$0xff]
    %v1090 = vld [vmem:[#allocation2 + $0x280] sm:$0x3f]
    %v1091 = vld [vmem:[#allocation2 + $0x288] sm:$0xff]
    %v1092 = vld [vmem:[#allocation2 + $0x290] sm:$0xff]
    %v1093 = vld [vmem:[#allocation2 + $0x298] sm:$0x3f]
    %v1094 = vld [vmem:[#allocation2 + $0x2a0] sm:$0xff]
    %v1095 = vld [vmem:[#allocation2 + $0x2a8] sm:$0xff]
    %v1096 = vld [vmem:[#allocation2 + $0x2b0] sm:$0x3f]
    %v1097 = vld [vmem:[#allocation2 + $0x2b8] sm:$0xff]
    %v1098 = vld [vmem:[#allocation2 + $0x2c0] sm:$0xff]
    %v1099 = vld [vmem:[#allocation2 + $0x2c8] sm:$0x3f]
    %v1100 = vld [vmem:[#allocation2 + $0x2d0] sm:$0xff]
    %v1101 = vld [vmem:[#allocation2 + $0x2d8] sm:$0xff]
    %v1102 = vld [vmem:[#allocation2 + $0x2e0] sm:$0x3f]
    %v1103 = vld [vmem:[#allocation2 + $0x2e8] sm:$0xff]
    %v1104 = vld [vmem:[#allocation2 + $0x2f0] sm:$0xff]
    %v1105 = vld [vmem:[#allocation2 + $0x2f8] sm:$0x3f]
    %v1106 = vld [vmem:[#allocation2 + $0x300] sm:$0xff]
    %v1107 = vld [vmem:[#allocation2 + $0x308] sm:$0xff]
    %v1108 = vld [vmem:[#allocation2 + $0x310] sm:$0x3f]
    %v1109 = vld [vmem:[#allocation2 + $0x318] sm:$0xff]
    %v1110 = vld [vmem:[#allocation2 + $0x320] sm:$0xff]
    %v1111 = vld [vmem:[#allocation2 + $0x328] sm:$0x3f]
    %v1112 = vld [vmem:[#allocation2 + $0x330] sm:$0xff]
    %v1113 = vld [vmem:[#allocation2 + $0x338] sm:$0xff]
    %v1114 = vld [vmem:[#allocation2 + $0x340] sm:$0x3f]
    %v1115 = vld [vmem:[#allocation2 + $0x348] sm:$0xff]
    %v1116 = vld [vmem:[#allocation2 + $0x350] sm:$0xff]
    %v1117 = vld [vmem:[#allocation2 + $0x358] sm:$0x3f]
    %v1118 = vld [vmem:[#allocation2 + $0x360] sm:$0xff]
    %v1119 = vld [vmem:[#allocation2 + $0x368] sm:$0xff]
    %v1120 = vld [vmem:[#allocation2 + $0x370] sm:$0x3f]
    %v1121 = vld [vmem:[#allocation2 + $0x378] sm:$0xff]
    %v1122 = vld [vmem:[#allocation2 + $0x380] sm:$0xff]
    %v1123 = vld [vmem:[#allocation2 + $0x388] sm:$0x3f]
    %v1124 = vld [vmem:[#allocation2 + $0x390] sm:$0xff]
    %v1125 = vld [vmem:[#allocation2 + $0x398] sm:$0xff]
    %v1126 = vld [vmem:[#allocation2 + $0x3a0] sm:$0x3f]
    %v1127 = vld [vmem:[#allocation2 + $0x3a8] sm:$0xff]
    %v1128 = vld [vmem:[#allocation2 + $0x3b0] sm:$0xff]
    %v1129 = vld [vmem:[#allocation2 + $0x3b8] sm:$0x3f]
    %1250 = vrot.lane.b32.xlu0 %v1010, 126
    %v1251 = vpop.permute.xlu0 %1250
    %1252 = vrot.lane.b32.xlu0 %v1011, 126
    %v1253 = vpop.permute.xlu0 %1252
    %1254 = vrot.lane.b32.xlu0 %v1012, 126
    %v1255 = vpop.permute.xlu0 %1254
    %1256 = vrot.lane.b32.xlu0 %v1013, 126
    %v1257 = vpop.permute.xlu0 %1256
    %1258 = vrot.lane.b32.xlu0 %v1014, 126
    %v1259 = vpop.permute.xlu0 %1258
    %1260 = vrot.lane.b32.xlu0 %v1015, 126
    %v1261 = vpop.permute.xlu0 %1260
    %1262 = vrot.lane.b32.xlu0 %v1016, 126
    %v1263 = vpop.permute.xlu0 %1262
    %1264 = vrot.lane.b32.xlu0 %v1017, 126
    %v1265 = vpop.permute.xlu0 %1264
    %1266 = vrot.lane.b32.xlu0 %v1018, 126
    %v1267 = vpop.permute.xlu0 %1266
    %1268 = vrot.lane.b32.xlu0 %v1019, 126
    %v1269 = vpop.permute.xlu0 %1268
    %1270 = vrot.lane.b32.xlu0 %v1020, 126
    %v1271 = vpop.permute.xlu0 %1270
    %1272 = vrot.lane.b32.xlu0 %v1021, 126
    %v1273 = vpop.permute.xlu0 %1272
    %1274 = vrot.lane.b32.xlu0 %v1022, 126
    %v1275 = vpop.permute.xlu0 %1274
    %1276 = vrot.lane.b32.xlu0 %v1023, 126
    %v1277 = vpop.permute.xlu0 %1276
    %1278 = vrot.lane.b32.xlu0 %v1024, 126
    %v1279 = vpop.permute.xlu0 %1278
    %1280 = vrot.lane.b32.xlu0 %v1025, 126
    %v1281 = vpop.permute.xlu0 %1280
    %1282 = vrot.lane.b32.xlu0 %v1026, 126
    %v1283 = vpop.permute.xlu0 %1282
    %1284 = vrot.lane.b32.xlu0 %v1027, 126
    %v1285 = vpop.permute.xlu0 %1284
    %1286 = vrot.lane.b32.xlu0 %v1028, 126
    %v1287 = vpop.permute.xlu0 %1286
    %1288 = vrot.lane.b32.xlu0 %v1029, 126
    %v1289 = vpop.permute.xlu0 %1288
    %1290 = vrot.lane.b32.xlu0 %v1030, 126
    %v1291 = vpop.permute.xlu0 %1290
    %1292 = vrot.lane.b32.xlu0 %v1031, 126
    %v1293 = vpop.permute.xlu0 %1292
    %1294 = vrot.lane.b32.xlu0 %v1032, 126
    %v1295 = vpop.permute.xlu0 %1294
    %1296 = vrot.lane.b32.xlu0 %v1033, 126
    %v1297 = vpop.permute.xlu0 %1296
    %1298 = vrot.lane.b32.xlu0 %v1034, 126
    %v1299 = vpop.permute.xlu0 %1298
    %1300 = vrot.lane.b32.xlu0 %v1035, 126
    %v1301 = vpop.permute.xlu0 %1300
    %1302 = vrot.lane.b32.xlu0 %v1036, 126
    %v1303 = vpop.permute.xlu0 %1302
    %1304 = vrot.lane.b32.xlu0 %v1037, 126
    %v1305 = vpop.permute.xlu0 %1304
    %1306 = vrot.lane.b32.xlu0 %v1038, 126
    %v1307 = vpop.permute.xlu0 %1306
    %1308 = vrot.lane.b32.xlu0 %v1039, 126
    %v1309 = vpop.permute.xlu0 %1308
    %1310 = vrot.lane.b32.xlu0 %v1040, 126
    %v1311 = vpop.permute.xlu0 %1310
    %1312 = vrot.lane.b32.xlu0 %v1041, 126
    %v1313 = vpop.permute.xlu0 %1312
    %1314 = vrot.lane.b32.xlu0 %v1042, 126
    %v1315 = vpop.permute.xlu0 %1314
    %1316 = vrot.lane.b32.xlu0 %v1043, 126
    %v1317 = vpop.permute.xlu0 %1316
    %1318 = vrot.lane.b32.xlu0 %v1044, 126
    %v1319 = vpop.permute.xlu0 %1318
    %1320 = vrot.lane.b32.xlu0 %v1045, 126
    %v1321 = vpop.permute.xlu0 %1320
    %1322 = vrot.lane.b32.xlu0 %v1046, 126
    %v1323 = vpop.permute.xlu0 %1322
    %1324 = vrot.lane.b32.xlu0 %v1047, 126
    %v1325 = vpop.permute.xlu0 %1324
    %1326 = vrot.lane.b32.xlu0 %v1048, 126
    %v1327 = vpop.permute.xlu0 %1326
    %1328 = vrot.lane.b32.xlu0 %v1049, 126
    %v1329 = vpop.permute.xlu0 %1328
    %1330 = vrot.lane.b32.xlu0 %v1050, 126
    %v1331 = vpop.permute.xlu0 %1330
    %1332 = vrot.lane.b32.xlu0 %v1051, 126
    %v1333 = vpop.permute.xlu0 %1332
    %1334 = vrot.lane.b32.xlu0 %v1052, 126
    %v1335 = vpop.permute.xlu0 %1334
    %1336 = vrot.lane.b32.xlu0 %v1053, 126
    %v1337 = vpop.permute.xlu0 %1336
    %1338 = vrot.lane.b32.xlu0 %v1054, 126
    %v1339 = vpop.permute.xlu0 %1338
    %1340 = vrot.lane.b32.xlu0 %v1055, 126
    %v1341 = vpop.permute.xlu0 %1340
    %1342 = vrot.lane.b32.xlu0 %v1056, 126
    %v1343 = vpop.permute.xlu0 %1342
    %1344 = vrot.lane.b32.xlu0 %v1057, 126
    %v1345 = vpop.permute.xlu0 %1344
    %1346 = vrot.lane.b32.xlu0 %v1058, 126
    %v1347 = vpop.permute.xlu0 %1346
    %1348 = vrot.lane.b32.xlu0 %v1059, 126
    %v1349 = vpop.permute.xlu0 %1348
    %1350 = vrot.lane.b32.xlu0 %v1060, 126
    %v1351 = vpop.permute.xlu0 %1350
    %1352 = vrot.lane.b32.xlu0 %v1061, 126
    %v1353 = vpop.permute.xlu0 %1352
    %1354 = vrot.lane.b32.xlu0 %v1062, 126
    %v1355 = vpop.permute.xlu0 %1354
    %1356 = vrot.lane.b32.xlu0 %v1063, 126
    %v1357 = vpop.permute.xlu0 %1356
    %1358 = vrot.lane.b32.xlu0 %v1064, 126
    %v1359 = vpop.permute.xlu0 %1358
    %1360 = vrot.lane.b32.xlu0 %v1065, 126
    %v1361 = vpop.permute.xlu0 %1360
    %1362 = vrot.lane.b32.xlu0 %v1066, 126
    %v1363 = vpop.permute.xlu0 %1362
    %1364 = vrot.lane.b32.xlu0 %v1067, 126
    %v1365 = vpop.permute.xlu0 %1364
    %1366 = vrot.lane.b32.xlu0 %v1068, 126
    %v1367 = vpop.permute.xlu0 %1366
    %1368 = vrot.lane.b32.xlu0 %v1069, 126
    %v1369 = vpop.permute.xlu0 %1368
    %1370 = vrot.lane.b32.xlu0 %v1070, 126
    %v1371 = vpop.permute.xlu0 %1370
    %1372 = vrot.lane.b32.xlu0 %v1071, 126
    %v1373 = vpop.permute.xlu0 %1372
    %1374 = vrot.lane.b32.xlu0 %v1072, 126
    %v1375 = vpop.permute.xlu0 %1374
    %1376 = vrot.lane.b32.xlu0 %v1073, 126
    %v1377 = vpop.permute.xlu0 %1376
    %1378 = vrot.lane.b32.xlu0 %v1074, 126
    %v1379 = vpop.permute.xlu0 %1378
    %1380 = vrot.lane.b32.xlu0 %v1075, 126
    %v1381 = vpop.permute.xlu0 %1380
    %1382 = vrot.lane.b32.xlu0 %v1076, 126
    %v1383 = vpop.permute.xlu0 %1382
    %1384 = vrot.lane.b32.xlu0 %v1077, 126
    %v1385 = vpop.permute.xlu0 %1384
    %1386 = vrot.lane.b32.xlu0 %v1078, 126
    %v1387 = vpop.permute.xlu0 %1386
    %1388 = vrot.lane.b32.xlu0 %v1079, 126
    %v1389 = vpop.permute.xlu0 %1388
    %1390 = vrot.lane.b32.xlu0 %v1080, 126
    %v1391 = vpop.permute.xlu0 %1390
    %1392 = vrot.lane.b32.xlu0 %v1081, 126
    %v1393 = vpop.permute.xlu0 %1392
    %1394 = vrot.lane.b32.xlu0 %v1082, 126
    %v1395 = vpop.permute.xlu0 %1394
    %1396 = vrot.lane.b32.xlu0 %v1083, 126
    %v1397 = vpop.permute.xlu0 %1396
    %1398 = vrot.lane.b32.xlu0 %v1084, 126
    %v1399 = vpop.permute.xlu0 %1398
    %1400 = vrot.lane.b32.xlu0 %v1085, 126
    %v1401 = vpop.permute.xlu0 %1400
    %1402 = vrot.lane.b32.xlu0 %v1086, 126
    %v1403 = vpop.permute.xlu0 %1402
    %1404 = vrot.lane.b32.xlu0 %v1087, 126
    %v1405 = vpop.permute.xlu0 %1404
    %1406 = vrot.lane.b32.xlu0 %v1088, 126
    %v1407 = vpop.permute.xlu0 %1406
    %1408 = vrot.lane.b32.xlu0 %v1089, 126
    %v1409 = vpop.permute.xlu0 %1408
    %1410 = vrot.lane.b32.xlu0 %v1090, 126
    %v1411 = vpop.permute.xlu0 %1410
    %1412 = vrot.lane.b32.xlu0 %v1091, 126
    %v1413 = vpop.permute.xlu0 %1412
    %1414 = vrot.lane.b32.xlu0 %v1092, 126
    %v1415 = vpop.permute.xlu0 %1414
    %1416 = vrot.lane.b32.xlu0 %v1093, 126
    %v1417 = vpop.permute.xlu0 %1416
    %1418 = vrot.lane.b32.xlu0 %v1094, 126
    %v1419 = vpop.permute.xlu0 %1418
    %1420 = vrot.lane.b32.xlu0 %v1095, 126
    %v1421 = vpop.permute.xlu0 %1420
    %1422 = vrot.lane.b32.xlu0 %v1096, 126
    %v1423 = vpop.permute.xlu0 %1422
    %1424 = vrot.lane.b32.xlu0 %v1097, 126
    %v1425 = vpop.permute.xlu0 %1424
    %1426 = vrot.lane.b32.xlu0 %v1098, 126
    %v1427 = vpop.permute.xlu0 %1426
    %1428 = vrot.lane.b32.xlu0 %v1099, 126
    %v1429 = vpop.permute.xlu0 %1428
    %1430 = vrot.lane.b32.xlu0 %v1100, 126
    %v1431 = vpop.permute.xlu0 %1430
    %1432 = vrot.lane.b32.xlu0 %v1101, 126
    %v1433 = vpop.permute.xlu0 %1432
    %1434 = vrot.lane.b32.xlu0 %v1102, 126
    %v1435 = vpop.permute.xlu0 %1434
    %1436 = vrot.lane.b32.xlu0 %v1103, 126
    %v1437 = vpop.permute.xlu0 %1436
    %1438 = vrot.lane.b32.xlu0 %v1104, 126
    %v1439 = vpop.permute.xlu0 %1438
    %1440 = vrot.lane.b32.xlu0 %v1105, 126
    %v1441 = vpop.permute.xlu0 %1440
    %1442 = vrot.lane.b32.xlu0 %v1106, 126
    %v1443 = vpop.permute.xlu0 %1442
    %1444 = vrot.lane.b32.xlu0 %v1107, 126
    %v1445 = vpop.permute.xlu0 %1444
    %1446 = vrot.lane.b32.xlu0 %v1108, 126
    %v1447 = vpop.permute.xlu0 %1446
    %1448 = vrot.lane.b32.xlu0 %v1109, 126
    %v1449 = vpop.permute.xlu0 %1448
    %1450 = vrot.lane.b32.xlu0 %v1110, 126
    %v1451 = vpop.permute.xlu0 %1450
    %1452 = vrot.lane.b32.xlu0 %v1111, 126
    %v1453 = vpop.permute.xlu0 %1452
    %1454 = vrot.lane.b32.xlu0 %v1112, 126
    %v1455 = vpop.permute.xlu0 %1454
    %1456 = vrot.lane.b32.xlu0 %v1113, 126
    %v1457 = vpop.permute.xlu0 %1456
    %1458 = vrot.lane.b32.xlu0 %v1114, 126
    %v1459 = vpop.permute.xlu0 %1458
    %1460 = vrot.lane.b32.xlu0 %v1115, 126
    %v1461 = vpop.permute.xlu0 %1460
    %1462 = vrot.lane.b32.xlu0 %v1116, 126
    %v1463 = vpop.permute.xlu0 %1462
    %1464 = vrot.lane.b32.xlu0 %v1117, 126
    %v1465 = vpop.permute.xlu0 %1464
    %1466 = vrot.lane.b32.xlu0 %v1118, 126
    %v1467 = vpop.permute.xlu0 %1466
    %1468 = vrot.lane.b32.xlu0 %v1119, 126
    %v1469 = vpop.permute.xlu0 %1468
    %1470 = vrot.lane.b32.xlu0 %v1120, 126
    %v1471 = vpop.permute.xlu0 %1470
    %1472 = vrot.lane.b32.xlu0 %v1121, 126
    %v1473 = vpop.permute.xlu0 %1472
    %1474 = vrot.lane.b32.xlu0 %v1122, 126
    %v1475 = vpop.permute.xlu0 %1474
    %1476 = vrot.lane.b32.xlu0 %v1123, 126
    %v1477 = vpop.permute.xlu0 %1476
    %1478 = vrot.lane.b32.xlu0 %v1124, 126
    %v1479 = vpop.permute.xlu0 %1478
    %1480 = vrot.lane.b32.xlu0 %v1125, 126
    %v1481 = vpop.permute.xlu0 %1480
    %1482 = vrot.lane.b32.xlu0 %v1126, 126
    %v1483 = vpop.permute.xlu0 %1482
    %1484 = vrot.lane.b32.xlu0 %v1127, 126
    %v1485 = vpop.permute.xlu0 %1484
    %1486 = vrot.lane.b32.xlu0 %v1128, 126
    %v1487 = vpop.permute.xlu0 %1486
    %1488 = vrot.lane.b32.xlu0 %v1129, 126
    %v1489 = vpop.permute.xlu0 %1488
    %vm1610 = vcmask 23568
    %1611 = vst.msk [vmem:[#allocation2] sm:$0xff] %vm1610, %v1251
    %1612 = vst.msk [vmem:[#allocation2 + $0x8] sm:$0xff] %vm1610, %v1253
    %vm1613 = vcmask 21520
    %1614 = vst.msk [vmem:[#allocation2 + $0x10] sm:$0x3f] %vm1613, %v1255
    %1615 = vst.msk [vmem:[#allocation2 + $0x18] sm:$0xff] %vm1610, %v1257
    %1616 = vst.msk [vmem:[#allocation2 + $0x20] sm:$0xff] %vm1610, %v1259
    %1617 = vst.msk [vmem:[#allocation2 + $0x28] sm:$0x3f] %vm1613, %v1261
    %1618 = vst.msk [vmem:[#allocation2 + $0x30] sm:$0xff] %vm1610, %v1263
    %1619 = vst.msk [vmem:[#allocation2 + $0x38] sm:$0xff] %vm1610, %v1265
    %1620 = vst.msk [vmem:[#allocation2 + $0x40] sm:$0x3f] %vm1613, %v1267
    %1621 = vst.msk [vmem:[#allocation2 + $0x48] sm:$0xff] %vm1610, %v1269
    %1622 = vst.msk [vmem:[#allocation2 + $0x50] sm:$0xff] %vm1610, %v1271
    %1623 = vst.msk [vmem:[#allocation2 + $0x58] sm:$0x3f] %vm1613, %v1273
    %1624 = vst.msk [vmem:[#allocation2 + $0x60] sm:$0xff] %vm1610, %v1275
    %1625 = vst.msk [vmem:[#allocation2 + $0x68] sm:$0xff] %vm1610, %v1277
    %1626 = vst.msk [vmem:[#allocation2 + $0x70] sm:$0x3f] %vm1613, %v1279
    %1627 = vst.msk [vmem:[#allocation2 + $0x78] sm:$0xff] %vm1610, %v1281
    %1628 = vst.msk [vmem:[#allocation2 + $0x80] sm:$0xff] %vm1610, %v1283
    %1629 = vst.msk [vmem:[#allocation2 + $0x88] sm:$0x3f] %vm1613, %v1285
    %1630 = vst.msk [vmem:[#allocation2 + $0x90] sm:$0xff] %vm1610, %v1287
    %1631 = vst.msk [vmem:[#allocation2 + $0x98] sm:$0xff] %vm1610, %v1289
    %1632 = vst.msk [vmem:[#allocation2 + $0xa0] sm:$0x3f] %vm1613, %v1291
    %1633 = vst.msk [vmem:[#allocation2 + $0xa8] sm:$0xff] %vm1610, %v1293
    %1634 = vst.msk [vmem:[#allocation2 + $0xb0] sm:$0xff] %vm1610, %v1295
    %1635 = vst.msk [vmem:[#allocation2 + $0xb8] sm:$0x3f] %vm1613, %v1297
    %1636 = vst.msk [vmem:[#allocation2 + $0xc0] sm:$0xff] %vm1610, %v1299
    %1637 = vst.msk [vmem:[#allocation2 + $0xc8] sm:$0xff] %vm1610, %v1301
    %1638 = vst.msk [vmem:[#allocation2 + $0xd0] sm:$0x3f] %vm1613, %v1303
    %1639 = vst.msk [vmem:[#allocation2 + $0xd8] sm:$0xff] %vm1610, %v1305
    %1640 = vst.msk [vmem:[#allocation2 + $0xe0] sm:$0xff] %vm1610, %v1307
    %1641 = vst.msk [vmem:[#allocation2 + $0xe8] sm:$0x3f] %vm1613, %v1309
    %1642 = vst.msk [vmem:[#allocation2 + $0xf0] sm:$0xff] %vm1610, %v1311
    %1643 = vst.msk [vmem:[#allocation2 + $0xf8] sm:$0xff] %vm1610, %v1313
    %1644 = vst.msk [vmem:[#allocation2 + $0x100] sm:$0x3f] %vm1613, %v1315
    %1645 = vst.msk [vmem:[#allocation2 + $0x108] sm:$0xff] %vm1610, %v1317
    %1646 = vst.msk [vmem:[#allocation2 + $0x110] sm:$0xff] %vm1610, %v1319
    %1647 = vst.msk [vmem:[#allocation2 + $0x118] sm:$0x3f] %vm1613, %v1321
    %1648 = vst.msk [vmem:[#allocation2 + $0x120] sm:$0xff] %vm1610, %v1323
    %1649 = vst.msk [vmem:[#allocation2 + $0x128] sm:$0xff] %vm1610, %v1325
    %1650 = vst.msk [vmem:[#allocation2 + $0x130] sm:$0x3f] %vm1613, %v1327
    %1651 = vst.msk [vmem:[#allocation2 + $0x138] sm:$0xff] %vm1610, %v1329
    %1652 = vst.msk [vmem:[#allocation2 + $0x140] sm:$0xff] %vm1610, %v1331
    %1653 = vst.msk [vmem:[#allocation2 + $0x148] sm:$0x3f] %vm1613, %v1333
    %1654 = vst.msk [vmem:[#allocation2 + $0x150] sm:$0xff] %vm1610, %v1335
    %1655 = vst.msk [vmem:[#allocation2 + $0x158] sm:$0xff] %vm1610, %v1337
    %1656 = vst.msk [vmem:[#allocation2 + $0x160] sm:$0x3f] %vm1613, %v1339
    %1657 = vst.msk [vmem:[#allocation2 + $0x168] sm:$0xff] %vm1610, %v1341
    %1658 = vst.msk [vmem:[#allocation2 + $0x170] sm:$0xff] %vm1610, %v1343
    %1659 = vst.msk [vmem:[#allocation2 + $0x178] sm:$0x3f] %vm1613, %v1345
    %1660 = vst.msk [vmem:[#allocation2 + $0x180] sm:$0xff] %vm1610, %v1347
    %1661 = vst.msk [vmem:[#allocation2 + $0x188] sm:$0xff] %vm1610, %v1349
    %1662 = vst.msk [vmem:[#allocation2 + $0x190] sm:$0x3f] %vm1613, %v1351
    %1663 = vst.msk [vmem:[#allocation2 + $0x198] sm:$0xff] %vm1610, %v1353
    %1664 = vst.msk [vmem:[#allocation2 + $0x1a0] sm:$0xff] %vm1610, %v1355
    %1665 = vst.msk [vmem:[#allocation2 + $0x1a8] sm:$0x3f] %vm1613, %v1357
    %1666 = vst.msk [vmem:[#allocation2 + $0x1b0] sm:$0xff] %vm1610, %v1359
    %1667 = vst.msk [vmem:[#allocation2 + $0x1b8] sm:$0xff] %vm1610, %v1361
    %1668 = vst.msk [vmem:[#allocation2 + $0x1c0] sm:$0x3f] %vm1613, %v1363
    %1669 = vst.msk [vmem:[#allocation2 + $0x1c8] sm:$0xff] %vm1610, %v1365
    %1670 = vst.msk [vmem:[#allocation2 + $0x1d0] sm:$0xff] %vm1610, %v1367
    %1671 = vst.msk [vmem:[#allocation2 + $0x1d8] sm:$0x3f] %vm1613, %v1369
    %1672 = vst.msk [vmem:[#allocation2 + $0x1e0] sm:$0xff] %vm1610, %v1371
    %1673 = vst.msk [vmem:[#allocation2 + $0x1e8] sm:$0xff] %vm1610, %v1373
    %1674 = vst.msk [vmem:[#allocation2 + $0x1f0] sm:$0x3f] %vm1613, %v1375
    %1675 = vst.msk [vmem:[#allocation2 + $0x1f8] sm:$0xff] %vm1610, %v1377
    %1676 = vst.msk [vmem:[#allocation2 + $0x200] sm:$0xff] %vm1610, %v1379
    %1677 = vst.msk [vmem:[#allocation2 + $0x208] sm:$0x3f] %vm1613, %v1381
    %1678 = vst.msk [vmem:[#allocation2 + $0x210] sm:$0xff] %vm1610, %v1383
    %1679 = vst.msk [vmem:[#allocation2 + $0x218] sm:$0xff] %vm1610, %v1385
    %1680 = vst.msk [vmem:[#allocation2 + $0x220] sm:$0x3f] %vm1613, %v1387
    %1681 = vst.msk [vmem:[#allocation2 + $0x228] sm:$0xff] %vm1610, %v1389
    %1682 = vst.msk [vmem:[#allocation2 + $0x230] sm:$0xff] %vm1610, %v1391
    %1683 = vst.msk [vmem:[#allocation2 + $0x238] sm:$0x3f] %vm1613, %v1393
    %1684 = vst.msk [vmem:[#allocation2 + $0x240] sm:$0xff] %vm1610, %v1395
    %1685 = vst.msk [vmem:[#allocation2 + $0x248] sm:$0xff] %vm1610, %v1397
    %1686 = vst.msk [vmem:[#allocation2 + $0x250] sm:$0x3f] %vm1613, %v1399
    %1687 = vst.msk [vmem:[#allocation2 + $0x258] sm:$0xff] %vm1610, %v1401
    %1688 = vst.msk [vmem:[#allocation2 + $0x260] sm:$0xff] %vm1610, %v1403
    %1689 = vst.msk [vmem:[#allocation2 + $0x268] sm:$0x3f] %vm1613, %v1405
    %1690 = vst.msk [vmem:[#allocation2 + $0x270] sm:$0xff] %vm1610, %v1407
    %1691 = vst.msk [vmem:[#allocation2 + $0x278] sm:$0xff] %vm1610, %v1409
    %1692 = vst.msk [vmem:[#allocation2 + $0x280] sm:$0x3f] %vm1613, %v1411
    %1693 = vst.msk [vmem:[#allocation2 + $0x288] sm:$0xff] %vm1610, %v1413
    %1694 = vst.msk [vmem:[#allocation2 + $0x290] sm:$0xff] %vm1610, %v1415
    %1695 = vst.msk [vmem:[#allocation2 + $0x298] sm:$0x3f] %vm1613, %v1417
    %1696 = vst.msk [vmem:[#allocation2 + $0x2a0] sm:$0xff] %vm1610, %v1419
    %1697 = vst.msk [vmem:[#allocation2 + $0x2a8] sm:$0xff] %vm1610, %v1421
    %1698 = vst.msk [vmem:[#allocation2 + $0x2b0] sm:$0x3f] %vm1613, %v1423
    %1699 = vst.msk [vmem:[#allocation2 + $0x2b8] sm:$0xff] %vm1610, %v1425
    %1700 = vst.msk [vmem:[#allocation2 + $0x2c0] sm:$0xff] %vm1610, %v1427
    %1701 = vst.msk [vmem:[#allocation2 + $0x2c8] sm:$0x3f] %vm1613, %v1429
    %1702 = vst.msk [vmem:[#allocation2 + $0x2d0] sm:$0xff] %vm1610, %v1431
    %1703 = vst.msk [vmem:[#allocation2 + $0x2d8] sm:$0xff] %vm1610, %v1433
    %1704 = vst.msk [vmem:[#allocation2 + $0x2e0] sm:$0x3f] %vm1613, %v1435
    %1705 = vst.msk [vmem:[#allocation2 + $0x2e8] sm:$0xff] %vm1610, %v1437
    %1706 = vst.msk [vmem:[#allocation2 + $0x2f0] sm:$0xff] %vm1610, %v1439
    %1707 = vst.msk [vmem:[#allocation2 + $0x2f8] sm:$0x3f] %vm1613, %v1441
    %1708 = vst.msk [vmem:[#allocation2 + $0x300] sm:$0xff] %vm1610, %v1443
    %1709 = vst.msk [vmem:[#allocation2 + $0x308] sm:$0xff] %vm1610, %v1445
    %1710 = vst.msk [vmem:[#allocation2 + $0x310] sm:$0x3f] %vm1613, %v1447
    %1711 = vst.msk [vmem:[#allocation2 + $0x318] sm:$0xff] %vm1610, %v1449
    %1712 = vst.msk [vmem:[#allocation2 + $0x320] sm:$0xff] %vm1610, %v1451
    %1713 = vst.msk [vmem:[#allocation2 + $0x328] sm:$0x3f] %vm1613, %v1453
    %1714 = vst.msk [vmem:[#allocation2 + $0x330] sm:$0xff] %vm1610, %v1455
    %1715 = vst.msk [vmem:[#allocation2 + $0x338] sm:$0xff] %vm1610, %v1457
    %1716 = vst.msk [vmem:[#allocation2 + $0x340] sm:$0x3f] %vm1613, %v1459
    %1717 = vst.msk [vmem:[#allocation2 + $0x348] sm:$0xff] %vm1610, %v1461
    %1718 = vst.msk [vmem:[#allocation2 + $0x350] sm:$0xff] %vm1610, %v1463
    %1719 = vst.msk [vmem:[#allocation2 + $0x358] sm:$0x3f] %vm1613, %v1465
    %1720 = vst.msk [vmem:[#allocation2 + $0x360] sm:$0xff] %vm1610, %v1467
    %1721 = vst.msk [vmem:[#allocation2 + $0x368] sm:$0xff] %vm1610, %v1469
    %1722 = vst.msk [vmem:[#allocation2 + $0x370] sm:$0x3f] %vm1613, %v1471
    %1723 = vst.msk [vmem:[#allocation2 + $0x378] sm:$0xff] %vm1610, %v1473
    %1724 = vst.msk [vmem:[#allocation2 + $0x380] sm:$0xff] %vm1610, %v1475
    %1725 = vst.msk [vmem:[#allocation2 + $0x388] sm:$0x3f] %vm1613, %v1477
    %1726 = vst.msk [vmem:[#allocation2 + $0x390] sm:$0xff] %vm1610, %v1479
    %1727 = vst.msk [vmem:[#allocation2 + $0x398] sm:$0xff] %vm1610, %v1481
    %1728 = vst.msk [vmem:[#allocation2 + $0x3a0] sm:$0x3f] %vm1613, %v1483
    %1729 = vst.msk [vmem:[#allocation2 + $0x3a8] sm:$0xff] %vm1610, %v1485
    %1730 = vst.msk [vmem:[#allocation2 + $0x3b0] sm:$0xff] %vm1610, %v1487
    %1731 = vst.msk [vmem:[#allocation2 + $0x3b8] sm:$0x3f] %vm1613, %v1489
    %1732 = vrot.lane.b32.xlu0 %v1010, 2
    %v1733 = vpop.permute.xlu0 %1732
    %1734 = vrot.lane.b32.xlu0 %v1011, 2
    %v1735 = vpop.permute.xlu0 %1734
    %1736 = vrot.lane.b32.xlu0 %v1012, 2
    %v1737 = vpop.permute.xlu0 %1736
    %1738 = vrot.lane.b32.xlu0 %v1013, 2
    %v1739 = vpop.permute.xlu0 %1738
    %1740 = vrot.lane.b32.xlu0 %v1014, 2
    %v1741 = vpop.permute.xlu0 %1740
    %1742 = vrot.lane.b32.xlu0 %v1015, 2
    %v1743 = vpop.permute.xlu0 %1742
    %1744 = vrot.lane.b32.xlu0 %v1016, 2
    %v1745 = vpop.permute.xlu0 %1744
    %1746 = vrot.lane.b32.xlu0 %v1017, 2
    %v1747 = vpop.permute.xlu0 %1746
    %1748 = vrot.lane.b32.xlu0 %v1018, 2
    %v1749 = vpop.permute.xlu0 %1748
    %1750 = vrot.lane.b32.xlu0 %v1019, 2
    %v1751 = vpop.permute.xlu0 %1750
    %1752 = vrot.lane.b32.xlu0 %v1020, 2
    %v1753 = vpop.permute.xlu0 %1752
    %1754 = vrot.lane.b32.xlu0 %v1021, 2
    %v1755 = vpop.permute.xlu0 %1754
    %1756 = vrot.lane.b32.xlu0 %v1022, 2
    %v1757 = vpop.permute.xlu0 %1756
    %1758 = vrot.lane.b32.xlu0 %v1023, 2
    %v1759 = vpop.permute.xlu0 %1758
    %1760 = vrot.lane.b32.xlu0 %v1024, 2
    %v1761 = vpop.permute.xlu0 %1760
    %1762 = vrot.lane.b32.xlu0 %v1025, 2
    %v1763 = vpop.permute.xlu0 %1762
    %1764 = vrot.lane.b32.xlu0 %v1026, 2
    %v1765 = vpop.permute.xlu0 %1764
    %1766 = vrot.lane.b32.xlu0 %v1027, 2
    %v1767 = vpop.permute.xlu0 %1766
    %1768 = vrot.lane.b32.xlu0 %v1028, 2
    %v1769 = vpop.permute.xlu0 %1768
    %1770 = vrot.lane.b32.xlu0 %v1029, 2
    %v1771 = vpop.permute.xlu0 %1770
    %1772 = vrot.lane.b32.xlu0 %v1030, 2
    %v1773 = vpop.permute.xlu0 %1772
    %1774 = vrot.lane.b32.xlu0 %v1031, 2
    %v1775 = vpop.permute.xlu0 %1774
    %1776 = vrot.lane.b32.xlu0 %v1032, 2
    %v1777 = vpop.permute.xlu0 %1776
    %1778 = vrot.lane.b32.xlu0 %v1033, 2
    %v1779 = vpop.permute.xlu0 %1778
    %1780 = vrot.lane.b32.xlu0 %v1034, 2
    %v1781 = vpop.permute.xlu0 %1780
    %1782 = vrot.lane.b32.xlu0 %v1035, 2
    %v1783 = vpop.permute.xlu0 %1782
    %1784 = vrot.lane.b32.xlu0 %v1036, 2
    %v1785 = vpop.permute.xlu0 %1784
    %1786 = vrot.lane.b32.xlu0 %v1037, 2
    %v1787 = vpop.permute.xlu0 %1786
    %1788 = vrot.lane.b32.xlu0 %v1038, 2
    %v1789 = vpop.permute.xlu0 %1788
    %1790 = vrot.lane.b32.xlu0 %v1039, 2
    %v1791 = vpop.permute.xlu0 %1790
    %1792 = vrot.lane.b32.xlu0 %v1040, 2
    %v1793 = vpop.permute.xlu0 %1792
    %1794 = vrot.lane.b32.xlu0 %v1041, 2
    %v1795 = vpop.permute.xlu0 %1794
    %1796 = vrot.lane.b32.xlu0 %v1042, 2
    %v1797 = vpop.permute.xlu0 %1796
    %1798 = vrot.lane.b32.xlu0 %v1043, 2
    %v1799 = vpop.permute.xlu0 %1798
    %1800 = vrot.lane.b32.xlu0 %v1044, 2
    %v1801 = vpop.permute.xlu0 %1800
    %1802 = vrot.lane.b32.xlu0 %v1045, 2
    %v1803 = vpop.permute.xlu0 %1802
    %1804 = vrot.lane.b32.xlu0 %v1046, 2
    %v1805 = vpop.permute.xlu0 %1804
    %1806 = vrot.lane.b32.xlu0 %v1047, 2
    %v1807 = vpop.permute.xlu0 %1806
    %1808 = vrot.lane.b32.xlu0 %v1048, 2
    %v1809 = vpop.permute.xlu0 %1808
    %1810 = vrot.lane.b32.xlu0 %v1049, 2
    %v1811 = vpop.permute.xlu0 %1810
    %1812 = vrot.lane.b32.xlu0 %v1050, 2
    %v1813 = vpop.permute.xlu0 %1812
    %1814 = vrot.lane.b32.xlu0 %v1051, 2
    %v1815 = vpop.permute.xlu0 %1814
    %1816 = vrot.lane.b32.xlu0 %v1052, 2
    %v1817 = vpop.permute.xlu0 %1816
    %1818 = vrot.lane.b32.xlu0 %v1053, 2
    %v1819 = vpop.permute.xlu0 %1818
    %1820 = vrot.lane.b32.xlu0 %v1054, 2
    %v1821 = vpop.permute.xlu0 %1820
    %1822 = vrot.lane.b32.xlu0 %v1055, 2
    %v1823 = vpop.permute.xlu0 %1822
    %1824 = vrot.lane.b32.xlu0 %v1056, 2
    %v1825 = vpop.permute.xlu0 %1824
    %1826 = vrot.lane.b32.xlu0 %v1057, 2
    %v1827 = vpop.permute.xlu0 %1826
    %1828 = vrot.lane.b32.xlu0 %v1058, 2
    %v1829 = vpop.permute.xlu0 %1828
    %1830 = vrot.lane.b32.xlu0 %v1059, 2
    %v1831 = vpop.permute.xlu0 %1830
    %1832 = vrot.lane.b32.xlu0 %v1060, 2
    %v1833 = vpop.permute.xlu0 %1832
    %1834 = vrot.lane.b32.xlu0 %v1061, 2
    %v1835 = vpop.permute.xlu0 %1834
    %1836 = vrot.lane.b32.xlu0 %v1062, 2
    %v1837 = vpop.permute.xlu0 %1836
    %1838 = vrot.lane.b32.xlu0 %v1063, 2
    %v1839 = vpop.permute.xlu0 %1838
    %1840 = vrot.lane.b32.xlu0 %v1064, 2
    %v1841 = vpop.permute.xlu0 %1840
    %1842 = vrot.lane.b32.xlu0 %v1065, 2
    %v1843 = vpop.permute.xlu0 %1842
    %1844 = vrot.lane.b32.xlu0 %v1066, 2
    %v1845 = vpop.permute.xlu0 %1844
    %1846 = vrot.lane.b32.xlu0 %v1067, 2
    %v1847 = vpop.permute.xlu0 %1846
    %1848 = vrot.lane.b32.xlu0 %v1068, 2
    %v1849 = vpop.permute.xlu0 %1848
    %1850 = vrot.lane.b32.xlu0 %v1069, 2
    %v1851 = vpop.permute.xlu0 %1850
    %1852 = vrot.lane.b32.xlu0 %v1070, 2
    %v1853 = vpop.permute.xlu0 %1852
    %1854 = vrot.lane.b32.xlu0 %v1071, 2
    %v1855 = vpop.permute.xlu0 %1854
    %1856 = vrot.lane.b32.xlu0 %v1072, 2
    %v1857 = vpop.permute.xlu0 %1856
    %1858 = vrot.lane.b32.xlu0 %v1073, 2
    %v1859 = vpop.permute.xlu0 %1858
    %1860 = vrot.lane.b32.xlu0 %v1074, 2
    %v1861 = vpop.permute.xlu0 %1860
    %1862 = vrot.lane.b32.xlu0 %v1075, 2
    %v1863 = vpop.permute.xlu0 %1862
    %1864 = vrot.lane.b32.xlu0 %v1076, 2
    %v1865 = vpop.permute.xlu0 %1864
    %1866 = vrot.lane.b32.xlu0 %v1077, 2
    %v1867 = vpop.permute.xlu0 %1866
    %1868 = vrot.lane.b32.xlu0 %v1078, 2
    %v1869 = vpop.permute.xlu0 %1868
    %1870 = vrot.lane.b32.xlu0 %v1079, 2
    %v1871 = vpop.permute.xlu0 %1870
    %1872 = vrot.lane.b32.xlu0 %v1080, 2
    %v1873 = vpop.permute.xlu0 %1872
    %1874 = vrot.lane.b32.xlu0 %v1081, 2
    %v1875 = vpop.permute.xlu0 %1874
    %1876 = vrot.lane.b32.xlu0 %v1082, 2
    %v1877 = vpop.permute.xlu0 %1876
    %1878 = vrot.lane.b32.xlu0 %v1083, 2
    %v1879 = vpop.permute.xlu0 %1878
    %1880 = vrot.lane.b32.xlu0 %v1084, 2
    %v1881 = vpop.permute.xlu0 %1880
    %1882 = vrot.lane.b32.xlu0 %v1085, 2
    %v1883 = vpop.permute.xlu0 %1882
    %1884 = vrot.lane.b32.xlu0 %v1086, 2
    %v1885 = vpop.permute.xlu0 %1884
    %1886 = vrot.lane.b32.xlu0 %v1087, 2
    %v1887 = vpop.permute.xlu0 %1886
    %1888 = vrot.lane.b32.xlu0 %v1088, 2
    %v1889 = vpop.permute.xlu0 %1888
    %1890 = vrot.lane.b32.xlu0 %v1089, 2
    %v1891 = vpop.permute.xlu0 %1890
    %1892 = vrot.lane.b32.xlu0 %v1090, 2
    %v1893 = vpop.permute.xlu0 %1892
    %1894 = vrot.lane.b32.xlu0 %v1091, 2
    %v1895 = vpop.permute.xlu0 %1894
    %1896 = vrot.lane.b32.xlu0 %v1092, 2
    %v1897 = vpop.permute.xlu0 %1896
    %1898 = vrot.lane.b32.xlu0 %v1093, 2
    %v1899 = vpop.permute.xlu0 %1898
    %1900 = vrot.lane.b32.xlu0 %v1094, 2
    %v1901 = vpop.permute.xlu0 %1900
    %1902 = vrot.lane.b32.xlu0 %v1095, 2
    %v1903 = vpop.permute.xlu0 %1902
    %1904 = vrot.lane.b32.xlu0 %v1096, 2
    %v1905 = vpop.permute.xlu0 %1904
    %1906 = vrot.lane.b32.xlu0 %v1097, 2
    %v1907 = vpop.permute.xlu0 %1906
    %1908 = vrot.lane.b32.xlu0 %v1098, 2
    %v1909 = vpop.permute.xlu0 %1908
    %1910 = vrot.lane.b32.xlu0 %v1099, 2
    %v1911 = vpop.permute.xlu0 %1910
    %1912 = vrot.lane.b32.xlu0 %v1100, 2
    %v1913 = vpop.permute.xlu0 %1912
    %1914 = vrot.lane.b32.xlu0 %v1101, 2
    %v1915 = vpop.permute.xlu0 %1914
    %1916 = vrot.lane.b32.xlu0 %v1102, 2
    %v1917 = vpop.permute.xlu0 %1916
    %1918 = vrot.lane.b32.xlu0 %v1103, 2
    %v1919 = vpop.permute.xlu0 %1918
    %1920 = vrot.lane.b32.xlu0 %v1104, 2
    %v1921 = vpop.permute.xlu0 %1920
    %1922 = vrot.lane.b32.xlu0 %v1105, 2
    %v1923 = vpop.permute.xlu0 %1922
    %1924 = vrot.lane.b32.xlu0 %v1106, 2
    %v1925 = vpop.permute.xlu0 %1924
    %1926 = vrot.lane.b32.xlu0 %v1107, 2
    %v1927 = vpop.permute.xlu0 %1926
    %1928 = vrot.lane.b32.xlu0 %v1108, 2
    %v1929 = vpop.permute.xlu0 %1928
    %1930 = vrot.lane.b32.xlu0 %v1109, 2
    %v1931 = vpop.permute.xlu0 %1930
    %1932 = vrot.lane.b32.xlu0 %v1110, 2
    %v1933 = vpop.permute.xlu0 %1932
    %1934 = vrot.lane.b32.xlu0 %v1111, 2
    %v1935 = vpop.permute.xlu0 %1934
    %1936 = vrot.lane.b32.xlu0 %v1112, 2
    %v1937 = vpop.permute.xlu0 %1936
    %1938 = vrot.lane.b32.xlu0 %v1113, 2
    %v1939 = vpop.permute.xlu0 %1938
    %1940 = vrot.lane.b32.xlu0 %v1114, 2
    %v1941 = vpop.permute.xlu0 %1940
    %1942 = vrot.lane.b32.xlu0 %v1115, 2
    %v1943 = vpop.permute.xlu0 %1942
    %1944 = vrot.lane.b32.xlu0 %v1116, 2
    %v1945 = vpop.permute.xlu0 %1944
    %1946 = vrot.lane.b32.xlu0 %v1117, 2
    %v1947 = vpop.permute.xlu0 %1946
    %1948 = vrot.lane.b32.xlu0 %v1118, 2
    %v1949 = vpop.permute.xlu0 %1948
    %1950 = vrot.lane.b32.xlu0 %v1119, 2
    %v1951 = vpop.permute.xlu0 %1950
    %1952 = vrot.lane.b32.xlu0 %v1120, 2
    %v1953 = vpop.permute.xlu0 %1952
    %1954 = vrot.lane.b32.xlu0 %v1121, 2
    %v1955 = vpop.permute.xlu0 %1954
    %1956 = vrot.lane.b32.xlu0 %v1122, 2
    %v1957 = vpop.permute.xlu0 %1956
    %1958 = vrot.lane.b32.xlu0 %v1123, 2
    %v1959 = vpop.permute.xlu0 %1958
    %1960 = vrot.lane.b32.xlu0 %v1124, 2
    %v1961 = vpop.permute.xlu0 %1960
    %1962 = vrot.lane.b32.xlu0 %v1125, 2
    %v1963 = vpop.permute.xlu0 %1962
    %1964 = vrot.lane.b32.xlu0 %v1126, 2
    %v1965 = vpop.permute.xlu0 %1964
    %1966 = vrot.lane.b32.xlu0 %v1127, 2
    %v1967 = vpop.permute.xlu0 %1966
    %1968 = vrot.lane.b32.xlu0 %v1128, 2
    %v1969 = vpop.permute.xlu0 %1968
    %1970 = vrot.lane.b32.xlu0 %v1129, 2
    %v1971 = vpop.permute.xlu0 %1970
    %vm2092 = vcmask 162968
    %2093 = vst.msk [vmem:[#allocation2] sm:$0xff] %vm2092, %v1733
    %2094 = vst.msk [vmem:[#allocation2 + $0x8] sm:$0xff] %vm2092, %v1735
    %vm2095 = vcmask 160920
    %2096 = vst.msk [vmem:[#allocation2 + $0x10] sm:$0x3f] %vm2095, %v1737
    %2097 = vst.msk [vmem:[#allocation2 + $0x18] sm:$0xff] %vm2092, %v1739
    %2098 = vst.msk [vmem:[#allocation2 + $0x20] sm:$0xff] %vm2092, %v1741
    %2099 = vst.msk [vmem:[#allocation2 + $0x28] sm:$0x3f] %vm2095, %v1743
    %2100 = vst.msk [vmem:[#allocation2 + $0x30] sm:$0xff] %vm2092, %v1745
    %2101 = vst.msk [vmem:[#allocation2 + $0x38] sm:$0xff] %vm2092, %v1747
    %2102 = vst.msk [vmem:[#allocation2 + $0x40] sm:$0x3f] %vm2095, %v1749
    %2103 = vst.msk [vmem:[#allocation2 + $0x48] sm:$0xff] %vm2092, %v1751
    %2104 = vst.msk [vmem:[#allocation2 + $0x50] sm:$0xff] %vm2092, %v1753
    %2105 = vst.msk [vmem:[#allocation2 + $0x58] sm:$0x3f] %vm2095, %v1755
    %2106 = vst.msk [vmem:[#allocation2 + $0x60] sm:$0xff] %vm2092, %v1757
    %2107 = vst.msk [vmem:[#allocation2 + $0x68] sm:$0xff] %vm2092, %v1759
    %2108 = vst.msk [vmem:[#allocation2 + $0x70] sm:$0x3f] %vm2095, %v1761
    %2109 = vst.msk [vmem:[#allocation2 + $0x78] sm:$0xff] %vm2092, %v1763
    %2110 = vst.msk [vmem:[#allocation2 + $0x80] sm:$0xff] %vm2092, %v1765
    %2111 = vst.msk [vmem:[#allocation2 + $0x88] sm:$0x3f] %vm2095, %v1767
    %2112 = vst.msk [vmem:[#allocation2 + $0x90] sm:$0xff] %vm2092, %v1769
    %2113 = vst.msk [vmem:[#allocation2 + $0x98] sm:$0xff] %vm2092, %v1771
    %2114 = vst.msk [vmem:[#allocation2 + $0xa0] sm:$0x3f] %vm2095, %v1773
    %2115 = vst.msk [vmem:[#allocation2 + $0xa8] sm:$0xff] %vm2092, %v1775
    %2116 = vst.msk [vmem:[#allocation2 + $0xb0] sm:$0xff] %vm2092, %v1777
    %2117 = vst.msk [vmem:[#allocation2 + $0xb8] sm:$0x3f] %vm2095, %v1779
    %2118 = vst.msk [vmem:[#allocation2 + $0xc0] sm:$0xff] %vm2092, %v1781
    %2119 = vst.msk [vmem:[#allocation2 + $0xc8] sm:$0xff] %vm2092, %v1783
    %2120 = vst.msk [vmem:[#allocation2 + $0xd0] sm:$0x3f] %vm2095, %v1785
    %2121 = vst.msk [vmem:[#allocation2 + $0xd8] sm:$0xff] %vm2092, %v1787
    %2122 = vst.msk [vmem:[#allocation2 + $0xe0] sm:$0xff] %vm2092, %v1789
    %2123 = vst.msk [vmem:[#allocation2 + $0xe8] sm:$0x3f] %vm2095, %v1791
    %2124 = vst.msk [vmem:[#allocation2 + $0xf0] sm:$0xff] %vm2092, %v1793
    %2125 = vst.msk [vmem:[#allocation2 + $0xf8] sm:$0xff] %vm2092, %v1795
    %2126 = vst.msk [vmem:[#allocation2 + $0x100] sm:$0x3f] %vm2095, %v1797
    %2127 = vst.msk [vmem:[#allocation2 + $0x108] sm:$0xff] %vm2092, %v1799
    %2128 = vst.msk [vmem:[#allocation2 + $0x110] sm:$0xff] %vm2092, %v1801
    %2129 = vst.msk [vmem:[#allocation2 + $0x118] sm:$0x3f] %vm2095, %v1803
    %2130 = vst.msk [vmem:[#allocation2 + $0x120] sm:$0xff] %vm2092, %v1805
    %2131 = vst.msk [vmem:[#allocation2 + $0x128] sm:$0xff] %vm2092, %v1807
    %2132 = vst.msk [vmem:[#allocation2 + $0x130] sm:$0x3f] %vm2095, %v1809
    %2133 = vst.msk [vmem:[#allocation2 + $0x138] sm:$0xff] %vm2092, %v1811
    %2134 = vst.msk [vmem:[#allocation2 + $0x140] sm:$0xff] %vm2092, %v1813
    %2135 = vst.msk [vmem:[#allocation2 + $0x148] sm:$0x3f] %vm2095, %v1815
    %2136 = vst.msk [vmem:[#allocation2 + $0x150] sm:$0xff] %vm2092, %v1817
    %2137 = vst.msk [vmem:[#allocation2 + $0x158] sm:$0xff] %vm2092, %v1819
    %2138 = vst.msk [vmem:[#allocation2 + $0x160] sm:$0x3f] %vm2095, %v1821
    %2139 = vst.msk [vmem:[#allocation2 + $0x168] sm:$0xff] %vm2092, %v1823
    %2140 = vst.msk [vmem:[#allocation2 + $0x170] sm:$0xff] %vm2092, %v1825
    %2141 = vst.msk [vmem:[#allocation2 + $0x178] sm:$0x3f] %vm2095, %v1827
    %2142 = vst.msk [vmem:[#allocation2 + $0x180] sm:$0xff] %vm2092, %v1829
    %2143 = vst.msk [vmem:[#allocation2 + $0x188] sm:$0xff] %vm2092, %v1831
    %2144 = vst.msk [vmem:[#allocation2 + $0x190] sm:$0x3f] %vm2095, %v1833
    %2145 = vst.msk [vmem:[#allocation2 + $0x198] sm:$0xff] %vm2092, %v1835
    %2146 = vst.msk [vmem:[#allocation2 + $0x1a0] sm:$0xff] %vm2092, %v1837
    %2147 = vst.msk [vmem:[#allocation2 + $0x1a8] sm:$0x3f] %vm2095, %v1839
    %2148 = vst.msk [vmem:[#allocation2 + $0x1b0] sm:$0xff] %vm2092, %v1841
    %2149 = vst.msk [vmem:[#allocation2 + $0x1b8] sm:$0xff] %vm2092, %v1843
    %2150 = vst.msk [vmem:[#allocation2 + $0x1c0] sm:$0x3f] %vm2095, %v1845
    %2151 = vst.msk [vmem:[#allocation2 + $0x1c8] sm:$0xff] %vm2092, %v1847
    %2152 = vst.msk [vmem:[#allocation2 + $0x1d0] sm:$0xff] %vm2092, %v1849
    %2153 = vst.msk [vmem:[#allocation2 + $0x1d8] sm:$0x3f] %vm2095, %v1851
    %2154 = vst.msk [vmem:[#allocation2 + $0x1e0] sm:$0xff] %vm2092, %v1853
    %2155 = vst.msk [vmem:[#allocation2 + $0x1e8] sm:$0xff] %vm2092, %v1855
    %2156 = vst.msk [vmem:[#allocation2 + $0x1f0] sm:$0x3f] %vm2095, %v1857
    %2157 = vst.msk [vmem:[#allocation2 + $0x1f8] sm:$0xff] %vm2092, %v1859
    %2158 = vst.msk [vmem:[#allocation2 + $0x200] sm:$0xff] %vm2092, %v1861
    %2159 = vst.msk [vmem:[#allocation2 + $0x208] sm:$0x3f] %vm2095, %v1863
    %2160 = vst.msk [vmem:[#allocation2 + $0x210] sm:$0xff] %vm2092, %v1865
    %2161 = vst.msk [vmem:[#allocation2 + $0x218] sm:$0xff] %vm2092, %v1867
    %2162 = vst.msk [vmem:[#allocation2 + $0x220] sm:$0x3f] %vm2095, %v1869
    %2163 = vst.msk [vmem:[#allocation2 + $0x228] sm:$0xff] %vm2092, %v1871
    %2164 = vst.msk [vmem:[#allocation2 + $0x230] sm:$0xff] %vm2092, %v1873
    %2165 = vst.msk [vmem:[#allocation2 + $0x238] sm:$0x3f] %vm2095, %v1875
    %2166 = vst.msk [vmem:[#allocation2 + $0x240] sm:$0xff] %vm2092, %v1877
    %2167 = vst.msk [vmem:[#allocation2 + $0x248] sm:$0xff] %vm2092, %v1879
    %2168 = vst.msk [vmem:[#allocation2 + $0x250] sm:$0x3f] %vm2095, %v1881
    %2169 = vst.msk [vmem:[#allocation2 + $0x258] sm:$0xff] %vm2092, %v1883
    %2170 = vst.msk [vmem:[#allocation2 + $0x260] sm:$0xff] %vm2092, %v1885
    %2171 = vst.msk [vmem:[#allocation2 + $0x268] sm:$0x3f] %vm2095, %v1887
    %2172 = vst.msk [vmem:[#allocation2 + $0x270] sm:$0xff] %vm2092, %v1889
    %2173 = vst.msk [vmem:[#allocation2 + $0x278] sm:$0xff] %vm2092, %v1891
    %2174 = vst.msk [vmem:[#allocation2 + $0x280] sm:$0x3f] %vm2095, %v1893
    %2175 = vst.msk [vmem:[#allocation2 + $0x288] sm:$0xff] %vm2092, %v1895
    %2176 = vst.msk [vmem:[#allocation2 + $0x290] sm:$0xff] %vm2092, %v1897
    %2177 = vst.msk [vmem:[#allocation2 + $0x298] sm:$0x3f] %vm2095, %v1899
    %2178 = vst.msk [vmem:[#allocation2 + $0x2a0] sm:$0xff] %vm2092, %v1901
    %2179 = vst.msk [vmem:[#allocation2 + $0x2a8] sm:$0xff] %vm2092, %v1903
    %2180 = vst.msk [vmem:[#allocation2 + $0x2b0] sm:$0x3f] %vm2095, %v1905
    %2181 = vst.msk [vmem:[#allocation2 + $0x2b8] sm:$0xff] %vm2092, %v1907
    %2182 = vst.msk [vmem:[#allocation2 + $0x2c0] sm:$0xff] %vm2092, %v1909
    %2183 = vst.msk [vmem:[#allocation2 + $0x2c8] sm:$0x3f] %vm2095, %v1911
    %2184 = vst.msk [vmem:[#allocation2 + $0x2d0] sm:$0xff] %vm2092, %v1913
    %2185 = vst.msk [vmem:[#allocation2 + $0x2d8] sm:$0xff] %vm2092, %v1915
    %2186 = vst.msk [vmem:[#allocation2 + $0x2e0] sm:$0x3f] %vm2095, %v1917
    %2187 = vst.msk [vmem:[#allocation2 + $0x2e8] sm:$0xff] %vm2092, %v1919
    %2188 = vst.msk [vmem:[#allocation2 + $0x2f0] sm:$0xff] %vm2092, %v1921
    %2189 = vst.msk [vmem:[#allocation2 + $0x2f8] sm:$0x3f] %vm2095, %v1923
    %2190 = vst.msk [vmem:[#allocation2 + $0x300] sm:$0xff] %vm2092, %v1925
    %2191 = vst.msk [vmem:[#allocation2 + $0x308] sm:$0xff] %vm2092, %v1927
    %2192 = vst.msk [vmem:[#allocation2 + $0x310] sm:$0x3f] %vm2095, %v1929
    %2193 = vst.msk [vmem:[#allocation2 + $0x318] sm:$0xff] %vm2092, %v1931
    %2194 = vst.msk [vmem:[#allocation2 + $0x320] sm:$0xff] %vm2092, %v1933
    %2195 = vst.msk [vmem:[#allocation2 + $0x328] sm:$0x3f] %vm2095, %v1935
    %2196 = vst.msk [vmem:[#allocation2 + $0x330] sm:$0xff] %vm2092, %v1937
    %2197 = vst.msk [vmem:[#allocation2 + $0x338] sm:$0xff] %vm2092, %v1939
    %2198 = vst.msk [vmem:[#allocation2 + $0x340] sm:$0x3f] %vm2095, %v1941
    %2199 = vst.msk [vmem:[#allocation2 + $0x348] sm:$0xff] %vm2092, %v1943
    %2200 = vst.msk [vmem:[#allocation2 + $0x350] sm:$0xff] %vm2092, %v1945
    %2201 = vst.msk [vmem:[#allocation2 + $0x358] sm:$0x3f] %vm2095, %v1947
    %2202 = vst.msk [vmem:[#allocation2 + $0x360] sm:$0xff] %vm2092, %v1949
    %2203 = vst.msk [vmem:[#allocation2 + $0x368] sm:$0xff] %vm2092, %v1951
    %2204 = vst.msk [vmem:[#allocation2 + $0x370] sm:$0x3f] %vm2095, %v1953
    %2205 = vst.msk [vmem:[#allocation2 + $0x378] sm:$0xff] %vm2092, %v1955
    %2206 = vst.msk [vmem:[#allocation2 + $0x380] sm:$0xff] %vm2092, %v1957
    %2207 = vst.msk [vmem:[#allocation2 + $0x388] sm:$0x3f] %vm2095, %v1959
    %2208 = vst.msk [vmem:[#allocation2 + $0x390] sm:$0xff] %vm2092, %v1961
    %2209 = vst.msk [vmem:[#allocation2 + $0x398] sm:$0xff] %vm2092, %v1963
    %2210 = vst.msk [vmem:[#allocation2 + $0x3a0] sm:$0x3f] %vm2095, %v1965
    %2211 = vst.msk [vmem:[#allocation2 + $0x3a8] sm:$0xff] %vm2092, %v1967
    %2212 = vst.msk [vmem:[#allocation2 + $0x3b0] sm:$0xff] %vm2092, %v1969
    %2213 = vst.msk [vmem:[#allocation2 + $0x3b8] sm:$0x3f] %vm2095, %v1971
    %2214 = vrot.lane.b32.xlu0 %v1010, 124
    %v2215 = vpop.permute.xlu0 %2214
    %2216 = vrot.lane.b32.xlu0 %v1011, 124
    %v2217 = vpop.permute.xlu0 %2216
    %2218 = vrot.lane.b32.xlu0 %v1012, 124
    %v2219 = vpop.permute.xlu0 %2218
    %2220 = vrot.lane.b32.xlu0 %v1013, 124
    %v2221 = vpop.permute.xlu0 %2220
    %2222 = vrot.lane.b32.xlu0 %v1014, 124
    %v2223 = vpop.permute.xlu0 %2222
    %2224 = vrot.lane.b32.xlu0 %v1015, 124
    %v2225 = vpop.permute.xlu0 %2224
    %2226 = vrot.lane.b32.xlu0 %v1016, 124
    %v2227 = vpop.permute.xlu0 %2226
    %2228 = vrot.lane.b32.xlu0 %v1017, 124
    %v2229 = vpop.permute.xlu0 %2228
    %2230 = vrot.lane.b32.xlu0 %v1018, 124
    %v2231 = vpop.permute.xlu0 %2230
    %2232 = vrot.lane.b32.xlu0 %v1019, 124
    %v2233 = vpop.permute.xlu0 %2232
    %2234 = vrot.lane.b32.xlu0 %v1020, 124
    %v2235 = vpop.permute.xlu0 %2234
    %2236 = vrot.lane.b32.xlu0 %v1021, 124
    %v2237 = vpop.permute.xlu0 %2236
    %2238 = vrot.lane.b32.xlu0 %v1022, 124
    %v2239 = vpop.permute.xlu0 %2238
    %2240 = vrot.lane.b32.xlu0 %v1023, 124
    %v2241 = vpop.permute.xlu0 %2240
    %2242 = vrot.lane.b32.xlu0 %v1024, 124
    %v2243 = vpop.permute.xlu0 %2242
    %2244 = vrot.lane.b32.xlu0 %v1025, 124
    %v2245 = vpop.permute.xlu0 %2244
    %2246 = vrot.lane.b32.xlu0 %v1026, 124
    %v2247 = vpop.permute.xlu0 %2246
    %2248 = vrot.lane.b32.xlu0 %v1027, 124
    %v2249 = vpop.permute.xlu0 %2248
    %2250 = vrot.lane.b32.xlu0 %v1028, 124
    %v2251 = vpop.permute.xlu0 %2250
    %2252 = vrot.lane.b32.xlu0 %v1029, 124
    %v2253 = vpop.permute.xlu0 %2252
    %2254 = vrot.lane.b32.xlu0 %v1030, 124
    %v2255 = vpop.permute.xlu0 %2254
    %2256 = vrot.lane.b32.xlu0 %v1031, 124
    %v2257 = vpop.permute.xlu0 %2256
    %2258 = vrot.lane.b32.xlu0 %v1032, 124
    %v2259 = vpop.permute.xlu0 %2258
    %2260 = vrot.lane.b32.xlu0 %v1033, 124
    %v2261 = vpop.permute.xlu0 %2260
    %2262 = vrot.lane.b32.xlu0 %v1034, 124
    %v2263 = vpop.permute.xlu0 %2262
    %2264 = vrot.lane.b32.xlu0 %v1035, 124
    %v2265 = vpop.permute.xlu0 %2264
    %2266 = vrot.lane.b32.xlu0 %v1036, 124
    %v2267 = vpop.permute.xlu0 %2266
    %2268 = vrot.lane.b32.xlu0 %v1037, 124
    %v2269 = vpop.permute.xlu0 %2268
    %2270 = vrot.lane.b32.xlu0 %v1038, 124
    %v2271 = vpop.permute.xlu0 %2270
    %2272 = vrot.lane.b32.xlu0 %v1039, 124
    %v2273 = vpop.permute.xlu0 %2272
    %2274 = vrot.lane.b32.xlu0 %v1040, 124
    %v2275 = vpop.permute.xlu0 %2274
    %2276 = vrot.lane.b32.xlu0 %v1041, 124
    %v2277 = vpop.permute.xlu0 %2276
    %2278 = vrot.lane.b32.xlu0 %v1042, 124
    %v2279 = vpop.permute.xlu0 %2278
    %2280 = vrot.lane.b32.xlu0 %v1043, 124
    %v2281 = vpop.permute.xlu0 %2280
    %2282 = vrot.lane.b32.xlu0 %v1044, 124
    %v2283 = vpop.permute.xlu0 %2282
    %2284 = vrot.lane.b32.xlu0 %v1045, 124
    %v2285 = vpop.permute.xlu0 %2284
    %2286 = vrot.lane.b32.xlu0 %v1046, 124
    %v2287 = vpop.permute.xlu0 %2286
    %2288 = vrot.lane.b32.xlu0 %v1047, 124
    %v2289 = vpop.permute.xlu0 %2288
    %2290 = vrot.lane.b32.xlu0 %v1048, 124
    %v2291 = vpop.permute.xlu0 %2290
    %2292 = vrot.lane.b32.xlu0 %v1049, 124
    %v2293 = vpop.permute.xlu0 %2292
    %2294 = vrot.lane.b32.xlu0 %v1050, 124
    %v2295 = vpop.permute.xlu0 %2294
    %2296 = vrot.lane.b32.xlu0 %v1051, 124
    %v2297 = vpop.permute.xlu0 %2296
    %2298 = vrot.lane.b32.xlu0 %v1052, 124
    %v2299 = vpop.permute.xlu0 %2298
    %2300 = vrot.lane.b32.xlu0 %v1053, 124
    %v2301 = vpop.permute.xlu0 %2300
    %2302 = vrot.lane.b32.xlu0 %v1054, 124
    %v2303 = vpop.permute.xlu0 %2302
    %2304 = vrot.lane.b32.xlu0 %v1055, 124
    %v2305 = vpop.permute.xlu0 %2304
    %2306 = vrot.lane.b32.xlu0 %v1056, 124
    %v2307 = vpop.permute.xlu0 %2306
    %2308 = vrot.lane.b32.xlu0 %v1057, 124
    %v2309 = vpop.permute.xlu0 %2308
    %2310 = vrot.lane.b32.xlu0 %v1058, 124
    %v2311 = vpop.permute.xlu0 %2310
    %2312 = vrot.lane.b32.xlu0 %v1059, 124
    %v2313 = vpop.permute.xlu0 %2312
    %2314 = vrot.lane.b32.xlu0 %v1060, 124
    %v2315 = vpop.permute.xlu0 %2314
    %2316 = vrot.lane.b32.xlu0 %v1061, 124
    %v2317 = vpop.permute.xlu0 %2316
    %2318 = vrot.lane.b32.xlu0 %v1062, 124
    %v2319 = vpop.permute.xlu0 %2318
    %2320 = vrot.lane.b32.xlu0 %v1063, 124
    %v2321 = vpop.permute.xlu0 %2320
    %2322 = vrot.lane.b32.xlu0 %v1064, 124
    %v2323 = vpop.permute.xlu0 %2322
    %2324 = vrot.lane.b32.xlu0 %v1065, 124
    %v2325 = vpop.permute.xlu0 %2324
    %2326 = vrot.lane.b32.xlu0 %v1066, 124
    %v2327 = vpop.permute.xlu0 %2326
    %2328 = vrot.lane.b32.xlu0 %v1067, 124
    %v2329 = vpop.permute.xlu0 %2328
    %2330 = vrot.lane.b32.xlu0 %v1068, 124
    %v2331 = vpop.permute.xlu0 %2330
    %2332 = vrot.lane.b32.xlu0 %v1069, 124
    %v2333 = vpop.permute.xlu0 %2332
    %2334 = vrot.lane.b32.xlu0 %v1070, 124
    %v2335 = vpop.permute.xlu0 %2334
    %2336 = vrot.lane.b32.xlu0 %v1071, 124
    %v2337 = vpop.permute.xlu0 %2336
    %2338 = vrot.lane.b32.xlu0 %v1072, 124
    %v2339 = vpop.permute.xlu0 %2338
    %2340 = vrot.lane.b32.xlu0 %v1073, 124
    %v2341 = vpop.permute.xlu0 %2340
    %2342 = vrot.lane.b32.xlu0 %v1074, 124
    %v2343 = vpop.permute.xlu0 %2342
    %2344 = vrot.lane.b32.xlu0 %v1075, 124
    %v2345 = vpop.permute.xlu0 %2344
    %2346 = vrot.lane.b32.xlu0 %v1076, 124
    %v2347 = vpop.permute.xlu0 %2346
    %2348 = vrot.lane.b32.xlu0 %v1077, 124
    %v2349 = vpop.permute.xlu0 %2348
    %2350 = vrot.lane.b32.xlu0 %v1078, 124
    %v2351 = vpop.permute.xlu0 %2350
    %2352 = vrot.lane.b32.xlu0 %v1079, 124
    %v2353 = vpop.permute.xlu0 %2352
    %2354 = vrot.lane.b32.xlu0 %v1080, 124
    %v2355 = vpop.permute.xlu0 %2354
    %2356 = vrot.lane.b32.xlu0 %v1081, 124
    %v2357 = vpop.permute.xlu0 %2356
    %2358 = vrot.lane.b32.xlu0 %v1082, 124
    %v2359 = vpop.permute.xlu0 %2358
    %2360 = vrot.lane.b32.xlu0 %v1083, 124
    %v2361 = vpop.permute.xlu0 %2360
    %2362 = vrot.lane.b32.xlu0 %v1084, 124
    %v2363 = vpop.permute.xlu0 %2362
    %2364 = vrot.lane.b32.xlu0 %v1085, 124
    %v2365 = vpop.permute.xlu0 %2364
    %2366 = vrot.lane.b32.xlu0 %v1086, 124
    %v2367 = vpop.permute.xlu0 %2366
    %2368 = vrot.lane.b32.xlu0 %v1087, 124
    %v2369 = vpop.permute.xlu0 %2368
    %2370 = vrot.lane.b32.xlu0 %v1088, 124
    %v2371 = vpop.permute.xlu0 %2370
    %2372 = vrot.lane.b32.xlu0 %v1089, 124
    %v2373 = vpop.permute.xlu0 %2372
    %2374 = vrot.lane.b32.xlu0 %v1090, 124
    %v2375 = vpop.permute.xlu0 %2374
    %2376 = vrot.lane.b32.xlu0 %v1091, 124
    %v2377 = vpop.permute.xlu0 %2376
    %2378 = vrot.lane.b32.xlu0 %v1092, 124
    %v2379 = vpop.permute.xlu0 %2378
    %2380 = vrot.lane.b32.xlu0 %v1093, 124
    %v2381 = vpop.permute.xlu0 %2380
    %2382 = vrot.lane.b32.xlu0 %v1094, 124
    %v2383 = vpop.permute.xlu0 %2382
    %2384 = vrot.lane.b32.xlu0 %v1095, 124
    %v2385 = vpop.permute.xlu0 %2384
    %2386 = vrot.lane.b32.xlu0 %v1096, 124
    %v2387 = vpop.permute.xlu0 %2386
    %2388 = vrot.lane.b32.xlu0 %v1097, 124
    %v2389 = vpop.permute.xlu0 %2388
    %2390 = vrot.lane.b32.xlu0 %v1098, 124
    %v2391 = vpop.permute.xlu0 %2390
    %2392 = vrot.lane.b32.xlu0 %v1099, 124
    %v2393 = vpop.permute.xlu0 %2392
    %2394 = vrot.lane.b32.xlu0 %v1100, 124
    %v2395 = vpop.permute.xlu0 %2394
    %2396 = vrot.lane.b32.xlu0 %v1101, 124
    %v2397 = vpop.permute.xlu0 %2396
    %2398 = vrot.lane.b32.xlu0 %v1102, 124
    %v2399 = vpop.permute.xlu0 %2398
    %2400 = vrot.lane.b32.xlu0 %v1103, 124
    %v2401 = vpop.permute.xlu0 %2400
    %2402 = vrot.lane.b32.xlu0 %v1104, 124
    %v2403 = vpop.permute.xlu0 %2402
    %2404 = vrot.lane.b32.xlu0 %v1105, 124
    %v2405 = vpop.permute.xlu0 %2404
    %2406 = vrot.lane.b32.xlu0 %v1106, 124
    %v2407 = vpop.permute.xlu0 %2406
    %2408 = vrot.lane.b32.xlu0 %v1107, 124
    %v2409 = vpop.permute.xlu0 %2408
    %2410 = vrot.lane.b32.xlu0 %v1108, 124
    %v2411 = vpop.permute.xlu0 %2410
    %2412 = vrot.lane.b32.xlu0 %v1109, 124
    %v2413 = vpop.permute.xlu0 %2412
    %2414 = vrot.lane.b32.xlu0 %v1110, 124
    %v2415 = vpop.permute.xlu0 %2414
    %2416 = vrot.lane.b32.xlu0 %v1111, 124
    %v2417 = vpop.permute.xlu0 %2416
    %2418 = vrot.lane.b32.xlu0 %v1112, 124
    %v2419 = vpop.permute.xlu0 %2418
    %2420 = vrot.lane.b32.xlu0 %v1113, 124
    %v2421 = vpop.permute.xlu0 %2420
    %2422 = vrot.lane.b32.xlu0 %v1114, 124
    %v2423 = vpop.permute.xlu0 %2422
    %2424 = vrot.lane.b32.xlu0 %v1115, 124
    %v2425 = vpop.permute.xlu0 %2424
    %2426 = vrot.lane.b32.xlu0 %v1116, 124
    %v2427 = vpop.permute.xlu0 %2426
    %2428 = vrot.lane.b32.xlu0 %v1117, 124
    %v2429 = vpop.permute.xlu0 %2428
    %2430 = vrot.lane.b32.xlu0 %v1118, 124
    %v2431 = vpop.permute.xlu0 %2430
    %2432 = vrot.lane.b32.xlu0 %v1119, 124
    %v2433 = vpop.permute.xlu0 %2432
    %2434 = vrot.lane.b32.xlu0 %v1120, 124
    %v2435 = vpop.permute.xlu0 %2434
    %2436 = vrot.lane.b32.xlu0 %v1121, 124
    %v2437 = vpop.permute.xlu0 %2436
    %2438 = vrot.lane.b32.xlu0 %v1122, 124
    %v2439 = vpop.permute.xlu0 %2438
    %2440 = vrot.lane.b32.xlu0 %v1123, 124
    %v2441 = vpop.permute.xlu0 %2440
    %2442 = vrot.lane.b32.xlu0 %v1124, 124
    %v2443 = vpop.permute.xlu0 %2442
    %2444 = vrot.lane.b32.xlu0 %v1125, 124
    %v2445 = vpop.permute.xlu0 %2444
    %2446 = vrot.lane.b32.xlu0 %v1126, 124
    %v2447 = vpop.permute.xlu0 %2446
    %2448 = vrot.lane.b32.xlu0 %v1127, 124
    %v2449 = vpop.permute.xlu0 %2448
    %2450 = vrot.lane.b32.xlu0 %v1128, 124
    %v2451 = vpop.permute.xlu0 %2450
    %2452 = vrot.lane.b32.xlu0 %v1129, 124
    %v2453 = vpop.permute.xlu0 %2452
    %vm2574 = vcmask 15368
    %2575 = vst.msk [vmem:[#allocation2] sm:$0xff] %vm2574, %v2215
    %2576 = vst.msk [vmem:[#allocation2 + $0x8] sm:$0xff] %vm2574, %v2217
    %vm2577 = vcmask 13320
    %2578 = vst.msk [vmem:[#allocation2 + $0x10] sm:$0x3f] %vm2577, %v2219
    %2579 = vst.msk [vmem:[#allocation2 + $0x18] sm:$0xff] %vm2574, %v2221
    %2580 = vst.msk [vmem:[#allocation2 + $0x20] sm:$0xff] %vm2574, %v2223
    %2581 = vst.msk [vmem:[#allocation2 + $0x28] sm:$0x3f] %vm2577, %v2225
    %2582 = vst.msk [vmem:[#allocation2 + $0x30] sm:$0xff] %vm2574, %v2227
    %2583 = vst.msk [vmem:[#allocation2 + $0x38] sm:$0xff] %vm2574, %v2229
    %2584 = vst.msk [vmem:[#allocation2 + $0x40] sm:$0x3f] %vm2577, %v2231
    %2585 = vst.msk [vmem:[#allocation2 + $0x48] sm:$0xff] %vm2574, %v2233
    %2586 = vst.msk [vmem:[#allocation2 + $0x50] sm:$0xff] %vm2574, %v2235
    %2587 = vst.msk [vmem:[#allocation2 + $0x58] sm:$0x3f] %vm2577, %v2237
    %2588 = vst.msk [vmem:[#allocation2 + $0x60] sm:$0xff] %vm2574, %v2239
    %2589 = vst.msk [vmem:[#allocation2 + $0x68] sm:$0xff] %vm2574, %v2241
    %2590 = vst.msk [vmem:[#allocation2 + $0x70] sm:$0x3f] %vm2577, %v2243
    %2591 = vst.msk [vmem:[#allocation2 + $0x78] sm:$0xff] %vm2574, %v2245
    %2592 = vst.msk [vmem:[#allocation2 + $0x80] sm:$0xff] %vm2574, %v2247
    %2593 = vst.msk [vmem:[#allocation2 + $0x88] sm:$0x3f] %vm2577, %v2249
    %2594 = vst.msk [vmem:[#allocation2 + $0x90] sm:$0xff] %vm2574, %v2251
    %2595 = vst.msk [vmem:[#allocation2 + $0x98] sm:$0xff] %vm2574, %v2253
    %2596 = vst.msk [vmem:[#allocation2 + $0xa0] sm:$0x3f] %vm2577, %v2255
    %2597 = vst.msk [vmem:[#allocation2 + $0xa8] sm:$0xff] %vm2574, %v2257
    %2598 = vst.msk [vmem:[#allocation2 + $0xb0] sm:$0xff] %vm2574, %v2259
    %2599 = vst.msk [vmem:[#allocation2 + $0xb8] sm:$0x3f] %vm2577, %v2261
    %2600 = vst.msk [vmem:[#allocation2 + $0xc0] sm:$0xff] %vm2574, %v2263
    %2601 = vst.msk [vmem:[#allocation2 + $0xc8] sm:$0xff] %vm2574, %v2265
    %2602 = vst.msk [vmem:[#allocation2 + $0xd0] sm:$0x3f] %vm2577, %v2267
    %2603 = vst.msk [vmem:[#allocation2 + $0xd8] sm:$0xff] %vm2574, %v2269
    %2604 = vst.msk [vmem:[#allocation2 + $0xe0] sm:$0xff] %vm2574, %v2271
    %2605 = vst.msk [vmem:[#allocation2 + $0xe8] sm:$0x3f] %vm2577, %v2273
    %2606 = vst.msk [vmem:[#allocation2 + $0xf0] sm:$0xff] %vm2574, %v2275
    %2607 = vst.msk [vmem:[#allocation2 + $0xf8] sm:$0xff] %vm2574, %v2277
    %2608 = vst.msk [vmem:[#allocation2 + $0x100] sm:$0x3f] %vm2577, %v2279
    %2609 = vst.msk [vmem:[#allocation2 + $0x108] sm:$0xff] %vm2574, %v2281
    %2610 = vst.msk [vmem:[#allocation2 + $0x110] sm:$0xff] %vm2574, %v2283
    %2611 = vst.msk [vmem:[#allocation2 + $0x118] sm:$0x3f] %vm2577, %v2285
    %2612 = vst.msk [vmem:[#allocation2 + $0x120] sm:$0xff] %vm2574, %v2287
    %2613 = vst.msk [vmem:[#allocation2 + $0x128] sm:$0xff] %vm2574, %v2289
    %2614 = vst.msk [vmem:[#allocation2 + $0x130] sm:$0x3f] %vm2577, %v2291
    %2615 = vst.msk [vmem:[#allocation2 + $0x138] sm:$0xff] %vm2574, %v2293
    %2616 = vst.msk [vmem:[#allocation2 + $0x140] sm:$0xff] %vm2574, %v2295
    %2617 = vst.msk [vmem:[#allocation2 + $0x148] sm:$0x3f] %vm2577, %v2297
    %2618 = vst.msk [vmem:[#allocation2 + $0x150] sm:$0xff] %vm2574, %v2299
    %2619 = vst.msk [vmem:[#allocation2 + $0x158] sm:$0xff] %vm2574, %v2301
    %2620 = vst.msk [vmem:[#allocation2 + $0x160] sm:$0x3f] %vm2577, %v2303
    %2621 = vst.msk [vmem:[#allocation2 + $0x168] sm:$0xff] %vm2574, %v2305
    %2622 = vst.msk [vmem:[#allocation2 + $0x170] sm:$0xff] %vm2574, %v2307
    %2623 = vst.msk [vmem:[#allocation2 + $0x178] sm:$0x3f] %vm2577, %v2309
    %2624 = vst.msk [vmem:[#allocation2 + $0x180] sm:$0xff] %vm2574, %v2311
    %2625 = vst.msk [vmem:[#allocation2 + $0x188] sm:$0xff] %vm2574, %v2313
    %2626 = vst.msk [vmem:[#allocation2 + $0x190] sm:$0x3f] %vm2577, %v2315
    %2627 = vst.msk [vmem:[#allocation2 + $0x198] sm:$0xff] %vm2574, %v2317
    %2628 = vst.msk [vmem:[#allocation2 + $0x1a0] sm:$0xff] %vm2574, %v2319
    %2629 = vst.msk [vmem:[#allocation2 + $0x1a8] sm:$0x3f] %vm2577, %v2321
    %2630 = vst.msk [vmem:[#allocation2 + $0x1b0] sm:$0xff] %vm2574, %v2323
    %2631 = vst.msk [vmem:[#allocation2 + $0x1b8] sm:$0xff] %vm2574, %v2325
    %2632 = vst.msk [vmem:[#allocation2 + $0x1c0] sm:$0x3f] %vm2577, %v2327
    %2633 = vst.msk [vmem:[#allocation2 + $0x1c8] sm:$0xff] %vm2574, %v2329
    %2634 = vst.msk [vmem:[#allocation2 + $0x1d0] sm:$0xff] %vm2574, %v2331
    %2635 = vst.msk [vmem:[#allocation2 + $0x1d8] sm:$0x3f] %vm2577, %v2333
    %2636 = vst.msk [vmem:[#allocation2 + $0x1e0] sm:$0xff] %vm2574, %v2335
    %2637 = vst.msk [vmem:[#allocation2 + $0x1e8] sm:$0xff] %vm2574, %v2337
    %2638 = vst.msk [vmem:[#allocation2 + $0x1f0] sm:$0x3f] %vm2577, %v2339
    %2639 = vst.msk [vmem:[#allocation2 + $0x1f8] sm:$0xff] %vm2574, %v2341
    %2640 = vst.msk [vmem:[#allocation2 + $0x200] sm:$0xff] %vm2574, %v2343
    %2641 = vst.msk [vmem:[#allocation2 + $0x208] sm:$0x3f] %vm2577, %v2345
    %2642 = vst.msk [vmem:[#allocation2 + $0x210] sm:$0xff] %vm2574, %v2347
    %2643 = vst.msk [vmem:[#allocation2 + $0x218] sm:$0xff] %vm2574, %v2349
    %2644 = vst.msk [vmem:[#allocation2 + $0x220] sm:$0x3f] %vm2577, %v2351
    %2645 = vst.msk [vmem:[#allocation2 + $0x228] sm:$0xff] %vm2574, %v2353
    %2646 = vst.msk [vmem:[#allocation2 + $0x230] sm:$0xff] %vm2574, %v2355
    %2647 = vst.msk [vmem:[#allocation2 + $0x238] sm:$0x3f] %vm2577, %v2357
    %2648 = vst.msk [vmem:[#allocation2 + $0x240] sm:$0xff] %vm2574, %v2359
    %2649 = vst.msk [vmem:[#allocation2 + $0x248] sm:$0xff] %vm2574, %v2361
    %2650 = vst.msk [vmem:[#allocation2 + $0x250] sm:$0x3f] %vm2577, %v2363
    %2651 = vst.msk [vmem:[#allocation2 + $0x258] sm:$0xff] %vm2574, %v2365
    %2652 = vst.msk [vmem:[#allocation2 + $0x260] sm:$0xff] %vm2574, %v2367
    %2653 = vst.msk [vmem:[#allocation2 + $0x268] sm:$0x3f] %vm2577, %v2369
    %2654 = vst.msk [vmem:[#allocation2 + $0x270] sm:$0xff] %vm2574, %v2371
    %2655 = vst.msk [vmem:[#allocation2 + $0x278] sm:$0xff] %vm2574, %v2373
    %2656 = vst.msk [vmem:[#allocation2 + $0x280] sm:$0x3f] %vm2577, %v2375
    %2657 = vst.msk [vmem:[#allocation2 + $0x288] sm:$0xff] %vm2574, %v2377
    %2658 = vst.msk [vmem:[#allocation2 + $0x290] sm:$0xff] %vm2574, %v2379
    %2659 = vst.msk [vmem:[#allocation2 + $0x298] sm:$0x3f] %vm2577, %v2381
    %2660 = vst.msk [vmem:[#allocation2 + $0x2a0] sm:$0xff] %vm2574, %v2383
    %2661 = vst.msk [vmem:[#allocation2 + $0x2a8] sm:$0xff] %vm2574, %v2385
    %2662 = vst.msk [vmem:[#allocation2 + $0x2b0] sm:$0x3f] %vm2577, %v2387
    %2663 = vst.msk [vmem:[#allocation2 + $0x2b8] sm:$0xff] %vm2574, %v2389
    %2664 = vst.msk [vmem:[#allocation2 + $0x2c0] sm:$0xff] %vm2574, %v2391
    %2665 = vst.msk [vmem:[#allocation2 + $0x2c8] sm:$0x3f] %vm2577, %v2393
    %2666 = vst.msk [vmem:[#allocation2 + $0x2d0] sm:$0xff] %vm2574, %v2395
    %2667 = vst.msk [vmem:[#allocation2 + $0x2d8] sm:$0xff] %vm2574, %v2397
    %2668 = vst.msk [vmem:[#allocation2 + $0x2e0] sm:$0x3f] %vm2577, %v2399
    %2669 = vst.msk [vmem:[#allocation2 + $0x2e8] sm:$0xff] %vm2574, %v2401
    %2670 = vst.msk [vmem:[#allocation2 + $0x2f0] sm:$0xff] %vm2574, %v2403
    %2671 = vst.msk [vmem:[#allocation2 + $0x2f8] sm:$0x3f] %vm2577, %v2405
    %2672 = vst.msk [vmem:[#allocation2 + $0x300] sm:$0xff] %vm2574, %v2407
    %2673 = vst.msk [vmem:[#allocation2 + $0x308] sm:$0xff] %vm2574, %v2409
    %2674 = vst.msk [vmem:[#allocation2 + $0x310] sm:$0x3f] %vm2577, %v2411
    %2675 = vst.msk [vmem:[#allocation2 + $0x318] sm:$0xff] %vm2574, %v2413
    %2676 = vst.msk [vmem:[#allocation2 + $0x320] sm:$0xff] %vm2574, %v2415
    %2677 = vst.msk [vmem:[#allocation2 + $0x328] sm:$0x3f] %vm2577, %v2417
    %2678 = vst.msk [vmem:[#allocation2 + $0x330] sm:$0xff] %vm2574, %v2419
    %2679 = vst.msk [vmem:[#allocation2 + $0x338] sm:$0xff] %vm2574, %v2421
    %2680 = vst.msk [vmem:[#allocation2 + $0x340] sm:$0x3f] %vm2577, %v2423
    %2681 = vst.msk [vmem:[#allocation2 + $0x348] sm:$0xff] %vm2574, %v2425
    %2682 = vst.msk [vmem:[#allocation2 + $0x350] sm:$0xff] %vm2574, %v2427
    %2683 = vst.msk [vmem:[#allocation2 + $0x358] sm:$0x3f] %vm2577, %v2429
    %2684 = vst.msk [vmem:[#allocation2 + $0x360] sm:$0xff] %vm2574, %v2431
    %2685 = vst.msk [vmem:[#allocation2 + $0x368] sm:$0xff] %vm2574, %v2433
    %2686 = vst.msk [vmem:[#allocation2 + $0x370] sm:$0x3f] %vm2577, %v2435
    %2687 = vst.msk [vmem:[#allocation2 + $0x378] sm:$0xff] %vm2574, %v2437
    %2688 = vst.msk [vmem:[#allocation2 + $0x380] sm:$0xff] %vm2574, %v2439
    %2689 = vst.msk [vmem:[#allocation2 + $0x388] sm:$0x3f] %vm2577, %v2441
    %2690 = vst.msk [vmem:[#allocation2 + $0x390] sm:$0xff] %vm2574, %v2443
    %2691 = vst.msk [vmem:[#allocation2 + $0x398] sm:$0xff] %vm2574, %v2445
    %2692 = vst.msk [vmem:[#allocation2 + $0x3a0] sm:$0x3f] %vm2577, %v2447
    %2693 = vst.msk [vmem:[#allocation2 + $0x3a8] sm:$0xff] %vm2574, %v2449
    %2694 = vst.msk [vmem:[#allocation2 + $0x3b0] sm:$0xff] %vm2574, %v2451
    %2695 = vst.msk [vmem:[#allocation2 + $0x3b8] sm:$0x3f] %vm2577, %v2453
    %2696 = vrot.lane.b32.xlu0 %v1010, 4
    %v2697 = vpop.permute.xlu0 %2696
    %2698 = vrot.lane.b32.xlu0 %v1011, 4
    %v2699 = vpop.permute.xlu0 %2698
    %2700 = vrot.lane.b32.xlu0 %v1012, 4
    %v2701 = vpop.permute.xlu0 %2700
    %2702 = vrot.lane.b32.xlu0 %v1013, 4
    %v2703 = vpop.permute.xlu0 %2702
    %2704 = vrot.lane.b32.xlu0 %v1014, 4
    %v2705 = vpop.permute.xlu0 %2704
    %2706 = vrot.lane.b32.xlu0 %v1015, 4
    %v2707 = vpop.permute.xlu0 %2706
    %2708 = vrot.lane.b32.xlu0 %v1016, 4
    %v2709 = vpop.permute.xlu0 %2708
    %2710 = vrot.lane.b32.xlu0 %v1017, 4
    %v2711 = vpop.permute.xlu0 %2710
    %2712 = vrot.lane.b32.xlu0 %v1018, 4
    %v2713 = vpop.permute.xlu0 %2712
    %2714 = vrot.lane.b32.xlu0 %v1019, 4
    %v2715 = vpop.permute.xlu0 %2714
    %2716 = vrot.lane.b32.xlu0 %v1020, 4
    %v2717 = vpop.permute.xlu0 %2716
    %2718 = vrot.lane.b32.xlu0 %v1021, 4
    %v2719 = vpop.permute.xlu0 %2718
    %2720 = vrot.lane.b32.xlu0 %v1022, 4
    %v2721 = vpop.permute.xlu0 %2720
    %2722 = vrot.lane.b32.xlu0 %v1023, 4
    %v2723 = vpop.permute.xlu0 %2722
    %2724 = vrot.lane.b32.xlu0 %v1024, 4
    %v2725 = vpop.permute.xlu0 %2724
    %2726 = vrot.lane.b32.xlu0 %v1025, 4
    %v2727 = vpop.permute.xlu0 %2726
    %2728 = vrot.lane.b32.xlu0 %v1026, 4
    %v2729 = vpop.permute.xlu0 %2728
    %2730 = vrot.lane.b32.xlu0 %v1027, 4
    %v2731 = vpop.permute.xlu0 %2730
    %2732 = vrot.lane.b32.xlu0 %v1028, 4
    %v2733 = vpop.permute.xlu0 %2732
    %2734 = vrot.lane.b32.xlu0 %v1029, 4
    %v2735 = vpop.permute.xlu0 %2734
    %2736 = vrot.lane.b32.xlu0 %v1030, 4
    %v2737 = vpop.permute.xlu0 %2736
    %2738 = vrot.lane.b32.xlu0 %v1031, 4
    %v2739 = vpop.permute.xlu0 %2738
    %2740 = vrot.lane.b32.xlu0 %v1032, 4
    %v2741 = vpop.permute.xlu0 %2740
    %2742 = vrot.lane.b32.xlu0 %v1033, 4
    %v2743 = vpop.permute.xlu0 %2742
    %2744 = vrot.lane.b32.xlu0 %v1034, 4
    %v2745 = vpop.permute.xlu0 %2744
    %2746 = vrot.lane.b32.xlu0 %v1035, 4
    %v2747 = vpop.permute.xlu0 %2746
    %2748 = vrot.lane.b32.xlu0 %v1036, 4
    %v2749 = vpop.permute.xlu0 %2748
    %2750 = vrot.lane.b32.xlu0 %v1037, 4
    %v2751 = vpop.permute.xlu0 %2750
    %2752 = vrot.lane.b32.xlu0 %v1038, 4
    %v2753 = vpop.permute.xlu0 %2752
    %2754 = vrot.lane.b32.xlu0 %v1039, 4
    %v2755 = vpop.permute.xlu0 %2754
    %2756 = vrot.lane.b32.xlu0 %v1040, 4
    %v2757 = vpop.permute.xlu0 %2756
    %2758 = vrot.lane.b32.xlu0 %v1041, 4
    %v2759 = vpop.permute.xlu0 %2758
    %2760 = vrot.lane.b32.xlu0 %v1042, 4
    %v2761 = vpop.permute.xlu0 %2760
    %2762 = vrot.lane.b32.xlu0 %v1043, 4
    %v2763 = vpop.permute.xlu0 %2762
    %2764 = vrot.lane.b32.xlu0 %v1044, 4
    %v2765 = vpop.permute.xlu0 %2764
    %2766 = vrot.lane.b32.xlu0 %v1045, 4
    %v2767 = vpop.permute.xlu0 %2766
    %2768 = vrot.lane.b32.xlu0 %v1046, 4
    %v2769 = vpop.permute.xlu0 %2768
    %2770 = vrot.lane.b32.xlu0 %v1047, 4
    %v2771 = vpop.permute.xlu0 %2770
    %2772 = vrot.lane.b32.xlu0 %v1048, 4
    %v2773 = vpop.permute.xlu0 %2772
    %2774 = vrot.lane.b32.xlu0 %v1049, 4
    %v2775 = vpop.permute.xlu0 %2774
    %2776 = vrot.lane.b32.xlu0 %v1050, 4
    %v2777 = vpop.permute.xlu0 %2776
    %2778 = vrot.lane.b32.xlu0 %v1051, 4
    %v2779 = vpop.permute.xlu0 %2778
    %2780 = vrot.lane.b32.xlu0 %v1052, 4
    %v2781 = vpop.permute.xlu0 %2780
    %2782 = vrot.lane.b32.xlu0 %v1053, 4
    %v2783 = vpop.permute.xlu0 %2782
    %2784 = vrot.lane.b32.xlu0 %v1054, 4
    %v2785 = vpop.permute.xlu0 %2784
    %2786 = vrot.lane.b32.xlu0 %v1055, 4
    %v2787 = vpop.permute.xlu0 %2786
    %2788 = vrot.lane.b32.xlu0 %v1056, 4
    %v2789 = vpop.permute.xlu0 %2788
    %2790 = vrot.lane.b32.xlu0 %v1057, 4
    %v2791 = vpop.permute.xlu0 %2790
    %2792 = vrot.lane.b32.xlu0 %v1058, 4
    %v2793 = vpop.permute.xlu0 %2792
    %2794 = vrot.lane.b32.xlu0 %v1059, 4
    %v2795 = vpop.permute.xlu0 %2794
    %2796 = vrot.lane.b32.xlu0 %v1060, 4
    %v2797 = vpop.permute.xlu0 %2796
    %2798 = vrot.lane.b32.xlu0 %v1061, 4
    %v2799 = vpop.permute.xlu0 %2798
    %2800 = vrot.lane.b32.xlu0 %v1062, 4
    %v2801 = vpop.permute.xlu0 %2800
    %2802 = vrot.lane.b32.xlu0 %v1063, 4
    %v2803 = vpop.permute.xlu0 %2802
    %2804 = vrot.lane.b32.xlu0 %v1064, 4
    %v2805 = vpop.permute.xlu0 %2804
    %2806 = vrot.lane.b32.xlu0 %v1065, 4
    %v2807 = vpop.permute.xlu0 %2806
    %2808 = vrot.lane.b32.xlu0 %v1066, 4
    %v2809 = vpop.permute.xlu0 %2808
    %2810 = vrot.lane.b32.xlu0 %v1067, 4
    %v2811 = vpop.permute.xlu0 %2810
    %2812 = vrot.lane.b32.xlu0 %v1068, 4
    %v2813 = vpop.permute.xlu0 %2812
    %2814 = vrot.lane.b32.xlu0 %v1069, 4
    %v2815 = vpop.permute.xlu0 %2814
    %2816 = vrot.lane.b32.xlu0 %v1070, 4
    %v2817 = vpop.permute.xlu0 %2816
    %2818 = vrot.lane.b32.xlu0 %v1071, 4
    %v2819 = vpop.permute.xlu0 %2818
    %2820 = vrot.lane.b32.xlu0 %v1072, 4
    %v2821 = vpop.permute.xlu0 %2820
    %2822 = vrot.lane.b32.xlu0 %v1073, 4
    %v2823 = vpop.permute.xlu0 %2822
    %2824 = vrot.lane.b32.xlu0 %v1074, 4
    %v2825 = vpop.permute.xlu0 %2824
    %2826 = vrot.lane.b32.xlu0 %v1075, 4
    %v2827 = vpop.permute.xlu0 %2826
    %2828 = vrot.lane.b32.xlu0 %v1076, 4
    %v2829 = vpop.permute.xlu0 %2828
    %2830 = vrot.lane.b32.xlu0 %v1077, 4
    %v2831 = vpop.permute.xlu0 %2830
    %2832 = vrot.lane.b32.xlu0 %v1078, 4
    %v2833 = vpop.permute.xlu0 %2832
    %2834 = vrot.lane.b32.xlu0 %v1079, 4
    %v2835 = vpop.permute.xlu0 %2834
    %2836 = vrot.lane.b32.xlu0 %v1080, 4
    %v2837 = vpop.permute.xlu0 %2836
    %2838 = vrot.lane.b32.xlu0 %v1081, 4
    %v2839 = vpop.permute.xlu0 %2838
    %2840 = vrot.lane.b32.xlu0 %v1082, 4
    %v2841 = vpop.permute.xlu0 %2840
    %2842 = vrot.lane.b32.xlu0 %v1083, 4
    %v2843 = vpop.permute.xlu0 %2842
    %2844 = vrot.lane.b32.xlu0 %v1084, 4
    %v2845 = vpop.permute.xlu0 %2844
    %2846 = vrot.lane.b32.xlu0 %v1085, 4
    %v2847 = vpop.permute.xlu0 %2846
    %2848 = vrot.lane.b32.xlu0 %v1086, 4
    %v2849 = vpop.permute.xlu0 %2848
    %2850 = vrot.lane.b32.xlu0 %v1087, 4
    %v2851 = vpop.permute.xlu0 %2850
    %2852 = vrot.lane.b32.xlu0 %v1088, 4
    %v2853 = vpop.permute.xlu0 %2852
    %2854 = vrot.lane.b32.xlu0 %v1089, 4
    %v2855 = vpop.permute.xlu0 %2854
    %2856 = vrot.lane.b32.xlu0 %v1090, 4
    %v2857 = vpop.permute.xlu0 %2856
    %2858 = vrot.lane.b32.xlu0 %v1091, 4
    %v2859 = vpop.permute.xlu0 %2858
    %2860 = vrot.lane.b32.xlu0 %v1092, 4
    %v2861 = vpop.permute.xlu0 %2860
    %2862 = vrot.lane.b32.xlu0 %v1093, 4
    %v2863 = vpop.permute.xlu0 %2862
    %2864 = vrot.lane.b32.xlu0 %v1094, 4
    %v2865 = vpop.permute.xlu0 %2864
    %2866 = vrot.lane.b32.xlu0 %v1095, 4
    %v2867 = vpop.permute.xlu0 %2866
    %2868 = vrot.lane.b32.xlu0 %v1096, 4
    %v2869 = vpop.permute.xlu0 %2868
    %2870 = vrot.lane.b32.xlu0 %v1097, 4
    %v2871 = vpop.permute.xlu0 %2870
    %2872 = vrot.lane.b32.xlu0 %v1098, 4
    %v2873 = vpop.permute.xlu0 %2872
    %2874 = vrot.lane.b32.xlu0 %v1099, 4
    %v2875 = vpop.permute.xlu0 %2874
    %2876 = vrot.lane.b32.xlu0 %v1100, 4
    %v2877 = vpop.permute.xlu0 %2876
    %2878 = vrot.lane.b32.xlu0 %v1101, 4
    %v2879 = vpop.permute.xlu0 %2878
    %2880 = vrot.lane.b32.xlu0 %v1102, 4
    %v2881 = vpop.permute.xlu0 %2880
    %2882 = vrot.lane.b32.xlu0 %v1103, 4
    %v2883 = vpop.permute.xlu0 %2882
    %2884 = vrot.lane.b32.xlu0 %v1104, 4
    %v2885 = vpop.permute.xlu0 %2884
    %2886 = vrot.lane.b32.xlu0 %v1105, 4
    %v2887 = vpop.permute.xlu0 %2886
    %2888 = vrot.lane.b32.xlu0 %v1106, 4
    %v2889 = vpop.permute.xlu0 %2888
    %2890 = vrot.lane.b32.xlu0 %v1107, 4
    %v2891 = vpop.permute.xlu0 %2890
    %2892 = vrot.lane.b32.xlu0 %v1108, 4
    %v2893 = vpop.permute.xlu0 %2892
    %2894 = vrot.lane.b32.xlu0 %v1109, 4
    %v2895 = vpop.permute.xlu0 %2894
    %2896 = vrot.lane.b32.xlu0 %v1110, 4
    %v2897 = vpop.permute.xlu0 %2896
    %2898 = vrot.lane.b32.xlu0 %v1111, 4
    %v2899 = vpop.permute.xlu0 %2898
    %2900 = vrot.lane.b32.xlu0 %v1112, 4
    %v2901 = vpop.permute.xlu0 %2900
    %2902 = vrot.lane.b32.xlu0 %v1113, 4
    %v2903 = vpop.permute.xlu0 %2902
    %2904 = vrot.lane.b32.xlu0 %v1114, 4
    %v2905 = vpop.permute.xlu0 %2904
    %2906 = vrot.lane.b32.xlu0 %v1115, 4
    %v2907 = vpop.permute.xlu0 %2906
    %2908 = vrot.lane.b32.xlu0 %v1116, 4
    %v2909 = vpop.permute.xlu0 %2908
    %2910 = vrot.lane.b32.xlu0 %v1117, 4
    %v2911 = vpop.permute.xlu0 %2910
    %2912 = vrot.lane.b32.xlu0 %v1118, 4
    %v2913 = vpop.permute.xlu0 %2912
    %2914 = vrot.lane.b32.xlu0 %v1119, 4
    %v2915 = vpop.permute.xlu0 %2914
    %2916 = vrot.lane.b32.xlu0 %v1120, 4
    %v2917 = vpop.permute.xlu0 %2916
    %2918 = vrot.lane.b32.xlu0 %v1121, 4
    %v2919 = vpop.permute.xlu0 %2918
    %2920 = vrot.lane.b32.xlu0 %v1122, 4
    %v2921 = vpop.permute.xlu0 %2920
    %2922 = vrot.lane.b32.xlu0 %v1123, 4
    %v2923 = vpop.permute.xlu0 %2922
    %2924 = vrot.lane.b32.xlu0 %v1124, 4
    %v2925 = vpop.permute.xlu0 %2924
    %2926 = vrot.lane.b32.xlu0 %v1125, 4
    %v2927 = vpop.permute.xlu0 %2926
    %2928 = vrot.lane.b32.xlu0 %v1126, 4
    %v2929 = vpop.permute.xlu0 %2928
    %2930 = vrot.lane.b32.xlu0 %v1127, 4
    %v2931 = vpop.permute.xlu0 %2930
    %2932 = vrot.lane.b32.xlu0 %v1128, 4
    %v2933 = vpop.permute.xlu0 %2932
    %2934 = vrot.lane.b32.xlu0 %v1129, 4
    %v2935 = vpop.permute.xlu0 %2934
    %vm3056 = vcmask 171168
    %3057 = vst.msk [vmem:[#allocation2] sm:$0xff] %vm3056, %v2697
    %3058 = vst.msk [vmem:[#allocation2 + $0x8] sm:$0xff] %vm3056, %v2699
    %vm3059 = vcmask 169120
    %3060 = vst.msk [vmem:[#allocation2 + $0x10] sm:$0x3f] %vm3059, %v2701
    %3061 = vst.msk [vmem:[#allocation2 + $0x18] sm:$0xff] %vm3056, %v2703
    %3062 = vst.msk [vmem:[#allocation2 + $0x20] sm:$0xff] %vm3056, %v2705
    %3063 = vst.msk [vmem:[#allocation2 + $0x28] sm:$0x3f] %vm3059, %v2707
    %3064 = vst.msk [vmem:[#allocation2 + $0x30] sm:$0xff] %vm3056, %v2709
    %3065 = vst.msk [vmem:[#allocation2 + $0x38] sm:$0xff] %vm3056, %v2711
    %3066 = vst.msk [vmem:[#allocation2 + $0x40] sm:$0x3f] %vm3059, %v2713
    %3067 = vst.msk [vmem:[#allocation2 + $0x48] sm:$0xff] %vm3056, %v2715
    %3068 = vst.msk [vmem:[#allocation2 + $0x50] sm:$0xff] %vm3056, %v2717
    %3069 = vst.msk [vmem:[#allocation2 + $0x58] sm:$0x3f] %vm3059, %v2719
    %3070 = vst.msk [vmem:[#allocation2 + $0x60] sm:$0xff] %vm3056, %v2721
    %3071 = vst.msk [vmem:[#allocation2 + $0x68] sm:$0xff] %vm3056, %v2723
    %3072 = vst.msk [vmem:[#allocation2 + $0x70] sm:$0x3f] %vm3059, %v2725
    %3073 = vst.msk [vmem:[#allocation2 + $0x78] sm:$0xff] %vm3056, %v2727
    %3074 = vst.msk [vmem:[#allocation2 + $0x80] sm:$0xff] %vm3056, %v2729
    %3075 = vst.msk [vmem:[#allocation2 + $0x88] sm:$0x3f] %vm3059, %v2731
    %3076 = vst.msk [vmem:[#allocation2 + $0x90] sm:$0xff] %vm3056, %v2733
    %3077 = vst.msk [vmem:[#allocation2 + $0x98] sm:$0xff] %vm3056, %v2735
    %3078 = vst.msk [vmem:[#allocation2 + $0xa0] sm:$0x3f] %vm3059, %v2737
    %3079 = vst.msk [vmem:[#allocation2 + $0xa8] sm:$0xff] %vm3056, %v2739
    %3080 = vst.msk [vmem:[#allocation2 + $0xb0] sm:$0xff] %vm3056, %v2741
    %3081 = vst.msk [vmem:[#allocation2 + $0xb8] sm:$0x3f] %vm3059, %v2743
    %3082 = vst.msk [vmem:[#allocation2 + $0xc0] sm:$0xff] %vm3056, %v2745
    %3083 = vst.msk [vmem:[#allocation2 + $0xc8] sm:$0xff] %vm3056, %v2747
    %3084 = vst.msk [vmem:[#allocation2 + $0xd0] sm:$0x3f] %vm3059, %v2749
    %3085 = vst.msk [vmem:[#allocation2 + $0xd8] sm:$0xff] %vm3056, %v2751
    %3086 = vst.msk [vmem:[#allocation2 + $0xe0] sm:$0xff] %vm3056, %v2753
    %3087 = vst.msk [vmem:[#allocation2 + $0xe8] sm:$0x3f] %vm3059, %v2755
    %3088 = vst.msk [vmem:[#allocation2 + $0xf0] sm:$0xff] %vm3056, %v2757
    %3089 = vst.msk [vmem:[#allocation2 + $0xf8] sm:$0xff] %vm3056, %v2759
    %3090 = vst.msk [vmem:[#allocation2 + $0x100] sm:$0x3f] %vm3059, %v2761
    %3091 = vst.msk [vmem:[#allocation2 + $0x108] sm:$0xff] %vm3056, %v2763
    %3092 = vst.msk [vmem:[#allocation2 + $0x110] sm:$0xff] %vm3056, %v2765
    %3093 = vst.msk [vmem:[#allocation2 + $0x118] sm:$0x3f] %vm3059, %v2767
    %3094 = vst.msk [vmem:[#allocation2 + $0x120] sm:$0xff] %vm3056, %v2769
    %3095 = vst.msk [vmem:[#allocation2 + $0x128] sm:$0xff] %vm3056, %v2771
    %3096 = vst.msk [vmem:[#allocation2 + $0x130] sm:$0x3f] %vm3059, %v2773
    %3097 = vst.msk [vmem:[#allocation2 + $0x138] sm:$0xff] %vm3056, %v2775
    %3098 = vst.msk [vmem:[#allocation2 + $0x140] sm:$0xff] %vm3056, %v2777
    %3099 = vst.msk [vmem:[#allocation2 + $0x148] sm:$0x3f] %vm3059, %v2779
    %3100 = vst.msk [vmem:[#allocation2 + $0x150] sm:$0xff] %vm3056, %v2781
    %3101 = vst.msk [vmem:[#allocation2 + $0x158] sm:$0xff] %vm3056, %v2783
    %3102 = vst.msk [vmem:[#allocation2 + $0x160] sm:$0x3f] %vm3059, %v2785
    %3103 = vst.msk [vmem:[#allocation2 + $0x168] sm:$0xff] %vm3056, %v2787
    %3104 = vst.msk [vmem:[#allocation2 + $0x170] sm:$0xff] %vm3056, %v2789
    %3105 = vst.msk [vmem:[#allocation2 + $0x178] sm:$0x3f] %vm3059, %v2791
    %3106 = vst.msk [vmem:[#allocation2 + $0x180] sm:$0xff] %vm3056, %v2793
    %3107 = vst.msk [vmem:[#allocation2 + $0x188] sm:$0xff] %vm3056, %v2795
    %3108 = vst.msk [vmem:[#allocation2 + $0x190] sm:$0x3f] %vm3059, %v2797
    %3109 = vst.msk [vmem:[#allocation2 + $0x198] sm:$0xff] %vm3056, %v2799
    %3110 = vst.msk [vmem:[#allocation2 + $0x1a0] sm:$0xff] %vm3056, %v2801
    %3111 = vst.msk [vmem:[#allocation2 + $0x1a8] sm:$0x3f] %vm3059, %v2803
    %3112 = vst.msk [vmem:[#allocation2 + $0x1b0] sm:$0xff] %vm3056, %v2805
    %3113 = vst.msk [vmem:[#allocation2 + $0x1b8] sm:$0xff] %vm3056, %v2807
    %3114 = vst.msk [vmem:[#allocation2 + $0x1c0] sm:$0x3f] %vm3059, %v2809
    %3115 = vst.msk [vmem:[#allocation2 + $0x1c8] sm:$0xff] %vm3056, %v2811
    %3116 = vst.msk [vmem:[#allocation2 + $0x1d0] sm:$0xff] %vm3056, %v2813
    %3117 = vst.msk [vmem:[#allocation2 + $0x1d8] sm:$0x3f] %vm3059, %v2815
    %3118 = vst.msk [vmem:[#allocation2 + $0x1e0] sm:$0xff] %vm3056, %v2817
    %3119 = vst.msk [vmem:[#allocation2 + $0x1e8] sm:$0xff] %vm3056, %v2819
    %3120 = vst.msk [vmem:[#allocation2 + $0x1f0] sm:$0x3f] %vm3059, %v2821
    %3121 = vst.msk [vmem:[#allocation2 + $0x1f8] sm:$0xff] %vm3056, %v2823
    %3122 = vst.msk [vmem:[#allocation2 + $0x200] sm:$0xff] %vm3056, %v2825
    %3123 = vst.msk [vmem:[#allocation2 + $0x208] sm:$0x3f] %vm3059, %v2827
    %3124 = vst.msk [vmem:[#allocation2 + $0x210] sm:$0xff] %vm3056, %v2829
    %3125 = vst.msk [vmem:[#allocation2 + $0x218] sm:$0xff] %vm3056, %v2831
    %3126 = vst.msk [vmem:[#allocation2 + $0x220] sm:$0x3f] %vm3059, %v2833
    %3127 = vst.msk [vmem:[#allocation2 + $0x228] sm:$0xff] %vm3056, %v2835
    %3128 = vst.msk [vmem:[#allocation2 + $0x230] sm:$0xff] %vm3056, %v2837
    %3129 = vst.msk [vmem:[#allocation2 + $0x238] sm:$0x3f] %vm3059, %v2839
    %3130 = vst.msk [vmem:[#allocation2 + $0x240] sm:$0xff] %vm3056, %v2841
    %3131 = vst.msk [vmem:[#allocation2 + $0x248] sm:$0xff] %vm3056, %v2843
    %3132 = vst.msk [vmem:[#allocation2 + $0x250] sm:$0x3f] %vm3059, %v2845
    %3133 = vst.msk [vmem:[#allocation2 + $0x258] sm:$0xff] %vm3056, %v2847
    %3134 = vst.msk [vmem:[#allocation2 + $0x260] sm:$0xff] %vm3056, %v2849
    %3135 = vst.msk [vmem:[#allocation2 + $0x268] sm:$0x3f] %vm3059, %v2851
    %3136 = vst.msk [vmem:[#allocation2 + $0x270] sm:$0xff] %vm3056, %v2853
    %3137 = vst.msk [vmem:[#allocation2 + $0x278] sm:$0xff] %vm3056, %v2855
    %3138 = vst.msk [vmem:[#allocation2 + $0x280] sm:$0x3f] %vm3059, %v2857
    %3139 = vst.msk [vmem:[#allocation2 + $0x288] sm:$0xff] %vm3056, %v2859
    %3140 = vst.msk [vmem:[#allocation2 + $0x290] sm:$0xff] %vm3056, %v2861
    %3141 = vst.msk [vmem:[#allocation2 + $0x298] sm:$0x3f] %vm3059, %v2863
    %3142 = vst.msk [vmem:[#allocation2 + $0x2a0] sm:$0xff] %vm3056, %v2865
    %3143 = vst.msk [vmem:[#allocation2 + $0x2a8] sm:$0xff] %vm3056, %v2867
    %3144 = vst.msk [vmem:[#allocation2 + $0x2b0] sm:$0x3f] %vm3059, %v2869
    %3145 = vst.msk [vmem:[#allocation2 + $0x2b8] sm:$0xff] %vm3056, %v2871
    %3146 = vst.msk [vmem:[#allocation2 + $0x2c0] sm:$0xff] %vm3056, %v2873
    %3147 = vst.msk [vmem:[#allocation2 + $0x2c8] sm:$0x3f] %vm3059, %v2875
    %3148 = vst.msk [vmem:[#allocation2 + $0x2d0] sm:$0xff] %vm3056, %v2877
    %3149 = vst.msk [vmem:[#allocation2 + $0x2d8] sm:$0xff] %vm3056, %v2879
    %3150 = vst.msk [vmem:[#allocation2 + $0x2e0] sm:$0x3f] %vm3059, %v2881
    %3151 = vst.msk [vmem:[#allocation2 + $0x2e8] sm:$0xff] %vm3056, %v2883
    %3152 = vst.msk [vmem:[#allocation2 + $0x2f0] sm:$0xff] %vm3056, %v2885
    %3153 = vst.msk [vmem:[#allocation2 + $0x2f8] sm:$0x3f] %vm3059, %v2887
    %3154 = vst.msk [vmem:[#allocation2 + $0x300] sm:$0xff] %vm3056, %v2889
    %3155 = vst.msk [vmem:[#allocation2 + $0x308] sm:$0xff] %vm3056, %v2891
    %3156 = vst.msk [vmem:[#allocation2 + $0x310] sm:$0x3f] %vm3059, %v2893
    %3157 = vst.msk [vmem:[#allocation2 + $0x318] sm:$0xff] %vm3056, %v2895
    %3158 = vst.msk [vmem:[#allocation2 + $0x320] sm:$0xff] %vm3056, %v2897
    %3159 = vst.msk [vmem:[#allocation2 + $0x328] sm:$0x3f] %vm3059, %v2899
    %3160 = vst.msk [vmem:[#allocation2 + $0x330] sm:$0xff] %vm3056, %v2901
    %3161 = vst.msk [vmem:[#allocation2 + $0x338] sm:$0xff] %vm3056, %v2903
    %3162 = vst.msk [vmem:[#allocation2 + $0x340] sm:$0x3f] %vm3059, %v2905
    %3163 = vst.msk [vmem:[#allocation2 + $0x348] sm:$0xff] %vm3056, %v2907
    %3164 = vst.msk [vmem:[#allocation2 + $0x350] sm:$0xff] %vm3056, %v2909
    %3165 = vst.msk [vmem:[#allocation2 + $0x358] sm:$0x3f] %vm3059, %v2911
    %3166 = vst.msk [vmem:[#allocation2 + $0x360] sm:$0xff] %vm3056, %v2913
    %3167 = vst.msk [vmem:[#allocation2 + $0x368] sm:$0xff] %vm3056, %v2915
    %3168 = vst.msk [vmem:[#allocation2 + $0x370] sm:$0x3f] %vm3059, %v2917
    %3169 = vst.msk [vmem:[#allocation2 + $0x378] sm:$0xff] %vm3056, %v2919
    %3170 = vst.msk [vmem:[#allocation2 + $0x380] sm:$0xff] %vm3056, %v2921
    %3171 = vst.msk [vmem:[#allocation2 + $0x388] sm:$0x3f] %vm3059, %v2923
    %3172 = vst.msk [vmem:[#allocation2 + $0x390] sm:$0xff] %vm3056, %v2925
    %3173 = vst.msk [vmem:[#allocation2 + $0x398] sm:$0xff] %vm3056, %v2927
    %3174 = vst.msk [vmem:[#allocation2 + $0x3a0] sm:$0x3f] %vm3059, %v2929
    %3175 = vst.msk [vmem:[#allocation2 + $0x3a8] sm:$0xff] %vm3056, %v2931
    %3176 = vst.msk [vmem:[#allocation2 + $0x3b0] sm:$0xff] %vm3056, %v2933
    %3177 = vst.msk [vmem:[#allocation2 + $0x3b8] sm:$0x3f] %vm3059, %v2935
    %3178 = vrot.lane.b32.xlu0 %v1010, 122
    %v3179 = vpop.permute.xlu0 %3178
    %3180 = vrot.lane.b32.xlu0 %v1011, 122
    %v3181 = vpop.permute.xlu0 %3180
    %3182 = vrot.lane.b32.xlu0 %v1012, 122
    %v3183 = vpop.permute.xlu0 %3182
    %3184 = vrot.lane.b32.xlu0 %v1013, 122
    %v3185 = vpop.permute.xlu0 %3184
    %3186 = vrot.lane.b32.xlu0 %v1014, 122
    %v3187 = vpop.permute.xlu0 %3186
    %3188 = vrot.lane.b32.xlu0 %v1015, 122
    %v3189 = vpop.permute.xlu0 %3188
    %3190 = vrot.lane.b32.xlu0 %v1016, 122
    %v3191 = vpop.permute.xlu0 %3190
    %3192 = vrot.lane.b32.xlu0 %v1017, 122
    %v3193 = vpop.permute.xlu0 %3192
    %3194 = vrot.lane.b32.xlu0 %v1018, 122
    %v3195 = vpop.permute.xlu0 %3194
    %3196 = vrot.lane.b32.xlu0 %v1019, 122
    %v3197 = vpop.permute.xlu0 %3196
    %3198 = vrot.lane.b32.xlu0 %v1020, 122
    %v3199 = vpop.permute.xlu0 %3198
    %3200 = vrot.lane.b32.xlu0 %v1021, 122
    %v3201 = vpop.permute.xlu0 %3200
    %3202 = vrot.lane.b32.xlu0 %v1022, 122
    %v3203 = vpop.permute.xlu0 %3202
    %3204 = vrot.lane.b32.xlu0 %v1023, 122
    %v3205 = vpop.permute.xlu0 %3204
    %3206 = vrot.lane.b32.xlu0 %v1024, 122
    %v3207 = vpop.permute.xlu0 %3206
    %3208 = vrot.lane.b32.xlu0 %v1025, 122
    %v3209 = vpop.permute.xlu0 %3208
    %3210 = vrot.lane.b32.xlu0 %v1026, 122
    %v3211 = vpop.permute.xlu0 %3210
    %3212 = vrot.lane.b32.xlu0 %v1027, 122
    %v3213 = vpop.permute.xlu0 %3212
    %3214 = vrot.lane.b32.xlu0 %v1028, 122
    %v3215 = vpop.permute.xlu0 %3214
    %3216 = vrot.lane.b32.xlu0 %v1029, 122
    %v3217 = vpop.permute.xlu0 %3216
    %3218 = vrot.lane.b32.xlu0 %v1030, 122
    %v3219 = vpop.permute.xlu0 %3218
    %3220 = vrot.lane.b32.xlu0 %v1031, 122
    %v3221 = vpop.permute.xlu0 %3220
    %3222 = vrot.lane.b32.xlu0 %v1032, 122
    %v3223 = vpop.permute.xlu0 %3222
    %3224 = vrot.lane.b32.xlu0 %v1033, 122
    %v3225 = vpop.permute.xlu0 %3224
    %3226 = vrot.lane.b32.xlu0 %v1034, 122
    %v3227 = vpop.permute.xlu0 %3226
    %3228 = vrot.lane.b32.xlu0 %v1035, 122
    %v3229 = vpop.permute.xlu0 %3228
    %3230 = vrot.lane.b32.xlu0 %v1036, 122
    %v3231 = vpop.permute.xlu0 %3230
    %3232 = vrot.lane.b32.xlu0 %v1037, 122
    %v3233 = vpop.permute.xlu0 %3232
    %3234 = vrot.lane.b32.xlu0 %v1038, 122
    %v3235 = vpop.permute.xlu0 %3234
    %3236 = vrot.lane.b32.xlu0 %v1039, 122
    %v3237 = vpop.permute.xlu0 %3236
    %3238 = vrot.lane.b32.xlu0 %v1040, 122
    %v3239 = vpop.permute.xlu0 %3238
    %3240 = vrot.lane.b32.xlu0 %v1041, 122
    %v3241 = vpop.permute.xlu0 %3240
    %3242 = vrot.lane.b32.xlu0 %v1042, 122
    %v3243 = vpop.permute.xlu0 %3242
    %3244 = vrot.lane.b32.xlu0 %v1043, 122
    %v3245 = vpop.permute.xlu0 %3244
    %3246 = vrot.lane.b32.xlu0 %v1044, 122
    %v3247 = vpop.permute.xlu0 %3246
    %3248 = vrot.lane.b32.xlu0 %v1045, 122
    %v3249 = vpop.permute.xlu0 %3248
    %3250 = vrot.lane.b32.xlu0 %v1046, 122
    %v3251 = vpop.permute.xlu0 %3250
    %3252 = vrot.lane.b32.xlu0 %v1047, 122
    %v3253 = vpop.permute.xlu0 %3252
    %3254 = vrot.lane.b32.xlu0 %v1048, 122
    %v3255 = vpop.permute.xlu0 %3254
    %3256 = vrot.lane.b32.xlu0 %v1049, 122
    %v3257 = vpop.permute.xlu0 %3256
    %3258 = vrot.lane.b32.xlu0 %v1050, 122
    %v3259 = vpop.permute.xlu0 %3258
    %3260 = vrot.lane.b32.xlu0 %v1051, 122
    %v3261 = vpop.permute.xlu0 %3260
    %3262 = vrot.lane.b32.xlu0 %v1052, 122
    %v3263 = vpop.permute.xlu0 %3262
    %3264 = vrot.lane.b32.xlu0 %v1053, 122
    %v3265 = vpop.permute.xlu0 %3264
    %3266 = vrot.lane.b32.xlu0 %v1054, 122
    %v3267 = vpop.permute.xlu0 %3266
    %3268 = vrot.lane.b32.xlu0 %v1055, 122
    %v3269 = vpop.permute.xlu0 %3268
    %3270 = vrot.lane.b32.xlu0 %v1056, 122
    %v3271 = vpop.permute.xlu0 %3270
    %3272 = vrot.lane.b32.xlu0 %v1057, 122
    %v3273 = vpop.permute.xlu0 %3272
    %3274 = vrot.lane.b32.xlu0 %v1058, 122
    %v3275 = vpop.permute.xlu0 %3274
    %3276 = vrot.lane.b32.xlu0 %v1059, 122
    %v3277 = vpop.permute.xlu0 %3276
    %3278 = vrot.lane.b32.xlu0 %v1060, 122
    %v3279 = vpop.permute.xlu0 %3278
    %3280 = vrot.lane.b32.xlu0 %v1061, 122
    %v3281 = vpop.permute.xlu0 %3280
    %3282 = vrot.lane.b32.xlu0 %v1062, 122
    %v3283 = vpop.permute.xlu0 %3282
    %3284 = vrot.lane.b32.xlu0 %v1063, 122
    %v3285 = vpop.permute.xlu0 %3284
    %3286 = vrot.lane.b32.xlu0 %v1064, 122
    %v3287 = vpop.permute.xlu0 %3286
    %3288 = vrot.lane.b32.xlu0 %v1065, 122
    %v3289 = vpop.permute.xlu0 %3288
    %3290 = vrot.lane.b32.xlu0 %v1066, 122
    %v3291 = vpop.permute.xlu0 %3290
    %3292 = vrot.lane.b32.xlu0 %v1067, 122
    %v3293 = vpop.permute.xlu0 %3292
    %3294 = vrot.lane.b32.xlu0 %v1068, 122
    %v3295 = vpop.permute.xlu0 %3294
    %3296 = vrot.lane.b32.xlu0 %v1069, 122
    %v3297 = vpop.permute.xlu0 %3296
    %3298 = vrot.lane.b32.xlu0 %v1070, 122
    %v3299 = vpop.permute.xlu0 %3298
    %3300 = vrot.lane.b32.xlu0 %v1071, 122
    %v3301 = vpop.permute.xlu0 %3300
    %3302 = vrot.lane.b32.xlu0 %v1072, 122
    %v3303 = vpop.permute.xlu0 %3302
    %3304 = vrot.lane.b32.xlu0 %v1073, 122
    %v3305 = vpop.permute.xlu0 %3304
    %3306 = vrot.lane.b32.xlu0 %v1074, 122
    %v3307 = vpop.permute.xlu0 %3306
    %3308 = vrot.lane.b32.xlu0 %v1075, 122
    %v3309 = vpop.permute.xlu0 %3308
    %3310 = vrot.lane.b32.xlu0 %v1076, 122
    %v3311 = vpop.permute.xlu0 %3310
    %3312 = vrot.lane.b32.xlu0 %v1077, 122
    %v3313 = vpop.permute.xlu0 %3312
    %3314 = vrot.lane.b32.xlu0 %v1078, 122
    %v3315 = vpop.permute.xlu0 %3314
    %3316 = vrot.lane.b32.xlu0 %v1079, 122
    %v3317 = vpop.permute.xlu0 %3316
    %3318 = vrot.lane.b32.xlu0 %v1080, 122
    %v3319 = vpop.permute.xlu0 %3318
    %3320 = vrot.lane.b32.xlu0 %v1081, 122
    %v3321 = vpop.permute.xlu0 %3320
    %3322 = vrot.lane.b32.xlu0 %v1082, 122
    %v3323 = vpop.permute.xlu0 %3322
    %3324 = vrot.lane.b32.xlu0 %v1083, 122
    %v3325 = vpop.permute.xlu0 %3324
    %3326 = vrot.lane.b32.xlu0 %v1084, 122
    %v3327 = vpop.permute.xlu0 %3326
    %3328 = vrot.lane.b32.xlu0 %v1085, 122
    %v3329 = vpop.permute.xlu0 %3328
    %3330 = vrot.lane.b32.xlu0 %v1086, 122
    %v3331 = vpop.permute.xlu0 %3330
    %3332 = vrot.lane.b32.xlu0 %v1087, 122
    %v3333 = vpop.permute.xlu0 %3332
    %3334 = vrot.lane.b32.xlu0 %v1088, 122
    %v3335 = vpop.permute.xlu0 %3334
    %3336 = vrot.lane.b32.xlu0 %v1089, 122
    %v3337 = vpop.permute.xlu0 %3336
    %3338 = vrot.lane.b32.xlu0 %v1090, 122
    %v3339 = vpop.permute.xlu0 %3338
    %3340 = vrot.lane.b32.xlu0 %v1091, 122
    %v3341 = vpop.permute.xlu0 %3340
    %3342 = vrot.lane.b32.xlu0 %v1092, 122
    %v3343 = vpop.permute.xlu0 %3342
    %3344 = vrot.lane.b32.xlu0 %v1093, 122
    %v3345 = vpop.permute.xlu0 %3344
    %3346 = vrot.lane.b32.xlu0 %v1094, 122
    %v3347 = vpop.permute.xlu0 %3346
    %3348 = vrot.lane.b32.xlu0 %v1095, 122
    %v3349 = vpop.permute.xlu0 %3348
    %3350 = vrot.lane.b32.xlu0 %v1096, 122
    %v3351 = vpop.permute.xlu0 %3350
    %3352 = vrot.lane.b32.xlu0 %v1097, 122
    %v3353 = vpop.permute.xlu0 %3352
    %3354 = vrot.lane.b32.xlu0 %v1098, 122
    %v3355 = vpop.permute.xlu0 %3354
    %3356 = vrot.lane.b32.xlu0 %v1099, 122
    %v3357 = vpop.permute.xlu0 %3356
    %3358 = vrot.lane.b32.xlu0 %v1100, 122
    %v3359 = vpop.permute.xlu0 %3358
    %3360 = vrot.lane.b32.xlu0 %v1101, 122
    %v3361 = vpop.permute.xlu0 %3360
    %3362 = vrot.lane.b32.xlu0 %v1102, 122
    %v3363 = vpop.permute.xlu0 %3362
    %3364 = vrot.lane.b32.xlu0 %v1103, 122
    %v3365 = vpop.permute.xlu0 %3364
    %3366 = vrot.lane.b32.xlu0 %v1104, 122
    %v3367 = vpop.permute.xlu0 %3366
    %3368 = vrot.lane.b32.xlu0 %v1105, 122
    %v3369 = vpop.permute.xlu0 %3368
    %3370 = vrot.lane.b32.xlu0 %v1106, 122
    %v3371 = vpop.permute.xlu0 %3370
    %3372 = vrot.lane.b32.xlu0 %v1107, 122
    %v3373 = vpop.permute.xlu0 %3372
    %3374 = vrot.lane.b32.xlu0 %v1108, 122
    %v3375 = vpop.permute.xlu0 %3374
    %3376 = vrot.lane.b32.xlu0 %v1109, 122
    %v3377 = vpop.permute.xlu0 %3376
    %3378 = vrot.lane.b32.xlu0 %v1110, 122
    %v3379 = vpop.permute.xlu0 %3378
    %3380 = vrot.lane.b32.xlu0 %v1111, 122
    %v3381 = vpop.permute.xlu0 %3380
    %3382 = vrot.lane.b32.xlu0 %v1112, 122
    %v3383 = vpop.permute.xlu0 %3382
    %3384 = vrot.lane.b32.xlu0 %v1113, 122
    %v3385 = vpop.permute.xlu0 %3384
    %3386 = vrot.lane.b32.xlu0 %v1114, 122
    %v3387 = vpop.permute.xlu0 %3386
    %3388 = vrot.lane.b32.xlu0 %v1115, 122
    %v3389 = vpop.permute.xlu0 %3388
    %3390 = vrot.lane.b32.xlu0 %v1116, 122
    %v3391 = vpop.permute.xlu0 %3390
    %3392 = vrot.lane.b32.xlu0 %v1117, 122
    %v3393 = vpop.permute.xlu0 %3392
    %3394 = vrot.lane.b32.xlu0 %v1118, 122
    %v3395 = vpop.permute.xlu0 %3394
    %3396 = vrot.lane.b32.xlu0 %v1119, 122
    %v3397 = vpop.permute.xlu0 %3396
    %3398 = vrot.lane.b32.xlu0 %v1120, 122
    %v3399 = vpop.permute.xlu0 %3398
    %3400 = vrot.lane.b32.xlu0 %v1121, 122
    %v3401 = vpop.permute.xlu0 %3400
    %3402 = vrot.lane.b32.xlu0 %v1122, 122
    %v3403 = vpop.permute.xlu0 %3402
    %3404 = vrot.lane.b32.xlu0 %v1123, 122
    %v3405 = vpop.permute.xlu0 %3404
    %3406 = vrot.lane.b32.xlu0 %v1124, 122
    %v3407 = vpop.permute.xlu0 %3406
    %3408 = vrot.lane.b32.xlu0 %v1125, 122
    %v3409 = vpop.permute.xlu0 %3408
    %3410 = vrot.lane.b32.xlu0 %v1126, 122
    %v3411 = vpop.permute.xlu0 %3410
    %3412 = vrot.lane.b32.xlu0 %v1127, 122
    %v3413 = vpop.permute.xlu0 %3412
    %3414 = vrot.lane.b32.xlu0 %v1128, 122
    %v3415 = vpop.permute.xlu0 %3414
    %3416 = vrot.lane.b32.xlu0 %v1129, 122
    %v3417 = vpop.permute.xlu0 %3416
    %vm3538 = vcmask 7168
    %3539 = vst.msk [vmem:[#allocation2] sm:$0xff] %vm3538, %v3179
    %3540 = vst.msk [vmem:[#allocation2 + $0x8] sm:$0xff] %vm3538, %v3181
    %vm3541 = vcmask 5120
    %3542 = vst.msk [vmem:[#allocation2 + $0x10] sm:$0x3f] %vm3541, %v3183
    %3543 = vst.msk [vmem:[#allocation2 + $0x18] sm:$0xff] %vm3538, %v3185
    %3544 = vst.msk [vmem:[#allocation2 + $0x20] sm:$0xff] %vm3538, %v3187
    %3545 = vst.msk [vmem:[#allocation2 + $0x28] sm:$0x3f] %vm3541, %v3189
    %3546 = vst.msk [vmem:[#allocation2 + $0x30] sm:$0xff] %vm3538, %v3191
    %3547 = vst.msk [vmem:[#allocation2 + $0x38] sm:$0xff] %vm3538, %v3193
    %3548 = vst.msk [vmem:[#allocation2 + $0x40] sm:$0x3f] %vm3541, %v3195
    %3549 = vst.msk [vmem:[#allocation2 + $0x48] sm:$0xff] %vm3538, %v3197
    %3550 = vst.msk [vmem:[#allocation2 + $0x50] sm:$0xff] %vm3538, %v3199
    %3551 = vst.msk [vmem:[#allocation2 + $0x58] sm:$0x3f] %vm3541, %v3201
    %3552 = vst.msk [vmem:[#allocation2 + $0x60] sm:$0xff] %vm3538, %v3203
    %3553 = vst.msk [vmem:[#allocation2 + $0x68] sm:$0xff] %vm3538, %v3205
    %3554 = vst.msk [vmem:[#allocation2 + $0x70] sm:$0x3f] %vm3541, %v3207
    %3555 = vst.msk [vmem:[#allocation2 + $0x78] sm:$0xff] %vm3538, %v3209
    %3556 = vst.msk [vmem:[#allocation2 + $0x80] sm:$0xff] %vm3538, %v3211
    %3557 = vst.msk [vmem:[#allocation2 + $0x88] sm:$0x3f] %vm3541, %v3213
    %3558 = vst.msk [vmem:[#allocation2 + $0x90] sm:$0xff] %vm3538, %v3215
    %3559 = vst.msk [vmem:[#allocation2 + $0x98] sm:$0xff] %vm3538, %v3217
    %3560 = vst.msk [vmem:[#allocation2 + $0xa0] sm:$0x3f] %vm3541, %v3219
    %3561 = vst.msk [vmem:[#allocation2 + $0xa8] sm:$0xff] %vm3538, %v3221
    %3562 = vst.msk [vmem:[#allocation2 + $0xb0] sm:$0xff] %vm3538, %v3223
    %3563 = vst.msk [vmem:[#allocation2 + $0xb8] sm:$0x3f] %vm3541, %v3225
    %3564 = vst.msk [vmem:[#allocation2 + $0xc0] sm:$0xff] %vm3538, %v3227
    %3565 = vst.msk [vmem:[#allocation2 + $0xc8] sm:$0xff] %vm3538, %v3229
    %3566 = vst.msk [vmem:[#allocation2 + $0xd0] sm:$0x3f] %vm3541, %v3231
    %3567 = vst.msk [vmem:[#allocation2 + $0xd8] sm:$0xff] %vm3538, %v3233
    %3568 = vst.msk [vmem:[#allocation2 + $0xe0] sm:$0xff] %vm3538, %v3235
    %3569 = vst.msk [vmem:[#allocation2 + $0xe8] sm:$0x3f] %vm3541, %v3237
    %3570 = vst.msk [vmem:[#allocation2 + $0xf0] sm:$0xff] %vm3538, %v3239
    %3571 = vst.msk [vmem:[#allocation2 + $0xf8] sm:$0xff] %vm3538, %v3241
    %3572 = vst.msk [vmem:[#allocation2 + $0x100] sm:$0x3f] %vm3541, %v3243
    %3573 = vst.msk [vmem:[#allocation2 + $0x108] sm:$0xff] %vm3538, %v3245
    %3574 = vst.msk [vmem:[#allocation2 + $0x110] sm:$0xff] %vm3538, %v3247
    %3575 = vst.msk [vmem:[#allocation2 + $0x118] sm:$0x3f] %vm3541, %v3249
    %3576 = vst.msk [vmem:[#allocation2 + $0x120] sm:$0xff] %vm3538, %v3251
    %3577 = vst.msk [vmem:[#allocation2 + $0x128] sm:$0xff] %vm3538, %v3253
    %3578 = vst.msk [vmem:[#allocation2 + $0x130] sm:$0x3f] %vm3541, %v3255
    %3579 = vst.msk [vmem:[#allocation2 + $0x138] sm:$0xff] %vm3538, %v3257
    %3580 = vst.msk [vmem:[#allocation2 + $0x140] sm:$0xff] %vm3538, %v3259
    %3581 = vst.msk [vmem:[#allocation2 + $0x148] sm:$0x3f] %vm3541, %v3261
    %3582 = vst.msk [vmem:[#allocation2 + $0x150] sm:$0xff] %vm3538, %v3263
    %3583 = vst.msk [vmem:[#allocation2 + $0x158] sm:$0xff] %vm3538, %v3265
    %3584 = vst.msk [vmem:[#allocation2 + $0x160] sm:$0x3f] %vm3541, %v3267
    %3585 = vst.msk [vmem:[#allocation2 + $0x168] sm:$0xff] %vm3538, %v3269
    %3586 = vst.msk [vmem:[#allocation2 + $0x170] sm:$0xff] %vm3538, %v3271
    %3587 = vst.msk [vmem:[#allocation2 + $0x178] sm:$0x3f] %vm3541, %v3273
    %3588 = vst.msk [vmem:[#allocation2 + $0x180] sm:$0xff] %vm3538, %v3275
    %3589 = vst.msk [vmem:[#allocation2 + $0x188] sm:$0xff] %vm3538, %v3277
    %3590 = vst.msk [vmem:[#allocation2 + $0x190] sm:$0x3f] %vm3541, %v3279
    %3591 = vst.msk [vmem:[#allocation2 + $0x198] sm:$0xff] %vm3538, %v3281
    %3592 = vst.msk [vmem:[#allocation2 + $0x1a0] sm:$0xff] %vm3538, %v3283
    %3593 = vst.msk [vmem:[#allocation2 + $0x1a8] sm:$0x3f] %vm3541, %v3285
    %3594 = vst.msk [vmem:[#allocation2 + $0x1b0] sm:$0xff] %vm3538, %v3287
    %3595 = vst.msk [vmem:[#allocation2 + $0x1b8] sm:$0xff] %vm3538, %v3289
    %3596 = vst.msk [vmem:[#allocation2 + $0x1c0] sm:$0x3f] %vm3541, %v3291
    %3597 = vst.msk [vmem:[#allocation2 + $0x1c8] sm:$0xff] %vm3538, %v3293
    %3598 = vst.msk [vmem:[#allocation2 + $0x1d0] sm:$0xff] %vm3538, %v3295
    %3599 = vst.msk [vmem:[#allocation2 + $0x1d8] sm:$0x3f] %vm3541, %v3297
    %3600 = vst.msk [vmem:[#allocation2 + $0x1e0] sm:$0xff] %vm3538, %v3299
    %3601 = vst.msk [vmem:[#allocation2 + $0x1e8] sm:$0xff] %vm3538, %v3301
    %3602 = vst.msk [vmem:[#allocation2 + $0x1f0] sm:$0x3f] %vm3541, %v3303
    %3603 = vst.msk [vmem:[#allocation2 + $0x1f8] sm:$0xff] %vm3538, %v3305
    %3604 = vst.msk [vmem:[#allocation2 + $0x200] sm:$0xff] %vm3538, %v3307
    %3605 = vst.msk [vmem:[#allocation2 + $0x208] sm:$0x3f] %vm3541, %v3309
    %3606 = vst.msk [vmem:[#allocation2 + $0x210] sm:$0xff] %vm3538, %v3311
    %3607 = vst.msk [vmem:[#allocation2 + $0x218] sm:$0xff] %vm3538, %v3313
    %3608 = vst.msk [vmem:[#allocation2 + $0x220] sm:$0x3f] %vm3541, %v3315
    %3609 = vst.msk [vmem:[#allocation2 + $0x228] sm:$0xff] %vm3538, %v3317
    %3610 = vst.msk [vmem:[#allocation2 + $0x230] sm:$0xff] %vm3538, %v3319
    %3611 = vst.msk [vmem:[#allocation2 + $0x238] sm:$0x3f] %vm3541, %v3321
    %3612 = vst.msk [vmem:[#allocation2 + $0x240] sm:$0xff] %vm3538, %v3323
    %3613 = vst.msk [vmem:[#allocation2 + $0x248] sm:$0xff] %vm3538, %v3325
    %3614 = vst.msk [vmem:[#allocation2 + $0x250] sm:$0x3f] %vm3541, %v3327
    %3615 = vst.msk [vmem:[#allocation2 + $0x258] sm:$0xff] %vm3538, %v3329
    %3616 = vst.msk [vmem:[#allocation2 + $0x260] sm:$0xff] %vm3538, %v3331
    %3617 = vst.msk [vmem:[#allocation2 + $0x268] sm:$0x3f] %vm3541, %v3333
    %3618 = vst.msk [vmem:[#allocation2 + $0x270] sm:$0xff] %vm3538, %v3335
    %3619 = vst.msk [vmem:[#allocation2 + $0x278] sm:$0xff] %vm3538, %v3337
    %3620 = vst.msk [vmem:[#allocation2 + $0x280] sm:$0x3f] %vm3541, %v3339
    %3621 = vst.msk [vmem:[#allocation2 + $0x288] sm:$0xff] %vm3538, %v3341
    %3622 = vst.msk [vmem:[#allocation2 + $0x290] sm:$0xff] %vm3538, %v3343
    %3623 = vst.msk [vmem:[#allocation2 + $0x298] sm:$0x3f] %vm3541, %v3345
    %3624 = vst.msk [vmem:[#allocation2 + $0x2a0] sm:$0xff] %vm3538, %v3347
    %3625 = vst.msk [vmem:[#allocation2 + $0x2a8] sm:$0xff] %vm3538, %v3349
    %3626 = vst.msk [vmem:[#allocation2 + $0x2b0] sm:$0x3f] %vm3541, %v3351
    %3627 = vst.msk [vmem:[#allocation2 + $0x2b8] sm:$0xff] %vm3538, %v3353
    %3628 = vst.msk [vmem:[#allocation2 + $0x2c0] sm:$0xff] %vm3538, %v3355
    %3629 = vst.msk [vmem:[#allocation2 + $0x2c8] sm:$0x3f] %vm3541, %v3357
    %3630 = vst.msk [vmem:[#allocation2 + $0x2d0] sm:$0xff] %vm3538, %v3359
    %3631 = vst.msk [vmem:[#allocation2 + $0x2d8] sm:$0xff] %vm3538, %v3361
    %3632 = vst.msk [vmem:[#allocation2 + $0x2e0] sm:$0x3f] %vm3541, %v3363
    %3633 = vst.msk [vmem:[#allocation2 + $0x2e8] sm:$0xff] %vm3538, %v3365
    %3634 = vst.msk [vmem:[#allocation2 + $0x2f0] sm:$0xff] %vm3538, %v3367
    %3635 = vst.msk [vmem:[#allocation2 + $0x2f8] sm:$0x3f] %vm3541, %v3369
    %3636 = vst.msk [vmem:[#allocation2 + $0x300] sm:$0xff] %vm3538, %v3371
    %3637 = vst.msk [vmem:[#allocation2 + $0x308] sm:$0xff] %vm3538, %v3373
    %3638 = vst.msk [vmem:[#allocation2 + $0x310] sm:$0x3f] %vm3541, %v3375
    %3639 = vst.msk [vmem:[#allocation2 + $0x318] sm:$0xff] %vm3538, %v3377
    %3640 = vst.msk [vmem:[#allocation2 + $0x320] sm:$0xff] %vm3538, %v3379
    %3641 = vst.msk [vmem:[#allocation2 + $0x328] sm:$0x3f] %vm3541, %v3381
    %3642 = vst.msk [vmem:[#allocation2 + $0x330] sm:$0xff] %vm3538, %v3383
    %3643 = vst.msk [vmem:[#allocation2 + $0x338] sm:$0xff] %vm3538, %v3385
    %3644 = vst.msk [vmem:[#allocation2 + $0x340] sm:$0x3f] %vm3541, %v3387
    %3645 = vst.msk [vmem:[#allocation2 + $0x348] sm:$0xff] %vm3538, %v3389
    %3646 = vst.msk [vmem:[#allocation2 + $0x350] sm:$0xff] %vm3538, %v3391
    %3647 = vst.msk [vmem:[#allocation2 + $0x358] sm:$0x3f] %vm3541, %v3393
    %3648 = vst.msk [vmem:[#allocation2 + $0x360] sm:$0xff] %vm3538, %v3395
    %3649 = vst.msk [vmem:[#allocation2 + $0x368] sm:$0xff] %vm3538, %v3397
    %3650 = vst.msk [vmem:[#allocation2 + $0x370] sm:$0x3f] %vm3541, %v3399
    %3651 = vst.msk [vmem:[#allocation2 + $0x378] sm:$0xff] %vm3538, %v3401
    %3652 = vst.msk [vmem:[#allocation2 + $0x380] sm:$0xff] %vm3538, %v3403
    %3653 = vst.msk [vmem:[#allocation2 + $0x388] sm:$0x3f] %vm3541, %v3405
    %3654 = vst.msk [vmem:[#allocation2 + $0x390] sm:$0xff] %vm3538, %v3407
    %3655 = vst.msk [vmem:[#allocation2 + $0x398] sm:$0xff] %vm3538, %v3409
    %3656 = vst.msk [vmem:[#allocation2 + $0x3a0] sm:$0x3f] %vm3541, %v3411
    %3657 = vst.msk [vmem:[#allocation2 + $0x3a8] sm:$0xff] %vm3538, %v3413
    %3658 = vst.msk [vmem:[#allocation2 + $0x3b0] sm:$0xff] %vm3538, %v3415
    %3659 = vst.msk [vmem:[#allocation2 + $0x3b8] sm:$0x3f] %vm3541, %v3417
    %3660 = vrot.lane.b32.xlu0 %v1010, 6
    %v3661 = vpop.permute.xlu0 %3660
    %3662 = vrot.lane.b32.xlu0 %v1011, 6
    %v3663 = vpop.permute.xlu0 %3662
    %3664 = vrot.lane.b32.xlu0 %v1012, 6
    %v3665 = vpop.permute.xlu0 %3664
    %3666 = vrot.lane.b32.xlu0 %v1013, 6
    %v3667 = vpop.permute.xlu0 %3666
    %3668 = vrot.lane.b32.xlu0 %v1014, 6
    %v3669 = vpop.permute.xlu0 %3668
    %3670 = vrot.lane.b32.xlu0 %v1015, 6
    %v3671 = vpop.permute.xlu0 %3670
    %3672 = vrot.lane.b32.xlu0 %v1016, 6
    %v3673 = vpop.permute.xlu0 %3672
    %3674 = vrot.lane.b32.xlu0 %v1017, 6
    %v3675 = vpop.permute.xlu0 %3674
    %3676 = vrot.lane.b32.xlu0 %v1018, 6
    %v3677 = vpop.permute.xlu0 %3676
    %3678 = vrot.lane.b32.xlu0 %v1019, 6
    %v3679 = vpop.permute.xlu0 %3678
    %3680 = vrot.lane.b32.xlu0 %v1020, 6
    %v3681 = vpop.permute.xlu0 %3680
    %3682 = vrot.lane.b32.xlu0 %v1021, 6
    %v3683 = vpop.permute.xlu0 %3682
    %3684 = vrot.lane.b32.xlu0 %v1022, 6
    %v3685 = vpop.permute.xlu0 %3684
    %3686 = vrot.lane.b32.xlu0 %v1023, 6
    %v3687 = vpop.permute.xlu0 %3686
    %3688 = vrot.lane.b32.xlu0 %v1024, 6
    %v3689 = vpop.permute.xlu0 %3688
    %3690 = vrot.lane.b32.xlu0 %v1025, 6
    %v3691 = vpop.permute.xlu0 %3690
    %3692 = vrot.lane.b32.xlu0 %v1026, 6
    %v3693 = vpop.permute.xlu0 %3692
    %3694 = vrot.lane.b32.xlu0 %v1027, 6
    %v3695 = vpop.permute.xlu0 %3694
    %3696 = vrot.lane.b32.xlu0 %v1028, 6
    %v3697 = vpop.permute.xlu0 %3696
    %3698 = vrot.lane.b32.xlu0 %v1029, 6
    %v3699 = vpop.permute.xlu0 %3698
    %3700 = vrot.lane.b32.xlu0 %v1030, 6
    %v3701 = vpop.permute.xlu0 %3700
    %3702 = vrot.lane.b32.xlu0 %v1031, 6
    %v3703 = vpop.permute.xlu0 %3702
    %3704 = vrot.lane.b32.xlu0 %v1032, 6
    %v3705 = vpop.permute.xlu0 %3704
    %3706 = vrot.lane.b32.xlu0 %v1033, 6
    %v3707 = vpop.permute.xlu0 %3706
    %3708 = vrot.lane.b32.xlu0 %v1034, 6
    %v3709 = vpop.permute.xlu0 %3708
    %3710 = vrot.lane.b32.xlu0 %v1035, 6
    %v3711 = vpop.permute.xlu0 %3710
    %3712 = vrot.lane.b32.xlu0 %v1036, 6
    %v3713 = vpop.permute.xlu0 %3712
    %3714 = vrot.lane.b32.xlu0 %v1037, 6
    %v3715 = vpop.permute.xlu0 %3714
    %3716 = vrot.lane.b32.xlu0 %v1038, 6
    %v3717 = vpop.permute.xlu0 %3716
    %3718 = vrot.lane.b32.xlu0 %v1039, 6
    %v3719 = vpop.permute.xlu0 %3718
    %3720 = vrot.lane.b32.xlu0 %v1040, 6
    %v3721 = vpop.permute.xlu0 %3720
    %3722 = vrot.lane.b32.xlu0 %v1041, 6
    %v3723 = vpop.permute.xlu0 %3722
    %3724 = vrot.lane.b32.xlu0 %v1042, 6
    %v3725 = vpop.permute.xlu0 %3724
    %3726 = vrot.lane.b32.xlu0 %v1043, 6
    %v3727 = vpop.permute.xlu0 %3726
    %3728 = vrot.lane.b32.xlu0 %v1044, 6
    %v3729 = vpop.permute.xlu0 %3728
    %3730 = vrot.lane.b32.xlu0 %v1045, 6
    %v3731 = vpop.permute.xlu0 %3730
    %3732 = vrot.lane.b32.xlu0 %v1046, 6
    %v3733 = vpop.permute.xlu0 %3732
    %3734 = vrot.lane.b32.xlu0 %v1047, 6
    %v3735 = vpop.permute.xlu0 %3734
    %3736 = vrot.lane.b32.xlu0 %v1048, 6
    %v3737 = vpop.permute.xlu0 %3736
    %3738 = vrot.lane.b32.xlu0 %v1049, 6
    %v3739 = vpop.permute.xlu0 %3738
    %3740 = vrot.lane.b32.xlu0 %v1050, 6
    %v3741 = vpop.permute.xlu0 %3740
    %3742 = vrot.lane.b32.xlu0 %v1051, 6
    %v3743 = vpop.permute.xlu0 %3742
    %3744 = vrot.lane.b32.xlu0 %v1052, 6
    %v3745 = vpop.permute.xlu0 %3744
    %3746 = vrot.lane.b32.xlu0 %v1053, 6
    %v3747 = vpop.permute.xlu0 %3746
    %3748 = vrot.lane.b32.xlu0 %v1054, 6
    %v3749 = vpop.permute.xlu0 %3748
    %3750 = vrot.lane.b32.xlu0 %v1055, 6
    %v3751 = vpop.permute.xlu0 %3750
    %3752 = vrot.lane.b32.xlu0 %v1056, 6
    %v3753 = vpop.permute.xlu0 %3752
    %3754 = vrot.lane.b32.xlu0 %v1057, 6
    %v3755 = vpop.permute.xlu0 %3754
    %3756 = vrot.lane.b32.xlu0 %v1058, 6
    %v3757 = vpop.permute.xlu0 %3756
    %3758 = vrot.lane.b32.xlu0 %v1059, 6
    %v3759 = vpop.permute.xlu0 %3758
    %3760 = vrot.lane.b32.xlu0 %v1060, 6
    %v3761 = vpop.permute.xlu0 %3760
    %3762 = vrot.lane.b32.xlu0 %v1061, 6
    %v3763 = vpop.permute.xlu0 %3762
    %3764 = vrot.lane.b32.xlu0 %v1062, 6
    %v3765 = vpop.permute.xlu0 %3764
    %3766 = vrot.lane.b32.xlu0 %v1063, 6
    %v3767 = vpop.permute.xlu0 %3766
    %3768 = vrot.lane.b32.xlu0 %v1064, 6
    %v3769 = vpop.permute.xlu0 %3768
    %3770 = vrot.lane.b32.xlu0 %v1065, 6
    %v3771 = vpop.permute.xlu0 %3770
    %3772 = vrot.lane.b32.xlu0 %v1066, 6
    %v3773 = vpop.permute.xlu0 %3772
    %3774 = vrot.lane.b32.xlu0 %v1067, 6
    %v3775 = vpop.permute.xlu0 %3774
    %3776 = vrot.lane.b32.xlu0 %v1068, 6
    %v3777 = vpop.permute.xlu0 %3776
    %3778 = vrot.lane.b32.xlu0 %v1069, 6
    %v3779 = vpop.permute.xlu0 %3778
    %3780 = vrot.lane.b32.xlu0 %v1070, 6
    %v3781 = vpop.permute.xlu0 %3780
    %3782 = vrot.lane.b32.xlu0 %v1071, 6
    %v3783 = vpop.permute.xlu0 %3782
    %3784 = vrot.lane.b32.xlu0 %v1072, 6
    %v3785 = vpop.permute.xlu0 %3784
    %3786 = vrot.lane.b32.xlu0 %v1073, 6
    %v3787 = vpop.permute.xlu0 %3786
    %3788 = vrot.lane.b32.xlu0 %v1074, 6
    %v3789 = vpop.permute.xlu0 %3788
    %3790 = vrot.lane.b32.xlu0 %v1075, 6
    %v3791 = vpop.permute.xlu0 %3790
    %3792 = vrot.lane.b32.xlu0 %v1076, 6
    %v3793 = vpop.permute.xlu0 %3792
    %3794 = vrot.lane.b32.xlu0 %v1077, 6
    %v3795 = vpop.permute.xlu0 %3794
    %3796 = vrot.lane.b32.xlu0 %v1078, 6
    %v3797 = vpop.permute.xlu0 %3796
    %3798 = vrot.lane.b32.xlu0 %v1079, 6
    %v3799 = vpop.permute.xlu0 %3798
    %3800 = vrot.lane.b32.xlu0 %v1080, 6
    %v3801 = vpop.permute.xlu0 %3800
    %3802 = vrot.lane.b32.xlu0 %v1081, 6
    %v3803 = vpop.permute.xlu0 %3802
    %3804 = vrot.lane.b32.xlu0 %v1082, 6
    %v3805 = vpop.permute.xlu0 %3804
    %3806 = vrot.lane.b32.xlu0 %v1083, 6
    %v3807 = vpop.permute.xlu0 %3806
    %3808 = vrot.lane.b32.xlu0 %v1084, 6
    %v3809 = vpop.permute.xlu0 %3808
    %3810 = vrot.lane.b32.xlu0 %v1085, 6
    %v3811 = vpop.permute.xlu0 %3810
    %3812 = vrot.lane.b32.xlu0 %v1086, 6
    %v3813 = vpop.permute.xlu0 %3812
    %3814 = vrot.lane.b32.xlu0 %v1087, 6
    %v3815 = vpop.permute.xlu0 %3814
    %3816 = vrot.lane.b32.xlu0 %v1088, 6
    %v3817 = vpop.permute.xlu0 %3816
    %3818 = vrot.lane.b32.xlu0 %v1089, 6
    %v3819 = vpop.permute.xlu0 %3818
    %3820 = vrot.lane.b32.xlu0 %v1090, 6
    %v3821 = vpop.permute.xlu0 %3820
    %3822 = vrot.lane.b32.xlu0 %v1091, 6
    %v3823 = vpop.permute.xlu0 %3822
    %3824 = vrot.lane.b32.xlu0 %v1092, 6
    %v3825 = vpop.permute.xlu0 %3824
    %3826 = vrot.lane.b32.xlu0 %v1093, 6
    %v3827 = vpop.permute.xlu0 %3826
    %3828 = vrot.lane.b32.xlu0 %v1094, 6
    %v3829 = vpop.permute.xlu0 %3828
    %3830 = vrot.lane.b32.xlu0 %v1095, 6
    %v3831 = vpop.permute.xlu0 %3830
    %3832 = vrot.lane.b32.xlu0 %v1096, 6
    %v3833 = vpop.permute.xlu0 %3832
    %3834 = vrot.lane.b32.xlu0 %v1097, 6
    %v3835 = vpop.permute.xlu0 %3834
    %3836 = vrot.lane.b32.xlu0 %v1098, 6
    %v3837 = vpop.permute.xlu0 %3836
    %3838 = vrot.lane.b32.xlu0 %v1099, 6
    %v3839 = vpop.permute.xlu0 %3838
    %3840 = vrot.lane.b32.xlu0 %v1100, 6
    %v3841 = vpop.permute.xlu0 %3840
    %3842 = vrot.lane.b32.xlu0 %v1101, 6
    %v3843 = vpop.permute.xlu0 %3842
    %3844 = vrot.lane.b32.xlu0 %v1102, 6
    %v3845 = vpop.permute.xlu0 %3844
    %3846 = vrot.lane.b32.xlu0 %v1103, 6
    %v3847 = vpop.permute.xlu0 %3846
    %3848 = vrot.lane.b32.xlu0 %v1104, 6
    %v3849 = vpop.permute.xlu0 %3848
    %3850 = vrot.lane.b32.xlu0 %v1105, 6
    %v3851 = vpop.permute.xlu0 %3850
    %3852 = vrot.lane.b32.xlu0 %v1106, 6
    %v3853 = vpop.permute.xlu0 %3852
    %3854 = vrot.lane.b32.xlu0 %v1107, 6
    %v3855 = vpop.permute.xlu0 %3854
    %3856 = vrot.lane.b32.xlu0 %v1108, 6
    %v3857 = vpop.permute.xlu0 %3856
    %3858 = vrot.lane.b32.xlu0 %v1109, 6
    %v3859 = vpop.permute.xlu0 %3858
    %3860 = vrot.lane.b32.xlu0 %v1110, 6
    %v3861 = vpop.permute.xlu0 %3860
    %3862 = vrot.lane.b32.xlu0 %v1111, 6
    %v3863 = vpop.permute.xlu0 %3862
    %3864 = vrot.lane.b32.xlu0 %v1112, 6
    %v3865 = vpop.permute.xlu0 %3864
    %3866 = vrot.lane.b32.xlu0 %v1113, 6
    %v3867 = vpop.permute.xlu0 %3866
    %3868 = vrot.lane.b32.xlu0 %v1114, 6
    %v3869 = vpop.permute.xlu0 %3868
    %3870 = vrot.lane.b32.xlu0 %v1115, 6
    %v3871 = vpop.permute.xlu0 %3870
    %3872 = vrot.lane.b32.xlu0 %v1116, 6
    %v3873 = vpop.permute.xlu0 %3872
    %3874 = vrot.lane.b32.xlu0 %v1117, 6
    %v3875 = vpop.permute.xlu0 %3874
    %3876 = vrot.lane.b32.xlu0 %v1118, 6
    %v3877 = vpop.permute.xlu0 %3876
    %3878 = vrot.lane.b32.xlu0 %v1119, 6
    %v3879 = vpop.permute.xlu0 %3878
    %3880 = vrot.lane.b32.xlu0 %v1120, 6
    %v3881 = vpop.permute.xlu0 %3880
    %3882 = vrot.lane.b32.xlu0 %v1121, 6
    %v3883 = vpop.permute.xlu0 %3882
    %3884 = vrot.lane.b32.xlu0 %v1122, 6
    %v3885 = vpop.permute.xlu0 %3884
    %3886 = vrot.lane.b32.xlu0 %v1123, 6
    %v3887 = vpop.permute.xlu0 %3886
    %3888 = vrot.lane.b32.xlu0 %v1124, 6
    %v3889 = vpop.permute.xlu0 %3888
    %3890 = vrot.lane.b32.xlu0 %v1125, 6
    %v3891 = vpop.permute.xlu0 %3890
    %3892 = vrot.lane.b32.xlu0 %v1126, 6
    %v3893 = vpop.permute.xlu0 %3892
    %3894 = vrot.lane.b32.xlu0 %v1127, 6
    %v3895 = vpop.permute.xlu0 %3894
    %3896 = vrot.lane.b32.xlu0 %v1128, 6
    %v3897 = vpop.permute.xlu0 %3896
    %3898 = vrot.lane.b32.xlu0 %v1129, 6
    %v3899 = vpop.permute.xlu0 %3898
    %vm4020 = vcmask 179368
    %4021 = vst.msk [vmem:[#allocation2] sm:$0xff] %vm4020, %v3661
    %4022 = vst.msk [vmem:[#allocation2 + $0x8] sm:$0xff] %vm4020, %v3663
    %vm4023 = vcmask 177320
    %4024 = vst.msk [vmem:[#allocation2 + $0x10] sm:$0x3f] %vm4023, %v3665
    %4025 = vst.msk [vmem:[#allocation2 + $0x18] sm:$0xff] %vm4020, %v3667
    %4026 = vst.msk [vmem:[#allocation2 + $0x20] sm:$0xff] %vm4020, %v3669
    %4027 = vst.msk [vmem:[#allocation2 + $0x28] sm:$0x3f] %vm4023, %v3671
    %4028 = vst.msk [vmem:[#allocation2 + $0x30] sm:$0xff] %vm4020, %v3673
    %4029 = vst.msk [vmem:[#allocation2 + $0x38] sm:$0xff] %vm4020, %v3675
    %4030 = vst.msk [vmem:[#allocation2 + $0x40] sm:$0x3f] %vm4023, %v3677
    %4031 = vst.msk [vmem:[#allocation2 + $0x48] sm:$0xff] %vm4020, %v3679
    %4032 = vst.msk [vmem:[#allocation2 + $0x50] sm:$0xff] %vm4020, %v3681
    %4033 = vst.msk [vmem:[#allocation2 + $0x58] sm:$0x3f] %vm4023, %v3683
    %4034 = vst.msk [vmem:[#allocation2 + $0x60] sm:$0xff] %vm4020, %v3685
    %4035 = vst.msk [vmem:[#allocation2 + $0x68] sm:$0xff] %vm4020, %v3687
    %4036 = vst.msk [vmem:[#allocation2 + $0x70] sm:$0x3f] %vm4023, %v3689
    %4037 = vst.msk [vmem:[#allocation2 + $0x78] sm:$0xff] %vm4020, %v3691
    %4038 = vst.msk [vmem:[#allocation2 + $0x80] sm:$0xff] %vm4020, %v3693
    %4039 = vst.msk [vmem:[#allocation2 + $0x88] sm:$0x3f] %vm4023, %v3695
    %4040 = vst.msk [vmem:[#allocation2 + $0x90] sm:$0xff] %vm4020, %v3697
    %4041 = vst.msk [vmem:[#allocation2 + $0x98] sm:$0xff] %vm4020, %v3699
    %4042 = vst.msk [vmem:[#allocation2 + $0xa0] sm:$0x3f] %vm4023, %v3701
    %4043 = vst.msk [vmem:[#allocation2 + $0xa8] sm:$0xff] %vm4020, %v3703
    %4044 = vst.msk [vmem:[#allocation2 + $0xb0] sm:$0xff] %vm4020, %v3705
    %4045 = vst.msk [vmem:[#allocation2 + $0xb8] sm:$0x3f] %vm4023, %v3707
    %4046 = vst.msk [vmem:[#allocation2 + $0xc0] sm:$0xff] %vm4020, %v3709
    %4047 = vst.msk [vmem:[#allocation2 + $0xc8] sm:$0xff] %vm4020, %v3711
    %4048 = vst.msk [vmem:[#allocation2 + $0xd0] sm:$0x3f] %vm4023, %v3713
    %4049 = vst.msk [vmem:[#allocation2 + $0xd8] sm:$0xff] %vm4020, %v3715
    %4050 = vst.msk [vmem:[#allocation2 + $0xe0] sm:$0xff] %vm4020, %v3717
    %4051 = vst.msk [vmem:[#allocation2 + $0xe8] sm:$0x3f] %vm4023, %v3719
    %4052 = vst.msk [vmem:[#allocation2 + $0xf0] sm:$0xff] %vm4020, %v3721
    %4053 = vst.msk [vmem:[#allocation2 + $0xf8] sm:$0xff] %vm4020, %v3723
    %4054 = vst.msk [vmem:[#allocation2 + $0x100] sm:$0x3f] %vm4023, %v3725
    %4055 = vst.msk [vmem:[#allocation2 + $0x108] sm:$0xff] %vm4020, %v3727
    %4056 = vst.msk [vmem:[#allocation2 + $0x110] sm:$0xff] %vm4020, %v3729
    %4057 = vst.msk [vmem:[#allocation2 + $0x118] sm:$0x3f] %vm4023, %v3731
    %4058 = vst.msk [vmem:[#allocation2 + $0x120] sm:$0xff] %vm4020, %v3733
    %4059 = vst.msk [vmem:[#allocation2 + $0x128] sm:$0xff] %vm4020, %v3735
    %4060 = vst.msk [vmem:[#allocation2 + $0x130] sm:$0x3f] %vm4023, %v3737
    %4061 = vst.msk [vmem:[#allocation2 + $0x138] sm:$0xff] %vm4020, %v3739
    %4062 = vst.msk [vmem:[#allocation2 + $0x140] sm:$0xff] %vm4020, %v3741
    %4063 = vst.msk [vmem:[#allocation2 + $0x148] sm:$0x3f] %vm4023, %v3743
    %4064 = vst.msk [vmem:[#allocation2 + $0x150] sm:$0xff] %vm4020, %v3745
    %4065 = vst.msk [vmem:[#allocation2 + $0x158] sm:$0xff] %vm4020, %v3747
    %4066 = vst.msk [vmem:[#allocation2 + $0x160] sm:$0x3f] %vm4023, %v3749
    %4067 = vst.msk [vmem:[#allocation2 + $0x168] sm:$0xff] %vm4020, %v3751
    %4068 = vst.msk [vmem:[#allocation2 + $0x170] sm:$0xff] %vm4020, %v3753
    %4069 = vst.msk [vmem:[#allocation2 + $0x178] sm:$0x3f] %vm4023, %v3755
    %4070 = vst.msk [vmem:[#allocation2 + $0x180] sm:$0xff] %vm4020, %v3757
    %4071 = vst.msk [vmem:[#allocation2 + $0x188] sm:$0xff] %vm4020, %v3759
    %4072 = vst.msk [vmem:[#allocation2 + $0x190] sm:$0x3f] %vm4023, %v3761
    %4073 = vst.msk [vmem:[#allocation2 + $0x198] sm:$0xff] %vm4020, %v3763
    %4074 = vst.msk [vmem:[#allocation2 + $0x1a0] sm:$0xff] %vm4020, %v3765
    %4075 = vst.msk [vmem:[#allocation2 + $0x1a8] sm:$0x3f] %vm4023, %v3767
    %4076 = vst.msk [vmem:[#allocation2 + $0x1b0] sm:$0xff] %vm4020, %v3769
    %4077 = vst.msk [vmem:[#allocation2 + $0x1b8] sm:$0xff] %vm4020, %v3771
    %4078 = vst.msk [vmem:[#allocation2 + $0x1c0] sm:$0x3f] %vm4023, %v3773
    %4079 = vst.msk [vmem:[#allocation2 + $0x1c8] sm:$0xff] %vm4020, %v3775
    %4080 = vst.msk [vmem:[#allocation2 + $0x1d0] sm:$0xff] %vm4020, %v3777
    %4081 = vst.msk [vmem:[#allocation2 + $0x1d8] sm:$0x3f] %vm4023, %v3779
    %4082 = vst.msk [vmem:[#allocation2 + $0x1e0] sm:$0xff] %vm4020, %v3781
    %4083 = vst.msk [vmem:[#allocation2 + $0x1e8] sm:$0xff] %vm4020, %v3783
    %4084 = vst.msk [vmem:[#allocation2 + $0x1f0] sm:$0x3f] %vm4023, %v3785
    %4085 = vst.msk [vmem:[#allocation2 + $0x1f8] sm:$0xff] %vm4020, %v3787
    %4086 = vst.msk [vmem:[#allocation2 + $0x200] sm:$0xff] %vm4020, %v3789
    %4087 = vst.msk [vmem:[#allocation2 + $0x208] sm:$0x3f] %vm4023, %v3791
    %4088 = vst.msk [vmem:[#allocation2 + $0x210] sm:$0xff] %vm4020, %v3793
    %4089 = vst.msk [vmem:[#allocation2 + $0x218] sm:$0xff] %vm4020, %v3795
    %4090 = vst.msk [vmem:[#allocation2 + $0x220] sm:$0x3f] %vm4023, %v3797
    %4091 = vst.msk [vmem:[#allocation2 + $0x228] sm:$0xff] %vm4020, %v3799
    %4092 = vst.msk [vmem:[#allocation2 + $0x230] sm:$0xff] %vm4020, %v3801
    %4093 = vst.msk [vmem:[#allocation2 + $0x238] sm:$0x3f] %vm4023, %v3803
    %4094 = vst.msk [vmem:[#allocation2 + $0x240] sm:$0xff] %vm4020, %v3805
    %4095 = vst.msk [vmem:[#allocation2 + $0x248] sm:$0xff] %vm4020, %v3807
    %4096 = vst.msk [vmem:[#allocation2 + $0x250] sm:$0x3f] %vm4023, %v3809
    %4097 = vst.msk [vmem:[#allocation2 + $0x258] sm:$0xff] %vm4020, %v3811
    %4098 = vst.msk [vmem:[#allocation2 + $0x260] sm:$0xff] %vm4020, %v3813
    %4099 = vst.msk [vmem:[#allocation2 + $0x268] sm:$0x3f] %vm4023, %v3815
    %4100 = vst.msk [vmem:[#allocation2 + $0x270] sm:$0xff] %vm4020, %v3817
    %4101 = vst.msk [vmem:[#allocation2 + $0x278] sm:$0xff] %vm4020, %v3819
    %4102 = vst.msk [vmem:[#allocation2 + $0x280] sm:$0x3f] %vm4023, %v3821
    %4103 = vst.msk [vmem:[#allocation2 + $0x288] sm:$0xff] %vm4020, %v3823
    %4104 = vst.msk [vmem:[#allocation2 + $0x290] sm:$0xff] %vm4020, %v3825
    %4105 = vst.msk [vmem:[#allocation2 + $0x298] sm:$0x3f] %vm4023, %v3827
    %4106 = vst.msk [vmem:[#allocation2 + $0x2a0] sm:$0xff] %vm4020, %v3829
    %4107 = vst.msk [vmem:[#allocation2 + $0x2a8] sm:$0xff] %vm4020, %v3831
    %4108 = vst.msk [vmem:[#allocation2 + $0x2b0] sm:$0x3f] %vm4023, %v3833
    %4109 = vst.msk [vmem:[#allocation2 + $0x2b8] sm:$0xff] %vm4020, %v3835
    %4110 = vst.msk [vmem:[#allocation2 + $0x2c0] sm:$0xff] %vm4020, %v3837
    %4111 = vst.msk [vmem:[#allocation2 + $0x2c8] sm:$0x3f] %vm4023, %v3839
    %4112 = vst.msk [vmem:[#allocation2 + $0x2d0] sm:$0xff] %vm4020, %v3841
    %4113 = vst.msk [vmem:[#allocation2 + $0x2d8] sm:$0xff] %vm4020, %v3843
    %4114 = vst.msk [vmem:[#allocation2 + $0x2e0] sm:$0x3f] %vm4023, %v3845
    %4115 = vst.msk [vmem:[#allocation2 + $0x2e8] sm:$0xff] %vm4020, %v3847
    %4116 = vst.msk [vmem:[#allocation2 + $0x2f0] sm:$0xff] %vm4020, %v3849
    %4117 = vst.msk [vmem:[#allocation2 + $0x2f8] sm:$0x3f] %vm4023, %v3851
    %4118 = vst.msk [vmem:[#allocation2 + $0x300] sm:$0xff] %vm4020, %v3853
    %4119 = vst.msk [vmem:[#allocation2 + $0x308] sm:$0xff] %vm4020, %v3855
    %4120 = vst.msk [vmem:[#allocation2 + $0x310] sm:$0x3f] %vm4023, %v3857
    %4121 = vst.msk [vmem:[#allocation2 + $0x318] sm:$0xff] %vm4020, %v3859
    %4122 = vst.msk [vmem:[#allocation2 + $0x320] sm:$0xff] %vm4020, %v3861
    %4123 = vst.msk [vmem:[#allocation2 + $0x328] sm:$0x3f] %vm4023, %v3863
    %4124 = vst.msk [vmem:[#allocation2 + $0x330] sm:$0xff] %vm4020, %v3865
    %4125 = vst.msk [vmem:[#allocation2 + $0x338] sm:$0xff] %vm4020, %v3867
    %4126 = vst.msk [vmem:[#allocation2 + $0x340] sm:$0x3f] %vm4023, %v3869
    %4127 = vst.msk [vmem:[#allocation2 + $0x348] sm:$0xff] %vm4020, %v3871
    %4128 = vst.msk [vmem:[#allocation2 + $0x350] sm:$0xff] %vm4020, %v3873
    %4129 = vst.msk [vmem:[#allocation2 + $0x358] sm:$0x3f] %vm4023, %v3875
    %4130 = vst.msk [vmem:[#allocation2 + $0x360] sm:$0xff] %vm4020, %v3877
    %4131 = vst.msk [vmem:[#allocation2 + $0x368] sm:$0xff] %vm4020, %v3879
    %4132 = vst.msk [vmem:[#allocation2 + $0x370] sm:$0x3f] %vm4023, %v3881
    %4133 = vst.msk [vmem:[#allocation2 + $0x378] sm:$0xff] %vm4020, %v3883
    %4134 = vst.msk [vmem:[#allocation2 + $0x380] sm:$0xff] %vm4020, %v3885
    %4135 = vst.msk [vmem:[#allocation2 + $0x388] sm:$0x3f] %vm4023, %v3887
    %4136 = vst.msk [vmem:[#allocation2 + $0x390] sm:$0xff] %vm4020, %v3889
    %4137 = vst.msk [vmem:[#allocation2 + $0x398] sm:$0xff] %vm4020, %v3891
    %4138 = vst.msk [vmem:[#allocation2 + $0x3a0] sm:$0x3f] %vm4023, %v3893
    %4139 = vst.msk [vmem:[#allocation2 + $0x3a8] sm:$0xff] %vm4020, %v3895
    %4140 = vst.msk [vmem:[#allocation2 + $0x3b0] sm:$0xff] %vm4020, %v3897
    %4141 = vst.msk [vmem:[#allocation2 + $0x3b8] sm:$0x3f] %vm4023, %v3899
    %v4142 = vld [vmem:[#allocation2] sm:$0xff]
    %v4143 = vld [vmem:[#allocation2 + $0x8] sm:$0xff]
    %v4144 = vld [vmem:[#allocation2 + $0x10] sm:$0x3f]
    %v4145 = vld [vmem:[#allocation2 + $0x18] sm:$0xff]
    %v4146 = vld [vmem:[#allocation2 + $0x20] sm:$0xff]
    %v4147 = vld [vmem:[#allocation2 + $0x28] sm:$0x3f]
    %v4148 = vld [vmem:[#allocation2 + $0x30] sm:$0xff]
    %v4149 = vld [vmem:[#allocation2 + $0x38] sm:$0xff]
    %v4150 = vld [vmem:[#allocation2 + $0x40] sm:$0x3f]
    %v4151 = vld [vmem:[#allocation2 + $0x48] sm:$0xff]
    %v4152 = vld [vmem:[#allocation2 + $0x50] sm:$0xff]
    %v4153 = vld [vmem:[#allocation2 + $0x58] sm:$0x3f]
    %v4154 = vld [vmem:[#allocation2 + $0x60] sm:$0xff]
    %v4155 = vld [vmem:[#allocation2 + $0x68] sm:$0xff]
    %v4156 = vld [vmem:[#allocation2 + $0x70] sm:$0x3f]
    %v4157 = vld [vmem:[#allocation2 + $0x78] sm:$0xff]
    %v4158 = vld [vmem:[#allocation2 + $0x80] sm:$0xff]
    %v4159 = vld [vmem:[#allocation2 + $0x88] sm:$0x3f]
    %v4160 = vld [vmem:[#allocation2 + $0x90] sm:$0xff]
    %v4161 = vld [vmem:[#allocation2 + $0x98] sm:$0xff]
    %v4162 = vld [vmem:[#allocation2 + $0xa0] sm:$0x3f]
    %v4163 = vld [vmem:[#allocation2 + $0xa8] sm:$0xff]
    %v4164 = vld [vmem:[#allocation2 + $0xb0] sm:$0xff]
    %v4165 = vld [vmem:[#allocation2 + $0xb8] sm:$0x3f]
    %v4166 = vld [vmem:[#allocation2 + $0xc0] sm:$0xff]
    %v4167 = vld [vmem:[#allocation2 + $0xc8] sm:$0xff]
    %v4168 = vld [vmem:[#allocation2 + $0xd0] sm:$0x3f]
    %v4169 = vld [vmem:[#allocation2 + $0xd8] sm:$0xff]
    %v4170 = vld [vmem:[#allocation2 + $0xe0] sm:$0xff]
    %v4171 = vld [vmem:[#allocation2 + $0xe8] sm:$0x3f]
    %v4172 = vld [vmem:[#allocation2 + $0xf0] sm:$0xff]
    %v4173 = vld [vmem:[#allocation2 + $0xf8] sm:$0xff]
    %v4174 = vld [vmem:[#allocation2 + $0x100] sm:$0x3f]
    %v4175 = vld [vmem:[#allocation2 + $0x108] sm:$0xff]
    %v4176 = vld [vmem:[#allocation2 + $0x110] sm:$0xff]
    %v4177 = vld [vmem:[#allocation2 + $0x118] sm:$0x3f]
    %v4178 = vld [vmem:[#allocation2 + $0x120] sm:$0xff]
    %v4179 = vld [vmem:[#allocation2 + $0x128] sm:$0xff]
    %v4180 = vld [vmem:[#allocation2 + $0x130] sm:$0x3f]
    %v4181 = vld [vmem:[#allocation2 + $0x138] sm:$0xff]
    %v4182 = vld [vmem:[#allocation2 + $0x140] sm:$0xff]
    %v4183 = vld [vmem:[#allocation2 + $0x148] sm:$0x3f]
    %v4184 = vld [vmem:[#allocation2 + $0x150] sm:$0xff]
    %v4185 = vld [vmem:[#allocation2 + $0x158] sm:$0xff]
    %v4186 = vld [vmem:[#allocation2 + $0x160] sm:$0x3f]
    %v4187 = vld [vmem:[#allocation2 + $0x168] sm:$0xff]
    %v4188 = vld [vmem:[#allocation2 + $0x170] sm:$0xff]
    %v4189 = vld [vmem:[#allocation2 + $0x178] sm:$0x3f]
    %v4190 = vld [vmem:[#allocation2 + $0x180] sm:$0xff]
    %v4191 = vld [vmem:[#allocation2 + $0x188] sm:$0xff]
    %v4192 = vld [vmem:[#allocation2 + $0x190] sm:$0x3f]
    %v4193 = vld [vmem:[#allocation2 + $0x198] sm:$0xff]
    %v4194 = vld [vmem:[#allocation2 + $0x1a0] sm:$0xff]
    %v4195 = vld [vmem:[#allocation2 + $0x1a8] sm:$0x3f]
    %v4196 = vld [vmem:[#allocation2 + $0x1b0] sm:$0xff]
    %v4197 = vld [vmem:[#allocation2 + $0x1b8] sm:$0xff]
    %v4198 = vld [vmem:[#allocation2 + $0x1c0] sm:$0x3f]
    %v4199 = vld [vmem:[#allocation2 + $0x1c8] sm:$0xff]
    %v4200 = vld [vmem:[#allocation2 + $0x1d0] sm:$0xff]
    %v4201 = vld [vmem:[#allocation2 + $0x1d8] sm:$0x3f]
    %v4202 = vld [vmem:[#allocation2 + $0x1e0] sm:$0xff]
    %v4203 = vld [vmem:[#allocation2 + $0x1e8] sm:$0xff]
    %v4204 = vld [vmem:[#allocation2 + $0x1f0] sm:$0x3f]
    %v4205 = vld [vmem:[#allocation2 + $0x1f8] sm:$0xff]
    %v4206 = vld [vmem:[#allocation2 + $0x200] sm:$0xff]
    %v4207 = vld [vmem:[#allocation2 + $0x208] sm:$0x3f]
    %v4208 = vld [vmem:[#allocation2 + $0x210] sm:$0xff]
    %v4209 = vld [vmem:[#allocation2 + $0x218] sm:$0xff]
    %v4210 = vld [vmem:[#allocation2 + $0x220] sm:$0x3f]
    %v4211 = vld [vmem:[#allocation2 + $0x228] sm:$0xff]
    %v4212 = vld [vmem:[#allocation2 + $0x230] sm:$0xff]
    %v4213 = vld [vmem:[#allocation2 + $0x238] sm:$0x3f]
    %v4214 = vld [vmem:[#allocation2 + $0x240] sm:$0xff]
    %v4215 = vld [vmem:[#allocation2 + $0x248] sm:$0xff]
    %v4216 = vld [vmem:[#allocation2 + $0x250] sm:$0x3f]
    %v4217 = vld [vmem:[#allocation2 + $0x258] sm:$0xff]
    %v4218 = vld [vmem:[#allocation2 + $0x260] sm:$0xff]
    %v4219 = vld [vmem:[#allocation2 + $0x268] sm:$0x3f]
    %v4220 = vld [vmem:[#allocation2 + $0x270] sm:$0xff]
    %v4221 = vld [vmem:[#allocation2 + $0x278] sm:$0xff]
    %v4222 = vld [vmem:[#allocation2 + $0x280] sm:$0x3f]
    %v4223 = vld [vmem:[#allocation2 + $0x288] sm:$0xff]
    %v4224 = vld [vmem:[#allocation2 + $0x290] sm:$0xff]
    %v4225 = vld [vmem:[#allocation2 + $0x298] sm:$0x3f]
    %v4226 = vld [vmem:[#allocation2 + $0x2a0] sm:$0xff]
    %v4227 = vld [vmem:[#allocation2 + $0x2a8] sm:$0xff]
    %v4228 = vld [vmem:[#allocation2 + $0x2b0] sm:$0x3f]
    %v4229 = vld [vmem:[#allocation2 + $0x2b8] sm:$0xff]
    %v4230 = vld [vmem:[#allocation2 + $0x2c0] sm:$0xff]
    %v4231 = vld [vmem:[#allocation2 + $0x2c8] sm:$0x3f]
    %v4232 = vld [vmem:[#allocation2 + $0x2d0] sm:$0xff]
    %v4233 = vld [vmem:[#allocation2 + $0x2d8] sm:$0xff]
    %v4234 = vld [vmem:[#allocation2 + $0x2e0] sm:$0x3f]
    %v4235 = vld [vmem:[#allocation2 + $0x2e8] sm:$0xff]
    %v4236 = vld [vmem:[#allocation2 + $0x2f0] sm:$0xff]
    %v4237 = vld [vmem:[#allocation2 + $0x2f8] sm:$0x3f]
    %v4238 = vld [vmem:[#allocation2 + $0x300] sm:$0xff]
    %v4239 = vld [vmem:[#allocation2 + $0x308] sm:$0xff]
    %v4240 = vld [vmem:[#allocation2 + $0x310] sm:$0x3f]
    %v4241 = vld [vmem:[#allocation2 + $0x318] sm:$0xff]
    %v4242 = vld [vmem:[#allocation2 + $0x320] sm:$0xff]
    %v4243 = vld [vmem:[#allocation2 + $0x328] sm:$0x3f]
    %v4244 = vld [vmem:[#allocation2 + $0x330] sm:$0xff]
    %v4245 = vld [vmem:[#allocation2 + $0x338] sm:$0xff]
    %v4246 = vld [vmem:[#allocation2 + $0x340] sm:$0x3f]
    %v4247 = vld [vmem:[#allocation2 + $0x348] sm:$0xff]
    %v4248 = vld [vmem:[#allocation2 + $0x350] sm:$0xff]
    %v4249 = vld [vmem:[#allocation2 + $0x358] sm:$0x3f]
    %v4250 = vld [vmem:[#allocation2 + $0x360] sm:$0xff]
    %v4251 = vld [vmem:[#allocation2 + $0x368] sm:$0xff]
    %v4252 = vld [vmem:[#allocation2 + $0x370] sm:$0x3f]
    %v4253 = vld [vmem:[#allocation2 + $0x378] sm:$0xff]
    %v4254 = vld [vmem:[#allocation2 + $0x380] sm:$0xff]
    %v4255 = vld [vmem:[#allocation2 + $0x388] sm:$0x3f]
    %v4256 = vld [vmem:[#allocation2 + $0x390] sm:$0xff]
    %v4257 = vld [vmem:[#allocation2 + $0x398] sm:$0xff]
    %v4258 = vld [vmem:[#allocation2 + $0x3a0] sm:$0x3f]
    %v4259 = vld [vmem:[#allocation2 + $0x3a8] sm:$0xff]
    %v4260 = vld [vmem:[#allocation2 + $0x3b0] sm:$0xff]
    %v4261 = vld [vmem:[#allocation2 + $0x3b8] sm:$0x3f]
    %vm4382 = vcmask 1046528
    %v4383 = vrot.slane %v4142, 1
    %v4384 = vrot.slane %v4143, 1
    %v4385 = vsel %vm4382, %v4383, %v4384
    %v4386 = vrot.slane %v4144, 1
    %v4387 = vsel %vm4382, %v4384, %v4386
    %v4388 = vrot.slane %v4145, 1
    %v4389 = vrot.slane %v4146, 1
    %v4390 = vsel %vm4382, %v4388, %v4389
    %v4391 = vrot.slane %v4147, 1
    %v4392 = vsel %vm4382, %v4389, %v4391
    %v4393 = vrot.slane %v4148, 1
    %v4394 = vrot.slane %v4149, 1
    %v4395 = vsel %vm4382, %v4393, %v4394
    %v4396 = vrot.slane %v4150, 1
    %v4397 = vsel %vm4382, %v4394, %v4396
    %v4398 = vrot.slane %v4151, 1
    %v4399 = vrot.slane %v4152, 1
    %v4400 = vsel %vm4382, %v4398, %v4399
    %v4401 = vrot.slane %v4153, 1
    %v4402 = vsel %vm4382, %v4399, %v4401
    %v4403 = vrot.slane %v4154, 1
    %v4404 = vrot.slane %v4155, 1
    %v4405 = vsel %vm4382, %v4403, %v4404
    %v4406 = vrot.slane %v4156, 1
    %v4407 = vsel %vm4382, %v4404, %v4406
    %v4408 = vrot.slane %v4157, 1
    %v4409 = vrot.slane %v4158, 1
    %v4410 = vsel %vm4382, %v4408, %v4409
    %v4411 = vrot.slane %v4159, 1
    %v4412 = vsel %vm4382, %v4409, %v4411
    %v4413 = vrot.slane %v4160, 1
    %v4414 = vrot.slane %v4161, 1
    %v4415 = vsel %vm4382, %v4413, %v4414
    %v4416 = vrot.slane %v4162, 1
    %v4417 = vsel %vm4382, %v4414, %v4416
    %v4418 = vrot.slane %v4163, 1
    %v4419 = vrot.slane %v4164, 1
    %v4420 = vsel %vm4382, %v4418, %v4419
    %v4421 = vrot.slane %v4165, 1
    %v4422 = vsel %vm4382, %v4419, %v4421
    %v4423 = vrot.slane %v4166, 1
    %v4424 = vrot.slane %v4167, 1
    %v4425 = vsel %vm4382, %v4423, %v4424
    %v4426 = vrot.slane %v4168, 1
    %v4427 = vsel %vm4382, %v4424, %v4426
    %v4428 = vrot.slane %v4169, 1
    %v4429 = vrot.slane %v4170, 1
    %v4430 = vsel %vm4382, %v4428, %v4429
    %v4431 = vrot.slane %v4171, 1
    %v4432 = vsel %vm4382, %v4429, %v4431
    %v4433 = vrot.slane %v4172, 1
    %v4434 = vrot.slane %v4173, 1
    %v4435 = vsel %vm4382, %v4433, %v4434
    %v4436 = vrot.slane %v4174, 1
    %v4437 = vsel %vm4382, %v4434, %v4436
    %v4438 = vrot.slane %v4175, 1
    %v4439 = vrot.slane %v4176, 1
    %v4440 = vsel %vm4382, %v4438, %v4439
    %v4441 = vrot.slane %v4177, 1
    %v4442 = vsel %vm4382, %v4439, %v4441
    %v4443 = vrot.slane %v4178, 1
    %v4444 = vrot.slane %v4179, 1
    %v4445 = vsel %vm4382, %v4443, %v4444
    %v4446 = vrot.slane %v4180, 1
    %v4447 = vsel %vm4382, %v4444, %v4446
    %v4448 = vrot.slane %v4181, 1
    %v4449 = vrot.slane %v4182, 1
    %v4450 = vsel %vm4382, %v4448, %v4449
    %v4451 = vrot.slane %v4183, 1
    %v4452 = vsel %vm4382, %v4449, %v4451
    %v4453 = vrot.slane %v4184, 1
    %v4454 = vrot.slane %v4185, 1
    %v4455 = vsel %vm4382, %v4453, %v4454
    %v4456 = vrot.slane %v4186, 1
    %v4457 = vsel %vm4382, %v4454, %v4456
    %v4458 = vrot.slane %v4187, 1
    %v4459 = vrot.slane %v4188, 1
    %v4460 = vsel %vm4382, %v4458, %v4459
    %v4461 = vrot.slane %v4189, 1
    %v4462 = vsel %vm4382, %v4459, %v4461
    %v4463 = vrot.slane %v4190, 1
    %v4464 = vrot.slane %v4191, 1
    %v4465 = vsel %vm4382, %v4463, %v4464
    %v4466 = vrot.slane %v4192, 1
    %v4467 = vsel %vm4382, %v4464, %v4466
    %v4468 = vrot.slane %v4193, 1
    %v4469 = vrot.slane %v4194, 1
    %v4470 = vsel %vm4382, %v4468, %v4469
    %v4471 = vrot.slane %v4195, 1
    %v4472 = vsel %vm4382, %v4469, %v4471
    %v4473 = vrot.slane %v4196, 1
    %v4474 = vrot.slane %v4197, 1
    %v4475 = vsel %vm4382, %v4473, %v4474
    %v4476 = vrot.slane %v4198, 1
    %v4477 = vsel %vm4382, %v4474, %v4476
    %v4478 = vrot.slane %v4199, 1
    %v4479 = vrot.slane %v4200, 1
    %v4480 = vsel %vm4382, %v4478, %v4479
    %v4481 = vrot.slane %v4201, 1
    %v4482 = vsel %vm4382, %v4479, %v4481
    %v4483 = vrot.slane %v4202, 1
    %v4484 = vrot.slane %v4203, 1
    %v4485 = vsel %vm4382, %v4483, %v4484
    %v4486 = vrot.slane %v4204, 1
    %v4487 = vsel %vm4382, %v4484, %v4486
    %v4488 = vrot.slane %v4205, 1
    %v4489 = vrot.slane %v4206, 1
    %v4490 = vsel %vm4382, %v4488, %v4489
    %v4491 = vrot.slane %v4207, 1
    %v4492 = vsel %vm4382, %v4489, %v4491
    %v4493 = vrot.slane %v4208, 1
    %v4494 = vrot.slane %v4209, 1
    %v4495 = vsel %vm4382, %v4493, %v4494
    %v4496 = vrot.slane %v4210, 1
    %v4497 = vsel %vm4382, %v4494, %v4496
    %v4498 = vrot.slane %v4211, 1
    %v4499 = vrot.slane %v4212, 1
    %v4500 = vsel %vm4382, %v4498, %v4499
    %v4501 = vrot.slane %v4213, 1
    %v4502 = vsel %vm4382, %v4499, %v4501
    %v4503 = vrot.slane %v4214, 1
    %v4504 = vrot.slane %v4215, 1
    %v4505 = vsel %vm4382, %v4503, %v4504
    %v4506 = vrot.slane %v4216, 1
    %v4507 = vsel %vm4382, %v4504, %v4506
    %v4508 = vrot.slane %v4217, 1
    %v4509 = vrot.slane %v4218, 1
    %v4510 = vsel %vm4382, %v4508, %v4509
    %v4511 = vrot.slane %v4219, 1
    %v4512 = vsel %vm4382, %v4509, %v4511
    %v4513 = vrot.slane %v4220, 1
    %v4514 = vrot.slane %v4221, 1
    %v4515 = vsel %vm4382, %v4513, %v4514
    %v4516 = vrot.slane %v4222, 1
    %v4517 = vsel %vm4382, %v4514, %v4516
    %v4518 = vrot.slane %v4223, 1
    %v4519 = vrot.slane %v4224, 1
    %v4520 = vsel %vm4382, %v4518, %v4519
    %v4521 = vrot.slane %v4225, 1
    %v4522 = vsel %vm4382, %v4519, %v4521
    %v4523 = vrot.slane %v4226, 1
    %v4524 = vrot.slane %v4227, 1
    %v4525 = vsel %vm4382, %v4523, %v4524
    %v4526 = vrot.slane %v4228, 1
    %v4527 = vsel %vm4382, %v4524, %v4526
    %v4528 = vrot.slane %v4229, 1
    %v4529 = vrot.slane %v4230, 1
    %v4530 = vsel %vm4382, %v4528, %v4529
    %v4531 = vrot.slane %v4231, 1
    %v4532 = vsel %vm4382, %v4529, %v4531
    %v4533 = vrot.slane %v4232, 1
    %v4534 = vrot.slane %v4233, 1
    %v4535 = vsel %vm4382, %v4533, %v4534
    %v4536 = vrot.slane %v4234, 1
    %v4537 = vsel %vm4382, %v4534, %v4536
    %v4538 = vrot.slane %v4235, 1
    %v4539 = vrot.slane %v4236, 1
    %v4540 = vsel %vm4382, %v4538, %v4539
    %v4541 = vrot.slane %v4237, 1
    %v4542 = vsel %vm4382, %v4539, %v4541
    %v4543 = vrot.slane %v4238, 1
    %v4544 = vrot.slane %v4239, 1
    %v4545 = vsel %vm4382, %v4543, %v4544
    %v4546 = vrot.slane %v4240, 1
    %v4547 = vsel %vm4382, %v4544, %v4546
    %v4548 = vrot.slane %v4241, 1
    %v4549 = vrot.slane %v4242, 1
    %v4550 = vsel %vm4382, %v4548, %v4549
    %v4551 = vrot.slane %v4243, 1
    %v4552 = vsel %vm4382, %v4549, %v4551
    %v4553 = vrot.slane %v4244, 1
    %v4554 = vrot.slane %v4245, 1
    %v4555 = vsel %vm4382, %v4553, %v4554
    %v4556 = vrot.slane %v4246, 1
    %v4557 = vsel %vm4382, %v4554, %v4556
    %v4558 = vrot.slane %v4247, 1
    %v4559 = vrot.slane %v4248, 1
    %v4560 = vsel %vm4382, %v4558, %v4559
    %v4561 = vrot.slane %v4249, 1
    %v4562 = vsel %vm4382, %v4559, %v4561
    %v4563 = vrot.slane %v4250, 1
    %v4564 = vrot.slane %v4251, 1
    %v4565 = vsel %vm4382, %v4563, %v4564
    %v4566 = vrot.slane %v4252, 1
    %v4567 = vsel %vm4382, %v4564, %v4566
    %v4568 = vrot.slane %v4253, 1
    %v4569 = vrot.slane %v4254, 1
    %v4570 = vsel %vm4382, %v4568, %v4569
    %v4571 = vrot.slane %v4255, 1
    %v4572 = vsel %vm4382, %v4569, %v4571
    %v4573 = vrot.slane %v4256, 1
    %v4574 = vrot.slane %v4257, 1
    %v4575 = vsel %vm4382, %v4573, %v4574
    %v4576 = vrot.slane %v4258, 1
    %v4577 = vsel %vm4382, %v4574, %v4576
    %v4578 = vrot.slane %v4259, 1
    %v4579 = vrot.slane %v4260, 1
    %v4580 = vsel %vm4382, %v4578, %v4579
    %v4581 = vrot.slane %v4261, 1
    %v4582 = vsel %vm4382, %v4579, %v4581
    %v4703 = vadd.f32 %v4142, %v4385
    %v4704 = vadd.f32 %v4143, %v4387
    %v4705 = vadd.f32 %v4144, %v4386
    %v4706 = vadd.f32 %v4145, %v4390
    %v4707 = vadd.f32 %v4146, %v4392
    %v4708 = vadd.f32 %v4147, %v4391
    %v4709 = vadd.f32 %v4148, %v4395
    %v4710 = vadd.f32 %v4149, %v4397
    %v4711 = vadd.f32 %v4150, %v4396
    %v4712 = vadd.f32 %v4151, %v4400
    %v4713 = vadd.f32 %v4152, %v4402
    %v4714 = vadd.f32 %v4153, %v4401
    %v4715 = vadd.f32 %v4154, %v4405
    %v4716 = vadd.f32 %v4155, %v4407
    %v4717 = vadd.f32 %v4156, %v4406
    %v4718 = vadd.f32 %v4157, %v4410
    %v4719 = vadd.f32 %v4158, %v4412
    %v4720 = vadd.f32 %v4159, %v4411
    %v4721 = vadd.f32 %v4160, %v4415
    %v4722 = vadd.f32 %v4161, %v4417
    %v4723 = vadd.f32 %v4162, %v4416
    %v4724 = vadd.f32 %v4163, %v4420
    %v4725 = vadd.f32 %v4164, %v4422
    %v4726 = vadd.f32 %v4165, %v4421
    %v4727 = vadd.f32 %v4166, %v4425
    %v4728 = vadd.f32 %v4167, %v4427
    %v4729 = vadd.f32 %v4168, %v4426
    %v4730 = vadd.f32 %v4169, %v4430
    %v4731 = vadd.f32 %v4170, %v4432
    %v4732 = vadd.f32 %v4171, %v4431
    %v4733 = vadd.f32 %v4172, %v4435
    %v4734 = vadd.f32 %v4173, %v4437
    %v4735 = vadd.f32 %v4174, %v4436
    %v4736 = vadd.f32 %v4175, %v4440
    %v4737 = vadd.f32 %v4176, %v4442
    %v4738 = vadd.f32 %v4177, %v4441
    %v4739 = vadd.f32 %v4178, %v4445
    %v4740 = vadd.f32 %v4179, %v4447
    %v4741 = vadd.f32 %v4180, %v4446
    %v4742 = vadd.f32 %v4181, %v4450
    %v4743 = vadd.f32 %v4182, %v4452
    %v4744 = vadd.f32 %v4183, %v4451
    %v4745 = vadd.f32 %v4184, %v4455
    %v4746 = vadd.f32 %v4185, %v4457
    %v4747 = vadd.f32 %v4186, %v4456
    %v4748 = vadd.f32 %v4187, %v4460
    %v4749 = vadd.f32 %v4188, %v4462
    %v4750 = vadd.f32 %v4189, %v4461
    %v4751 = vadd.f32 %v4190, %v4465
    %v4752 = vadd.f32 %v4191, %v4467
    %v4753 = vadd.f32 %v4192, %v4466
    %v4754 = vadd.f32 %v4193, %v4470
    %v4755 = vadd.f32 %v4194, %v4472
    %v4756 = vadd.f32 %v4195, %v4471
    %v4757 = vadd.f32 %v4196, %v4475
    %v4758 = vadd.f32 %v4197, %v4477
    %v4759 = vadd.f32 %v4198, %v4476
    %v4760 = vadd.f32 %v4199, %v4480
    %v4761 = vadd.f32 %v4200, %v4482
    %v4762 = vadd.f32 %v4201, %v4481
    %v4763 = vadd.f32 %v4202, %v4485
    %v4764 = vadd.f32 %v4203, %v4487
    %v4765 = vadd.f32 %v4204, %v4486
    %v4766 = vadd.f32 %v4205, %v4490
    %v4767 = vadd.f32 %v4206, %v4492
    %v4768 = vadd.f32 %v4207, %v4491
    %v4769 = vadd.f32 %v4208, %v4495
    %v4770 = vadd.f32 %v4209, %v4497
    %v4771 = vadd.f32 %v4210, %v4496
    %v4772 = vadd.f32 %v4211, %v4500
    %v4773 = vadd.f32 %v4212, %v4502
    %v4774 = vadd.f32 %v4213, %v4501
    %v4775 = vadd.f32 %v4214, %v4505
    %v4776 = vadd.f32 %v4215, %v4507
    %v4777 = vadd.f32 %v4216, %v4506
    %v4778 = vadd.f32 %v4217, %v4510
    %v4779 = vadd.f32 %v4218, %v4512
    %v4780 = vadd.f32 %v4219, %v4511
    %v4781 = vadd.f32 %v4220, %v4515
    %v4782 = vadd.f32 %v4221, %v4517
    %v4783 = vadd.f32 %v4222, %v4516
    %v4784 = vadd.f32 %v4223, %v4520
    %v4785 = vadd.f32 %v4224, %v4522
    %v4786 = vadd.f32 %v4225, %v4521
    %v4787 = vadd.f32 %v4226, %v4525
    %v4788 = vadd.f32 %v4227, %v4527
    %v4789 = vadd.f32 %v4228, %v4526
    %v4790 = vadd.f32 %v4229, %v4530
    %v4791 = vadd.f32 %v4230, %v4532
    %v4792 = vadd.f32 %v4231, %v4531
    %v4793 = vadd.f32 %v4232, %v4535
    %v4794 = vadd.f32 %v4233, %v4537
    %v4795 = vadd.f32 %v4234, %v4536
    %v4796 = vadd.f32 %v4235, %v4540
    %v4797 = vadd.f32 %v4236, %v4542
    %v4798 = vadd.f32 %v4237, %v4541
    %v4799 = vadd.f32 %v4238, %v4545
    %v4800 = vadd.f32 %v4239, %v4547
    %v4801 = vadd.f32 %v4240, %v4546
    %v4802 = vadd.f32 %v4241, %v4550
    %v4803 = vadd.f32 %v4242, %v4552
    %v4804 = vadd.f32 %v4243, %v4551
    %v4805 = vadd.f32 %v4244, %v4555
    %v4806 = vadd.f32 %v4245, %v4557
    %v4807 = vadd.f32 %v4246, %v4556
    %v4808 = vadd.f32 %v4247, %v4560
    %v4809 = vadd.f32 %v4248, %v4562
    %v4810 = vadd.f32 %v4249, %v4561
    %v4811 = vadd.f32 %v4250, %v4565
    %v4812 = vadd.f32 %v4251, %v4567
    %v4813 = vadd.f32 %v4252, %v4566
    %v4814 = vadd.f32 %v4253, %v4570
    %v4815 = vadd.f32 %v4254, %v4572
    %v4816 = vadd.f32 %v4255, %v4571
    %v4817 = vadd.f32 %v4256, %v4575
    %v4818 = vadd.f32 %v4257, %v4577
    %v4819 = vadd.f32 %v4258, %v4576
    %v4820 = vadd.f32 %v4259, %v4580
    %v4821 = vadd.f32 %v4260, %v4582
    %v4822 = vadd.f32 %v4261, %v4581
    %vm4943 = vcmask 1045504
    %v4944 = vrot.slane %v4703, 2
    %v4945 = vrot.slane %v4704, 2
    %v4946 = vsel %vm4943, %v4944, %v4945
    %v4947 = vrot.slane %v4705, 2
    %v4948 = vsel %vm4943, %v4945, %v4947
    %v4949 = vrot.slane %v4706, 2
    %v4950 = vrot.slane %v4707, 2
    %v4951 = vsel %vm4943, %v4949, %v4950
    %v4952 = vrot.slane %v4708, 2
    %v4953 = vsel %vm4943, %v4950, %v4952
    %v4954 = vrot.slane %v4709, 2
    %v4955 = vrot.slane %v4710, 2
    %v4956 = vsel %vm4943, %v4954, %v4955
    %v4957 = vrot.slane %v4711, 2
    %v4958 = vsel %vm4943, %v4955, %v4957
    %v4959 = vrot.slane %v4712, 2
    %v4960 = vrot.slane %v4713, 2
    %v4961 = vsel %vm4943, %v4959, %v4960
    %v4962 = vrot.slane %v4714, 2
    %v4963 = vsel %vm4943, %v4960, %v4962
    %v4964 = vrot.slane %v4715, 2
    %v4965 = vrot.slane %v4716, 2
    %v4966 = vsel %vm4943, %v4964, %v4965
    %v4967 = vrot.slane %v4717, 2
    %v4968 = vsel %vm4943, %v4965, %v4967
    %v4969 = vrot.slane %v4718, 2
    %v4970 = vrot.slane %v4719, 2
    %v4971 = vsel %vm4943, %v4969, %v4970
    %v4972 = vrot.slane %v4720, 2
    %v4973 = vsel %vm4943, %v4970, %v4972
    %v4974 = vrot.slane %v4721, 2
    %v4975 = vrot.slane %v4722, 2
    %v4976 = vsel %vm4943, %v4974, %v4975
    %v4977 = vrot.slane %v4723, 2
    %v4978 = vsel %vm4943, %v4975, %v4977
    %v4979 = vrot.slane %v4724, 2
    %v4980 = vrot.slane %v4725, 2
    %v4981 = vsel %vm4943, %v4979, %v4980
    %v4982 = vrot.slane %v4726, 2
    %v4983 = vsel %vm4943, %v4980, %v4982
    %v4984 = vrot.slane %v4727, 2
    %v4985 = vrot.slane %v4728, 2
    %v4986 = vsel %vm4943, %v4984, %v4985
    %v4987 = vrot.slane %v4729, 2
    %v4988 = vsel %vm4943, %v4985, %v4987
    %v4989 = vrot.slane %v4730, 2
    %v4990 = vrot.slane %v4731, 2
    %v4991 = vsel %vm4943, %v4989, %v4990
    %v4992 = vrot.slane %v4732, 2
    %v4993 = vsel %vm4943, %v4990, %v4992
    %v4994 = vrot.slane %v4733, 2
    %v4995 = vrot.slane %v4734, 2
    %v4996 = vsel %vm4943, %v4994, %v4995
    %v4997 = vrot.slane %v4735, 2
    %v4998 = vsel %vm4943, %v4995, %v4997
    %v4999 = vrot.slane %v4736, 2
    %v5000 = vrot.slane %v4737, 2
    %v5001 = vsel %vm4943, %v4999, %v5000
    %v5002 = vrot.slane %v4738, 2
    %v5003 = vsel %vm4943, %v5000, %v5002
    %v5004 = vrot.slane %v4739, 2
    %v5005 = vrot.slane %v4740, 2
    %v5006 = vsel %vm4943, %v5004, %v5005
    %v5007 = vrot.slane %v4741, 2
    %v5008 = vsel %vm4943, %v5005, %v5007
    %v5009 = vrot.slane %v4742, 2
    %v5010 = vrot.slane %v4743, 2
    %v5011 = vsel %vm4943, %v5009, %v5010
    %v5012 = vrot.slane %v4744, 2
    %v5013 = vsel %vm4943, %v5010, %v5012
    %v5014 = vrot.slane %v4745, 2
    %v5015 = vrot.slane %v4746, 2
    %v5016 = vsel %vm4943, %v5014, %v5015
    %v5017 = vrot.slane %v4747, 2
    %v5018 = vsel %vm4943, %v5015, %v5017
    %v5019 = vrot.slane %v4748, 2
    %v5020 = vrot.slane %v4749, 2
    %v5021 = vsel %vm4943, %v5019, %v5020
    %v5022 = vrot.slane %v4750, 2
    %v5023 = vsel %vm4943, %v5020, %v5022
    %v5024 = vrot.slane %v4751, 2
    %v5025 = vrot.slane %v4752, 2
    %v5026 = vsel %vm4943, %v5024, %v5025
    %v5027 = vrot.slane %v4753, 2
    %v5028 = vsel %vm4943, %v5025, %v5027
    %v5029 = vrot.slane %v4754, 2
    %v5030 = vrot.slane %v4755, 2
    %v5031 = vsel %vm4943, %v5029, %v5030
    %v5032 = vrot.slane %v4756, 2
    %v5033 = vsel %vm4943, %v5030, %v5032
    %v5034 = vrot.slane %v4757, 2
    %v5035 = vrot.slane %v4758, 2
    %v5036 = vsel %vm4943, %v5034, %v5035
    %v5037 = vrot.slane %v4759, 2
    %v5038 = vsel %vm4943, %v5035, %v5037
    %v5039 = vrot.slane %v4760, 2
    %v5040 = vrot.slane %v4761, 2
    %v5041 = vsel %vm4943, %v5039, %v5040
    %v5042 = vrot.slane %v4762, 2
    %v5043 = vsel %vm4943, %v5040, %v5042
    %v5044 = vrot.slane %v4763, 2
    %v5045 = vrot.slane %v4764, 2
    %v5046 = vsel %vm4943, %v5044, %v5045
    %v5047 = vrot.slane %v4765, 2
    %v5048 = vsel %vm4943, %v5045, %v5047
    %v5049 = vrot.slane %v4766, 2
    %v5050 = vrot.slane %v4767, 2
    %v5051 = vsel %vm4943, %v5049, %v5050
    %v5052 = vrot.slane %v4768, 2
    %v5053 = vsel %vm4943, %v5050, %v5052
    %v5054 = vrot.slane %v4769, 2
    %v5055 = vrot.slane %v4770, 2
    %v5056 = vsel %vm4943, %v5054, %v5055
    %v5057 = vrot.slane %v4771, 2
    %v5058 = vsel %vm4943, %v5055, %v5057
    %v5059 = vrot.slane %v4772, 2
    %v5060 = vrot.slane %v4773, 2
    %v5061 = vsel %vm4943, %v5059, %v5060
    %v5062 = vrot.slane %v4774, 2
    %v5063 = vsel %vm4943, %v5060, %v5062
    %v5064 = vrot.slane %v4775, 2
    %v5065 = vrot.slane %v4776, 2
    %v5066 = vsel %vm4943, %v5064, %v5065
    %v5067 = vrot.slane %v4777, 2
    %v5068 = vsel %vm4943, %v5065, %v5067
    %v5069 = vrot.slane %v4778, 2
    %v5070 = vrot.slane %v4779, 2
    %v5071 = vsel %vm4943, %v5069, %v5070
    %v5072 = vrot.slane %v4780, 2
    %v5073 = vsel %vm4943, %v5070, %v5072
    %v5074 = vrot.slane %v4781, 2
    %v5075 = vrot.slane %v4782, 2
    %v5076 = vsel %vm4943, %v5074, %v5075
    %v5077 = vrot.slane %v4783, 2
    %v5078 = vsel %vm4943, %v5075, %v5077
    %v5079 = vrot.slane %v4784, 2
    %v5080 = vrot.slane %v4785, 2
    %v5081 = vsel %vm4943, %v5079, %v5080
    %v5082 = vrot.slane %v4786, 2
    %v5083 = vsel %vm4943, %v5080, %v5082
    %v5084 = vrot.slane %v4787, 2
    %v5085 = vrot.slane %v4788, 2
    %v5086 = vsel %vm4943, %v5084, %v5085
    %v5087 = vrot.slane %v4789, 2
    %v5088 = vsel %vm4943, %v5085, %v5087
    %v5089 = vrot.slane %v4790, 2
    %v5090 = vrot.slane %v4791, 2
    %v5091 = vsel %vm4943, %v5089, %v5090
    %v5092 = vrot.slane %v4792, 2
    %v5093 = vsel %vm4943, %v5090, %v5092
    %v5094 = vrot.slane %v4793, 2
    %v5095 = vrot.slane %v4794, 2
    %v5096 = vsel %vm4943, %v5094, %v5095
    %v5097 = vrot.slane %v4795, 2
    %v5098 = vsel %vm4943, %v5095, %v5097
    %v5099 = vrot.slane %v4796, 2
    %v5100 = vrot.slane %v4797, 2
    %v5101 = vsel %vm4943, %v5099, %v5100
    %v5102 = vrot.slane %v4798, 2
    %v5103 = vsel %vm4943, %v5100, %v5102
    %v5104 = vrot.slane %v4799, 2
    %v5105 = vrot.slane %v4800, 2
    %v5106 = vsel %vm4943, %v5104, %v5105
    %v5107 = vrot.slane %v4801, 2
    %v5108 = vsel %vm4943, %v5105, %v5107
    %v5109 = vrot.slane %v4802, 2
    %v5110 = vrot.slane %v4803, 2
    %v5111 = vsel %vm4943, %v5109, %v5110
    %v5112 = vrot.slane %v4804, 2
    %v5113 = vsel %vm4943, %v5110, %v5112
    %v5114 = vrot.slane %v4805, 2
    %v5115 = vrot.slane %v4806, 2
    %v5116 = vsel %vm4943, %v5114, %v5115
    %v5117 = vrot.slane %v4807, 2
    %v5118 = vsel %vm4943, %v5115, %v5117
    %v5119 = vrot.slane %v4808, 2
    %v5120 = vrot.slane %v4809, 2
    %v5121 = vsel %vm4943, %v5119, %v5120
    %v5122 = vrot.slane %v4810, 2
    %v5123 = vsel %vm4943, %v5120, %v5122
    %v5124 = vrot.slane %v4811, 2
    %v5125 = vrot.slane %v4812, 2
    %v5126 = vsel %vm4943, %v5124, %v5125
    %v5127 = vrot.slane %v4813, 2
    %v5128 = vsel %vm4943, %v5125, %v5127
    %v5129 = vrot.slane %v4814, 2
    %v5130 = vrot.slane %v4815, 2
    %v5131 = vsel %vm4943, %v5129, %v5130
    %v5132 = vrot.slane %v4816, 2
    %v5133 = vsel %vm4943, %v5130, %v5132
    %v5134 = vrot.slane %v4817, 2
    %v5135 = vrot.slane %v4818, 2
    %v5136 = vsel %vm4943, %v5134, %v5135
    %v5137 = vrot.slane %v4819, 2
    %v5138 = vsel %vm4943, %v5135, %v5137
    %v5139 = vrot.slane %v4820, 2
    %v5140 = vrot.slane %v4821, 2
    %v5141 = vsel %vm4943, %v5139, %v5140
    %v5142 = vrot.slane %v4822, 2
    %v5143 = vsel %vm4943, %v5140, %v5142
    %v5224 = vadd.f32 %v4703, %v4946
    %v5225 = vadd.f32 %v4704, %v4948
    %v5226 = vadd.f32 %v4706, %v4951
    %v5227 = vadd.f32 %v4707, %v4953
    %v5228 = vadd.f32 %v4709, %v4956
    %v5229 = vadd.f32 %v4710, %v4958
    %v5230 = vadd.f32 %v4712, %v4961
    %v5231 = vadd.f32 %v4713, %v4963
    %v5232 = vadd.f32 %v4715, %v4966
    %v5233 = vadd.f32 %v4716, %v4968
    %v5234 = vadd.f32 %v4718, %v4971
    %v5235 = vadd.f32 %v4719, %v4973
    %v5236 = vadd.f32 %v4721, %v4976
    %v5237 = vadd.f32 %v4722, %v4978
    %v5238 = vadd.f32 %v4724, %v4981
    %v5239 = vadd.f32 %v4725, %v4983
    %v5240 = vadd.f32 %v4727, %v4986
    %v5241 = vadd.f32 %v4728, %v4988
    %v5242 = vadd.f32 %v4730, %v4991
    %v5243 = vadd.f32 %v4731, %v4993
    %v5244 = vadd.f32 %v4733, %v4996
    %v5245 = vadd.f32 %v4734, %v4998
    %v5246 = vadd.f32 %v4736, %v5001
    %v5247 = vadd.f32 %v4737, %v5003
    %v5248 = vadd.f32 %v4739, %v5006
    %v5249 = vadd.f32 %v4740, %v5008
    %v5250 = vadd.f32 %v4742, %v5011
    %v5251 = vadd.f32 %v4743, %v5013
    %v5252 = vadd.f32 %v4745, %v5016
    %v5253 = vadd.f32 %v4746, %v5018
    %v5254 = vadd.f32 %v4748, %v5021
    %v5255 = vadd.f32 %v4749, %v5023
    %v5256 = vadd.f32 %v4751, %v5026
    %v5257 = vadd.f32 %v4752, %v5028
    %v5258 = vadd.f32 %v4754, %v5031
    %v5259 = vadd.f32 %v4755, %v5033
    %v5260 = vadd.f32 %v4757, %v5036
    %v5261 = vadd.f32 %v4758, %v5038
    %v5262 = vadd.f32 %v4760, %v5041
    %v5263 = vadd.f32 %v4761, %v5043
    %v5264 = vadd.f32 %v4763, %v5046
    %v5265 = vadd.f32 %v4764, %v5048
    %v5266 = vadd.f32 %v4766, %v5051
    %v5267 = vadd.f32 %v4767, %v5053
    %v5268 = vadd.f32 %v4769, %v5056
    %v5269 = vadd.f32 %v4770, %v5058
    %v5270 = vadd.f32 %v4772, %v5061
    %v5271 = vadd.f32 %v4773, %v5063
    %v5272 = vadd.f32 %v4775, %v5066
    %v5273 = vadd.f32 %v4776, %v5068
    %v5274 = vadd.f32 %v4778, %v5071
    %v5275 = vadd.f32 %v4779, %v5073
    %v5276 = vadd.f32 %v4781, %v5076
    %v5277 = vadd.f32 %v4782, %v5078
    %v5278 = vadd.f32 %v4784, %v5081
    %v5279 = vadd.f32 %v4785, %v5083
    %v5280 = vadd.f32 %v4787, %v5086
    %v5281 = vadd.f32 %v4788, %v5088
    %v5282 = vadd.f32 %v4790, %v5091
    %v5283 = vadd.f32 %v4791, %v5093
    %v5284 = vadd.f32 %v4793, %v5096
    %v5285 = vadd.f32 %v4794, %v5098
    %v5286 = vadd.f32 %v4796, %v5101
    %v5287 = vadd.f32 %v4797, %v5103
    %v5288 = vadd.f32 %v4799, %v5106
    %v5289 = vadd.f32 %v4800, %v5108
    %v5290 = vadd.f32 %v4802, %v5111
    %v5291 = vadd.f32 %v4803, %v5113
    %v5292 = vadd.f32 %v4805, %v5116
    %v5293 = vadd.f32 %v4806, %v5118
    %v5294 = vadd.f32 %v4808, %v5121
    %v5295 = vadd.f32 %v4809, %v5123
    %v5296 = vadd.f32 %v4811, %v5126
    %v5297 = vadd.f32 %v4812, %v5128
    %v5298 = vadd.f32 %v4814, %v5131
    %v5299 = vadd.f32 %v4815, %v5133
    %v5300 = vadd.f32 %v4817, %v5136
    %v5301 = vadd.f32 %v4818, %v5138
    %v5302 = vadd.f32 %v4820, %v5141
    %v5303 = vadd.f32 %v4821, %v5143
    %vm5304 = vcmask 1043456
    %v5305 = vrot.slane %v4703, 4
    %v5306 = vrot.slane %v4704, 4
    %v5307 = vsel %vm5304, %v5305, %v5306
    %v5308 = vrot.slane %v4705, 4
    %v5309 = vsel %vm5304, %v5306, %v5308
    %v5310 = vrot.slane %v4706, 4
    %v5311 = vrot.slane %v4707, 4
    %v5312 = vsel %vm5304, %v5310, %v5311
    %v5313 = vrot.slane %v4708, 4
    %v5314 = vsel %vm5304, %v5311, %v5313
    %v5315 = vrot.slane %v4709, 4
    %v5316 = vrot.slane %v4710, 4
    %v5317 = vsel %vm5304, %v5315, %v5316
    %v5318 = vrot.slane %v4711, 4
    %v5319 = vsel %vm5304, %v5316, %v5318
    %v5320 = vrot.slane %v4712, 4
    %v5321 = vrot.slane %v4713, 4
    %v5322 = vsel %vm5304, %v5320, %v5321
    %v5323 = vrot.slane %v4714, 4
    %v5324 = vsel %vm5304, %v5321, %v5323
    %v5325 = vrot.slane %v4715, 4
    %v5326 = vrot.slane %v4716, 4
    %v5327 = vsel %vm5304, %v5325, %v5326
    %v5328 = vrot.slane %v4717, 4
    %v5329 = vsel %vm5304, %v5326, %v5328
    %v5330 = vrot.slane %v4718, 4
    %v5331 = vrot.slane %v4719, 4
    %v5332 = vsel %vm5304, %v5330, %v5331
    %v5333 = vrot.slane %v4720, 4
    %v5334 = vsel %vm5304, %v5331, %v5333
    %v5335 = vrot.slane %v4721, 4
    %v5336 = vrot.slane %v4722, 4
    %v5337 = vsel %vm5304, %v5335, %v5336
    %v5338 = vrot.slane %v4723, 4
    %v5339 = vsel %vm5304, %v5336, %v5338
    %v5340 = vrot.slane %v4724, 4
    %v5341 = vrot.slane %v4725, 4
    %v5342 = vsel %vm5304, %v5340, %v5341
    %v5343 = vrot.slane %v4726, 4
    %v5344 = vsel %vm5304, %v5341, %v5343
    %v5345 = vrot.slane %v4727, 4
    %v5346 = vrot.slane %v4728, 4
    %v5347 = vsel %vm5304, %v5345, %v5346
    %v5348 = vrot.slane %v4729, 4
    %v5349 = vsel %vm5304, %v5346, %v5348
    %v5350 = vrot.slane %v4730, 4
    %v5351 = vrot.slane %v4731, 4
    %v5352 = vsel %vm5304, %v5350, %v5351
    %v5353 = vrot.slane %v4732, 4
    %v5354 = vsel %vm5304, %v5351, %v5353
    %v5355 = vrot.slane %v4733, 4
    %v5356 = vrot.slane %v4734, 4
    %v5357 = vsel %vm5304, %v5355, %v5356
    %v5358 = vrot.slane %v4735, 4
    %v5359 = vsel %vm5304, %v5356, %v5358
    %v5360 = vrot.slane %v4736, 4
    %v5361 = vrot.slane %v4737, 4
    %v5362 = vsel %vm5304, %v5360, %v5361
    %v5363 = vrot.slane %v4738, 4
    %v5364 = vsel %vm5304, %v5361, %v5363
    %v5365 = vrot.slane %v4739, 4
    %v5366 = vrot.slane %v4740, 4
    %v5367 = vsel %vm5304, %v5365, %v5366
    %v5368 = vrot.slane %v4741, 4
    %v5369 = vsel %vm5304, %v5366, %v5368
    %v5370 = vrot.slane %v4742, 4
    %v5371 = vrot.slane %v4743, 4
    %v5372 = vsel %vm5304, %v5370, %v5371
    %v5373 = vrot.slane %v4744, 4
    %v5374 = vsel %vm5304, %v5371, %v5373
    %v5375 = vrot.slane %v4745, 4
    %v5376 = vrot.slane %v4746, 4
    %v5377 = vsel %vm5304, %v5375, %v5376
    %v5378 = vrot.slane %v4747, 4
    %v5379 = vsel %vm5304, %v5376, %v5378
    %v5380 = vrot.slane %v4748, 4
    %v5381 = vrot.slane %v4749, 4
    %v5382 = vsel %vm5304, %v5380, %v5381
    %v5383 = vrot.slane %v4750, 4
    %v5384 = vsel %vm5304, %v5381, %v5383
    %v5385 = vrot.slane %v4751, 4
    %v5386 = vrot.slane %v4752, 4
    %v5387 = vsel %vm5304, %v5385, %v5386
    %v5388 = vrot.slane %v4753, 4
    %v5389 = vsel %vm5304, %v5386, %v5388
    %v5390 = vrot.slane %v4754, 4
    %v5391 = vrot.slane %v4755, 4
    %v5392 = vsel %vm5304, %v5390, %v5391
    %v5393 = vrot.slane %v4756, 4
    %v5394 = vsel %vm5304, %v5391, %v5393
    %v5395 = vrot.slane %v4757, 4
    %v5396 = vrot.slane %v4758, 4
    %v5397 = vsel %vm5304, %v5395, %v5396
    %v5398 = vrot.slane %v4759, 4
    %v5399 = vsel %vm5304, %v5396, %v5398
    %v5400 = vrot.slane %v4760, 4
    %v5401 = vrot.slane %v4761, 4
    %v5402 = vsel %vm5304, %v5400, %v5401
    %v5403 = vrot.slane %v4762, 4
    %v5404 = vsel %vm5304, %v5401, %v5403
    %v5405 = vrot.slane %v4763, 4
    %v5406 = vrot.slane %v4764, 4
    %v5407 = vsel %vm5304, %v5405, %v5406
    %v5408 = vrot.slane %v4765, 4
    %v5409 = vsel %vm5304, %v5406, %v5408
    %v5410 = vrot.slane %v4766, 4
    %v5411 = vrot.slane %v4767, 4
    %v5412 = vsel %vm5304, %v5410, %v5411
    %v5413 = vrot.slane %v4768, 4
    %v5414 = vsel %vm5304, %v5411, %v5413
    %v5415 = vrot.slane %v4769, 4
    %v5416 = vrot.slane %v4770, 4
    %v5417 = vsel %vm5304, %v5415, %v5416
    %v5418 = vrot.slane %v4771, 4
    %v5419 = vsel %vm5304, %v5416, %v5418
    %v5420 = vrot.slane %v4772, 4
    %v5421 = vrot.slane %v4773, 4
    %v5422 = vsel %vm5304, %v5420, %v5421
    %v5423 = vrot.slane %v4774, 4
    %v5424 = vsel %vm5304, %v5421, %v5423
    %v5425 = vrot.slane %v4775, 4
    %v5426 = vrot.slane %v4776, 4
    %v5427 = vsel %vm5304, %v5425, %v5426
    %v5428 = vrot.slane %v4777, 4
    %v5429 = vsel %vm5304, %v5426, %v5428
    %v5430 = vrot.slane %v4778, 4
    %v5431 = vrot.slane %v4779, 4
    %v5432 = vsel %vm5304, %v5430, %v5431
    %v5433 = vrot.slane %v4780, 4
    %v5434 = vsel %vm5304, %v5431, %v5433
    %v5435 = vrot.slane %v4781, 4
    %v5436 = vrot.slane %v4782, 4
    %v5437 = vsel %vm5304, %v5435, %v5436
    %v5438 = vrot.slane %v4783, 4
    %v5439 = vsel %vm5304, %v5436, %v5438
    %v5440 = vrot.slane %v4784, 4
    %v5441 = vrot.slane %v4785, 4
    %v5442 = vsel %vm5304, %v5440, %v5441
    %v5443 = vrot.slane %v4786, 4
    %v5444 = vsel %vm5304, %v5441, %v5443
    %v5445 = vrot.slane %v4787, 4
    %v5446 = vrot.slane %v4788, 4
    %v5447 = vsel %vm5304, %v5445, %v5446
    %v5448 = vrot.slane %v4789, 4
    %v5449 = vsel %vm5304, %v5446, %v5448
    %v5450 = vrot.slane %v4790, 4
    %v5451 = vrot.slane %v4791, 4
    %v5452 = vsel %vm5304, %v5450, %v5451
    %v5453 = vrot.slane %v4792, 4
    %v5454 = vsel %vm5304, %v5451, %v5453
    %v5455 = vrot.slane %v4793, 4
    %v5456 = vrot.slane %v4794, 4
    %v5457 = vsel %vm5304, %v5455, %v5456
    %v5458 = vrot.slane %v4795, 4
    %v5459 = vsel %vm5304, %v5456, %v5458
    %v5460 = vrot.slane %v4796, 4
    %v5461 = vrot.slane %v4797, 4
    %v5462 = vsel %vm5304, %v5460, %v5461
    %v5463 = vrot.slane %v4798, 4
    %v5464 = vsel %vm5304, %v5461, %v5463
    %v5465 = vrot.slane %v4799, 4
    %v5466 = vrot.slane %v4800, 4
    %v5467 = vsel %vm5304, %v5465, %v5466
    %v5468 = vrot.slane %v4801, 4
    %v5469 = vsel %vm5304, %v5466, %v5468
    %v5470 = vrot.slane %v4802, 4
    %v5471 = vrot.slane %v4803, 4
    %v5472 = vsel %vm5304, %v5470, %v5471
    %v5473 = vrot.slane %v4804, 4
    %v5474 = vsel %vm5304, %v5471, %v5473
    %v5475 = vrot.slane %v4805, 4
    %v5476 = vrot.slane %v4806, 4
    %v5477 = vsel %vm5304, %v5475, %v5476
    %v5478 = vrot.slane %v4807, 4
    %v5479 = vsel %vm5304, %v5476, %v5478
    %v5480 = vrot.slane %v4808, 4
    %v5481 = vrot.slane %v4809, 4
    %v5482 = vsel %vm5304, %v5480, %v5481
    %v5483 = vrot.slane %v4810, 4
    %v5484 = vsel %vm5304, %v5481, %v5483
    %v5485 = vrot.slane %v4811, 4
    %v5486 = vrot.slane %v4812, 4
    %v5487 = vsel %vm5304, %v5485, %v5486
    %v5488 = vrot.slane %v4813, 4
    %v5489 = vsel %vm5304, %v5486, %v5488
    %v5490 = vrot.slane %v4814, 4
    %v5491 = vrot.slane %v4815, 4
    %v5492 = vsel %vm5304, %v5490, %v5491
    %v5493 = vrot.slane %v4816, 4
    %v5494 = vsel %vm5304, %v5491, %v5493
    %v5495 = vrot.slane %v4817, 4
    %v5496 = vrot.slane %v4818, 4
    %v5497 = vsel %vm5304, %v5495, %v5496
    %v5498 = vrot.slane %v4819, 4
    %v5499 = vsel %vm5304, %v5496, %v5498
    %v5500 = vrot.slane %v4820, 4
    %v5501 = vrot.slane %v4821, 4
    %v5502 = vsel %vm5304, %v5500, %v5501
    %v5503 = vrot.slane %v4822, 4
    %v5504 = vsel %vm5304, %v5501, %v5503
    %v5585 = vadd.f32 %v5224, %v5307
    %v5586 = vadd.f32 %v5225, %v5309
    %v5587 = vadd.f32 %v5226, %v5312
    %v5588 = vadd.f32 %v5227, %v5314
    %v5589 = vadd.f32 %v5228, %v5317
    %v5590 = vadd.f32 %v5229, %v5319
    %v5591 = vadd.f32 %v5230, %v5322
    %v5592 = vadd.f32 %v5231, %v5324
    %v5593 = vadd.f32 %v5232, %v5327
    %v5594 = vadd.f32 %v5233, %v5329
    %v5595 = vadd.f32 %v5234, %v5332
    %v5596 = vadd.f32 %v5235, %v5334
    %v5597 = vadd.f32 %v5236, %v5337
    %v5598 = vadd.f32 %v5237, %v5339
    %v5599 = vadd.f32 %v5238, %v5342
    %v5600 = vadd.f32 %v5239, %v5344
    %v5601 = vadd.f32 %v5240, %v5347
    %v5602 = vadd.f32 %v5241, %v5349
    %v5603 = vadd.f32 %v5242, %v5352
    %v5604 = vadd.f32 %v5243, %v5354
    %v5605 = vadd.f32 %v5244, %v5357
    %v5606 = vadd.f32 %v5245, %v5359
    %v5607 = vadd.f32 %v5246, %v5362
    %v5608 = vadd.f32 %v5247, %v5364
    %v5609 = vadd.f32 %v5248, %v5367
    %v5610 = vadd.f32 %v5249, %v5369
    %v5611 = vadd.f32 %v5250, %v5372
    %v5612 = vadd.f32 %v5251, %v5374
    %v5613 = vadd.f32 %v5252, %v5377
    %v5614 = vadd.f32 %v5253, %v5379
    %v5615 = vadd.f32 %v5254, %v5382
    %v5616 = vadd.f32 %v5255, %v5384
    %v5617 = vadd.f32 %v5256, %v5387
    %v5618 = vadd.f32 %v5257, %v5389
    %v5619 = vadd.f32 %v5258, %v5392
    %v5620 = vadd.f32 %v5259, %v5394
    %v5621 = vadd.f32 %v5260, %v5397
    %v5622 = vadd.f32 %v5261, %v5399
    %v5623 = vadd.f32 %v5262, %v5402
    %v5624 = vadd.f32 %v5263, %v5404
    %v5625 = vadd.f32 %v5264, %v5407
    %v5626 = vadd.f32 %v5265, %v5409
    %v5627 = vadd.f32 %v5266, %v5412
    %v5628 = vadd.f32 %v5267, %v5414
    %v5629 = vadd.f32 %v5268, %v5417
    %v5630 = vadd.f32 %v5269, %v5419
    %v5631 = vadd.f32 %v5270, %v5422
    %v5632 = vadd.f32 %v5271, %v5424
    %v5633 = vadd.f32 %v5272, %v5427
    %v5634 = vadd.f32 %v5273, %v5429
    %v5635 = vadd.f32 %v5274, %v5432
    %v5636 = vadd.f32 %v5275, %v5434
    %v5637 = vadd.f32 %v5276, %v5437
    %v5638 = vadd.f32 %v5277, %v5439
    %v5639 = vadd.f32 %v5278, %v5442
    %v5640 = vadd.f32 %v5279, %v5444
    %v5641 = vadd.f32 %v5280, %v5447
    %v5642 = vadd.f32 %v5281, %v5449
    %v5643 = vadd.f32 %v5282, %v5452
    %v5644 = vadd.f32 %v5283, %v5454
    %v5645 = vadd.f32 %v5284, %v5457
    %v5646 = vadd.f32 %v5285, %v5459
    %v5647 = vadd.f32 %v5286, %v5462
    %v5648 = vadd.f32 %v5287, %v5464
    %v5649 = vadd.f32 %v5288, %v5467
    %v5650 = vadd.f32 %v5289, %v5469
    %v5651 = vadd.f32 %v5290, %v5472
    %v5652 = vadd.f32 %v5291, %v5474
    %v5653 = vadd.f32 %v5292, %v5477
    %v5654 = vadd.f32 %v5293, %v5479
    %v5655 = vadd.f32 %v5294, %v5482
    %v5656 = vadd.f32 %v5295, %v5484
    %v5657 = vadd.f32 %v5296, %v5487
    %v5658 = vadd.f32 %v5297, %v5489
    %v5659 = vadd.f32 %v5298, %v5492
    %v5660 = vadd.f32 %v5299, %v5494
    %v5661 = vadd.f32 %v5300, %v5497
    %v5662 = vadd.f32 %v5301, %v5499
    %v5663 = vadd.f32 %v5302, %v5502
    %v5664 = vadd.f32 %v5303, %v5504
    %vm5665 = vcmask 1041408
    %v5666 = vrot.slane %v4142, 6
    %v5667 = vrot.slane %v4143, 6
    %v5668 = vsel %vm5665, %v5666, %v5667
    %v5669 = vrot.slane %v4144, 6
    %v5670 = vsel %vm5665, %v5667, %v5669
    %v5671 = vrot.slane %v4145, 6
    %v5672 = vrot.slane %v4146, 6
    %v5673 = vsel %vm5665, %v5671, %v5672
    %v5674 = vrot.slane %v4147, 6
    %v5675 = vsel %vm5665, %v5672, %v5674
    %v5676 = vrot.slane %v4148, 6
    %v5677 = vrot.slane %v4149, 6
    %v5678 = vsel %vm5665, %v5676, %v5677
    %v5679 = vrot.slane %v4150, 6
    %v5680 = vsel %vm5665, %v5677, %v5679
    %v5681 = vrot.slane %v4151, 6
    %v5682 = vrot.slane %v4152, 6
    %v5683 = vsel %vm5665, %v5681, %v5682
    %v5684 = vrot.slane %v4153, 6
    %v5685 = vsel %vm5665, %v5682, %v5684
    %v5686 = vrot.slane %v4154, 6
    %v5687 = vrot.slane %v4155, 6
    %v5688 = vsel %vm5665, %v5686, %v5687
    %v5689 = vrot.slane %v4156, 6
    %v5690 = vsel %vm5665, %v5687, %v5689
    %v5691 = vrot.slane %v4157, 6
    %v5692 = vrot.slane %v4158, 6
    %v5693 = vsel %vm5665, %v5691, %v5692
    %v5694 = vrot.slane %v4159, 6
    %v5695 = vsel %vm5665, %v5692, %v5694
    %v5696 = vrot.slane %v4160, 6
    %v5697 = vrot.slane %v4161, 6
    %v5698 = vsel %vm5665, %v5696, %v5697
    %v5699 = vrot.slane %v4162, 6
    %v5700 = vsel %vm5665, %v5697, %v5699
    %v5701 = vrot.slane %v4163, 6
    %v5702 = vrot.slane %v4164, 6
    %v5703 = vsel %vm5665, %v5701, %v5702
    %v5704 = vrot.slane %v4165, 6
    %v5705 = vsel %vm5665, %v5702, %v5704
    %v5706 = vrot.slane %v4166, 6
    %v5707 = vrot.slane %v4167, 6
    %v5708 = vsel %vm5665, %v5706, %v5707
    %v5709 = vrot.slane %v4168, 6
    %v5710 = vsel %vm5665, %v5707, %v5709
    %v5711 = vrot.slane %v4169, 6
    %v5712 = vrot.slane %v4170, 6
    %v5713 = vsel %vm5665, %v5711, %v5712
    %v5714 = vrot.slane %v4171, 6
    %v5715 = vsel %vm5665, %v5712, %v5714
    %v5716 = vrot.slane %v4172, 6
    %v5717 = vrot.slane %v4173, 6
    %v5718 = vsel %vm5665, %v5716, %v5717
    %v5719 = vrot.slane %v4174, 6
    %v5720 = vsel %vm5665, %v5717, %v5719
    %v5721 = vrot.slane %v4175, 6
    %v5722 = vrot.slane %v4176, 6
    %v5723 = vsel %vm5665, %v5721, %v5722
    %v5724 = vrot.slane %v4177, 6
    %v5725 = vsel %vm5665, %v5722, %v5724
    %v5726 = vrot.slane %v4178, 6
    %v5727 = vrot.slane %v4179, 6
    %v5728 = vsel %vm5665, %v5726, %v5727
    %v5729 = vrot.slane %v4180, 6
    %v5730 = vsel %vm5665, %v5727, %v5729
    %v5731 = vrot.slane %v4181, 6
    %v5732 = vrot.slane %v4182, 6
    %v5733 = vsel %vm5665, %v5731, %v5732
    %v5734 = vrot.slane %v4183, 6
    %v5735 = vsel %vm5665, %v5732, %v5734
    %v5736 = vrot.slane %v4184, 6
    %v5737 = vrot.slane %v4185, 6
    %v5738 = vsel %vm5665, %v5736, %v5737
    %v5739 = vrot.slane %v4186, 6
    %v5740 = vsel %vm5665, %v5737, %v5739
    %v5741 = vrot.slane %v4187, 6
    %v5742 = vrot.slane %v4188, 6
    %v5743 = vsel %vm5665, %v5741, %v5742
    %v5744 = vrot.slane %v4189, 6
    %v5745 = vsel %vm5665, %v5742, %v5744
    %v5746 = vrot.slane %v4190, 6
    %v5747 = vrot.slane %v4191, 6
    %v5748 = vsel %vm5665, %v5746, %v5747
    %v5749 = vrot.slane %v4192, 6
    %v5750 = vsel %vm5665, %v5747, %v5749
    %v5751 = vrot.slane %v4193, 6
    %v5752 = vrot.slane %v4194, 6
    %v5753 = vsel %vm5665, %v5751, %v5752
    %v5754 = vrot.slane %v4195, 6
    %v5755 = vsel %vm5665, %v5752, %v5754
    %v5756 = vrot.slane %v4196, 6
    %v5757 = vrot.slane %v4197, 6
    %v5758 = vsel %vm5665, %v5756, %v5757
    %v5759 = vrot.slane %v4198, 6
    %v5760 = vsel %vm5665, %v5757, %v5759
    %v5761 = vrot.slane %v4199, 6
    %v5762 = vrot.slane %v4200, 6
    %v5763 = vsel %vm5665, %v5761, %v5762
    %v5764 = vrot.slane %v4201, 6
    %v5765 = vsel %vm5665, %v5762, %v5764
    %v5766 = vrot.slane %v4202, 6
    %v5767 = vrot.slane %v4203, 6
    %v5768 = vsel %vm5665, %v5766, %v5767
    %v5769 = vrot.slane %v4204, 6
    %v5770 = vsel %vm5665, %v5767, %v5769
    %v5771 = vrot.slane %v4205, 6
    %v5772 = vrot.slane %v4206, 6
    %v5773 = vsel %vm5665, %v5771, %v5772
    %v5774 = vrot.slane %v4207, 6
    %v5775 = vsel %vm5665, %v5772, %v5774
    %v5776 = vrot.slane %v4208, 6
    %v5777 = vrot.slane %v4209, 6
    %v5778 = vsel %vm5665, %v5776, %v5777
    %v5779 = vrot.slane %v4210, 6
    %v5780 = vsel %vm5665, %v5777, %v5779
    %v5781 = vrot.slane %v4211, 6
    %v5782 = vrot.slane %v4212, 6
    %v5783 = vsel %vm5665, %v5781, %v5782
    %v5784 = vrot.slane %v4213, 6
    %v5785 = vsel %vm5665, %v5782, %v5784
    %v5786 = vrot.slane %v4214, 6
    %v5787 = vrot.slane %v4215, 6
    %v5788 = vsel %vm5665, %v5786, %v5787
    %v5789 = vrot.slane %v4216, 6
    %v5790 = vsel %vm5665, %v5787, %v5789
    %v5791 = vrot.slane %v4217, 6
    %v5792 = vrot.slane %v4218, 6
    %v5793 = vsel %vm5665, %v5791, %v5792
    %v5794 = vrot.slane %v4219, 6
    %v5795 = vsel %vm5665, %v5792, %v5794
    %v5796 = vrot.slane %v4220, 6
    %v5797 = vrot.slane %v4221, 6
    %v5798 = vsel %vm5665, %v5796, %v5797
    %v5799 = vrot.slane %v4222, 6
    %v5800 = vsel %vm5665, %v5797, %v5799
    %v5801 = vrot.slane %v4223, 6
    %v5802 = vrot.slane %v4224, 6
    %v5803 = vsel %vm5665, %v5801, %v5802
    %v5804 = vrot.slane %v4225, 6
    %v5805 = vsel %vm5665, %v5802, %v5804
    %v5806 = vrot.slane %v4226, 6
    %v5807 = vrot.slane %v4227, 6
    %v5808 = vsel %vm5665, %v5806, %v5807
    %v5809 = vrot.slane %v4228, 6
    %v5810 = vsel %vm5665, %v5807, %v5809
    %v5811 = vrot.slane %v4229, 6
    %v5812 = vrot.slane %v4230, 6
    %v5813 = vsel %vm5665, %v5811, %v5812
    %v5814 = vrot.slane %v4231, 6
    %v5815 = vsel %vm5665, %v5812, %v5814
    %v5816 = vrot.slane %v4232, 6
    %v5817 = vrot.slane %v4233, 6
    %v5818 = vsel %vm5665, %v5816, %v5817
    %v5819 = vrot.slane %v4234, 6
    %v5820 = vsel %vm5665, %v5817, %v5819
    %v5821 = vrot.slane %v4235, 6
    %v5822 = vrot.slane %v4236, 6
    %v5823 = vsel %vm5665, %v5821, %v5822
    %v5824 = vrot.slane %v4237, 6
    %v5825 = vsel %vm5665, %v5822, %v5824
    %v5826 = vrot.slane %v4238, 6
    %v5827 = vrot.slane %v4239, 6
    %v5828 = vsel %vm5665, %v5826, %v5827
    %v5829 = vrot.slane %v4240, 6
    %v5830 = vsel %vm5665, %v5827, %v5829
    %v5831 = vrot.slane %v4241, 6
    %v5832 = vrot.slane %v4242, 6
    %v5833 = vsel %vm5665, %v5831, %v5832
    %v5834 = vrot.slane %v4243, 6
    %v5835 = vsel %vm5665, %v5832, %v5834
    %v5836 = vrot.slane %v4244, 6
    %v5837 = vrot.slane %v4245, 6
    %v5838 = vsel %vm5665, %v5836, %v5837
    %v5839 = vrot.slane %v4246, 6
    %v5840 = vsel %vm5665, %v5837, %v5839
    %v5841 = vrot.slane %v4247, 6
    %v5842 = vrot.slane %v4248, 6
    %v5843 = vsel %vm5665, %v5841, %v5842
    %v5844 = vrot.slane %v4249, 6
    %v5845 = vsel %vm5665, %v5842, %v5844
    %v5846 = vrot.slane %v4250, 6
    %v5847 = vrot.slane %v4251, 6
    %v5848 = vsel %vm5665, %v5846, %v5847
    %v5849 = vrot.slane %v4252, 6
    %v5850 = vsel %vm5665, %v5847, %v5849
    %v5851 = vrot.slane %v4253, 6
    %v5852 = vrot.slane %v4254, 6
    %v5853 = vsel %vm5665, %v5851, %v5852
    %v5854 = vrot.slane %v4255, 6
    %v5855 = vsel %vm5665, %v5852, %v5854
    %v5856 = vrot.slane %v4256, 6
    %v5857 = vrot.slane %v4257, 6
    %v5858 = vsel %vm5665, %v5856, %v5857
    %v5859 = vrot.slane %v4258, 6
    %v5860 = vsel %vm5665, %v5857, %v5859
    %v5861 = vrot.slane %v4259, 6
    %v5862 = vrot.slane %v4260, 6
    %v5863 = vsel %vm5665, %v5861, %v5862
    %v5864 = vrot.slane %v4261, 6
    %v5865 = vsel %vm5665, %v5862, %v5864
    %v5946 = vadd.f32 %v5585, %v5668
    %v5947 = vadd.f32 %v5586, %v5670
    %v5948 = vadd.f32 %v5587, %v5673
    %v5949 = vadd.f32 %v5588, %v5675
    %v5950 = vadd.f32 %v5589, %v5678
    %v5951 = vadd.f32 %v5590, %v5680
    %v5952 = vadd.f32 %v5591, %v5683
    %v5953 = vadd.f32 %v5592, %v5685
    %v5954 = vadd.f32 %v5593, %v5688
    %v5955 = vadd.f32 %v5594, %v5690
    %v5956 = vadd.f32 %v5595, %v5693
    %v5957 = vadd.f32 %v5596, %v5695
    %v5958 = vadd.f32 %v5597, %v5698
    %v5959 = vadd.f32 %v5598, %v5700
    %v5960 = vadd.f32 %v5599, %v5703
    %v5961 = vadd.f32 %v5600, %v5705
    %v5962 = vadd.f32 %v5601, %v5708
    %v5963 = vadd.f32 %v5602, %v5710
    %v5964 = vadd.f32 %v5603, %v5713
    %v5965 = vadd.f32 %v5604, %v5715
    %v5966 = vadd.f32 %v5605, %v5718
    %v5967 = vadd.f32 %v5606, %v5720
    %v5968 = vadd.f32 %v5607, %v5723
    %v5969 = vadd.f32 %v5608, %v5725
    %v5970 = vadd.f32 %v5609, %v5728
    %v5971 = vadd.f32 %v5610, %v5730
    %v5972 = vadd.f32 %v5611, %v5733
    %v5973 = vadd.f32 %v5612, %v5735
    %v5974 = vadd.f32 %v5613, %v5738
    %v5975 = vadd.f32 %v5614, %v5740
    %v5976 = vadd.f32 %v5615, %v5743
    %v5977 = vadd.f32 %v5616, %v5745
    %v5978 = vadd.f32 %v5617, %v5748
    %v5979 = vadd.f32 %v5618, %v5750
    %v5980 = vadd.f32 %v5619, %v5753
    %v5981 = vadd.f32 %v5620, %v5755
    %v5982 = vadd.f32 %v5621, %v5758
    %v5983 = vadd.f32 %v5622, %v5760
    %v5984 = vadd.f32 %v5623, %v5763
    %v5985 = vadd.f32 %v5624, %v5765
    %v5986 = vadd.f32 %v5625, %v5768
    %v5987 = vadd.f32 %v5626, %v5770
    %v5988 = vadd.f32 %v5627, %v5773
    %v5989 = vadd.f32 %v5628, %v5775
    %v5990 = vadd.f32 %v5629, %v5778
    %v5991 = vadd.f32 %v5630, %v5780
    %v5992 = vadd.f32 %v5631, %v5783
    %v5993 = vadd.f32 %v5632, %v5785
    %v5994 = vadd.f32 %v5633, %v5788
    %v5995 = vadd.f32 %v5634, %v5790
    %v5996 = vadd.f32 %v5635, %v5793
    %v5997 = vadd.f32 %v5636, %v5795
    %v5998 = vadd.f32 %v5637, %v5798
    %v5999 = vadd.f32 %v5638, %v5800
    %v6000 = vadd.f32 %v5639, %v5803
    %v6001 = vadd.f32 %v5640, %v5805
    %v6002 = vadd.f32 %v5641, %v5808
    %v6003 = vadd.f32 %v5642, %v5810
    %v6004 = vadd.f32 %v5643, %v5813
    %v6005 = vadd.f32 %v5644, %v5815
    %v6006 = vadd.f32 %v5645, %v5818
    %v6007 = vadd.f32 %v5646, %v5820
    %v6008 = vadd.f32 %v5647, %v5823
    %v6009 = vadd.f32 %v5648, %v5825
    %v6010 = vadd.f32 %v5649, %v5828
    %v6011 = vadd.f32 %v5650, %v5830
    %v6012 = vadd.f32 %v5651, %v5833
    %v6013 = vadd.f32 %v5652, %v5835
    %v6014 = vadd.f32 %v5653, %v5838
    %v6015 = vadd.f32 %v5654, %v5840
    %v6016 = vadd.f32 %v5655, %v5843
    %v6017 = vadd.f32 %v5656, %v5845
    %v6018 = vadd.f32 %v5657, %v5848
    %v6019 = vadd.f32 %v5658, %v5850
    %v6020 = vadd.f32 %v5659, %v5853
    %v6021 = vadd.f32 %v5660, %v5855
    %v6022 = vadd.f32 %v5661, %v5858
    %v6023 = vadd.f32 %v5662, %v5860
    %v6024 = vadd.f32 %v5663, %v5863
    %v6025 = vadd.f32 %v5664, %v5865
    %6106 = vrot.lane.b32.xlu0 %v5946, 127
    %v6107 = vpop.permute.xlu0 %6106
    %6108 = vrot.lane.b32.xlu0 %v5947, 127
    %v6109 = vpop.permute.xlu0 %6108
    %6110 = vrot.lane.b32.xlu0 %v5948, 127
    %v6111 = vpop.permute.xlu0 %6110
    %6112 = vrot.lane.b32.xlu0 %v5949, 127
    %v6113 = vpop.permute.xlu0 %6112
    %6114 = vrot.lane.b32.xlu0 %v5950, 127
    %v6115 = vpop.permute.xlu0 %6114
    %6116 = vrot.lane.b32.xlu0 %v5951, 127
    %v6117 = vpop.permute.xlu0 %6116
    %6118 = vrot.lane.b32.xlu0 %v5952, 127
    %v6119 = vpop.permute.xlu0 %6118
    %6120 = vrot.lane.b32.xlu0 %v5953, 127
    %v6121 = vpop.permute.xlu0 %6120
    %6122 = vrot.lane.b32.xlu0 %v5954, 127
    %v6123 = vpop.permute.xlu0 %6122
    %6124 = vrot.lane.b32.xlu0 %v5955, 127
    %v6125 = vpop.permute.xlu0 %6124
    %6126 = vrot.lane.b32.xlu0 %v5956, 127
    %v6127 = vpop.permute.xlu0 %6126
    %6128 = vrot.lane.b32.xlu0 %v5957, 127
    %v6129 = vpop.permute.xlu0 %6128
    %6130 = vrot.lane.b32.xlu0 %v5958, 127
    %v6131 = vpop.permute.xlu0 %6130
    %6132 = vrot.lane.b32.xlu0 %v5959, 127
    %v6133 = vpop.permute.xlu0 %6132
    %6134 = vrot.lane.b32.xlu0 %v5960, 127
    %v6135 = vpop.permute.xlu0 %6134
    %6136 = vrot.lane.b32.xlu0 %v5961, 127
    %v6137 = vpop.permute.xlu0 %6136
    %6138 = vrot.lane.b32.xlu0 %v5962, 127
    %v6139 = vpop.permute.xlu0 %6138
    %6140 = vrot.lane.b32.xlu0 %v5963, 127
    %v6141 = vpop.permute.xlu0 %6140
    %6142 = vrot.lane.b32.xlu0 %v5964, 127
    %v6143 = vpop.permute.xlu0 %6142
    %6144 = vrot.lane.b32.xlu0 %v5965, 127
    %v6145 = vpop.permute.xlu0 %6144
    %6146 = vrot.lane.b32.xlu0 %v5966, 127
    %v6147 = vpop.permute.xlu0 %6146
    %6148 = vrot.lane.b32.xlu0 %v5967, 127
    %v6149 = vpop.permute.xlu0 %6148
    %6150 = vrot.lane.b32.xlu0 %v5968, 127
    %v6151 = vpop.permute.xlu0 %6150
    %6152 = vrot.lane.b32.xlu0 %v5969, 127
    %v6153 = vpop.permute.xlu0 %6152
    %6154 = vrot.lane.b32.xlu0 %v5970, 127
    %v6155 = vpop.permute.xlu0 %6154
    %6156 = vrot.lane.b32.xlu0 %v5971, 127
    %v6157 = vpop.permute.xlu0 %6156
    %6158 = vrot.lane.b32.xlu0 %v5972, 127
    %v6159 = vpop.permute.xlu0 %6158
    %6160 = vrot.lane.b32.xlu0 %v5973, 127
    %v6161 = vpop.permute.xlu0 %6160
    %6162 = vrot.lane.b32.xlu0 %v5974, 127
    %v6163 = vpop.permute.xlu0 %6162
    %6164 = vrot.lane.b32.xlu0 %v5975, 127
    %v6165 = vpop.permute.xlu0 %6164
    %6166 = vrot.lane.b32.xlu0 %v5976, 127
    %v6167 = vpop.permute.xlu0 %6166
    %6168 = vrot.lane.b32.xlu0 %v5977, 127
    %v6169 = vpop.permute.xlu0 %6168
    %6170 = vrot.lane.b32.xlu0 %v5978, 127
    %v6171 = vpop.permute.xlu0 %6170
    %6172 = vrot.lane.b32.xlu0 %v5979, 127
    %v6173 = vpop.permute.xlu0 %6172
    %6174 = vrot.lane.b32.xlu0 %v5980, 127
    %v6175 = vpop.permute.xlu0 %6174
    %6176 = vrot.lane.b32.xlu0 %v5981, 127
    %v6177 = vpop.permute.xlu0 %6176
    %6178 = vrot.lane.b32.xlu0 %v5982, 127
    %v6179 = vpop.permute.xlu0 %6178
    %6180 = vrot.lane.b32.xlu0 %v5983, 127
    %v6181 = vpop.permute.xlu0 %6180
    %6182 = vrot.lane.b32.xlu0 %v5984, 127
    %v6183 = vpop.permute.xlu0 %6182
    %6184 = vrot.lane.b32.xlu0 %v5985, 127
    %v6185 = vpop.permute.xlu0 %6184
    %6186 = vrot.lane.b32.xlu0 %v5986, 127
    %v6187 = vpop.permute.xlu0 %6186
    %6188 = vrot.lane.b32.xlu0 %v5987, 127
    %v6189 = vpop.permute.xlu0 %6188
    %6190 = vrot.lane.b32.xlu0 %v5988, 127
    %v6191 = vpop.permute.xlu0 %6190
    %6192 = vrot.lane.b32.xlu0 %v5989, 127
    %v6193 = vpop.permute.xlu0 %6192
    %6194 = vrot.lane.b32.xlu0 %v5990, 127
    %v6195 = vpop.permute.xlu0 %6194
    %6196 = vrot.lane.b32.xlu0 %v5991, 127
    %v6197 = vpop.permute.xlu0 %6196
    %6198 = vrot.lane.b32.xlu0 %v5992, 127
    %v6199 = vpop.permute.xlu0 %6198
    %6200 = vrot.lane.b32.xlu0 %v5993, 127
    %v6201 = vpop.permute.xlu0 %6200
    %6202 = vrot.lane.b32.xlu0 %v5994, 127
    %v6203 = vpop.permute.xlu0 %6202
    %6204 = vrot.lane.b32.xlu0 %v5995, 127
    %v6205 = vpop.permute.xlu0 %6204
    %6206 = vrot.lane.b32.xlu0 %v5996, 127
    %v6207 = vpop.permute.xlu0 %6206
    %6208 = vrot.lane.b32.xlu0 %v5997, 127
    %v6209 = vpop.permute.xlu0 %6208
    %6210 = vrot.lane.b32.xlu0 %v5998, 127
    %v6211 = vpop.permute.xlu0 %6210
    %6212 = vrot.lane.b32.xlu0 %v5999, 127
    %v6213 = vpop.permute.xlu0 %6212
    %6214 = vrot.lane.b32.xlu0 %v6000, 127
    %v6215 = vpop.permute.xlu0 %6214
    %6216 = vrot.lane.b32.xlu0 %v6001, 127
    %v6217 = vpop.permute.xlu0 %6216
    %6218 = vrot.lane.b32.xlu0 %v6002, 127
    %v6219 = vpop.permute.xlu0 %6218
    %6220 = vrot.lane.b32.xlu0 %v6003, 127
    %v6221 = vpop.permute.xlu0 %6220
    %6222 = vrot.lane.b32.xlu0 %v6004, 127
    %v6223 = vpop.permute.xlu0 %6222
    %6224 = vrot.lane.b32.xlu0 %v6005, 127
    %v6225 = vpop.permute.xlu0 %6224
    %6226 = vrot.lane.b32.xlu0 %v6006, 127
    %v6227 = vpop.permute.xlu0 %6226
    %6228 = vrot.lane.b32.xlu0 %v6007, 127
    %v6229 = vpop.permute.xlu0 %6228
    %6230 = vrot.lane.b32.xlu0 %v6008, 127
    %v6231 = vpop.permute.xlu0 %6230
    %6232 = vrot.lane.b32.xlu0 %v6009, 127
    %v6233 = vpop.permute.xlu0 %6232
    %6234 = vrot.lane.b32.xlu0 %v6010, 127
    %v6235 = vpop.permute.xlu0 %6234
    %6236 = vrot.lane.b32.xlu0 %v6011, 127
    %v6237 = vpop.permute.xlu0 %6236
    %6238 = vrot.lane.b32.xlu0 %v6012, 127
    %v6239 = vpop.permute.xlu0 %6238
    %6240 = vrot.lane.b32.xlu0 %v6013, 127
    %v6241 = vpop.permute.xlu0 %6240
    %6242 = vrot.lane.b32.xlu0 %v6014, 127
    %v6243 = vpop.permute.xlu0 %6242
    %6244 = vrot.lane.b32.xlu0 %v6015, 127
    %v6245 = vpop.permute.xlu0 %6244
    %6246 = vrot.lane.b32.xlu0 %v6016, 127
    %v6247 = vpop.permute.xlu0 %6246
    %6248 = vrot.lane.b32.xlu0 %v6017, 127
    %v6249 = vpop.permute.xlu0 %6248
    %6250 = vrot.lane.b32.xlu0 %v6018, 127
    %v6251 = vpop.permute.xlu0 %6250
    %6252 = vrot.lane.b32.xlu0 %v6019, 127
    %v6253 = vpop.permute.xlu0 %6252
    %6254 = vrot.lane.b32.xlu0 %v6020, 127
    %v6255 = vpop.permute.xlu0 %6254
    %6256 = vrot.lane.b32.xlu0 %v6021, 127
    %v6257 = vpop.permute.xlu0 %6256
    %6258 = vrot.lane.b32.xlu0 %v6022, 127
    %v6259 = vpop.permute.xlu0 %6258
    %6260 = vrot.lane.b32.xlu0 %v6023, 127
    %v6261 = vpop.permute.xlu0 %6260
    %6262 = vrot.lane.b32.xlu0 %v6024, 127
    %v6263 = vpop.permute.xlu0 %6262
    %6264 = vrot.lane.b32.xlu0 %v6025, 127
    %v6265 = vpop.permute.xlu0 %6264
    %v6346 = vadd.f32 %v5946, %v6107
    %v6347 = vadd.f32 %v5947, %v6109
    %v6348 = vadd.f32 %v5948, %v6111
    %v6349 = vadd.f32 %v5949, %v6113
    %v6350 = vadd.f32 %v5950, %v6115
    %v6351 = vadd.f32 %v5951, %v6117
    %v6352 = vadd.f32 %v5952, %v6119
    %v6353 = vadd.f32 %v5953, %v6121
    %v6354 = vadd.f32 %v5954, %v6123
    %v6355 = vadd.f32 %v5955, %v6125
    %v6356 = vadd.f32 %v5956, %v6127
    %v6357 = vadd.f32 %v5957, %v6129
    %v6358 = vadd.f32 %v5958, %v6131
    %v6359 = vadd.f32 %v5959, %v6133
    %v6360 = vadd.f32 %v5960, %v6135
    %v6361 = vadd.f32 %v5961, %v6137
    %v6362 = vadd.f32 %v5962, %v6139
    %v6363 = vadd.f32 %v5963, %v6141
    %v6364 = vadd.f32 %v5964, %v6143
    %v6365 = vadd.f32 %v5965, %v6145
    %v6366 = vadd.f32 %v5966, %v6147
    %v6367 = vadd.f32 %v5967, %v6149
    %v6368 = vadd.f32 %v5968, %v6151
    %v6369 = vadd.f32 %v5969, %v6153
    %v6370 = vadd.f32 %v5970, %v6155
    %v6371 = vadd.f32 %v5971, %v6157
    %v6372 = vadd.f32 %v5972, %v6159
    %v6373 = vadd.f32 %v5973, %v6161
    %v6374 = vadd.f32 %v5974, %v6163
    %v6375 = vadd.f32 %v5975, %v6165
    %v6376 = vadd.f32 %v5976, %v6167
    %v6377 = vadd.f32 %v5977, %v6169
    %v6378 = vadd.f32 %v5978, %v6171
    %v6379 = vadd.f32 %v5979, %v6173
    %v6380 = vadd.f32 %v5980, %v6175
    %v6381 = vadd.f32 %v5981, %v6177
    %v6382 = vadd.f32 %v5982, %v6179
    %v6383 = vadd.f32 %v5983, %v6181
    %v6384 = vadd.f32 %v5984, %v6183
    %v6385 = vadd.f32 %v5985, %v6185
    %v6386 = vadd.f32 %v5986, %v6187
    %v6387 = vadd.f32 %v5987, %v6189
    %v6388 = vadd.f32 %v5988, %v6191
    %v6389 = vadd.f32 %v5989, %v6193
    %v6390 = vadd.f32 %v5990, %v6195
    %v6391 = vadd.f32 %v5991, %v6197
    %v6392 = vadd.f32 %v5992, %v6199
    %v6393 = vadd.f32 %v5993, %v6201
    %v6394 = vadd.f32 %v5994, %v6203
    %v6395 = vadd.f32 %v5995, %v6205
    %v6396 = vadd.f32 %v5996, %v6207
    %v6397 = vadd.f32 %v5997, %v6209
    %v6398 = vadd.f32 %v5998, %v6211
    %v6399 = vadd.f32 %v5999, %v6213
    %v6400 = vadd.f32 %v6000, %v6215
    %v6401 = vadd.f32 %v6001, %v6217
    %v6402 = vadd.f32 %v6002, %v6219
    %v6403 = vadd.f32 %v6003, %v6221
    %v6404 = vadd.f32 %v6004, %v6223
    %v6405 = vadd.f32 %v6005, %v6225
    %v6406 = vadd.f32 %v6006, %v6227
    %v6407 = vadd.f32 %v6007, %v6229
    %v6408 = vadd.f32 %v6008, %v6231
    %v6409 = vadd.f32 %v6009, %v6233
    %v6410 = vadd.f32 %v6010, %v6235
    %v6411 = vadd.f32 %v6011, %v6237
    %v6412 = vadd.f32 %v6012, %v6239
    %v6413 = vadd.f32 %v6013, %v6241
    %v6414 = vadd.f32 %v6014, %v6243
    %v6415 = vadd.f32 %v6015, %v6245
    %v6416 = vadd.f32 %v6016, %v6247
    %v6417 = vadd.f32 %v6017, %v6249
    %v6418 = vadd.f32 %v6018, %v6251
    %v6419 = vadd.f32 %v6019, %v6253
    %v6420 = vadd.f32 %v6020, %v6255
    %v6421 = vadd.f32 %v6021, %v6257
    %v6422 = vadd.f32 %v6022, %v6259
    %v6423 = vadd.f32 %v6023, %v6261
    %v6424 = vadd.f32 %v6024, %v6263
    %v6425 = vadd.f32 %v6025, %v6265
    %6506 = vrot.lane.b32.xlu0 %v6346, 126
    %v6507 = vpop.permute.xlu0 %6506
    %6508 = vrot.lane.b32.xlu0 %v6347, 126
    %v6509 = vpop.permute.xlu0 %6508
    %6510 = vrot.lane.b32.xlu0 %v6348, 126
    %v6511 = vpop.permute.xlu0 %6510
    %6512 = vrot.lane.b32.xlu0 %v6349, 126
    %v6513 = vpop.permute.xlu0 %6512
    %6514 = vrot.lane.b32.xlu0 %v6350, 126
    %v6515 = vpop.permute.xlu0 %6514
    %6516 = vrot.lane.b32.xlu0 %v6351, 126
    %v6517 = vpop.permute.xlu0 %6516
    %6518 = vrot.lane.b32.xlu0 %v6352, 126
    %v6519 = vpop.permute.xlu0 %6518
    %6520 = vrot.lane.b32.xlu0 %v6353, 126
    %v6521 = vpop.permute.xlu0 %6520
    %6522 = vrot.lane.b32.xlu0 %v6354, 126
    %v6523 = vpop.permute.xlu0 %6522
    %6524 = vrot.lane.b32.xlu0 %v6355, 126
    %v6525 = vpop.permute.xlu0 %6524
    %6526 = vrot.lane.b32.xlu0 %v6356, 126
    %v6527 = vpop.permute.xlu0 %6526
    %6528 = vrot.lane.b32.xlu0 %v6357, 126
    %v6529 = vpop.permute.xlu0 %6528
    %6530 = vrot.lane.b32.xlu0 %v6358, 126
    %v6531 = vpop.permute.xlu0 %6530
    %6532 = vrot.lane.b32.xlu0 %v6359, 126
    %v6533 = vpop.permute.xlu0 %6532
    %6534 = vrot.lane.b32.xlu0 %v6360, 126
    %v6535 = vpop.permute.xlu0 %6534
    %6536 = vrot.lane.b32.xlu0 %v6361, 126
    %v6537 = vpop.permute.xlu0 %6536
    %6538 = vrot.lane.b32.xlu0 %v6362, 126
    %v6539 = vpop.permute.xlu0 %6538
    %6540 = vrot.lane.b32.xlu0 %v6363, 126
    %v6541 = vpop.permute.xlu0 %6540
    %6542 = vrot.lane.b32.xlu0 %v6364, 126
    %v6543 = vpop.permute.xlu0 %6542
    %6544 = vrot.lane.b32.xlu0 %v6365, 126
    %v6545 = vpop.permute.xlu0 %6544
    %6546 = vrot.lane.b32.xlu0 %v6366, 126
    %v6547 = vpop.permute.xlu0 %6546
    %6548 = vrot.lane.b32.xlu0 %v6367, 126
    %v6549 = vpop.permute.xlu0 %6548
    %6550 = vrot.lane.b32.xlu0 %v6368, 126
    %v6551 = vpop.permute.xlu0 %6550
    %6552 = vrot.lane.b32.xlu0 %v6369, 126
    %v6553 = vpop.permute.xlu0 %6552
    %6554 = vrot.lane.b32.xlu0 %v6370, 126
    %v6555 = vpop.permute.xlu0 %6554
    %6556 = vrot.lane.b32.xlu0 %v6371, 126
    %v6557 = vpop.permute.xlu0 %6556
    %6558 = vrot.lane.b32.xlu0 %v6372, 126
    %v6559 = vpop.permute.xlu0 %6558
    %6560 = vrot.lane.b32.xlu0 %v6373, 126
    %v6561 = vpop.permute.xlu0 %6560
    %6562 = vrot.lane.b32.xlu0 %v6374, 126
    %v6563 = vpop.permute.xlu0 %6562
    %6564 = vrot.lane.b32.xlu0 %v6375, 126
    %v6565 = vpop.permute.xlu0 %6564
    %6566 = vrot.lane.b32.xlu0 %v6376, 126
    %v6567 = vpop.permute.xlu0 %6566
    %6568 = vrot.lane.b32.xlu0 %v6377, 126
    %v6569 = vpop.permute.xlu0 %6568
    %6570 = vrot.lane.b32.xlu0 %v6378, 126
    %v6571 = vpop.permute.xlu0 %6570
    %6572 = vrot.lane.b32.xlu0 %v6379, 126
    %v6573 = vpop.permute.xlu0 %6572
    %6574 = vrot.lane.b32.xlu0 %v6380, 126
    %v6575 = vpop.permute.xlu0 %6574
    %6576 = vrot.lane.b32.xlu0 %v6381, 126
    %v6577 = vpop.permute.xlu0 %6576
    %6578 = vrot.lane.b32.xlu0 %v6382, 126
    %v6579 = vpop.permute.xlu0 %6578
    %6580 = vrot.lane.b32.xlu0 %v6383, 126
    %v6581 = vpop.permute.xlu0 %6580
    %6582 = vrot.lane.b32.xlu0 %v6384, 126
    %v6583 = vpop.permute.xlu0 %6582
    %6584 = vrot.lane.b32.xlu0 %v6385, 126
    %v6585 = vpop.permute.xlu0 %6584
    %6586 = vrot.lane.b32.xlu0 %v6386, 126
    %v6587 = vpop.permute.xlu0 %6586
    %6588 = vrot.lane.b32.xlu0 %v6387, 126
    %v6589 = vpop.permute.xlu0 %6588
    %6590 = vrot.lane.b32.xlu0 %v6388, 126
    %v6591 = vpop.permute.xlu0 %6590
    %6592 = vrot.lane.b32.xlu0 %v6389, 126
    %v6593 = vpop.permute.xlu0 %6592
    %6594 = vrot.lane.b32.xlu0 %v6390, 126
    %v6595 = vpop.permute.xlu0 %6594
    %6596 = vrot.lane.b32.xlu0 %v6391, 126
    %v6597 = vpop.permute.xlu0 %6596
    %6598 = vrot.lane.b32.xlu0 %v6392, 126
    %v6599 = vpop.permute.xlu0 %6598
    %6600 = vrot.lane.b32.xlu0 %v6393, 126
    %v6601 = vpop.permute.xlu0 %6600
    %6602 = vrot.lane.b32.xlu0 %v6394, 126
    %v6603 = vpop.permute.xlu0 %6602
    %6604 = vrot.lane.b32.xlu0 %v6395, 126
    %v6605 = vpop.permute.xlu0 %6604
    %6606 = vrot.lane.b32.xlu0 %v6396, 126
    %v6607 = vpop.permute.xlu0 %6606
    %6608 = vrot.lane.b32.xlu0 %v6397, 126
    %v6609 = vpop.permute.xlu0 %6608
    %6610 = vrot.lane.b32.xlu0 %v6398, 126
    %v6611 = vpop.permute.xlu0 %6610
    %6612 = vrot.lane.b32.xlu0 %v6399, 126
    %v6613 = vpop.permute.xlu0 %6612
    %6614 = vrot.lane.b32.xlu0 %v6400, 126
    %v6615 = vpop.permute.xlu0 %6614
    %6616 = vrot.lane.b32.xlu0 %v6401, 126
    %v6617 = vpop.permute.xlu0 %6616
    %6618 = vrot.lane.b32.xlu0 %v6402, 126
    %v6619 = vpop.permute.xlu0 %6618
    %6620 = vrot.lane.b32.xlu0 %v6403, 126
    %v6621 = vpop.permute.xlu0 %6620
    %6622 = vrot.lane.b32.xlu0 %v6404, 126
    %v6623 = vpop.permute.xlu0 %6622
    %6624 = vrot.lane.b32.xlu0 %v6405, 126
    %v6625 = vpop.permute.xlu0 %6624
    %6626 = vrot.lane.b32.xlu0 %v6406, 126
    %v6627 = vpop.permute.xlu0 %6626
    %6628 = vrot.lane.b32.xlu0 %v6407, 126
    %v6629 = vpop.permute.xlu0 %6628
    %6630 = vrot.lane.b32.xlu0 %v6408, 126
    %v6631 = vpop.permute.xlu0 %6630
    %6632 = vrot.lane.b32.xlu0 %v6409, 126
    %v6633 = vpop.permute.xlu0 %6632
    %6634 = vrot.lane.b32.xlu0 %v6410, 126
    %v6635 = vpop.permute.xlu0 %6634
    %6636 = vrot.lane.b32.xlu0 %v6411, 126
    %v6637 = vpop.permute.xlu0 %6636
    %6638 = vrot.lane.b32.xlu0 %v6412, 126
    %v6639 = vpop.permute.xlu0 %6638
    %6640 = vrot.lane.b32.xlu0 %v6413, 126
    %v6641 = vpop.permute.xlu0 %6640
    %6642 = vrot.lane.b32.xlu0 %v6414, 126
    %v6643 = vpop.permute.xlu0 %6642
    %6644 = vrot.lane.b32.xlu0 %v6415, 126
    %v6645 = vpop.permute.xlu0 %6644
    %6646 = vrot.lane.b32.xlu0 %v6416, 126
    %v6647 = vpop.permute.xlu0 %6646
    %6648 = vrot.lane.b32.xlu0 %v6417, 126
    %v6649 = vpop.permute.xlu0 %6648
    %6650 = vrot.lane.b32.xlu0 %v6418, 126
    %v6651 = vpop.permute.xlu0 %6650
    %6652 = vrot.lane.b32.xlu0 %v6419, 126
    %v6653 = vpop.permute.xlu0 %6652
    %6654 = vrot.lane.b32.xlu0 %v6420, 126
    %v6655 = vpop.permute.xlu0 %6654
    %6656 = vrot.lane.b32.xlu0 %v6421, 126
    %v6657 = vpop.permute.xlu0 %6656
    %6658 = vrot.lane.b32.xlu0 %v6422, 126
    %v6659 = vpop.permute.xlu0 %6658
    %6660 = vrot.lane.b32.xlu0 %v6423, 126
    %v6661 = vpop.permute.xlu0 %6660
    %6662 = vrot.lane.b32.xlu0 %v6424, 126
    %v6663 = vpop.permute.xlu0 %6662
    %6664 = vrot.lane.b32.xlu0 %v6425, 126
    %v6665 = vpop.permute.xlu0 %6664
    %v6746 = vadd.f32 %v6346, %v6507
    %v6747 = vadd.f32 %v6347, %v6509
    %v6748 = vadd.f32 %v6348, %v6511
    %v6749 = vadd.f32 %v6349, %v6513
    %v6750 = vadd.f32 %v6350, %v6515
    %v6751 = vadd.f32 %v6351, %v6517
    %v6752 = vadd.f32 %v6352, %v6519
    %v6753 = vadd.f32 %v6353, %v6521
    %v6754 = vadd.f32 %v6354, %v6523
    %v6755 = vadd.f32 %v6355, %v6525
    %v6756 = vadd.f32 %v6356, %v6527
    %v6757 = vadd.f32 %v6357, %v6529
    %v6758 = vadd.f32 %v6358, %v6531
    %v6759 = vadd.f32 %v6359, %v6533
    %v6760 = vadd.f32 %v6360, %v6535
    %v6761 = vadd.f32 %v6361, %v6537
    %v6762 = vadd.f32 %v6362, %v6539
    %v6763 = vadd.f32 %v6363, %v6541
    %v6764 = vadd.f32 %v6364, %v6543
    %v6765 = vadd.f32 %v6365, %v6545
    %v6766 = vadd.f32 %v6366, %v6547
    %v6767 = vadd.f32 %v6367, %v6549
    %v6768 = vadd.f32 %v6368, %v6551
    %v6769 = vadd.f32 %v6369, %v6553
    %v6770 = vadd.f32 %v6370, %v6555
    %v6771 = vadd.f32 %v6371, %v6557
    %v6772 = vadd.f32 %v6372, %v6559
    %v6773 = vadd.f32 %v6373, %v6561
    %v6774 = vadd.f32 %v6374, %v6563
    %v6775 = vadd.f32 %v6375, %v6565
    %v6776 = vadd.f32 %v6376, %v6567
    %v6777 = vadd.f32 %v6377, %v6569
    %v6778 = vadd.f32 %v6378, %v6571
    %v6779 = vadd.f32 %v6379, %v6573
    %v6780 = vadd.f32 %v6380, %v6575
    %v6781 = vadd.f32 %v6381, %v6577
    %v6782 = vadd.f32 %v6382, %v6579
    %v6783 = vadd.f32 %v6383, %v6581
    %v6784 = vadd.f32 %v6384, %v6583
    %v6785 = vadd.f32 %v6385, %v6585
    %v6786 = vadd.f32 %v6386, %v6587
    %v6787 = vadd.f32 %v6387, %v6589
    %v6788 = vadd.f32 %v6388, %v6591
    %v6789 = vadd.f32 %v6389, %v6593
    %v6790 = vadd.f32 %v6390, %v6595
    %v6791 = vadd.f32 %v6391, %v6597
    %v6792 = vadd.f32 %v6392, %v6599
    %v6793 = vadd.f32 %v6393, %v6601
    %v6794 = vadd.f32 %v6394, %v6603
    %v6795 = vadd.f32 %v6395, %v6605
    %v6796 = vadd.f32 %v6396, %v6607
    %v6797 = vadd.f32 %v6397, %v6609
    %v6798 = vadd.f32 %v6398, %v6611
    %v6799 = vadd.f32 %v6399, %v6613
    %v6800 = vadd.f32 %v6400, %v6615
    %v6801 = vadd.f32 %v6401, %v6617
    %v6802 = vadd.f32 %v6402, %v6619
    %v6803 = vadd.f32 %v6403, %v6621
    %v6804 = vadd.f32 %v6404, %v6623
    %v6805 = vadd.f32 %v6405, %v6625
    %v6806 = vadd.f32 %v6406, %v6627
    %v6807 = vadd.f32 %v6407, %v6629
    %v6808 = vadd.f32 %v6408, %v6631
    %v6809 = vadd.f32 %v6409, %v6633
    %v6810 = vadd.f32 %v6410, %v6635
    %v6811 = vadd.f32 %v6411, %v6637
    %v6812 = vadd.f32 %v6412, %v6639
    %v6813 = vadd.f32 %v6413, %v6641
    %v6814 = vadd.f32 %v6414, %v6643
    %v6815 = vadd.f32 %v6415, %v6645
    %v6816 = vadd.f32 %v6416, %v6647
    %v6817 = vadd.f32 %v6417, %v6649
    %v6818 = vadd.f32 %v6418, %v6651
    %v6819 = vadd.f32 %v6419, %v6653
    %v6820 = vadd.f32 %v6420, %v6655
    %v6821 = vadd.f32 %v6421, %v6657
    %v6822 = vadd.f32 %v6422, %v6659
    %v6823 = vadd.f32 %v6423, %v6661
    %v6824 = vadd.f32 %v6424, %v6663
    %v6825 = vadd.f32 %v6425, %v6665
    %6826 = vrot.lane.b32.xlu0 %v6346, 124
    %v6827 = vpop.permute.xlu0 %6826
    %6828 = vrot.lane.b32.xlu0 %v6347, 124
    %v6829 = vpop.permute.xlu0 %6828
    %6830 = vrot.lane.b32.xlu0 %v6348, 124
    %v6831 = vpop.permute.xlu0 %6830
    %6832 = vrot.lane.b32.xlu0 %v6349, 124
    %v6833 = vpop.permute.xlu0 %6832
    %6834 = vrot.lane.b32.xlu0 %v6350, 124
    %v6835 = vpop.permute.xlu0 %6834
    %6836 = vrot.lane.b32.xlu0 %v6351, 124
    %v6837 = vpop.permute.xlu0 %6836
    %6838 = vrot.lane.b32.xlu0 %v6352, 124
    %v6839 = vpop.permute.xlu0 %6838
    %6840 = vrot.lane.b32.xlu0 %v6353, 124
    %v6841 = vpop.permute.xlu0 %6840
    %6842 = vrot.lane.b32.xlu0 %v6354, 124
    %v6843 = vpop.permute.xlu0 %6842
    %6844 = vrot.lane.b32.xlu0 %v6355, 124
    %v6845 = vpop.permute.xlu0 %6844
    %6846 = vrot.lane.b32.xlu0 %v6356, 124
    %v6847 = vpop.permute.xlu0 %6846
    %6848 = vrot.lane.b32.xlu0 %v6357, 124
    %v6849 = vpop.permute.xlu0 %6848
    %6850 = vrot.lane.b32.xlu0 %v6358, 124
    %v6851 = vpop.permute.xlu0 %6850
    %6852 = vrot.lane.b32.xlu0 %v6359, 124
    %v6853 = vpop.permute.xlu0 %6852
    %6854 = vrot.lane.b32.xlu0 %v6360, 124
    %v6855 = vpop.permute.xlu0 %6854
    %6856 = vrot.lane.b32.xlu0 %v6361, 124
    %v6857 = vpop.permute.xlu0 %6856
    %6858 = vrot.lane.b32.xlu0 %v6362, 124
    %v6859 = vpop.permute.xlu0 %6858
    %6860 = vrot.lane.b32.xlu0 %v6363, 124
    %v6861 = vpop.permute.xlu0 %6860
    %6862 = vrot.lane.b32.xlu0 %v6364, 124
    %v6863 = vpop.permute.xlu0 %6862
    %6864 = vrot.lane.b32.xlu0 %v6365, 124
    %v6865 = vpop.permute.xlu0 %6864
    %6866 = vrot.lane.b32.xlu0 %v6366, 124
    %v6867 = vpop.permute.xlu0 %6866
    %6868 = vrot.lane.b32.xlu0 %v6367, 124
    %v6869 = vpop.permute.xlu0 %6868
    %6870 = vrot.lane.b32.xlu0 %v6368, 124
    %v6871 = vpop.permute.xlu0 %6870
    %6872 = vrot.lane.b32.xlu0 %v6369, 124
    %v6873 = vpop.permute.xlu0 %6872
    %6874 = vrot.lane.b32.xlu0 %v6370, 124
    %v6875 = vpop.permute.xlu0 %6874
    %6876 = vrot.lane.b32.xlu0 %v6371, 124
    %v6877 = vpop.permute.xlu0 %6876
    %6878 = vrot.lane.b32.xlu0 %v6372, 124
    %v6879 = vpop.permute.xlu0 %6878
    %6880 = vrot.lane.b32.xlu0 %v6373, 124
    %v6881 = vpop.permute.xlu0 %6880
    %6882 = vrot.lane.b32.xlu0 %v6374, 124
    %v6883 = vpop.permute.xlu0 %6882
    %6884 = vrot.lane.b32.xlu0 %v6375, 124
    %v6885 = vpop.permute.xlu0 %6884
    %6886 = vrot.lane.b32.xlu0 %v6376, 124
    %v6887 = vpop.permute.xlu0 %6886
    %6888 = vrot.lane.b32.xlu0 %v6377, 124
    %v6889 = vpop.permute.xlu0 %6888
    %6890 = vrot.lane.b32.xlu0 %v6378, 124
    %v6891 = vpop.permute.xlu0 %6890
    %6892 = vrot.lane.b32.xlu0 %v6379, 124
    %v6893 = vpop.permute.xlu0 %6892
    %6894 = vrot.lane.b32.xlu0 %v6380, 124
    %v6895 = vpop.permute.xlu0 %6894
    %6896 = vrot.lane.b32.xlu0 %v6381, 124
    %v6897 = vpop.permute.xlu0 %6896
    %6898 = vrot.lane.b32.xlu0 %v6382, 124
    %v6899 = vpop.permute.xlu0 %6898
    %6900 = vrot.lane.b32.xlu0 %v6383, 124
    %v6901 = vpop.permute.xlu0 %6900
    %6902 = vrot.lane.b32.xlu0 %v6384, 124
    %v6903 = vpop.permute.xlu0 %6902
    %6904 = vrot.lane.b32.xlu0 %v6385, 124
    %v6905 = vpop.permute.xlu0 %6904
    %6906 = vrot.lane.b32.xlu0 %v6386, 124
    %v6907 = vpop.permute.xlu0 %6906
    %6908 = vrot.lane.b32.xlu0 %v6387, 124
    %v6909 = vpop.permute.xlu0 %6908
    %6910 = vrot.lane.b32.xlu0 %v6388, 124
    %v6911 = vpop.permute.xlu0 %6910
    %6912 = vrot.lane.b32.xlu0 %v6389, 124
    %v6913 = vpop.permute.xlu0 %6912
    %6914 = vrot.lane.b32.xlu0 %v6390, 124
    %v6915 = vpop.permute.xlu0 %6914
    %6916 = vrot.lane.b32.xlu0 %v6391, 124
    %v6917 = vpop.permute.xlu0 %6916
    %6918 = vrot.lane.b32.xlu0 %v6392, 124
    %v6919 = vpop.permute.xlu0 %6918
    %6920 = vrot.lane.b32.xlu0 %v6393, 124
    %v6921 = vpop.permute.xlu0 %6920
    %6922 = vrot.lane.b32.xlu0 %v6394, 124
    %v6923 = vpop.permute.xlu0 %6922
    %6924 = vrot.lane.b32.xlu0 %v6395, 124
    %v6925 = vpop.permute.xlu0 %6924
    %6926 = vrot.lane.b32.xlu0 %v6396, 124
    %v6927 = vpop.permute.xlu0 %6926
    %6928 = vrot.lane.b32.xlu0 %v6397, 124
    %v6929 = vpop.permute.xlu0 %6928
    %6930 = vrot.lane.b32.xlu0 %v6398, 124
    %v6931 = vpop.permute.xlu0 %6930
    %6932 = vrot.lane.b32.xlu0 %v6399, 124
    %v6933 = vpop.permute.xlu0 %6932
    %6934 = vrot.lane.b32.xlu0 %v6400, 124
    %v6935 = vpop.permute.xlu0 %6934
    %6936 = vrot.lane.b32.xlu0 %v6401, 124
    %v6937 = vpop.permute.xlu0 %6936
    %6938 = vrot.lane.b32.xlu0 %v6402, 124
    %v6939 = vpop.permute.xlu0 %6938
    %6940 = vrot.lane.b32.xlu0 %v6403, 124
    %v6941 = vpop.permute.xlu0 %6940
    %6942 = vrot.lane.b32.xlu0 %v6404, 124
    %v6943 = vpop.permute.xlu0 %6942
    %6944 = vrot.lane.b32.xlu0 %v6405, 124
    %v6945 = vpop.permute.xlu0 %6944
    %6946 = vrot.lane.b32.xlu0 %v6406, 124
    %v6947 = vpop.permute.xlu0 %6946
    %6948 = vrot.lane.b32.xlu0 %v6407, 124
    %v6949 = vpop.permute.xlu0 %6948
    %6950 = vrot.lane.b32.xlu0 %v6408, 124
    %v6951 = vpop.permute.xlu0 %6950
    %6952 = vrot.lane.b32.xlu0 %v6409, 124
    %v6953 = vpop.permute.xlu0 %6952
    %6954 = vrot.lane.b32.xlu0 %v6410, 124
    %v6955 = vpop.permute.xlu0 %6954
    %6956 = vrot.lane.b32.xlu0 %v6411, 124
    %v6957 = vpop.permute.xlu0 %6956
    %6958 = vrot.lane.b32.xlu0 %v6412, 124
    %v6959 = vpop.permute.xlu0 %6958
    %6960 = vrot.lane.b32.xlu0 %v6413, 124
    %v6961 = vpop.permute.xlu0 %6960
    %6962 = vrot.lane.b32.xlu0 %v6414, 124
    %v6963 = vpop.permute.xlu0 %6962
    %6964 = vrot.lane.b32.xlu0 %v6415, 124
    %v6965 = vpop.permute.xlu0 %6964
    %6966 = vrot.lane.b32.xlu0 %v6416, 124
    %v6967 = vpop.permute.xlu0 %6966
    %6968 = vrot.lane.b32.xlu0 %v6417, 124
    %v6969 = vpop.permute.xlu0 %6968
    %6970 = vrot.lane.b32.xlu0 %v6418, 124
    %v6971 = vpop.permute.xlu0 %6970
    %6972 = vrot.lane.b32.xlu0 %v6419, 124
    %v6973 = vpop.permute.xlu0 %6972
    %6974 = vrot.lane.b32.xlu0 %v6420, 124
    %v6975 = vpop.permute.xlu0 %6974
    %6976 = vrot.lane.b32.xlu0 %v6421, 124
    %v6977 = vpop.permute.xlu0 %6976
    %6978 = vrot.lane.b32.xlu0 %v6422, 124
    %v6979 = vpop.permute.xlu0 %6978
    %6980 = vrot.lane.b32.xlu0 %v6423, 124
    %v6981 = vpop.permute.xlu0 %6980
    %6982 = vrot.lane.b32.xlu0 %v6424, 124
    %v6983 = vpop.permute.xlu0 %6982
    %6984 = vrot.lane.b32.xlu0 %v6425, 124
    %v6985 = vpop.permute.xlu0 %6984
    %v7066 = vadd.f32 %v6746, %v6827
    %v7067 = vadd.f32 %v6747, %v6829
    %v7068 = vadd.f32 %v6748, %v6831
    %v7069 = vadd.f32 %v6749, %v6833
    %v7070 = vadd.f32 %v6750, %v6835
    %v7071 = vadd.f32 %v6751, %v6837
    %v7072 = vadd.f32 %v6752, %v6839
    %v7073 = vadd.f32 %v6753, %v6841
    %v7074 = vadd.f32 %v6754, %v6843
    %v7075 = vadd.f32 %v6755, %v6845
    %v7076 = vadd.f32 %v6756, %v6847
    %v7077 = vadd.f32 %v6757, %v6849
    %v7078 = vadd.f32 %v6758, %v6851
    %v7079 = vadd.f32 %v6759, %v6853
    %v7080 = vadd.f32 %v6760, %v6855
    %v7081 = vadd.f32 %v6761, %v6857
    %v7082 = vadd.f32 %v6762, %v6859
    %v7083 = vadd.f32 %v6763, %v6861
    %v7084 = vadd.f32 %v6764, %v6863
    %v7085 = vadd.f32 %v6765, %v6865
    %v7086 = vadd.f32 %v6766, %v6867
    %v7087 = vadd.f32 %v6767, %v6869
    %v7088 = vadd.f32 %v6768, %v6871
    %v7089 = vadd.f32 %v6769, %v6873
    %v7090 = vadd.f32 %v6770, %v6875
    %v7091 = vadd.f32 %v6771, %v6877
    %v7092 = vadd.f32 %v6772, %v6879
    %v7093 = vadd.f32 %v6773, %v6881
    %v7094 = vadd.f32 %v6774, %v6883
    %v7095 = vadd.f32 %v6775, %v6885
    %v7096 = vadd.f32 %v6776, %v6887
    %v7097 = vadd.f32 %v6777, %v6889
    %v7098 = vadd.f32 %v6778, %v6891
    %v7099 = vadd.f32 %v6779, %v6893
    %v7100 = vadd.f32 %v6780, %v6895
    %v7101 = vadd.f32 %v6781, %v6897
    %v7102 = vadd.f32 %v6782, %v6899
    %v7103 = vadd.f32 %v6783, %v6901
    %v7104 = vadd.f32 %v6784, %v6903
    %v7105 = vadd.f32 %v6785, %v6905
    %v7106 = vadd.f32 %v6786, %v6907
    %v7107 = vadd.f32 %v6787, %v6909
    %v7108 = vadd.f32 %v6788, %v6911
    %v7109 = vadd.f32 %v6789, %v6913
    %v7110 = vadd.f32 %v6790, %v6915
    %v7111 = vadd.f32 %v6791, %v6917
    %v7112 = vadd.f32 %v6792, %v6919
    %v7113 = vadd.f32 %v6793, %v6921
    %v7114 = vadd.f32 %v6794, %v6923
    %v7115 = vadd.f32 %v6795, %v6925
    %v7116 = vadd.f32 %v6796, %v6927
    %v7117 = vadd.f32 %v6797, %v6929
    %v7118 = vadd.f32 %v6798, %v6931
    %v7119 = vadd.f32 %v6799, %v6933
    %v7120 = vadd.f32 %v6800, %v6935
    %v7121 = vadd.f32 %v6801, %v6937
    %v7122 = vadd.f32 %v6802, %v6939
    %v7123 = vadd.f32 %v6803, %v6941
    %v7124 = vadd.f32 %v6804, %v6943
    %v7125 = vadd.f32 %v6805, %v6945
    %v7126 = vadd.f32 %v6806, %v6947
    %v7127 = vadd.f32 %v6807, %v6949
    %v7128 = vadd.f32 %v6808, %v6951
    %v7129 = vadd.f32 %v6809, %v6953
    %v7130 = vadd.f32 %v6810, %v6955
    %v7131 = vadd.f32 %v6811, %v6957
    %v7132 = vadd.f32 %v6812, %v6959
    %v7133 = vadd.f32 %v6813, %v6961
    %v7134 = vadd.f32 %v6814, %v6963
    %v7135 = vadd.f32 %v6815, %v6965
    %v7136 = vadd.f32 %v6816, %v6967
    %v7137 = vadd.f32 %v6817, %v6969
    %v7138 = vadd.f32 %v6818, %v6971
    %v7139 = vadd.f32 %v6819, %v6973
    %v7140 = vadd.f32 %v6820, %v6975
    %v7141 = vadd.f32 %v6821, %v6977
    %v7142 = vadd.f32 %v6822, %v6979
    %v7143 = vadd.f32 %v6823, %v6981
    %v7144 = vadd.f32 %v6824, %v6983
    %v7145 = vadd.f32 %v6825, %v6985
    %7146 = vrot.lane.b32.xlu0 %v5946, 122
    %v7147 = vpop.permute.xlu0 %7146
    %7148 = vrot.lane.b32.xlu0 %v5947, 122
    %v7149 = vpop.permute.xlu0 %7148
    %7150 = vrot.lane.b32.xlu0 %v5948, 122
    %v7151 = vpop.permute.xlu0 %7150
    %7152 = vrot.lane.b32.xlu0 %v5949, 122
    %v7153 = vpop.permute.xlu0 %7152
    %7154 = vrot.lane.b32.xlu0 %v5950, 122
    %v7155 = vpop.permute.xlu0 %7154
    %7156 = vrot.lane.b32.xlu0 %v5951, 122
    %v7157 = vpop.permute.xlu0 %7156
    %7158 = vrot.lane.b32.xlu0 %v5952, 122
    %v7159 = vpop.permute.xlu0 %7158
    %7160 = vrot.lane.b32.xlu0 %v5953, 122
    %v7161 = vpop.permute.xlu0 %7160
    %7162 = vrot.lane.b32.xlu0 %v5954, 122
    %v7163 = vpop.permute.xlu0 %7162
    %7164 = vrot.lane.b32.xlu0 %v5955, 122
    %v7165 = vpop.permute.xlu0 %7164
    %7166 = vrot.lane.b32.xlu0 %v5956, 122
    %v7167 = vpop.permute.xlu0 %7166
    %7168 = vrot.lane.b32.xlu0 %v5957, 122
    %v7169 = vpop.permute.xlu0 %7168
    %7170 = vrot.lane.b32.xlu0 %v5958, 122
    %v7171 = vpop.permute.xlu0 %7170
    %7172 = vrot.lane.b32.xlu0 %v5959, 122
    %v7173 = vpop.permute.xlu0 %7172
    %7174 = vrot.lane.b32.xlu0 %v5960, 122
    %v7175 = vpop.permute.xlu0 %7174
    %7176 = vrot.lane.b32.xlu0 %v5961, 122
    %v7177 = vpop.permute.xlu0 %7176
    %7178 = vrot.lane.b32.xlu0 %v5962, 122
    %v7179 = vpop.permute.xlu0 %7178
    %7180 = vrot.lane.b32.xlu0 %v5963, 122
    %v7181 = vpop.permute.xlu0 %7180
    %7182 = vrot.lane.b32.xlu0 %v5964, 122
    %v7183 = vpop.permute.xlu0 %7182
    %7184 = vrot.lane.b32.xlu0 %v5965, 122
    %v7185 = vpop.permute.xlu0 %7184
    %7186 = vrot.lane.b32.xlu0 %v5966, 122
    %v7187 = vpop.permute.xlu0 %7186
    %7188 = vrot.lane.b32.xlu0 %v5967, 122
    %v7189 = vpop.permute.xlu0 %7188
    %7190 = vrot.lane.b32.xlu0 %v5968, 122
    %v7191 = vpop.permute.xlu0 %7190
    %7192 = vrot.lane.b32.xlu0 %v5969, 122
    %v7193 = vpop.permute.xlu0 %7192
    %7194 = vrot.lane.b32.xlu0 %v5970, 122
    %v7195 = vpop.permute.xlu0 %7194
    %7196 = vrot.lane.b32.xlu0 %v5971, 122
    %v7197 = vpop.permute.xlu0 %7196
    %7198 = vrot.lane.b32.xlu0 %v5972, 122
    %v7199 = vpop.permute.xlu0 %7198
    %7200 = vrot.lane.b32.xlu0 %v5973, 122
    %v7201 = vpop.permute.xlu0 %7200
    %7202 = vrot.lane.b32.xlu0 %v5974, 122
    %v7203 = vpop.permute.xlu0 %7202
    %7204 = vrot.lane.b32.xlu0 %v5975, 122
    %v7205 = vpop.permute.xlu0 %7204
    %7206 = vrot.lane.b32.xlu0 %v5976, 122
    %v7207 = vpop.permute.xlu0 %7206
    %7208 = vrot.lane.b32.xlu0 %v5977, 122
    %v7209 = vpop.permute.xlu0 %7208
    %7210 = vrot.lane.b32.xlu0 %v5978, 122
    %v7211 = vpop.permute.xlu0 %7210
    %7212 = vrot.lane.b32.xlu0 %v5979, 122
    %v7213 = vpop.permute.xlu0 %7212
    %7214 = vrot.lane.b32.xlu0 %v5980, 122
    %v7215 = vpop.permute.xlu0 %7214
    %7216 = vrot.lane.b32.xlu0 %v5981, 122
    %v7217 = vpop.permute.xlu0 %7216
    %7218 = vrot.lane.b32.xlu0 %v5982, 122
    %v7219 = vpop.permute.xlu0 %7218
    %7220 = vrot.lane.b32.xlu0 %v5983, 122
    %v7221 = vpop.permute.xlu0 %7220
    %7222 = vrot.lane.b32.xlu0 %v5984, 122
    %v7223 = vpop.permute.xlu0 %7222
    %7224 = vrot.lane.b32.xlu0 %v5985, 122
    %v7225 = vpop.permute.xlu0 %7224
    %7226 = vrot.lane.b32.xlu0 %v5986, 122
    %v7227 = vpop.permute.xlu0 %7226
    %7228 = vrot.lane.b32.xlu0 %v5987, 122
    %v7229 = vpop.permute.xlu0 %7228
    %7230 = vrot.lane.b32.xlu0 %v5988, 122
    %v7231 = vpop.permute.xlu0 %7230
    %7232 = vrot.lane.b32.xlu0 %v5989, 122
    %v7233 = vpop.permute.xlu0 %7232
    %7234 = vrot.lane.b32.xlu0 %v5990, 122
    %v7235 = vpop.permute.xlu0 %7234
    %7236 = vrot.lane.b32.xlu0 %v5991, 122
    %v7237 = vpop.permute.xlu0 %7236
    %7238 = vrot.lane.b32.xlu0 %v5992, 122
    %v7239 = vpop.permute.xlu0 %7238
    %7240 = vrot.lane.b32.xlu0 %v5993, 122
    %v7241 = vpop.permute.xlu0 %7240
    %7242 = vrot.lane.b32.xlu0 %v5994, 122
    %v7243 = vpop.permute.xlu0 %7242
    %7244 = vrot.lane.b32.xlu0 %v5995, 122
    %v7245 = vpop.permute.xlu0 %7244
    %7246 = vrot.lane.b32.xlu0 %v5996, 122
    %v7247 = vpop.permute.xlu0 %7246
    %7248 = vrot.lane.b32.xlu0 %v5997, 122
    %v7249 = vpop.permute.xlu0 %7248
    %7250 = vrot.lane.b32.xlu0 %v5998, 122
    %v7251 = vpop.permute.xlu0 %7250
    %7252 = vrot.lane.b32.xlu0 %v5999, 122
    %v7253 = vpop.permute.xlu0 %7252
    %7254 = vrot.lane.b32.xlu0 %v6000, 122
    %v7255 = vpop.permute.xlu0 %7254
    %7256 = vrot.lane.b32.xlu0 %v6001, 122
    %v7257 = vpop.permute.xlu0 %7256
    %7258 = vrot.lane.b32.xlu0 %v6002, 122
    %v7259 = vpop.permute.xlu0 %7258
    %7260 = vrot.lane.b32.xlu0 %v6003, 122
    %v7261 = vpop.permute.xlu0 %7260
    %7262 = vrot.lane.b32.xlu0 %v6004, 122
    %v7263 = vpop.permute.xlu0 %7262
    %7264 = vrot.lane.b32.xlu0 %v6005, 122
    %v7265 = vpop.permute.xlu0 %7264
    %7266 = vrot.lane.b32.xlu0 %v6006, 122
    %v7267 = vpop.permute.xlu0 %7266
    %7268 = vrot.lane.b32.xlu0 %v6007, 122
    %v7269 = vpop.permute.xlu0 %7268
    %7270 = vrot.lane.b32.xlu0 %v6008, 122
    %v7271 = vpop.permute.xlu0 %7270
    %7272 = vrot.lane.b32.xlu0 %v6009, 122
    %v7273 = vpop.permute.xlu0 %7272
    %7274 = vrot.lane.b32.xlu0 %v6010, 122
    %v7275 = vpop.permute.xlu0 %7274
    %7276 = vrot.lane.b32.xlu0 %v6011, 122
    %v7277 = vpop.permute.xlu0 %7276
    %7278 = vrot.lane.b32.xlu0 %v6012, 122
    %v7279 = vpop.permute.xlu0 %7278
    %7280 = vrot.lane.b32.xlu0 %v6013, 122
    %v7281 = vpop.permute.xlu0 %7280
    %7282 = vrot.lane.b32.xlu0 %v6014, 122
    %v7283 = vpop.permute.xlu0 %7282
    %7284 = vrot.lane.b32.xlu0 %v6015, 122
    %v7285 = vpop.permute.xlu0 %7284
    %7286 = vrot.lane.b32.xlu0 %v6016, 122
    %v7287 = vpop.permute.xlu0 %7286
    %7288 = vrot.lane.b32.xlu0 %v6017, 122
    %v7289 = vpop.permute.xlu0 %7288
    %7290 = vrot.lane.b32.xlu0 %v6018, 122
    %v7291 = vpop.permute.xlu0 %7290
    %7292 = vrot.lane.b32.xlu0 %v6019, 122
    %v7293 = vpop.permute.xlu0 %7292
    %7294 = vrot.lane.b32.xlu0 %v6020, 122
    %v7295 = vpop.permute.xlu0 %7294
    %7296 = vrot.lane.b32.xlu0 %v6021, 122
    %v7297 = vpop.permute.xlu0 %7296
    %7298 = vrot.lane.b32.xlu0 %v6022, 122
    %v7299 = vpop.permute.xlu0 %7298
    %7300 = vrot.lane.b32.xlu0 %v6023, 122
    %v7301 = vpop.permute.xlu0 %7300
    %7302 = vrot.lane.b32.xlu0 %v6024, 122
    %v7303 = vpop.permute.xlu0 %7302
    %7304 = vrot.lane.b32.xlu0 %v6025, 122
    %v7305 = vpop.permute.xlu0 %7304
    %v7386 = vadd.f32 %v7066, %v7147
    %v7387 = vadd.f32 %v7067, %v7149
    %v7388 = vadd.f32 %v7068, %v7151
    %v7389 = vadd.f32 %v7069, %v7153
    %v7390 = vadd.f32 %v7070, %v7155
    %v7391 = vadd.f32 %v7071, %v7157
    %v7392 = vadd.f32 %v7072, %v7159
    %v7393 = vadd.f32 %v7073, %v7161
    %v7394 = vadd.f32 %v7074, %v7163
    %v7395 = vadd.f32 %v7075, %v7165
    %v7396 = vadd.f32 %v7076, %v7167
    %v7397 = vadd.f32 %v7077, %v7169
    %v7398 = vadd.f32 %v7078, %v7171
    %v7399 = vadd.f32 %v7079, %v7173
    %v7400 = vadd.f32 %v7080, %v7175
    %v7401 = vadd.f32 %v7081, %v7177
    %v7402 = vadd.f32 %v7082, %v7179
    %v7403 = vadd.f32 %v7083, %v7181
    %v7404 = vadd.f32 %v7084, %v7183
    %v7405 = vadd.f32 %v7085, %v7185
    %v7406 = vadd.f32 %v7086, %v7187
    %v7407 = vadd.f32 %v7087, %v7189
    %v7408 = vadd.f32 %v7088, %v7191
    %v7409 = vadd.f32 %v7089, %v7193
    %v7410 = vadd.f32 %v7090, %v7195
    %v7411 = vadd.f32 %v7091, %v7197
    %v7412 = vadd.f32 %v7092, %v7199
    %v7413 = vadd.f32 %v7093, %v7201
    %v7414 = vadd.f32 %v7094, %v7203
    %v7415 = vadd.f32 %v7095, %v7205
    %v7416 = vadd.f32 %v7096, %v7207
    %v7417 = vadd.f32 %v7097, %v7209
    %v7418 = vadd.f32 %v7098, %v7211
    %v7419 = vadd.f32 %v7099, %v7213
    %v7420 = vadd.f32 %v7100, %v7215
    %v7421 = vadd.f32 %v7101, %v7217
    %v7422 = vadd.f32 %v7102, %v7219
    %v7423 = vadd.f32 %v7103, %v7221
    %v7424 = vadd.f32 %v7104, %v7223
    %v7425 = vadd.f32 %v7105, %v7225
    %v7426 = vadd.f32 %v7106, %v7227
    %v7427 = vadd.f32 %v7107, %v7229
    %v7428 = vadd.f32 %v7108, %v7231
    %v7429 = vadd.f32 %v7109, %v7233
    %v7430 = vadd.f32 %v7110, %v7235
    %v7431 = vadd.f32 %v7111, %v7237
    %v7432 = vadd.f32 %v7112, %v7239
    %v7433 = vadd.f32 %v7113, %v7241
    %v7434 = vadd.f32 %v7114, %v7243
    %v7435 = vadd.f32 %v7115, %v7245
    %v7436 = vadd.f32 %v7116, %v7247
    %v7437 = vadd.f32 %v7117, %v7249
    %v7438 = vadd.f32 %v7118, %v7251
    %v7439 = vadd.f32 %v7119, %v7253
    %v7440 = vadd.f32 %v7120, %v7255
    %v7441 = vadd.f32 %v7121, %v7257
    %v7442 = vadd.f32 %v7122, %v7259
    %v7443 = vadd.f32 %v7123, %v7261
    %v7444 = vadd.f32 %v7124, %v7263
    %v7445 = vadd.f32 %v7125, %v7265
    %v7446 = vadd.f32 %v7126, %v7267
    %v7447 = vadd.f32 %v7127, %v7269
    %v7448 = vadd.f32 %v7128, %v7271
    %v7449 = vadd.f32 %v7129, %v7273
    %v7450 = vadd.f32 %v7130, %v7275
    %v7451 = vadd.f32 %v7131, %v7277
    %v7452 = vadd.f32 %v7132, %v7279
    %v7453 = vadd.f32 %v7133, %v7281
    %v7454 = vadd.f32 %v7134, %v7283
    %v7455 = vadd.f32 %v7135, %v7285
    %v7456 = vadd.f32 %v7136, %v7287
    %v7457 = vadd.f32 %v7137, %v7289
    %v7458 = vadd.f32 %v7138, %v7291
    %v7459 = vadd.f32 %v7139, %v7293
    %v7460 = vadd.f32 %v7140, %v7295
    %v7461 = vadd.f32 %v7141, %v7297
    %v7462 = vadd.f32 %v7142, %v7299
    %v7463 = vadd.f32 %v7143, %v7301
    %v7464 = vadd.f32 %v7144, %v7303
    %v7465 = vadd.f32 %v7145, %v7305
    %v7466 = vmul.f32 %v7386, 0.020408163
    %v7467 = vmul.f32 %v7387, 0.020408163
    %v7468 = vmul.f32 %v7388, 0.020408163
    %v7469 = vmul.f32 %v7389, 0.020408163
    %v7470 = vmul.f32 %v7390, 0.020408163
    %v7471 = vmul.f32 %v7391, 0.020408163
    %v7472 = vmul.f32 %v7392, 0.020408163
    %v7473 = vmul.f32 %v7393, 0.020408163
    %v7474 = vmul.f32 %v7394, 0.020408163
    %v7475 = vmul.f32 %v7395, 0.020408163
    %v7476 = vmul.f32 %v7396, 0.020408163
    %v7477 = vmul.f32 %v7397, 0.020408163
    %v7478 = vmul.f32 %v7398, 0.020408163
    %v7479 = vmul.f32 %v7399, 0.020408163
    %v7480 = vmul.f32 %v7400, 0.020408163
    %v7481 = vmul.f32 %v7401, 0.020408163
    %v7482 = vmul.f32 %v7402, 0.020408163
    %v7483 = vmul.f32 %v7403, 0.020408163
    %v7484 = vmul.f32 %v7404, 0.020408163
    %v7485 = vmul.f32 %v7405, 0.020408163
    %v7486 = vmul.f32 %v7406, 0.020408163
    %v7487 = vmul.f32 %v7407, 0.020408163
    %v7488 = vmul.f32 %v7408, 0.020408163
    %v7489 = vmul.f32 %v7409, 0.020408163
    %v7490 = vmul.f32 %v7410, 0.020408163
    %v7491 = vmul.f32 %v7411, 0.020408163
    %v7492 = vmul.f32 %v7412, 0.020408163
    %v7493 = vmul.f32 %v7413, 0.020408163
    %v7494 = vmul.f32 %v7414, 0.020408163
    %v7495 = vmul.f32 %v7415, 0.020408163
    %v7496 = vmul.f32 %v7416, 0.020408163
    %v7497 = vmul.f32 %v7417, 0.020408163
    %v7498 = vmul.f32 %v7418, 0.020408163
    %v7499 = vmul.f32 %v7419, 0.020408163
    %v7500 = vmul.f32 %v7420, 0.020408163
    %v7501 = vmul.f32 %v7421, 0.020408163
    %v7502 = vmul.f32 %v7422, 0.020408163
    %v7503 = vmul.f32 %v7423, 0.020408163
    %v7504 = vmul.f32 %v7424, 0.020408163
    %v7505 = vmul.f32 %v7425, 0.020408163
    %v7506 = vmul.f32 %v7426, 0.020408163
    %v7507 = vmul.f32 %v7427, 0.020408163
    %v7508 = vmul.f32 %v7428, 0.020408163
    %v7509 = vmul.f32 %v7429, 0.020408163
    %v7510 = vmul.f32 %v7430, 0.020408163
    %v7511 = vmul.f32 %v7431, 0.020408163
    %v7512 = vmul.f32 %v7432, 0.020408163
    %v7513 = vmul.f32 %v7433, 0.020408163
    %v7514 = vmul.f32 %v7434, 0.020408163
    %v7515 = vmul.f32 %v7435, 0.020408163
    %v7516 = vmul.f32 %v7436, 0.020408163
    %v7517 = vmul.f32 %v7437, 0.020408163
    %v7518 = vmul.f32 %v7438, 0.020408163
    %v7519 = vmul.f32 %v7439, 0.020408163
    %v7520 = vmul.f32 %v7440, 0.020408163
    %v7521 = vmul.f32 %v7441, 0.020408163
    %v7522 = vmul.f32 %v7442, 0.020408163
    %v7523 = vmul.f32 %v7443, 0.020408163
    %v7524 = vmul.f32 %v7444, 0.020408163
    %v7525 = vmul.f32 %v7445, 0.020408163
    %v7526 = vmul.f32 %v7446, 0.020408163
    %v7527 = vmul.f32 %v7447, 0.020408163
    %v7528 = vmul.f32 %v7448, 0.020408163
    %v7529 = vmul.f32 %v7449, 0.020408163
    %v7530 = vmul.f32 %v7450, 0.020408163
    %v7531 = vmul.f32 %v7451, 0.020408163
    %v7532 = vmul.f32 %v7452, 0.020408163
    %v7533 = vmul.f32 %v7453, 0.020408163
    %v7534 = vmul.f32 %v7454, 0.020408163
    %v7535 = vmul.f32 %v7455, 0.020408163
    %v7536 = vmul.f32 %v7456, 0.020408163
    %v7537 = vmul.f32 %v7457, 0.020408163
    %v7538 = vmul.f32 %v7458, 0.020408163
    %v7539 = vmul.f32 %v7459, 0.020408163
    %v7540 = vmul.f32 %v7460, 0.020408163
    %v7541 = vmul.f32 %v7461, 0.020408163
    %v7542 = vmul.f32 %v7462, 0.020408163
    %v7543 = vmul.f32 %v7463, 0.020408163
    %v7544 = vmul.f32 %v7464, 0.020408163
    %v7545 = vmul.f32 %v7465, 0.020408163
    %v7546 = vmul.f32 %v7466, %v7466
    %v7547 = vmul.f32 %v7467, %v7467
    %v7548 = vmul.f32 %v7468, %v7468
    %v7549 = vmul.f32 %v7469, %v7469
    %v7550 = vmul.f32 %v7470, %v7470
    %v7551 = vmul.f32 %v7471, %v7471
    %v7552 = vmul.f32 %v7472, %v7472
    %v7553 = vmul.f32 %v7473, %v7473
    %v7554 = vmul.f32 %v7474, %v7474
    %v7555 = vmul.f32 %v7475, %v7475
    %v7556 = vmul.f32 %v7476, %v7476
    %v7557 = vmul.f32 %v7477, %v7477
    %v7558 = vmul.f32 %v7478, %v7478
    %v7559 = vmul.f32 %v7479, %v7479
    %v7560 = vmul.f32 %v7480, %v7480
    %v7561 = vmul.f32 %v7481, %v7481
    %v7562 = vsub.f32 %v7498, %v7546
    %v7563 = vsub.f32 %v7499, %v7547
    %v7564 = vsub.f32 %v7500, %v7548
    %v7565 = vsub.f32 %v7501, %v7549
    %v7566 = vsub.f32 %v7502, %v7550
    %v7567 = vsub.f32 %v7503, %v7551
    %v7568 = vsub.f32 %v7504, %v7552
    %v7569 = vsub.f32 %v7505, %v7553
    %v7570 = vsub.f32 %v7506, %v7554
    %v7571 = vsub.f32 %v7507, %v7555
    %v7572 = vsub.f32 %v7508, %v7556
    %v7573 = vsub.f32 %v7509, %v7557
    %v7574 = vsub.f32 %v7510, %v7558
    %v7575 = vsub.f32 %v7511, %v7559
    %v7576 = vsub.f32 %v7512, %v7560
    %v7577 = vsub.f32 %v7513, %v7561
    %v7578 = vmul.f32 %v7482, %v7482
    %v7579 = vmul.f32 %v7483, %v7483
    %v7580 = vmul.f32 %v7484, %v7484
    %v7581 = vmul.f32 %v7485, %v7485
    %v7582 = vmul.f32 %v7486, %v7486
    %v7583 = vmul.f32 %v7487, %v7487
    %v7584 = vmul.f32 %v7488, %v7488
    %v7585 = vmul.f32 %v7489, %v7489
    %v7586 = vmul.f32 %v7490, %v7490
    %v7587 = vmul.f32 %v7491, %v7491
    %v7588 = vmul.f32 %v7492, %v7492
    %v7589 = vmul.f32 %v7493, %v7493
    %v7590 = vmul.f32 %v7494, %v7494
    %v7591 = vmul.f32 %v7495, %v7495
    %v7592 = vmul.f32 %v7496, %v7496
    %v7593 = vmul.f32 %v7497, %v7497
    %v7594 = vsub.f32 %v7514, %v7578
    %v7595 = vsub.f32 %v7515, %v7579
    %v7596 = vsub.f32 %v7516, %v7580
    %v7597 = vsub.f32 %v7517, %v7581
    %v7598 = vsub.f32 %v7518, %v7582
    %v7599 = vsub.f32 %v7519, %v7583
    %v7600 = vsub.f32 %v7520, %v7584
    %v7601 = vsub.f32 %v7521, %v7585
    %v7602 = vsub.f32 %v7522, %v7586
    %v7603 = vsub.f32 %v7523, %v7587
    %v7604 = vsub.f32 %v7524, %v7588
    %v7605 = vsub.f32 %v7525, %v7589
    %v7606 = vsub.f32 %v7526, %v7590
    %v7607 = vsub.f32 %v7527, %v7591
    %v7608 = vsub.f32 %v7528, %v7592
    %v7609 = vsub.f32 %v7529, %v7593
    %v7610 = vmul.f32 %v7466, %v7482
    %v7611 = vmul.f32 %v7467, %v7483
    %v7612 = vmul.f32 %v7468, %v7484
    %v7613 = vmul.f32 %v7469, %v7485
    %v7614 = vmul.f32 %v7470, %v7486
    %v7615 = vmul.f32 %v7471, %v7487
    %v7616 = vmul.f32 %v7472, %v7488
    %v7617 = vmul.f32 %v7473, %v7489
    %v7618 = vmul.f32 %v7474, %v7490
    %v7619 = vmul.f32 %v7475, %v7491
    %v7620 = vmul.f32 %v7476, %v7492
    %v7621 = vmul.f32 %v7477, %v7493
    %v7622 = vmul.f32 %v7478, %v7494
    %v7623 = vmul.f32 %v7479, %v7495
    %v7624 = vmul.f32 %v7480, %v7496
    %v7625 = vmul.f32 %v7481, %v7497
    %v7626 = vsub.f32 %v7530, %v7610
    %v7627 = vsub.f32 %v7531, %v7611
    %v7628 = vsub.f32 %v7532, %v7612
    %v7629 = vsub.f32 %v7533, %v7613
    %v7630 = vsub.f32 %v7534, %v7614
    %v7631 = vsub.f32 %v7535, %v7615
    %v7632 = vsub.f32 %v7536, %v7616
    %v7633 = vsub.f32 %v7537, %v7617
    %v7634 = vsub.f32 %v7538, %v7618
    %v7635 = vsub.f32 %v7539, %v7619
    %v7636 = vsub.f32 %v7540, %v7620
    %v7637 = vsub.f32 %v7541, %v7621
    %v7638 = vsub.f32 %v7542, %v7622
    %v7639 = vsub.f32 %v7543, %v7623
    %v7640 = vsub.f32 %v7544, %v7624
    %v7641 = vsub.f32 %v7545, %v7625
    %v7642 = vmul.f32 %v7466, 2.0
    %v7643 = vmul.f32 %v7467, 2.0
    %v7644 = vmul.f32 %v7468, 2.0
    %v7645 = vmul.f32 %v7469, 2.0
    %v7646 = vmul.f32 %v7470, 2.0
    %v7647 = vmul.f32 %v7471, 2.0
    %v7648 = vmul.f32 %v7472, 2.0
    %v7649 = vmul.f32 %v7473, 2.0
    %v7650 = vmul.f32 %v7474, 2.0
    %v7651 = vmul.f32 %v7475, 2.0
    %v7652 = vmul.f32 %v7476, 2.0
    %v7653 = vmul.f32 %v7477, 2.0
    %v7654 = vmul.f32 %v7478, 2.0
    %v7655 = vmul.f32 %v7479, 2.0
    %v7656 = vmul.f32 %v7480, 2.0
    %v7657 = vmul.f32 %v7481, 2.0
    %v7658 = vmul.f32 %v7642, %v7482
    %v7659 = vmul.f32 %v7643, %v7483
    %v7660 = vmul.f32 %v7644, %v7484
    %v7661 = vmul.f32 %v7645, %v7485
    %v7662 = vmul.f32 %v7646, %v7486
    %v7663 = vmul.f32 %v7647, %v7487
    %v7664 = vmul.f32 %v7648, %v7488
    %v7665 = vmul.f32 %v7649, %v7489
    %v7666 = vmul.f32 %v7650, %v7490
    %v7667 = vmul.f32 %v7651, %v7491
    %v7668 = vmul.f32 %v7652, %v7492
    %v7669 = vmul.f32 %v7653, %v7493
    %v7670 = vmul.f32 %v7654, %v7494
    %v7671 = vmul.f32 %v7655, %v7495
    %v7672 = vmul.f32 %v7656, %v7496
    %v7673 = vmul.f32 %v7657, %v7497
    %v7674 = vadd.f32 %v7658, 0.0001
    %v7675 = vadd.f32 %v7659, 0.0001
    %v7676 = vadd.f32 %v7660, 0.0001
    %v7677 = vadd.f32 %v7661, 0.0001
    %v7678 = vadd.f32 %v7662, 0.0001
    %v7679 = vadd.f32 %v7663, 0.0001
    %v7680 = vadd.f32 %v7664, 0.0001
    %v7681 = vadd.f32 %v7665, 0.0001
    %v7682 = vadd.f32 %v7666, 0.0001
    %v7683 = vadd.f32 %v7667, 0.0001
    %v7684 = vadd.f32 %v7668, 0.0001
    %v7685 = vadd.f32 %v7669, 0.0001
    %v7686 = vadd.f32 %v7670, 0.0001
    %v7687 = vadd.f32 %v7671, 0.0001
    %v7688 = vadd.f32 %v7672, 0.0001
    %v7689 = vadd.f32 %v7673, 0.0001
    %v7690 = vmul.f32 %v7626, 2.0
    %v7691 = vmul.f32 %v7627, 2.0
    %v7692 = vmul.f32 %v7628, 2.0
    %v7693 = vmul.f32 %v7629, 2.0
    %v7694 = vmul.f32 %v7630, 2.0
    %v7695 = vmul.f32 %v7631, 2.0
    %v7696 = vmul.f32 %v7632, 2.0
    %v7697 = vmul.f32 %v7633, 2.0
    %v7698 = vmul.f32 %v7634, 2.0
    %v7699 = vmul.f32 %v7635, 2.0
    %v7700 = vmul.f32 %v7636, 2.0
    %v7701 = vmul.f32 %v7637, 2.0
    %v7702 = vmul.f32 %v7638, 2.0
    %v7703 = vmul.f32 %v7639, 2.0
    %v7704 = vmul.f32 %v7640, 2.0
    %v7705 = vmul.f32 %v7641, 2.0
    %v7706 = vadd.f32 %v7690, 0.0009
    %v7707 = vadd.f32 %v7691, 0.0009
    %v7708 = vadd.f32 %v7692, 0.0009
    %v7709 = vadd.f32 %v7693, 0.0009
    %v7710 = vadd.f32 %v7694, 0.0009
    %v7711 = vadd.f32 %v7695, 0.0009
    %v7712 = vadd.f32 %v7696, 0.0009
    %v7713 = vadd.f32 %v7697, 0.0009
    %v7714 = vadd.f32 %v7698, 0.0009
    %v7715 = vadd.f32 %v7699, 0.0009
    %v7716 = vadd.f32 %v7700, 0.0009
    %v7717 = vadd.f32 %v7701, 0.0009
    %v7718 = vadd.f32 %v7702, 0.0009
    %v7719 = vadd.f32 %v7703, 0.0009
    %v7720 = vadd.f32 %v7704, 0.0009
    %v7721 = vadd.f32 %v7705, 0.0009
    %v7722 = vmul.f32 %v7674, %v7706
    %v7723 = vmul.f32 %v7675, %v7707
    %v7724 = vmul.f32 %v7676, %v7708
    %v7725 = vmul.f32 %v7677, %v7709
    %v7726 = vmul.f32 %v7678, %v7710
    %v7727 = vmul.f32 %v7679, %v7711
    %v7728 = vmul.f32 %v7680, %v7712
    %v7729 = vmul.f32 %v7681, %v7713
    %v7730 = vmul.f32 %v7682, %v7714
    %v7731 = vmul.f32 %v7683, %v7715
    %v7732 = vmul.f32 %v7684, %v7716
    %v7733 = vmul.f32 %v7685, %v7717
    %v7734 = vmul.f32 %v7686, %v7718
    %v7735 = vmul.f32 %v7687, %v7719
    %v7736 = vmul.f32 %v7688, %v7720
    %v7737 = vmul.f32 %v7689, %v7721
    %v7738 = vadd.f32 %v7546, %v7578
    %v7739 = vadd.f32 %v7547, %v7579
    %v7740 = vadd.f32 %v7548, %v7580
    %v7741 = vadd.f32 %v7549, %v7581
    %v7742 = vadd.f32 %v7550, %v7582
    %v7743 = vadd.f32 %v7551, %v7583
    %v7744 = vadd.f32 %v7552, %v7584
    %v7745 = vadd.f32 %v7553, %v7585
    %v7746 = vadd.f32 %v7554, %v7586
    %v7747 = vadd.f32 %v7555, %v7587
    %v7748 = vadd.f32 %v7556, %v7588
    %v7749 = vadd.f32 %v7557, %v7589
    %v7750 = vadd.f32 %v7558, %v7590
    %v7751 = vadd.f32 %v7559, %v7591
    %v7752 = vadd.f32 %v7560, %v7592
    %v7753 = vadd.f32 %v7561, %v7593
    %v7754 = vadd.f32 %v7738, 0.0001
    %v7755 = vadd.f32 %v7739, 0.0001
    %v7756 = vadd.f32 %v7740, 0.0001
    %v7757 = vadd.f32 %v7741, 0.0001
    %v7758 = vadd.f32 %v7742, 0.0001
    %v7759 = vadd.f32 %v7743, 0.0001
    %v7760 = vadd.f32 %v7744, 0.0001
    %v7761 = vadd.f32 %v7745, 0.0001
    %v7762 = vadd.f32 %v7746, 0.0001
    %v7763 = vadd.f32 %v7747, 0.0001
    %v7764 = vadd.f32 %v7748, 0.0001
    %v7765 = vadd.f32 %v7749, 0.0001
    %v7766 = vadd.f32 %v7750, 0.0001
    %v7767 = vadd.f32 %v7751, 0.0001
    %v7768 = vadd.f32 %v7752, 0.0001
    %v7769 = vadd.f32 %v7753, 0.0001
    %v7770 = vadd.f32 %v7562, %v7594
    %v7771 = vadd.f32 %v7563, %v7595
    %v7772 = vadd.f32 %v7564, %v7596
    %v7773 = vadd.f32 %v7565, %v7597
    %v7774 = vadd.f32 %v7566, %v7598
    %v7775 = vadd.f32 %v7567, %v7599
    %v7776 = vadd.f32 %v7568, %v7600
    %v7777 = vadd.f32 %v7569, %v7601
    %v7778 = vadd.f32 %v7570, %v7602
    %v7779 = vadd.f32 %v7571, %v7603
    %v7780 = vadd.f32 %v7572, %v7604
    %v7781 = vadd.f32 %v7573, %v7605
    %v7782 = vadd.f32 %v7574, %v7606
    %v7783 = vadd.f32 %v7575, %v7607
    %v7784 = vadd.f32 %v7576, %v7608
    %v7785 = vadd.f32 %v7577, %v7609
    %v7786 = vadd.f32 %v7770, 0.0009
    %v7787 = vadd.f32 %v7771, 0.0009
    %v7788 = vadd.f32 %v7772, 0.0009
    %v7789 = vadd.f32 %v7773, 0.0009
    %v7790 = vadd.f32 %v7774, 0.0009
    %v7791 = vadd.f32 %v7775, 0.0009
    %v7792 = vadd.f32 %v7776, 0.0009
    %v7793 = vadd.f32 %v7777, 0.0009
    %v7794 = vadd.f32 %v7778, 0.0009
    %v7795 = vadd.f32 %v7779, 0.0009
    %v7796 = vadd.f32 %v7780, 0.0009
    %v7797 = vadd.f32 %v7781, 0.0009
    %v7798 = vadd.f32 %v7782, 0.0009
    %v7799 = vadd.f32 %v7783, 0.0009
    %v7800 = vadd.f32 %v7784, 0.0009
    %v7801 = vadd.f32 %v7785, 0.0009
    %v7802 = vmul.f32 %v7754, %v7786
    %v7803 = vmul.f32 %v7755, %v7787
    %v7804 = vmul.f32 %v7756, %v7788
    %v7805 = vmul.f32 %v7757, %v7789
    %v7806 = vmul.f32 %v7758, %v7790
    %v7807 = vmul.f32 %v7759, %v7791
    %v7808 = vmul.f32 %v7760, %v7792
    %v7809 = vmul.f32 %v7761, %v7793
    %v7810 = vmul.f32 %v7762, %v7794
    %v7811 = vmul.f32 %v7763, %v7795
    %v7812 = vmul.f32 %v7764, %v7796
    %v7813 = vmul.f32 %v7765, %v7797
    %v7814 = vmul.f32 %v7766, %v7798
    %v7815 = vmul.f32 %v7767, %v7799
    %v7816 = vmul.f32 %v7768, %v7800
    %v7817 = vmul.f32 %v7769, %v7801
    %v7818 = vrcp.pop %v7802
    %v7819 = vrcp.pop %v7803
    %v7820 = vrcp.pop %v7804
    %v7821 = vrcp.pop %v7805
    %v7822 = vrcp.pop %v7806
    %v7823 = vrcp.pop %v7807
    %v7824 = vrcp.pop %v7808
    %v7825 = vrcp.pop %v7809
    %v7826 = vrcp.pop %v7810
    %v7827 = vrcp.pop %v7811
    %v7828 = vrcp.pop %v7812
    %v7829 = vrcp.pop %v7813
    %v7830 = vrcp.pop %v7814
    %v7831 = vrcp.pop %v7815
    %v7832 = vrcp.pop %v7816
    %v7833 = vrcp.pop %v7817
    %v7834 = vmul.f32 %v7802, %v7818
    %v7835 = vmul.f32 %v7803, %v7819
    %v7836 = vmul.f32 %v7804, %v7820
    %v7837 = vmul.f32 %v7805, %v7821
    %v7838 = vmul.f32 %v7806, %v7822
    %v7839 = vmul.f32 %v7807, %v7823
    %v7840 = vmul.f32 %v7808, %v7824
    %v7841 = vmul.f32 %v7809, %v7825
    %v7842 = vmul.f32 %v7810, %v7826
    %v7843 = vmul.f32 %v7811, %v7827
    %v7844 = vmul.f32 %v7812, %v7828
    %v7845 = vmul.f32 %v7813, %v7829
    %v7846 = vmul.f32 %v7814, %v7830
    %v7847 = vmul.f32 %v7815, %v7831
    %v7848 = vmul.f32 %v7816, %v7832
    %v7849 = vmul.f32 %v7817, %v7833
    %v7850 = vsub.f32 2.0, %v7834
    %v7851 = vsub.f32 2.0, %v7835
    %v7852 = vsub.f32 2.0, %v7836
    %v7853 = vsub.f32 2.0, %v7837
    %v7854 = vsub.f32 2.0, %v7838
    %v7855 = vsub.f32 2.0, %v7839
    %v7856 = vsub.f32 2.0, %v7840
    %v7857 = vsub.f32 2.0, %v7841
    %v7858 = vsub.f32 2.0, %v7842
    %v7859 = vsub.f32 2.0, %v7843
    %v7860 = vsub.f32 2.0, %v7844
    %v7861 = vsub.f32 2.0, %v7845
    %v7862 = vsub.f32 2.0, %v7846
    %v7863 = vsub.f32 2.0, %v7847
    %v7864 = vsub.f32 2.0, %v7848
    %v7865 = vsub.f32 2.0, %v7849
    %v7866 = vmul.f32 %v7818, %v7850
    %v7867 = vmul.f32 %v7819, %v7851
    %v7868 = vmul.f32 %v7820, %v7852
    %v7869 = vmul.f32 %v7821, %v7853
    %v7870 = vmul.f32 %v7822, %v7854
    %v7871 = vmul.f32 %v7823, %v7855
    %v7872 = vmul.f32 %v7824, %v7856
    %v7873 = vmul.f32 %v7825, %v7857
    %v7874 = vmul.f32 %v7826, %v7858
    %v7875 = vmul.f32 %v7827, %v7859
    %v7876 = vmul.f32 %v7828, %v7860
    %v7877 = vmul.f32 %v7829, %v7861
    %v7878 = vmul.f32 %v7830, %v7862
    %v7879 = vmul.f32 %v7831, %v7863
    %v7880 = vmul.f32 %v7832, %v7864
    %v7881 = vmul.f32 %v7833, %v7865
    %v7882 = vmul.f32 %v7722, %v7866
    %v7883 = vmul.f32 %v7723, %v7867
    %v7884 = vmul.f32 %v7724, %v7868
    %v7885 = vmul.f32 %v7725, %v7869
    %v7886 = vmul.f32 %v7726, %v7870
    %v7887 = vmul.f32 %v7727, %v7871
    %v7888 = vmul.f32 %v7728, %v7872
    %v7889 = vmul.f32 %v7729, %v7873
    %v7890 = vmul.f32 %v7730, %v7874
    %v7891 = vmul.f32 %v7731, %v7875
    %v7892 = vmul.f32 %v7732, %v7876
    %v7893 = vmul.f32 %v7733, %v7877
    %v7894 = vmul.f32 %v7734, %v7878
    %v7895 = vmul.f32 %v7735, %v7879
    %v7896 = vmul.f32 %v7736, %v7880
    %v7897 = vmul.f32 %v7737, %v7881
    %v7898 = vsub.f32 1.0, %v7882
    %v7899 = vsub.f32 1.0, %v7883
    %v7900 = vsub.f32 1.0, %v7884
    %v7901 = vsub.f32 1.0, %v7885
    %v7902 = vsub.f32 1.0, %v7886
    %v7903 = vsub.f32 1.0, %v7887
    %v7904 = vsub.f32 1.0, %v7888
    %v7905 = vsub.f32 1.0, %v7889
    %v7906 = vsub.f32 1.0, %v7890
    %v7907 = vsub.f32 1.0, %v7891
    %v7908 = vsub.f32 1.0, %v7892
    %v7909 = vsub.f32 1.0, %v7893
    %v7910 = vsub.f32 1.0, %v7894
    %v7911 = vsub.f32 1.0, %v7895
    %v7912 = vsub.f32 1.0, %v7896
    %v7913 = vsub.f32 1.0, %v7897
    %v7914 = vmul.f32 %v7898, 0.5
    %v7915 = vmul.f32 %v7899, 0.5
    %v7916 = vmul.f32 %v7900, 0.5
    %v7917 = vmul.f32 %v7901, 0.5
    %v7918 = vmul.f32 %v7902, 0.5
    %v7919 = vmul.f32 %v7903, 0.5
    %v7920 = vmul.f32 %v7904, 0.5
    %v7921 = vmul.f32 %v7905, 0.5
    %v7922 = vmul.f32 %v7906, 0.5
    %v7923 = vmul.f32 %v7907, 0.5
    %v7924 = vmul.f32 %v7908, 0.5
    %v7925 = vmul.f32 %v7909, 0.5
    %v7926 = vmul.f32 %v7910, 0.5
    %v7927 = vmul.f32 %v7911, 0.5
    %v7928 = vmul.f32 %v7912, 0.5
    %v7929 = vmul.f32 %v7913, 0.5
    %v7930 = vmax.f32 %v7914, 0.0
    %v7931 = vmax.f32 %v7915, 0.0
    %v7932 = vmax.f32 %v7916, 0.0
    %v7933 = vmax.f32 %v7917, 0.0
    %v7934 = vmax.f32 %v7918, 0.0
    %v7935 = vmax.f32 %v7919, 0.0
    %v7936 = vmax.f32 %v7920, 0.0
    %v7937 = vmax.f32 %v7921, 0.0
    %v7938 = vmax.f32 %v7922, 0.0
    %v7939 = vmax.f32 %v7923, 0.0
    %v7940 = vmax.f32 %v7924, 0.0
    %v7941 = vmax.f32 %v7925, 0.0
    %v7942 = vmax.f32 %v7926, 0.0
    %v7943 = vmax.f32 %v7927, 0.0
    %v7944 = vmax.f32 %v7928, 0.0
    %v7945 = vmax.f32 %v7929, 0.0
    %v7946 = vmin.f32 %v7930, 1.0
    %v7947 = vmin.f32 %v7931, 1.0
    %v7948 = vmin.f32 %v7932, 1.0
    %v7949 = vmin.f32 %v7933, 1.0
    %v7950 = vmin.f32 %v7934, 1.0
    %v7951 = vmin.f32 %v7935, 1.0
    %v7952 = vmin.f32 %v7936, 1.0
    %v7953 = vmin.f32 %v7937, 1.0
    %v7954 = vmin.f32 %v7938, 1.0
    %v7955 = vmin.f32 %v7939, 1.0
    %v7956 = vmin.f32 %v7940, 1.0
    %v7957 = vmin.f32 %v7941, 1.0
    %v7958 = vmin.f32 %v7942, 1.0
    %v7959 = vmin.f32 %v7943, 1.0
    %v7960 = vmin.f32 %v7944, 1.0
    %v7961 = vmin.f32 %v7945, 1.0
    %vm7962 = vcmask 130048
    %7963 = vst.msk [vmem:[#allocation8] sm:$0xff] %vm7962, %v7946
    %7964 = vst.msk [vmem:[#allocation8 + $0x8] sm:$0xff] %vm7962, %v7947
    %7965 = vst.msk [vmem:[#allocation8 + $0x10] sm:$0xff] %vm7962, %v7948
    %7966 = vst.msk [vmem:[#allocation8 + $0x18] sm:$0xff] %vm7962, %v7949
    %7967 = vst.msk [vmem:[#allocation8 + $0x20] sm:$0xff] %vm7962, %v7950
    %7968 = vst.msk [vmem:[#allocation8 + $0x28] sm:$0xff] %vm7962, %v7951
    %7969 = vst.msk [vmem:[#allocation8 + $0x30] sm:$0xff] %vm7962, %v7952
    %7970 = vst.msk [vmem:[#allocation8 + $0x38] sm:$0xff] %vm7962, %v7953
    %7971 = vst.msk [vmem:[#allocation8 + $0x40] sm:$0xff] %vm7962, %v7954
    %7972 = vst.msk [vmem:[#allocation8 + $0x48] sm:$0xff] %vm7962, %v7955
    %7973 = vst.msk [vmem:[#allocation8 + $0x50] sm:$0xff] %vm7962, %v7956
    %7974 = vst.msk [vmem:[#allocation8 + $0x58] sm:$0xff] %vm7962, %v7957
    %7975 = vst.msk [vmem:[#allocation8 + $0x60] sm:$0xff] %vm7962, %v7958
    %7976 = vst.msk [vmem:[#allocation8 + $0x68] sm:$0xff] %vm7962, %v7959
    %7977 = vst.msk [vmem:[#allocation8 + $0x70] sm:$0xff] %vm7962, %v7960
    %7978 = vst.msk [vmem:[#allocation8 + $0x78] sm:$0xff] %vm7962, %v7961
    // Predicated region
    $region18: #{tpu_custom_call.1} parent=1 // pred_check
      _
    $region19: #{tpu_custom_call.1} parent=1 // pred_check_branch
      %7980 = sbr.rel (0) target = $region21
    $region20: #{tpu_custom_call.1} parent=1 // pred_region
      %7982 = vsyncadd [#allocation5], 0
      %s7983 = sshll.u32 [#allocation8], 4
      %s7984 = int_to_ptr.vmem [resolvable:$true] %s7983
      %s7985 = sshll.u32 %s2, 4
      %s7986 = int_to_ptr.hbm [resolvable:$true] %s7985
      %7991 = dma.vmem_to_hbm [thread:$0]  %s7984, 2048, %s7986, [#allocation5], 128, 128, 8
    $region21: #{tpu_custom_call.1} parent=1 // pred_fallthru
      _
    // Predicated region
    $region22: #{tpu_custom_call.1} parent=1 // pred_check
      _
    $region23: #{tpu_custom_call.1} parent=1 // pred_check_branch
      %7993 = sbr.rel (0) target = $region25
    $region24: #{tpu_custom_call.1} parent=1 // pred_region
      %7995 = dma.done [#allocation5], 2048
    $region25: #{tpu_custom_call.1} parent=1 // pred_fallthru
      _
    %7996 = vsyncpa [#allocation4], 1
    %7997 = vsyncpa [#allocation7], 1
    %7998 = vsyncpa [#allocation5], 1

</llo_original>
